<compile_context>
chip_gen: v5e
topology: v5e:2x2
jax: 0.10.0
libtpu: 0.0.40
codegen_flags: <defaults>
</compile_context>

<pallas_src>
import functools

import numpy as np
import jax
import jax.numpy as jnp
from jax.experimental import pallas as pl
from jax.experimental.pallas import tpu as pltpu

_BN_EPS = 1e-5


# ------------------------------ kernel helpers ------------------------------ #
def _bn_relu_batched(ys, gamma, beta):
    """Training-mode BatchNorm (stats over every row of every slab) + ReLU."""
    count = sum(y.shape[0] for y in ys)
    inv = 1.0 / float(count)
    s1 = jnp.sum(ys[0], axis=0, keepdims=True)
    s2 = jnp.sum(ys[0] * ys[0], axis=0, keepdims=True)
    for y in ys[1:]:
        s1 = s1 + jnp.sum(y, axis=0, keepdims=True)
        s2 = s2 + jnp.sum(y * y, axis=0, keepdims=True)
    mean = s1 * inv
    var = s2 * inv - mean * mean                      # biased batch variance
    scale = gamma * jax.lax.rsqrt(var + _BN_EPS)
    shift = beta - mean * scale
    return [jnp.maximum(y * scale + shift, 0.0) for y in ys]


def _conv_layer(xs, g_ref, w_ref):
    """Conv as sum_t (G_t @ x_b) @ W_t; G_t/W_t loaded once per tap, reused
    across the (statically unrolled) batch."""
    n_taps, m_out, _ = g_ref.shape
    cout = w_ref.shape[2]
    accs = [jnp.zeros((m_out, cout), jnp.float32) for _ in xs]
    for t in range(n_taps):                           # static unroll (<= 9)
        g_t = g_ref[t]
        w_t = w_ref[t]
        for b, x_b in enumerate(xs):
            gathered = jnp.dot(g_t, x_b, preferred_element_type=jnp.float32)
            accs[b] = accs[b] + jnp.dot(gathered, w_t,
                                        preferred_element_type=jnp.float32)
    return accs


def _mi_disc_kernel(xc1_ref, w1_ref, ga1_ref, be1_ref,
                    g2_ref, w2_ref, ga2_ref, be2_ref,
                    g3_ref, w3_ref, ga3_ref, be3_ref,
                    g4_ref, w4_ref, ga4_ref, be4_ref,
                    g5_ref, w5_ref, out_ref, *, n, m1):
    # Layer 1: wrapper-side im2col'd input (N*M1, 27) @ (27, nc), fused BN+ReLU.
    y1 = jnp.dot(xc1_ref[...], w1_ref[...], preferred_element_type=jnp.float32)
    y1 = _bn_relu_batched([y1], ga1_ref[...], be1_ref[...])[0]
    # Split into per-batch slabs (static slices; lane dim untouched).
    xs = [y1[b * m1:(b + 1) * m1, :] for b in range(n)]
    # Layers 2-4: VMEM-resident gather-matmul conv, fused BN + ReLU.
    for g_ref, w_ref, ga_ref, be_ref in (
            (g2_ref, w2_ref, ga2_ref, be2_ref),
            (g3_ref, w3_ref, ga3_ref, be3_ref),
            (g4_ref, w4_ref, ga4_ref, be4_ref)):
        xs = _bn_relu_batched(_conv_layer(xs, g_ref, w_ref),
                              ga_ref[...], be_ref[...])
    # Final 2x2 conv (stride 1, no pad) + sigmoid (EUP exp + approx reciprocal).
    ys = _conv_layer(xs, g5_ref, w5_ref)
    y = jnp.concatenate(ys, axis=0)
    out_ref[...] = pl.reciprocal(1.0 + jnp.exp(-y), approx=True)


def _full_spec(shape):
    nd = len(shape)
    return pl.BlockSpec(tuple(shape), lambda i: (0,) * nd)


# ------------------------- one-time param preparation ----------------------- #
def _conv_out(sz, k, s, p):
    return (sz + 2 * p - k) // s + 1


def _weight_to_mat(w_oihw):
    """PyTorch (Cout,Cin,kh,kw) -> (kh*kw*Cin, Cout), matching _im2col order."""
    cout, cin, kh, kw = w_oihw.shape
    return jnp.transpose(w_oihw, (2, 3, 1, 0)).reshape(kh * kw * cin, cout)


def _weight_taps(w_oihw):
    """PyTorch (Cout,Cin,kh,kw) -> (kh*kw, Cin, Cout), tap order t=i*kw+j."""
    cout, cin, kh, kw = w_oihw.shape
    taps = [w_oihw[:, :, i, j].T for i in range(kh) for j in range(kw)]
    return jnp.stack(taps, axis=0)


def _selection_mats(h_in, w_in, kh, kw, stride, pad):
    """Batch-independent 0/1 row-gather matrices (one per tap), built in numpy."""
    ho = _conv_out(h_in, kh, stride, pad)
    wo = _conv_out(w_in, kw, stride, pad)
    g = np.zeros((kh * kw, ho * wo, h_in * w_in), np.float32)
    for i in range(kh):
        for j in range(kw):
            t = i * kw + j
            for a in range(ho):
                hh = stride * a + i - pad
                if hh < 0 or hh >= h_in:
                    continue
                for c in range(wo):
                    ww = stride * c + j - pad
                    if ww < 0 or ww >= w_in:
                        continue
                    g[t, a * wo + c, hh * w_in + ww] = 1.0
    return g, ho, wo


def prepare_params(params, h, w):
    """Precompute weight matrices, gather matrices, gamma/beta layouts (once)."""
    w1, gamma1, beta1 = params["blocks"][0]
    prep = [_weight_to_mat(w1), gamma1.reshape(1, -1), beta1.reshape(1, -1)]
    cur_h, cur_w = _conv_out(h, 3, 2, 1), _conv_out(w, 3, 2, 1)
    for idx in range(1, 4):
        wk, gk, bk = params["blocks"][idx]
        g, cur_h, cur_w = _selection_mats(cur_h, cur_w, 3, 3, 2, 1)
        prep += [jnp.asarray(g), _weight_taps(wk),
                 gk.reshape(1, -1), bk.reshape(1, -1)]
    g, _, _ = _selection_mats(cur_h, cur_w, 2, 2, 1, 0)
    prep += [jnp.asarray(g), _weight_taps(params["final_w"])]
    return tuple(prep)


# -------------------------------- JAX glue ---------------------------------- #
def _im2col(x_nhwc, kh, kw, stride, pad):
    """x: (N,H,W,C) -> (N*Ho*Wo, kh*kw*C). Column order: (i, j, c)."""
    n, h, w, c = x_nhwc.shape
    xp = jnp.pad(x_nhwc, ((0, 0), (pad, pad), (pad, pad), (0, 0)))
    ho = _conv_out(h, kh, stride, pad)
    wo = _conv_out(w, kw, stride, pad)
    cols = []
    for i in range(kh):
        for j in range(kw):
            cols.append(xp[:, i:i + (ho - 1) * stride + 1:stride,
                           j:j + (wo - 1) * stride + 1:stride, :])
    patches = jnp.stack(cols, axis=3)                 # (N, Ho, Wo, kh*kw, C)
    return patches.reshape(n * ho * wo, kh * kw * c)


@jax.jit
def mi_discriminator_forward(x_nchw, prep):
    """Input/output in PyTorch NCHW convention. `prep` from prepare_params()."""
    n, _, h, w = x_nchw.shape
    x = jnp.transpose(x_nchw, (0, 2, 3, 1)).astype(jnp.float32)   # NHWC
    xcols = _im2col(x, 3, 3, stride=2, pad=1)                     # layer-1 only

    h1, w1 = _conv_out(h, 3, 2, 1), _conv_out(w, 3, 2, 1)
    sh, sw = h1, w1
    for _ in range(3):
        sh, sw = _conv_out(sh, 3, 2, 1), _conv_out(sw, 3, 2, 1)
    sh, sw = _conv_out(sh, 2, 1, 0), _conv_out(sw, 2, 1, 0)
    m_out = n * sh * sw

    kernel = functools.partial(_mi_disc_kernel, n=n, m1=h1 * w1)
    args = (xcols,) + tuple(prep)
    out = pl.pallas_call(
        kernel,
        grid=(1,),
        in_specs=[_full_spec(a.shape) for a in args],
        out_specs=_full_spec((m_out, 1)),
        out_shape=jax.ShapeDtypeStruct((m_out, 1), jnp.float32),
        compiler_params=pltpu.CompilerParams(
            dimension_semantics=("arbitrary",),
            vmem_limit_bytes=32 * 1024 * 1024),
    )(*args)
    return jnp.transpose(out.reshape(n, sh, sw, 1), (0, 3, 1, 2))  # NCHW


# ---------------------------- pure-JAX reference ----------------------------- #
def _reference_forward(x_nchw, params):
    y = x_nchw.astype(jnp.float32)
    for (w, gamma, beta) in params["blocks"]:
        y = jax.lax.conv_general_dilated(
            y, w, window_strides=(2, 2), padding=((1, 1), (1, 1)),
            dimension_numbers=("NCHW", "OIHW", "NCHW"))
        mean = jnp.mean(y, axis=(0, 2, 3), keepdims=True)
        var = jnp.mean(jnp.square(y - mean), axis=(0, 2, 3), keepdims=True)
        y = (y - mean) * jax.lax.rsqrt(var + _BN_EPS)
        y = y * gamma.reshape(1, -1, 1, 1) + beta.reshape(1, -1, 1, 1)
        y = jnp.maximum(y, 0.0)
    y = jax.lax.conv_general_dilated(
        y, params["final_w"], window_strides=(1, 1), padding="VALID",
        dimension_numbers=("NCHW", "OIHW", "NCHW"))
    return jax.nn.sigmoid(y)


# -------------------------------- param init --------------------------------- #
def init_params(key, nc_base):
    chans = [(3, nc_base), (nc_base, 2 * nc_base),
             (2 * nc_base, 4 * nc_base), (4 * nc_base, 8 * nc_base)]
    blocks = []
    for idx, (cin, cout) in enumerate(chans):
        kw_key, g_key, b_key = jax.random.split(jax.random.fold_in(key, idx), 3)
        w = 0.1 * jax.random.normal(kw_key, (cout, cin, 3, 3), jnp.float32)
        gamma = 1.0 + 0.1 * jax.random.normal(g_key, (cout,), jnp.float32)
        beta = 0.1 * jax.random.normal(b_key, (cout,), jnp.float32)
        blocks.append((w, gamma, beta))
    wf = 0.1 * jax.random.normal(
        jax.random.fold_in(key, 100), (1, 8 * nc_base, 2, 2), jnp.float32)
    return {"blocks": blocks, "final_w": wf}


# ----------------------------------- main ------------------------------------ #
if __name__ == "__main__":
    key = jax.random.PRNGKey(0)
    nc_base = 4
    batch, hh, ww = 2, 32, 32  # 4 stride-2 convs -> 2x2, final 2x2 conv -> 1x1
    x = jax.random.normal(jax.random.fold_in(key, 7), (batch, 3, hh, ww),
                          jnp.float32)
    params = init_params(jax.random.fold_in(key, 13), nc_base)
    prep = prepare_params(params, hh, ww)

    out = jax.block_until_ready(mi_discriminator_forward(x, prep))
    assert out.shape == (batch, 1, 1, 1), out.shape

    ref = jax.block_until_ready(_reference_forward(x, params))
    np.testing.assert_allclose(np.asarray(out), np.asarray(ref),
                               rtol=2e-2, atol=2e-2)
    print("KERNEL_OK")
</pallas_src>

<mosaic_0001>
module attributes {stable_mosaic.version = 11 : i64} {
  func.func @_mi_disc_kernel(%arg0: i32, %arg1: memref<512x27xf32, #tpu.memory_space<vmem>>, %arg2: memref<27x4xf32, #tpu.memory_space<vmem>>, %arg3: memref<1x4xf32, #tpu.memory_space<vmem>>, %arg4: memref<1x4xf32, #tpu.memory_space<vmem>>, %arg5: memref<9x64x256xf32, #tpu.memory_space<vmem>>, %arg6: memref<9x4x8xf32, #tpu.memory_space<vmem>>, %arg7: memref<1x8xf32, #tpu.memory_space<vmem>>, %arg8: memref<1x8xf32, #tpu.memory_space<vmem>>, %arg9: memref<9x16x64xf32, #tpu.memory_space<vmem>>, %arg10: memref<9x8x16xf32, #tpu.memory_space<vmem>>, %arg11: memref<1x16xf32, #tpu.memory_space<vmem>>, %arg12: memref<1x16xf32, #tpu.memory_space<vmem>>, %arg13: memref<9x4x16xf32, #tpu.memory_space<vmem>>, %arg14: memref<9x16x32xf32, #tpu.memory_space<vmem>>, %arg15: memref<1x32xf32, #tpu.memory_space<vmem>>, %arg16: memref<1x32xf32, #tpu.memory_space<vmem>>, %arg17: memref<4x1x4xf32, #tpu.memory_space<vmem>>, %arg18: memref<4x32x1xf32, #tpu.memory_space<vmem>>, %arg19: memref<2x1xf32, #tpu.memory_space<vmem>>) attributes {dimension_semantics = [#tpu.dimension_semantics<arbitrary>], iteration_bounds = array<i64: 1>, scalar_prefetch = 0 : i64, scratch_operands = 0 : i64, tpu.core_type = #tpu.core_type<tc>, window_params = [{pipeline_mode = #tpu.pipeline_mode<synchronous>, transform_indices = @transform_0, window_bounds = array<i64: 512, 27>}, {pipeline_mode = #tpu.pipeline_mode<synchronous>, transform_indices = @transform_1, window_bounds = array<i64: 27, 4>}, {pipeline_mode = #tpu.pipeline_mode<synchronous>, transform_indices = @transform_2, window_bounds = array<i64: 1, 4>}, {pipeline_mode = #tpu.pipeline_mode<synchronous>, transform_indices = @transform_3, window_bounds = array<i64: 1, 4>}, {pipeline_mode = #tpu.pipeline_mode<synchronous>, transform_indices = @transform_4, window_bounds = array<i64: 9, 64, 256>}, {pipeline_mode = #tpu.pipeline_mode<synchronous>, transform_indices = @transform_5, window_bounds = array<i64: 9, 4, 8>}, {pipeline_mode = #tpu.pipeline_mode<synchronous>, transform_indices = @transform_6, window_bounds = array<i64: 1, 8>}, {pipeline_mode = #tpu.pipeline_mode<synchronous>, transform_indices = @transform_7, window_bounds = array<i64: 1, 8>}, {pipeline_mode = #tpu.pipeline_mode<synchronous>, transform_indices = @transform_8, window_bounds = array<i64: 9, 16, 64>}, {pipeline_mode = #tpu.pipeline_mode<synchronous>, transform_indices = @transform_9, window_bounds = array<i64: 9, 8, 16>}, {pipeline_mode = #tpu.pipeline_mode<synchronous>, transform_indices = @transform_10, window_bounds = array<i64: 1, 16>}, {pipeline_mode = #tpu.pipeline_mode<synchronous>, transform_indices = @transform_11, window_bounds = array<i64: 1, 16>}, {pipeline_mode = #tpu.pipeline_mode<synchronous>, transform_indices = @transform_12, window_bounds = array<i64: 9, 4, 16>}, {pipeline_mode = #tpu.pipeline_mode<synchronous>, transform_indices = @transform_13, window_bounds = array<i64: 9, 16, 32>}, {pipeline_mode = #tpu.pipeline_mode<synchronous>, transform_indices = @transform_14, window_bounds = array<i64: 1, 32>}, {pipeline_mode = #tpu.pipeline_mode<synchronous>, transform_indices = @transform_15, window_bounds = array<i64: 1, 32>}, {pipeline_mode = #tpu.pipeline_mode<synchronous>, transform_indices = @transform_16, window_bounds = array<i64: 4, 1, 4>}, {pipeline_mode = #tpu.pipeline_mode<synchronous>, transform_indices = @transform_17, window_bounds = array<i64: 4, 32, 1>}, {pipeline_mode = #tpu.pipeline_mode<synchronous>, transform_indices = @transform_18, window_bounds = array<i64: 2, 1>}]} {
    %c0 = arith.constant 0 : index
    %c0_0 = arith.constant 0 : index
    %0 = vector.load %arg1[%c0, %c0_0] : memref<512x27xf32, #tpu.memory_space<vmem>>, vector<512x27xf32>
    %c0_1 = arith.constant 0 : index
    %c0_2 = arith.constant 0 : index
    %1 = vector.load %arg2[%c0_1, %c0_2] : memref<27x4xf32, #tpu.memory_space<vmem>>, vector<27x4xf32>
    %cst = arith.constant dense<0.000000e+00> : vector<512x4xf32>
    %2 = tpu.matmul %0, %1, %cst {dimension_numbers = #tpu.dot_dimension_numbers<[1], [0], [0], [1], [0, 0, 1, 1], [], []>} : vector<512x27xf32>, vector<27x4xf32>, vector<512x4xf32> -> vector<512x4xf32>
    %c0_3 = arith.constant 0 : index
    %c0_4 = arith.constant 0 : index
    %3 = vector.load %arg3[%c0_3, %c0_4] : memref<1x4xf32, #tpu.memory_space<vmem>>, vector<1x4xf32>
    %c0_5 = arith.constant 0 : index
    %c0_6 = arith.constant 0 : index
    %4 = vector.load %arg4[%c0_5, %c0_6] : memref<1x4xf32, #tpu.memory_space<vmem>>, vector<1x4xf32>
    %cst_7 = arith.constant dense<0.000000e+00> : vector<4xf32>
    %5 = vector.multi_reduction <add>, %2, %cst_7 [0] : vector<512x4xf32> to vector<4xf32>
    %6 = vector.shape_cast %5 : vector<4xf32> to vector<1x4xf32>
    %7 = arith.mulf %2, %2 : vector<512x4xf32>
    %cst_8 = arith.constant dense<0.000000e+00> : vector<4xf32>
    %8 = vector.multi_reduction <add>, %7, %cst_8 [0] : vector<512x4xf32> to vector<4xf32>
    %9 = vector.shape_cast %8 : vector<4xf32> to vector<1x4xf32>
    %cst_9 = arith.constant 0.001953125 : f32
    %10 = vector.broadcast %cst_9 : f32 to vector<1x4xf32>
    %11 = arith.mulf %6, %10 : vector<1x4xf32>
    %cst_10 = arith.constant 0.001953125 : f32
    %12 = vector.broadcast %cst_10 : f32 to vector<1x4xf32>
    %13 = arith.mulf %9, %12 : vector<1x4xf32>
    %14 = arith.mulf %11, %11 : vector<1x4xf32>
    %15 = arith.subf %13, %14 : vector<1x4xf32>
    %cst_11 = arith.constant 9.99999974E-6 : f32
    %16 = vector.broadcast %cst_11 : f32 to vector<1x4xf32>
    %17 = arith.addf %15, %16 : vector<1x4xf32>
    %18 = math.rsqrt %17 : vector<1x4xf32>
    %19 = arith.mulf %3, %18 : vector<1x4xf32>
    %20 = arith.mulf %11, %19 : vector<1x4xf32>
    %21 = arith.subf %4, %20 : vector<1x4xf32>
    %22 = vector.broadcast %19 : vector<1x4xf32> to vector<512x4xf32>
    %23 = arith.mulf %2, %22 : vector<512x4xf32>
    %24 = vector.broadcast %21 : vector<1x4xf32> to vector<512x4xf32>
    %25 = arith.addf %23, %24 : vector<512x4xf32>
    %cst_12 = arith.constant 0.000000e+00 : f32
    %26 = vector.broadcast %cst_12 : f32 to vector<512x4xf32>
    %27 = arith.maximumf %25, %26 : vector<512x4xf32>
    %28 = vector.extract_strided_slice %27 {offsets = [0, 0], sizes = [256, 4], strides = [1, 1]} : vector<512x4xf32> to vector<256x4xf32>
    %29 = vector.extract_strided_slice %27 {offsets = [256, 0], sizes = [256, 4], strides = [1, 1]} : vector<512x4xf32> to vector<256x4xf32>
    %cst_13 = arith.constant 0.000000e+00 : f32
    %30 = vector.broadcast %cst_13 : f32 to vector<64x8xf32>
    %cst_14 = arith.constant 0.000000e+00 : f32
    %31 = vector.broadcast %cst_14 : f32 to vector<64x8xf32>
    %c0_15 = arith.constant 0 : index
    %c0_16 = arith.constant 0 : index
    %c0_17 = arith.constant 0 : index
    %32 = vector.load %arg5[%c0_15, %c0_16, %c0_17] : memref<9x64x256xf32, #tpu.memory_space<vmem>>, vector<1x64x256xf32>
    %33 = vector.shape_cast %32 : vector<1x64x256xf32> to vector<64x256xf32>
    %c0_18 = arith.constant 0 : index
    %c0_19 = arith.constant 0 : index
    %c0_20 = arith.constant 0 : index
    %34 = vector.load %arg6[%c0_18, %c0_19, %c0_20] : memref<9x4x8xf32, #tpu.memory_space<vmem>>, vector<1x4x8xf32>
    %35 = vector.shape_cast %34 : vector<1x4x8xf32> to vector<4x8xf32>
    %cst_21 = arith.constant dense<0.000000e+00> : vector<64x4xf32>
    %36 = tpu.matmul %33, %28, %cst_21 {dimension_numbers = #tpu.dot_dimension_numbers<[1], [0], [0], [1], [0, 0, 1, 1], [], []>} : vector<64x256xf32>, vector<256x4xf32>, vector<64x4xf32> -> vector<64x4xf32>
    %cst_22 = arith.constant dense<0.000000e+00> : vector<64x8xf32>
    %37 = tpu.matmul %36, %35, %cst_22 {dimension_numbers = #tpu.dot_dimension_numbers<[1], [0], [0], [1], [0, 0, 1, 1], [], []>} : vector<64x4xf32>, vector<4x8xf32>, vector<64x8xf32> -> vector<64x8xf32>
    %38 = arith.addf %30, %37 : vector<64x8xf32>
    %cst_23 = arith.constant dense<0.000000e+00> : vector<64x4xf32>
    %39 = tpu.matmul %33, %29, %cst_23 {dimension_numbers = #tpu.dot_dimension_numbers<[1], [0], [0], [1], [0, 0, 1, 1], [], []>} : vector<64x256xf32>, vector<256x4xf32>, vector<64x4xf32> -> vector<64x4xf32>
    %cst_24 = arith.constant dense<0.000000e+00> : vector<64x8xf32>
    %40 = tpu.matmul %39, %35, %cst_24 {dimension_numbers = #tpu.dot_dimension_numbers<[1], [0], [0], [1], [0, 0, 1, 1], [], []>} : vector<64x4xf32>, vector<4x8xf32>, vector<64x8xf32> -> vector<64x8xf32>
    %41 = arith.addf %31, %40 : vector<64x8xf32>
    %c1 = arith.constant 1 : index
    %c0_25 = arith.constant 0 : index
    %c0_26 = arith.constant 0 : index
    %42 = vector.load %arg5[%c1, %c0_25, %c0_26] : memref<9x64x256xf32, #tpu.memory_space<vmem>>, vector<1x64x256xf32>
    %43 = vector.shape_cast %42 : vector<1x64x256xf32> to vector<64x256xf32>
    %c1_27 = arith.constant 1 : index
    %c0_28 = arith.constant 0 : index
    %c0_29 = arith.constant 0 : index
    %44 = vector.load %arg6[%c1_27, %c0_28, %c0_29] : memref<9x4x8xf32, #tpu.memory_space<vmem>>, vector<1x4x8xf32>
    %45 = vector.shape_cast %44 : vector<1x4x8xf32> to vector<4x8xf32>
    %cst_30 = arith.constant dense<0.000000e+00> : vector<64x4xf32>
    %46 = tpu.matmul %43, %28, %cst_30 {dimension_numbers = #tpu.dot_dimension_numbers<[1], [0], [0], [1], [0, 0, 1, 1], [], []>} : vector<64x256xf32>, vector<256x4xf32>, vector<64x4xf32> -> vector<64x4xf32>
    %cst_31 = arith.constant dense<0.000000e+00> : vector<64x8xf32>
    %47 = tpu.matmul %46, %45, %cst_31 {dimension_numbers = #tpu.dot_dimension_numbers<[1], [0], [0], [1], [0, 0, 1, 1], [], []>} : vector<64x4xf32>, vector<4x8xf32>, vector<64x8xf32> -> vector<64x8xf32>
    %48 = arith.addf %38, %47 : vector<64x8xf32>
    %cst_32 = arith.constant dense<0.000000e+00> : vector<64x4xf32>
    %49 = tpu.matmul %43, %29, %cst_32 {dimension_numbers = #tpu.dot_dimension_numbers<[1], [0], [0], [1], [0, 0, 1, 1], [], []>} : vector<64x256xf32>, vector<256x4xf32>, vector<64x4xf32> -> vector<64x4xf32>
    %cst_33 = arith.constant dense<0.000000e+00> : vector<64x8xf32>
    %50 = tpu.matmul %49, %45, %cst_33 {dimension_numbers = #tpu.dot_dimension_numbers<[1], [0], [0], [1], [0, 0, 1, 1], [], []>} : vector<64x4xf32>, vector<4x8xf32>, vector<64x8xf32> -> vector<64x8xf32>
    %51 = arith.addf %41, %50 : vector<64x8xf32>
    %c2 = arith.constant 2 : index
    %c0_34 = arith.constant 0 : index
    %c0_35 = arith.constant 0 : index
    %52 = vector.load %arg5[%c2, %c0_34, %c0_35] : memref<9x64x256xf32, #tpu.memory_space<vmem>>, vector<1x64x256xf32>
    %53 = vector.shape_cast %52 : vector<1x64x256xf32> to vector<64x256xf32>
    %c2_36 = arith.constant 2 : index
    %c0_37 = arith.constant 0 : index
    %c0_38 = arith.constant 0 : index
    %54 = vector.load %arg6[%c2_36, %c0_37, %c0_38] : memref<9x4x8xf32, #tpu.memory_space<vmem>>, vector<1x4x8xf32>
    %55 = vector.shape_cast %54 : vector<1x4x8xf32> to vector<4x8xf32>
    %cst_39 = arith.constant dense<0.000000e+00> : vector<64x4xf32>
    %56 = tpu.matmul %53, %28, %cst_39 {dimension_numbers = #tpu.dot_dimension_numbers<[1], [0], [0], [1], [0, 0, 1, 1], [], []>} : vector<64x256xf32>, vector<256x4xf32>, vector<64x4xf32> -> vector<64x4xf32>
    %cst_40 = arith.constant dense<0.000000e+00> : vector<64x8xf32>
    %57 = tpu.matmul %56, %55, %cst_40 {dimension_numbers = #tpu.dot_dimension_numbers<[1], [0], [0], [1], [0, 0, 1, 1], [], []>} : vector<64x4xf32>, vector<4x8xf32>, vector<64x8xf32> -> vector<64x8xf32>
    %58 = arith.addf %48, %57 : vector<64x8xf32>
    %cst_41 = arith.constant dense<0.000000e+00> : vector<64x4xf32>
    %59 = tpu.matmul %53, %29, %cst_41 {dimension_numbers = #tpu.dot_dimension_numbers<[1], [0], [0], [1], [0, 0, 1, 1], [], []>} : vector<64x256xf32>, vector<256x4xf32>, vector<64x4xf32> -> vector<64x4xf32>
    %cst_42 = arith.constant dense<0.000000e+00> : vector<64x8xf32>
    %60 = tpu.matmul %59, %55, %cst_42 {dimension_numbers = #tpu.dot_dimension_numbers<[1], [0], [0], [1], [0, 0, 1, 1], [], []>} : vector<64x4xf32>, vector<4x8xf32>, vector<64x8xf32> -> vector<64x8xf32>
    %61 = arith.addf %51, %60 : vector<64x8xf32>
    %c3 = arith.constant 3 : index
    %c0_43 = arith.constant 0 : index
    %c0_44 = arith.constant 0 : index
    %62 = vector.load %arg5[%c3, %c0_43, %c0_44] : memref<9x64x256xf32, #tpu.memory_space<vmem>>, vector<1x64x256xf32>
    %63 = vector.shape_cast %62 : vector<1x64x256xf32> to vector<64x256xf32>
    %c3_45 = arith.constant 3 : index
    %c0_46 = arith.constant 0 : index
    %c0_47 = arith.constant 0 : index
    %64 = vector.load %arg6[%c3_45, %c0_46, %c0_47] : memref<9x4x8xf32, #tpu.memory_space<vmem>>, vector<1x4x8xf32>
    %65 = vector.shape_cast %64 : vector<1x4x8xf32> to vector<4x8xf32>
    %cst_48 = arith.constant dense<0.000000e+00> : vector<64x4xf32>
    %66 = tpu.matmul %63, %28, %cst_48 {dimension_numbers = #tpu.dot_dimension_numbers<[1], [0], [0], [1], [0, 0, 1, 1], [], []>} : vector<64x256xf32>, vector<256x4xf32>, vector<64x4xf32> -> vector<64x4xf32>
    %cst_49 = arith.constant dense<0.000000e+00> : vector<64x8xf32>
    %67 = tpu.matmul %66, %65, %cst_49 {dimension_numbers = #tpu.dot_dimension_numbers<[1], [0], [0], [1], [0, 0, 1, 1], [], []>} : vector<64x4xf32>, vector<4x8xf32>, vector<64x8xf32> -> vector<64x8xf32>
    %68 = arith.addf %58, %67 : vector<64x8xf32>
    %cst_50 = arith.constant dense<0.000000e+00> : vector<64x4xf32>
    %69 = tpu.matmul %63, %29, %cst_50 {dimension_numbers = #tpu.dot_dimension_numbers<[1], [0], [0], [1], [0, 0, 1, 1], [], []>} : vector<64x256xf32>, vector<256x4xf32>, vector<64x4xf32> -> vector<64x4xf32>
    %cst_51 = arith.constant dense<0.000000e+00> : vector<64x8xf32>
    %70 = tpu.matmul %69, %65, %cst_51 {dimension_numbers = #tpu.dot_dimension_numbers<[1], [0], [0], [1], [0, 0, 1, 1], [], []>} : vector<64x4xf32>, vector<4x8xf32>, vector<64x8xf32> -> vector<64x8xf32>
    %71 = arith.addf %61, %70 : vector<64x8xf32>
    %c4 = arith.constant 4 : index
    %c0_52 = arith.constant 0 : index
    %c0_53 = arith.constant 0 : index
    %72 = vector.load %arg5[%c4, %c0_52, %c0_53] : memref<9x64x256xf32, #tpu.memory_space<vmem>>, vector<1x64x256xf32>
    %73 = vector.shape_cast %72 : vector<1x64x256xf32> to vector<64x256xf32>
    %c4_54 = arith.constant 4 : index
    %c0_55 = arith.constant 0 : index
    %c0_56 = arith.constant 0 : index
    %74 = vector.load %arg6[%c4_54, %c0_55, %c0_56] : memref<9x4x8xf32, #tpu.memory_space<vmem>>, vector<1x4x8xf32>
    %75 = vector.shape_cast %74 : vector<1x4x8xf32> to vector<4x8xf32>
    %cst_57 = arith.constant dense<0.000000e+00> : vector<64x4xf32>
    %76 = tpu.matmul %73, %28, %cst_57 {dimension_numbers = #tpu.dot_dimension_numbers<[1], [0], [0], [1], [0, 0, 1, 1], [], []>} : vector<64x256xf32>, vector<256x4xf32>, vector<64x4xf32> -> vector<64x4xf32>
    %cst_58 = arith.constant dense<0.000000e+00> : vector<64x8xf32>
    %77 = tpu.matmul %76, %75, %cst_58 {dimension_numbers = #tpu.dot_dimension_numbers<[1], [0], [0], [1], [0, 0, 1, 1], [], []>} : vector<64x4xf32>, vector<4x8xf32>, vector<64x8xf32> -> vector<64x8xf32>
    %78 = arith.addf %68, %77 : vector<64x8xf32>
    %cst_59 = arith.constant dense<0.000000e+00> : vector<64x4xf32>
    %79 = tpu.matmul %73, %29, %cst_59 {dimension_numbers = #tpu.dot_dimension_numbers<[1], [0], [0], [1], [0, 0, 1, 1], [], []>} : vector<64x256xf32>, vector<256x4xf32>, vector<64x4xf32> -> vector<64x4xf32>
    %cst_60 = arith.constant dense<0.000000e+00> : vector<64x8xf32>
    %80 = tpu.matmul %79, %75, %cst_60 {dimension_numbers = #tpu.dot_dimension_numbers<[1], [0], [0], [1], [0, 0, 1, 1], [], []>} : vector<64x4xf32>, vector<4x8xf32>, vector<64x8xf32> -> vector<64x8xf32>
    %81 = arith.addf %71, %80 : vector<64x8xf32>
    %c5 = arith.constant 5 : index
    %c0_61 = arith.constant 0 : index
    %c0_62 = arith.constant 0 : index
    %82 = vector.load %arg5[%c5, %c0_61, %c0_62] : memref<9x64x256xf32, #tpu.memory_space<vmem>>, vector<1x64x256xf32>
    %83 = vector.shape_cast %82 : vector<1x64x256xf32> to vector<64x256xf32>
    %c5_63 = arith.constant 5 : index
    %c0_64 = arith.constant 0 : index
    %c0_65 = arith.constant 0 : index
    %84 = vector.load %arg6[%c5_63, %c0_64, %c0_65] : memref<9x4x8xf32, #tpu.memory_space<vmem>>, vector<1x4x8xf32>
    %85 = vector.shape_cast %84 : vector<1x4x8xf32> to vector<4x8xf32>
    %cst_66 = arith.constant dense<0.000000e+00> : vector<64x4xf32>
    %86 = tpu.matmul %83, %28, %cst_66 {dimension_numbers = #tpu.dot_dimension_numbers<[1], [0], [0], [1], [0, 0, 1, 1], [], []>} : vector<64x256xf32>, vector<256x4xf32>, vector<64x4xf32> -> vector<64x4xf32>
    %cst_67 = arith.constant dense<0.000000e+00> : vector<64x8xf32>
    %87 = tpu.matmul %86, %85, %cst_67 {dimension_numbers = #tpu.dot_dimension_numbers<[1], [0], [0], [1], [0, 0, 1, 1], [], []>} : vector<64x4xf32>, vector<4x8xf32>, vector<64x8xf32> -> vector<64x8xf32>
    %88 = arith.addf %78, %87 : vector<64x8xf32>
    %cst_68 = arith.constant dense<0.000000e+00> : vector<64x4xf32>
    %89 = tpu.matmul %83, %29, %cst_68 {dimension_numbers = #tpu.dot_dimension_numbers<[1], [0], [0], [1], [0, 0, 1, 1], [], []>} : vector<64x256xf32>, vector<256x4xf32>, vector<64x4xf32> -> vector<64x4xf32>
    %cst_69 = arith.constant dense<0.000000e+00> : vector<64x8xf32>
    %90 = tpu.matmul %89, %85, %cst_69 {dimension_numbers = #tpu.dot_dimension_numbers<[1], [0], [0], [1], [0, 0, 1, 1], [], []>} : vector<64x4xf32>, vector<4x8xf32>, vector<64x8xf32> -> vector<64x8xf32>
    %91 = arith.addf %81, %90 : vector<64x8xf32>
    %c6 = arith.constant 6 : index
    %c0_70 = arith.constant 0 : index
    %c0_71 = arith.constant 0 : index
    %92 = vector.load %arg5[%c6, %c0_70, %c0_71] : memref<9x64x256xf32, #tpu.memory_space<vmem>>, vector<1x64x256xf32>
    %93 = vector.shape_cast %92 : vector<1x64x256xf32> to vector<64x256xf32>
    %c6_72 = arith.constant 6 : index
    %c0_73 = arith.constant 0 : index
    %c0_74 = arith.constant 0 : index
    %94 = vector.load %arg6[%c6_72, %c0_73, %c0_74] : memref<9x4x8xf32, #tpu.memory_space<vmem>>, vector<1x4x8xf32>
    %95 = vector.shape_cast %94 : vector<1x4x8xf32> to vector<4x8xf32>
    %cst_75 = arith.constant dense<0.000000e+00> : vector<64x4xf32>
    %96 = tpu.matmul %93, %28, %cst_75 {dimension_numbers = #tpu.dot_dimension_numbers<[1], [0], [0], [1], [0, 0, 1, 1], [], []>} : vector<64x256xf32>, vector<256x4xf32>, vector<64x4xf32> -> vector<64x4xf32>
    %cst_76 = arith.constant dense<0.000000e+00> : vector<64x8xf32>
    %97 = tpu.matmul %96, %95, %cst_76 {dimension_numbers = #tpu.dot_dimension_numbers<[1], [0], [0], [1], [0, 0, 1, 1], [], []>} : vector<64x4xf32>, vector<4x8xf32>, vector<64x8xf32> -> vector<64x8xf32>
    %98 = arith.addf %88, %97 : vector<64x8xf32>
    %cst_77 = arith.constant dense<0.000000e+00> : vector<64x4xf32>
    %99 = tpu.matmul %93, %29, %cst_77 {dimension_numbers = #tpu.dot_dimension_numbers<[1], [0], [0], [1], [0, 0, 1, 1], [], []>} : vector<64x256xf32>, vector<256x4xf32>, vector<64x4xf32> -> vector<64x4xf32>
    %cst_78 = arith.constant dense<0.000000e+00> : vector<64x8xf32>
    %100 = tpu.matmul %99, %95, %cst_78 {dimension_numbers = #tpu.dot_dimension_numbers<[1], [0], [0], [1], [0, 0, 1, 1], [], []>} : vector<64x4xf32>, vector<4x8xf32>, vector<64x8xf32> -> vector<64x8xf32>
    %101 = arith.addf %91, %100 : vector<64x8xf32>
    %c7 = arith.constant 7 : index
    %c0_79 = arith.constant 0 : index
    %c0_80 = arith.constant 0 : index
    %102 = vector.load %arg5[%c7, %c0_79, %c0_80] : memref<9x64x256xf32, #tpu.memory_space<vmem>>, vector<1x64x256xf32>
    %103 = vector.shape_cast %102 : vector<1x64x256xf32> to vector<64x256xf32>
    %c7_81 = arith.constant 7 : index
    %c0_82 = arith.constant 0 : index
    %c0_83 = arith.constant 0 : index
    %104 = vector.load %arg6[%c7_81, %c0_82, %c0_83] : memref<9x4x8xf32, #tpu.memory_space<vmem>>, vector<1x4x8xf32>
    %105 = vector.shape_cast %104 : vector<1x4x8xf32> to vector<4x8xf32>
    %cst_84 = arith.constant dense<0.000000e+00> : vector<64x4xf32>
    %106 = tpu.matmul %103, %28, %cst_84 {dimension_numbers = #tpu.dot_dimension_numbers<[1], [0], [0], [1], [0, 0, 1, 1], [], []>} : vector<64x256xf32>, vector<256x4xf32>, vector<64x4xf32> -> vector<64x4xf32>
    %cst_85 = arith.constant dense<0.000000e+00> : vector<64x8xf32>
    %107 = tpu.matmul %106, %105, %cst_85 {dimension_numbers = #tpu.dot_dimension_numbers<[1], [0], [0], [1], [0, 0, 1, 1], [], []>} : vector<64x4xf32>, vector<4x8xf32>, vector<64x8xf32> -> vector<64x8xf32>
    %108 = arith.addf %98, %107 : vector<64x8xf32>
    %cst_86 = arith.constant dense<0.000000e+00> : vector<64x4xf32>
    %109 = tpu.matmul %103, %29, %cst_86 {dimension_numbers = #tpu.dot_dimension_numbers<[1], [0], [0], [1], [0, 0, 1, 1], [], []>} : vector<64x256xf32>, vector<256x4xf32>, vector<64x4xf32> -> vector<64x4xf32>
    %cst_87 = arith.constant dense<0.000000e+00> : vector<64x8xf32>
    %110 = tpu.matmul %109, %105, %cst_87 {dimension_numbers = #tpu.dot_dimension_numbers<[1], [0], [0], [1], [0, 0, 1, 1], [], []>} : vector<64x4xf32>, vector<4x8xf32>, vector<64x8xf32> -> vector<64x8xf32>
    %111 = arith.addf %101, %110 : vector<64x8xf32>
    %c8 = arith.constant 8 : index
    %c0_88 = arith.constant 0 : index
    %c0_89 = arith.constant 0 : index
    %112 = vector.load %arg5[%c8, %c0_88, %c0_89] : memref<9x64x256xf32, #tpu.memory_space<vmem>>, vector<1x64x256xf32>
    %113 = vector.shape_cast %112 : vector<1x64x256xf32> to vector<64x256xf32>
    %c8_90 = arith.constant 8 : index
    %c0_91 = arith.constant 0 : index
    %c0_92 = arith.constant 0 : index
    %114 = vector.load %arg6[%c8_90, %c0_91, %c0_92] : memref<9x4x8xf32, #tpu.memory_space<vmem>>, vector<1x4x8xf32>
    %115 = vector.shape_cast %114 : vector<1x4x8xf32> to vector<4x8xf32>
    %cst_93 = arith.constant dense<0.000000e+00> : vector<64x4xf32>
    %116 = tpu.matmul %113, %28, %cst_93 {dimension_numbers = #tpu.dot_dimension_numbers<[1], [0], [0], [1], [0, 0, 1, 1], [], []>} : vector<64x256xf32>, vector<256x4xf32>, vector<64x4xf32> -> vector<64x4xf32>
    %cst_94 = arith.constant dense<0.000000e+00> : vector<64x8xf32>
    %117 = tpu.matmul %116, %115, %cst_94 {dimension_numbers = #tpu.dot_dimension_numbers<[1], [0], [0], [1], [0, 0, 1, 1], [], []>} : vector<64x4xf32>, vector<4x8xf32>, vector<64x8xf32> -> vector<64x8xf32>
    %118 = arith.addf %108, %117 : vector<64x8xf32>
    %cst_95 = arith.constant dense<0.000000e+00> : vector<64x4xf32>
    %119 = tpu.matmul %113, %29, %cst_95 {dimension_numbers = #tpu.dot_dimension_numbers<[1], [0], [0], [1], [0, 0, 1, 1], [], []>} : vector<64x256xf32>, vector<256x4xf32>, vector<64x4xf32> -> vector<64x4xf32>
    %cst_96 = arith.constant dense<0.000000e+00> : vector<64x8xf32>
    %120 = tpu.matmul %119, %115, %cst_96 {dimension_numbers = #tpu.dot_dimension_numbers<[1], [0], [0], [1], [0, 0, 1, 1], [], []>} : vector<64x4xf32>, vector<4x8xf32>, vector<64x8xf32> -> vector<64x8xf32>
    %121 = arith.addf %111, %120 : vector<64x8xf32>
    %c0_97 = arith.constant 0 : index
    %c0_98 = arith.constant 0 : index
    %122 = vector.load %arg7[%c0_97, %c0_98] : memref<1x8xf32, #tpu.memory_space<vmem>>, vector<1x8xf32>
    %c0_99 = arith.constant 0 : index
    %c0_100 = arith.constant 0 : index
    %123 = vector.load %arg8[%c0_99, %c0_100] : memref<1x8xf32, #tpu.memory_space<vmem>>, vector<1x8xf32>
    %cst_101 = arith.constant dense<0.000000e+00> : vector<8xf32>
    %124 = vector.multi_reduction <add>, %118, %cst_101 [0] : vector<64x8xf32> to vector<8xf32>
    %125 = vector.shape_cast %124 : vector<8xf32> to vector<1x8xf32>
    %126 = arith.mulf %118, %118 : vector<64x8xf32>
    %cst_102 = arith.constant dense<0.000000e+00> : vector<8xf32>
    %127 = vector.multi_reduction <add>, %126, %cst_102 [0] : vector<64x8xf32> to vector<8xf32>
    %128 = vector.shape_cast %127 : vector<8xf32> to vector<1x8xf32>
    %cst_103 = arith.constant dense<0.000000e+00> : vector<8xf32>
    %129 = vector.multi_reduction <add>, %121, %cst_103 [0] : vector<64x8xf32> to vector<8xf32>
    %130 = vector.shape_cast %129 : vector<8xf32> to vector<1x8xf32>
    %131 = arith.addf %125, %130 : vector<1x8xf32>
    %132 = arith.mulf %121, %121 : vector<64x8xf32>
    %cst_104 = arith.constant dense<0.000000e+00> : vector<8xf32>
    %133 = vector.multi_reduction <add>, %132, %cst_104 [0] : vector<64x8xf32> to vector<8xf32>
    %134 = vector.shape_cast %133 : vector<8xf32> to vector<1x8xf32>
    %135 = arith.addf %128, %134 : vector<1x8xf32>
    %cst_105 = arith.constant 7.812500e-03 : f32
    %136 = vector.broadcast %cst_105 : f32 to vector<1x8xf32>
    %137 = arith.mulf %131, %136 : vector<1x8xf32>
    %cst_106 = arith.constant 7.812500e-03 : f32
    %138 = vector.broadcast %cst_106 : f32 to vector<1x8xf32>
    %139 = arith.mulf %135, %138 : vector<1x8xf32>
    %140 = arith.mulf %137, %137 : vector<1x8xf32>
    %141 = arith.subf %139, %140 : vector<1x8xf32>
    %cst_107 = arith.constant 9.99999974E-6 : f32
    %142 = vector.broadcast %cst_107 : f32 to vector<1x8xf32>
    %143 = arith.addf %141, %142 : vector<1x8xf32>
    %144 = math.rsqrt %143 : vector<1x8xf32>
    %145 = arith.mulf %122, %144 : vector<1x8xf32>
    %146 = arith.mulf %137, %145 : vector<1x8xf32>
    %147 = arith.subf %123, %146 : vector<1x8xf32>
    %148 = vector.broadcast %145 : vector<1x8xf32> to vector<64x8xf32>
    %149 = arith.mulf %118, %148 : vector<64x8xf32>
    %150 = vector.broadcast %147 : vector<1x8xf32> to vector<64x8xf32>
    %151 = arith.addf %149, %150 : vector<64x8xf32>
    %cst_108 = arith.constant 0.000000e+00 : f32
    %152 = vector.broadcast %cst_108 : f32 to vector<64x8xf32>
    %153 = arith.maximumf %151, %152 : vector<64x8xf32>
    %154 = vector.broadcast %145 : vector<1x8xf32> to vector<64x8xf32>
    %155 = arith.mulf %121, %154 : vector<64x8xf32>
    %156 = vector.broadcast %147 : vector<1x8xf32> to vector<64x8xf32>
    %157 = arith.addf %155, %156 : vector<64x8xf32>
    %cst_109 = arith.constant 0.000000e+00 : f32
    %158 = vector.broadcast %cst_109 : f32 to vector<64x8xf32>
    %159 = arith.maximumf %157, %158 : vector<64x8xf32>
    %cst_110 = arith.constant 0.000000e+00 : f32
    %160 = vector.broadcast %cst_110 : f32 to vector<16x16xf32>
    %cst_111 = arith.constant 0.000000e+00 : f32
    %161 = vector.broadcast %cst_111 : f32 to vector<16x16xf32>
    %c0_112 = arith.constant 0 : index
    %c0_113 = arith.constant 0 : index
    %c0_114 = arith.constant 0 : index
    %162 = vector.load %arg9[%c0_112, %c0_113, %c0_114] : memref<9x16x64xf32, #tpu.memory_space<vmem>>, vector<1x16x64xf32>
    %163 = vector.shape_cast %162 : vector<1x16x64xf32> to vector<16x64xf32>
    %c0_115 = arith.constant 0 : index
    %c0_116 = arith.constant 0 : index
    %c0_117 = arith.constant 0 : index
    %164 = vector.load %arg10[%c0_115, %c0_116, %c0_117] : memref<9x8x16xf32, #tpu.memory_space<vmem>>, vector<1x8x16xf32>
    %165 = vector.shape_cast %164 : vector<1x8x16xf32> to vector<8x16xf32>
    %cst_118 = arith.constant dense<0.000000e+00> : vector<16x8xf32>
    %166 = tpu.matmul %163, %153, %cst_118 {dimension_numbers = #tpu.dot_dimension_numbers<[1], [0], [0], [1], [0, 0, 1, 1], [], []>} : vector<16x64xf32>, vector<64x8xf32>, vector<16x8xf32> -> vector<16x8xf32>
    %cst_119 = arith.constant dense<0.000000e+00> : vector<16x16xf32>
    %167 = tpu.matmul %166, %165, %cst_119 {dimension_numbers = #tpu.dot_dimension_numbers<[1], [0], [0], [1], [0, 0, 1, 1], [], []>} : vector<16x8xf32>, vector<8x16xf32>, vector<16x16xf32> -> vector<16x16xf32>
    %168 = arith.addf %160, %167 : vector<16x16xf32>
    %cst_120 = arith.constant dense<0.000000e+00> : vector<16x8xf32>
    %169 = tpu.matmul %163, %159, %cst_120 {dimension_numbers = #tpu.dot_dimension_numbers<[1], [0], [0], [1], [0, 0, 1, 1], [], []>} : vector<16x64xf32>, vector<64x8xf32>, vector<16x8xf32> -> vector<16x8xf32>
    %cst_121 = arith.constant dense<0.000000e+00> : vector<16x16xf32>
    %170 = tpu.matmul %169, %165, %cst_121 {dimension_numbers = #tpu.dot_dimension_numbers<[1], [0], [0], [1], [0, 0, 1, 1], [], []>} : vector<16x8xf32>, vector<8x16xf32>, vector<16x16xf32> -> vector<16x16xf32>
    %171 = arith.addf %161, %170 : vector<16x16xf32>
    %c1_122 = arith.constant 1 : index
    %c0_123 = arith.constant 0 : index
    %c0_124 = arith.constant 0 : index
    %172 = vector.load %arg9[%c1_122, %c0_123, %c0_124] : memref<9x16x64xf32, #tpu.memory_space<vmem>>, vector<1x16x64xf32>
    %173 = vector.shape_cast %172 : vector<1x16x64xf32> to vector<16x64xf32>
    %c1_125 = arith.constant 1 : index
    %c0_126 = arith.constant 0 : index
    %c0_127 = arith.constant 0 : index
    %174 = vector.load %arg10[%c1_125, %c0_126, %c0_127] : memref<9x8x16xf32, #tpu.memory_space<vmem>>, vector<1x8x16xf32>
    %175 = vector.shape_cast %174 : vector<1x8x16xf32> to vector<8x16xf32>
    %cst_128 = arith.constant dense<0.000000e+00> : vector<16x8xf32>
    %176 = tpu.matmul %173, %153, %cst_128 {dimension_numbers = #tpu.dot_dimension_numbers<[1], [0], [0], [1], [0, 0, 1, 1], [], []>} : vector<16x64xf32>, vector<64x8xf32>, vector<16x8xf32> -> vector<16x8xf32>
    %cst_129 = arith.constant dense<0.000000e+00> : vector<16x16xf32>
    %177 = tpu.matmul %176, %175, %cst_129 {dimension_numbers = #tpu.dot_dimension_numbers<[1], [0], [0], [1], [0, 0, 1, 1], [], []>} : vector<16x8xf32>, vector<8x16xf32>, vector<16x16xf32> -> vector<16x16xf32>
    %178 = arith.addf %168, %177 : vector<16x16xf32>
    %cst_130 = arith.constant dense<0.000000e+00> : vector<16x8xf32>
    %179 = tpu.matmul %173, %159, %cst_130 {dimension_numbers = #tpu.dot_dimension_numbers<[1], [0], [0], [1], [0, 0, 1, 1], [], []>} : vector<16x64xf32>, vector<64x8xf32>, vector<16x8xf32> -> vector<16x8xf32>
    %cst_131 = arith.constant dense<0.000000e+00> : vector<16x16xf32>
    %180 = tpu.matmul %179, %175, %cst_131 {dimension_numbers = #tpu.dot_dimension_numbers<[1], [0], [0], [1], [0, 0, 1, 1], [], []>} : vector<16x8xf32>, vector<8x16xf32>, vector<16x16xf32> -> vector<16x16xf32>
    %181 = arith.addf %171, %180 : vector<16x16xf32>
    %c2_132 = arith.constant 2 : index
    %c0_133 = arith.constant 0 : index
    %c0_134 = arith.constant 0 : index
    %182 = vector.load %arg9[%c2_132, %c0_133, %c0_134] : memref<9x16x64xf32, #tpu.memory_space<vmem>>, vector<1x16x64xf32>
    %183 = vector.shape_cast %182 : vector<1x16x64xf32> to vector<16x64xf32>
    %c2_135 = arith.constant 2 : index
    %c0_136 = arith.constant 0 : index
    %c0_137 = arith.constant 0 : index
    %184 = vector.load %arg10[%c2_135, %c0_136, %c0_137] : memref<9x8x16xf32, #tpu.memory_space<vmem>>, vector<1x8x16xf32>
    %185 = vector.shape_cast %184 : vector<1x8x16xf32> to vector<8x16xf32>
    %cst_138 = arith.constant dense<0.000000e+00> : vector<16x8xf32>
    %186 = tpu.matmul %183, %153, %cst_138 {dimension_numbers = #tpu.dot_dimension_numbers<[1], [0], [0], [1], [0, 0, 1, 1], [], []>} : vector<16x64xf32>, vector<64x8xf32>, vector<16x8xf32> -> vector<16x8xf32>
    %cst_139 = arith.constant dense<0.000000e+00> : vector<16x16xf32>
    %187 = tpu.matmul %186, %185, %cst_139 {dimension_numbers = #tpu.dot_dimension_numbers<[1], [0], [0], [1], [0, 0, 1, 1], [], []>} : vector<16x8xf32>, vector<8x16xf32>, vector<16x16xf32> -> vector<16x16xf32>
    %188 = arith.addf %178, %187 : vector<16x16xf32>
    %cst_140 = arith.constant dense<0.000000e+00> : vector<16x8xf32>
    %189 = tpu.matmul %183, %159, %cst_140 {dimension_numbers = #tpu.dot_dimension_numbers<[1], [0], [0], [1], [0, 0, 1, 1], [], []>} : vector<16x64xf32>, vector<64x8xf32>, vector<16x8xf32> -> vector<16x8xf32>
    %cst_141 = arith.constant dense<0.000000e+00> : vector<16x16xf32>
    %190 = tpu.matmul %189, %185, %cst_141 {dimension_numbers = #tpu.dot_dimension_numbers<[1], [0], [0], [1], [0, 0, 1, 1], [], []>} : vector<16x8xf32>, vector<8x16xf32>, vector<16x16xf32> -> vector<16x16xf32>
    %191 = arith.addf %181, %190 : vector<16x16xf32>
    %c3_142 = arith.constant 3 : index
    %c0_143 = arith.constant 0 : index
    %c0_144 = arith.constant 0 : index
    %192 = vector.load %arg9[%c3_142, %c0_143, %c0_144] : memref<9x16x64xf32, #tpu.memory_space<vmem>>, vector<1x16x64xf32>
    %193 = vector.shape_cast %192 : vector<1x16x64xf32> to vector<16x64xf32>
    %c3_145 = arith.constant 3 : index
    %c0_146 = arith.constant 0 : index
    %c0_147 = arith.constant 0 : index
    %194 = vector.load %arg10[%c3_145, %c0_146, %c0_147] : memref<9x8x16xf32, #tpu.memory_space<vmem>>, vector<1x8x16xf32>
    %195 = vector.shape_cast %194 : vector<1x8x16xf32> to vector<8x16xf32>
    %cst_148 = arith.constant dense<0.000000e+00> : vector<16x8xf32>
    %196 = tpu.matmul %193, %153, %cst_148 {dimension_numbers = #tpu.dot_dimension_numbers<[1], [0], [0], [1], [0, 0, 1, 1], [], []>} : vector<16x64xf32>, vector<64x8xf32>, vector<16x8xf32> -> vector<16x8xf32>
    %cst_149 = arith.constant dense<0.000000e+00> : vector<16x16xf32>
    %197 = tpu.matmul %196, %195, %cst_149 {dimension_numbers = #tpu.dot_dimension_numbers<[1], [0], [0], [1], [0, 0, 1, 1], [], []>} : vector<16x8xf32>, vector<8x16xf32>, vector<16x16xf32> -> vector<16x16xf32>
    %198 = arith.addf %188, %197 : vector<16x16xf32>
    %cst_150 = arith.constant dense<0.000000e+00> : vector<16x8xf32>
    %199 = tpu.matmul %193, %159, %cst_150 {dimension_numbers = #tpu.dot_dimension_numbers<[1], [0], [0], [1], [0, 0, 1, 1], [], []>} : vector<16x64xf32>, vector<64x8xf32>, vector<16x8xf32> -> vector<16x8xf32>
    %cst_151 = arith.constant dense<0.000000e+00> : vector<16x16xf32>
    %200 = tpu.matmul %199, %195, %cst_151 {dimension_numbers = #tpu.dot_dimension_numbers<[1], [0], [0], [1], [0, 0, 1, 1], [], []>} : vector<16x8xf32>, vector<8x16xf32>, vector<16x16xf32> -> vector<16x16xf32>
    %201 = arith.addf %191, %200 : vector<16x16xf32>
    %c4_152 = arith.constant 4 : index
    %c0_153 = arith.constant 0 : index
    %c0_154 = arith.constant 0 : index
    %202 = vector.load %arg9[%c4_152, %c0_153, %c0_154] : memref<9x16x64xf32, #tpu.memory_space<vmem>>, vector<1x16x64xf32>
    %203 = vector.shape_cast %202 : vector<1x16x64xf32> to vector<16x64xf32>
    %c4_155 = arith.constant 4 : index
    %c0_156 = arith.constant 0 : index
    %c0_157 = arith.constant 0 : index
    %204 = vector.load %arg10[%c4_155, %c0_156, %c0_157] : memref<9x8x16xf32, #tpu.memory_space<vmem>>, vector<1x8x16xf32>
    %205 = vector.shape_cast %204 : vector<1x8x16xf32> to vector<8x16xf32>
    %cst_158 = arith.constant dense<0.000000e+00> : vector<16x8xf32>
    %206 = tpu.matmul %203, %153, %cst_158 {dimension_numbers = #tpu.dot_dimension_numbers<[1], [0], [0], [1], [0, 0, 1, 1], [], []>} : vector<16x64xf32>, vector<64x8xf32>, vector<16x8xf32> -> vector<16x8xf32>
    %cst_159 = arith.constant dense<0.000000e+00> : vector<16x16xf32>
    %207 = tpu.matmul %206, %205, %cst_159 {dimension_numbers = #tpu.dot_dimension_numbers<[1], [0], [0], [1], [0, 0, 1, 1], [], []>} : vector<16x8xf32>, vector<8x16xf32>, vector<16x16xf32> -> vector<16x16xf32>
    %208 = arith.addf %198, %207 : vector<16x16xf32>
    %cst_160 = arith.constant dense<0.000000e+00> : vector<16x8xf32>
    %209 = tpu.matmul %203, %159, %cst_160 {dimension_numbers = #tpu.dot_dimension_numbers<[1], [0], [0], [1], [0, 0, 1, 1], [], []>} : vector<16x64xf32>, vector<64x8xf32>, vector<16x8xf32> -> vector<16x8xf32>
    %cst_161 = arith.constant dense<0.000000e+00> : vector<16x16xf32>
    %210 = tpu.matmul %209, %205, %cst_161 {dimension_numbers = #tpu.dot_dimension_numbers<[1], [0], [0], [1], [0, 0, 1, 1], [], []>} : vector<16x8xf32>, vector<8x16xf32>, vector<16x16xf32> -> vector<16x16xf32>
    %211 = arith.addf %201, %210 : vector<16x16xf32>
    %c5_162 = arith.constant 5 : index
    %c0_163 = arith.constant 0 : index
    %c0_164 = arith.constant 0 : index
    %212 = vector.load %arg9[%c5_162, %c0_163, %c0_164] : memref<9x16x64xf32, #tpu.memory_space<vmem>>, vector<1x16x64xf32>
    %213 = vector.shape_cast %212 : vector<1x16x64xf32> to vector<16x64xf32>
    %c5_165 = arith.constant 5 : index
    %c0_166 = arith.constant 0 : index
    %c0_167 = arith.constant 0 : index
    %214 = vector.load %arg10[%c5_165, %c0_166, %c0_167] : memref<9x8x16xf32, #tpu.memory_space<vmem>>, vector<1x8x16xf32>
    %215 = vector.shape_cast %214 : vector<1x8x16xf32> to vector<8x16xf32>
    %cst_168 = arith.constant dense<0.000000e+00> : vector<16x8xf32>
    %216 = tpu.matmul %213, %153, %cst_168 {dimension_numbers = #tpu.dot_dimension_numbers<[1], [0], [0], [1], [0, 0, 1, 1], [], []>} : vector<16x64xf32>, vector<64x8xf32>, vector<16x8xf32> -> vector<16x8xf32>
    %cst_169 = arith.constant dense<0.000000e+00> : vector<16x16xf32>
    %217 = tpu.matmul %216, %215, %cst_169 {dimension_numbers = #tpu.dot_dimension_numbers<[1], [0], [0], [1], [0, 0, 1, 1], [], []>} : vector<16x8xf32>, vector<8x16xf32>, vector<16x16xf32> -> vector<16x16xf32>
    %218 = arith.addf %208, %217 : vector<16x16xf32>
    %cst_170 = arith.constant dense<0.000000e+00> : vector<16x8xf32>
    %219 = tpu.matmul %213, %159, %cst_170 {dimension_numbers = #tpu.dot_dimension_numbers<[1], [0], [0], [1], [0, 0, 1, 1], [], []>} : vector<16x64xf32>, vector<64x8xf32>, vector<16x8xf32> -> vector<16x8xf32>
    %cst_171 = arith.constant dense<0.000000e+00> : vector<16x16xf32>
    %220 = tpu.matmul %219, %215, %cst_171 {dimension_numbers = #tpu.dot_dimension_numbers<[1], [0], [0], [1], [0, 0, 1, 1], [], []>} : vector<16x8xf32>, vector<8x16xf32>, vector<16x16xf32> -> vector<16x16xf32>
    %221 = arith.addf %211, %220 : vector<16x16xf32>
    %c6_172 = arith.constant 6 : index
    %c0_173 = arith.constant 0 : index
    %c0_174 = arith.constant 0 : index
    %222 = vector.load %arg9[%c6_172, %c0_173, %c0_174] : memref<9x16x64xf32, #tpu.memory_space<vmem>>, vector<1x16x64xf32>
    %223 = vector.shape_cast %222 : vector<1x16x64xf32> to vector<16x64xf32>
    %c6_175 = arith.constant 6 : index
    %c0_176 = arith.constant 0 : index
    %c0_177 = arith.constant 0 : index
    %224 = vector.load %arg10[%c6_175, %c0_176, %c0_177] : memref<9x8x16xf32, #tpu.memory_space<vmem>>, vector<1x8x16xf32>
    %225 = vector.shape_cast %224 : vector<1x8x16xf32> to vector<8x16xf32>
    %cst_178 = arith.constant dense<0.000000e+00> : vector<16x8xf32>
    %226 = tpu.matmul %223, %153, %cst_178 {dimension_numbers = #tpu.dot_dimension_numbers<[1], [0], [0], [1], [0, 0, 1, 1], [], []>} : vector<16x64xf32>, vector<64x8xf32>, vector<16x8xf32> -> vector<16x8xf32>
    %cst_179 = arith.constant dense<0.000000e+00> : vector<16x16xf32>
    %227 = tpu.matmul %226, %225, %cst_179 {dimension_numbers = #tpu.dot_dimension_numbers<[1], [0], [0], [1], [0, 0, 1, 1], [], []>} : vector<16x8xf32>, vector<8x16xf32>, vector<16x16xf32> -> vector<16x16xf32>
    %228 = arith.addf %218, %227 : vector<16x16xf32>
    %cst_180 = arith.constant dense<0.000000e+00> : vector<16x8xf32>
    %229 = tpu.matmul %223, %159, %cst_180 {dimension_numbers = #tpu.dot_dimension_numbers<[1], [0], [0], [1], [0, 0, 1, 1], [], []>} : vector<16x64xf32>, vector<64x8xf32>, vector<16x8xf32> -> vector<16x8xf32>
    %cst_181 = arith.constant dense<0.000000e+00> : vector<16x16xf32>
    %230 = tpu.matmul %229, %225, %cst_181 {dimension_numbers = #tpu.dot_dimension_numbers<[1], [0], [0], [1], [0, 0, 1, 1], [], []>} : vector<16x8xf32>, vector<8x16xf32>, vector<16x16xf32> -> vector<16x16xf32>
    %231 = arith.addf %221, %230 : vector<16x16xf32>
    %c7_182 = arith.constant 7 : index
    %c0_183 = arith.constant 0 : index
    %c0_184 = arith.constant 0 : index
    %232 = vector.load %arg9[%c7_182, %c0_183, %c0_184] : memref<9x16x64xf32, #tpu.memory_space<vmem>>, vector<1x16x64xf32>
    %233 = vector.shape_cast %232 : vector<1x16x64xf32> to vector<16x64xf32>
    %c7_185 = arith.constant 7 : index
    %c0_186 = arith.constant 0 : index
    %c0_187 = arith.constant 0 : index
    %234 = vector.load %arg10[%c7_185, %c0_186, %c0_187] : memref<9x8x16xf32, #tpu.memory_space<vmem>>, vector<1x8x16xf32>
    %235 = vector.shape_cast %234 : vector<1x8x16xf32> to vector<8x16xf32>
    %cst_188 = arith.constant dense<0.000000e+00> : vector<16x8xf32>
    %236 = tpu.matmul %233, %153, %cst_188 {dimension_numbers = #tpu.dot_dimension_numbers<[1], [0], [0], [1], [0, 0, 1, 1], [], []>} : vector<16x64xf32>, vector<64x8xf32>, vector<16x8xf32> -> vector<16x8xf32>
    %cst_189 = arith.constant dense<0.000000e+00> : vector<16x16xf32>
    %237 = tpu.matmul %236, %235, %cst_189 {dimension_numbers = #tpu.dot_dimension_numbers<[1], [0], [0], [1], [0, 0, 1, 1], [], []>} : vector<16x8xf32>, vector<8x16xf32>, vector<16x16xf32> -> vector<16x16xf32>
    %238 = arith.addf %228, %237 : vector<16x16xf32>
    %cst_190 = arith.constant dense<0.000000e+00> : vector<16x8xf32>
    %239 = tpu.matmul %233, %159, %cst_190 {dimension_numbers = #tpu.dot_dimension_numbers<[1], [0], [0], [1], [0, 0, 1, 1], [], []>} : vector<16x64xf32>, vector<64x8xf32>, vector<16x8xf32> -> vector<16x8xf32>
    %cst_191 = arith.constant dense<0.000000e+00> : vector<16x16xf32>
    %240 = tpu.matmul %239, %235, %cst_191 {dimension_numbers = #tpu.dot_dimension_numbers<[1], [0], [0], [1], [0, 0, 1, 1], [], []>} : vector<16x8xf32>, vector<8x16xf32>, vector<16x16xf32> -> vector<16x16xf32>
    %241 = arith.addf %231, %240 : vector<16x16xf32>
    %c8_192 = arith.constant 8 : index
    %c0_193 = arith.constant 0 : index
    %c0_194 = arith.constant 0 : index
    %242 = vector.load %arg9[%c8_192, %c0_193, %c0_194] : memref<9x16x64xf32, #tpu.memory_space<vmem>>, vector<1x16x64xf32>
    %243 = vector.shape_cast %242 : vector<1x16x64xf32> to vector<16x64xf32>
    %c8_195 = arith.constant 8 : index
    %c0_196 = arith.constant 0 : index
    %c0_197 = arith.constant 0 : index
    %244 = vector.load %arg10[%c8_195, %c0_196, %c0_197] : memref<9x8x16xf32, #tpu.memory_space<vmem>>, vector<1x8x16xf32>
    %245 = vector.shape_cast %244 : vector<1x8x16xf32> to vector<8x16xf32>
    %cst_198 = arith.constant dense<0.000000e+00> : vector<16x8xf32>
    %246 = tpu.matmul %243, %153, %cst_198 {dimension_numbers = #tpu.dot_dimension_numbers<[1], [0], [0], [1], [0, 0, 1, 1], [], []>} : vector<16x64xf32>, vector<64x8xf32>, vector<16x8xf32> -> vector<16x8xf32>
    %cst_199 = arith.constant dense<0.000000e+00> : vector<16x16xf32>
    %247 = tpu.matmul %246, %245, %cst_199 {dimension_numbers = #tpu.dot_dimension_numbers<[1], [0], [0], [1], [0, 0, 1, 1], [], []>} : vector<16x8xf32>, vector<8x16xf32>, vector<16x16xf32> -> vector<16x16xf32>
    %248 = arith.addf %238, %247 : vector<16x16xf32>
    %cst_200 = arith.constant dense<0.000000e+00> : vector<16x8xf32>
    %249 = tpu.matmul %243, %159, %cst_200 {dimension_numbers = #tpu.dot_dimension_numbers<[1], [0], [0], [1], [0, 0, 1, 1], [], []>} : vector<16x64xf32>, vector<64x8xf32>, vector<16x8xf32> -> vector<16x8xf32>
    %cst_201 = arith.constant dense<0.000000e+00> : vector<16x16xf32>
    %250 = tpu.matmul %249, %245, %cst_201 {dimension_numbers = #tpu.dot_dimension_numbers<[1], [0], [0], [1], [0, 0, 1, 1], [], []>} : vector<16x8xf32>, vector<8x16xf32>, vector<16x16xf32> -> vector<16x16xf32>
    %251 = arith.addf %241, %250 : vector<16x16xf32>
    %c0_202 = arith.constant 0 : index
    %c0_203 = arith.constant 0 : index
    %252 = vector.load %arg11[%c0_202, %c0_203] : memref<1x16xf32, #tpu.memory_space<vmem>>, vector<1x16xf32>
    %c0_204 = arith.constant 0 : index
    %c0_205 = arith.constant 0 : index
    %253 = vector.load %arg12[%c0_204, %c0_205] : memref<1x16xf32, #tpu.memory_space<vmem>>, vector<1x16xf32>
    %cst_206 = arith.constant dense<0.000000e+00> : vector<16xf32>
    %254 = vector.multi_reduction <add>, %248, %cst_206 [0] : vector<16x16xf32> to vector<16xf32>
    %255 = vector.shape_cast %254 : vector<16xf32> to vector<1x16xf32>
    %256 = arith.mulf %248, %248 : vector<16x16xf32>
    %cst_207 = arith.constant dense<0.000000e+00> : vector<16xf32>
    %257 = vector.multi_reduction <add>, %256, %cst_207 [0] : vector<16x16xf32> to vector<16xf32>
    %258 = vector.shape_cast %257 : vector<16xf32> to vector<1x16xf32>
    %cst_208 = arith.constant dense<0.000000e+00> : vector<16xf32>
    %259 = vector.multi_reduction <add>, %251, %cst_208 [0] : vector<16x16xf32> to vector<16xf32>
    %260 = vector.shape_cast %259 : vector<16xf32> to vector<1x16xf32>
    %261 = arith.addf %255, %260 : vector<1x16xf32>
    %262 = arith.mulf %251, %251 : vector<16x16xf32>
    %cst_209 = arith.constant dense<0.000000e+00> : vector<16xf32>
    %263 = vector.multi_reduction <add>, %262, %cst_209 [0] : vector<16x16xf32> to vector<16xf32>
    %264 = vector.shape_cast %263 : vector<16xf32> to vector<1x16xf32>
    %265 = arith.addf %258, %264 : vector<1x16xf32>
    %cst_210 = arith.constant 3.125000e-02 : f32
    %266 = vector.broadcast %cst_210 : f32 to vector<1x16xf32>
    %267 = arith.mulf %261, %266 : vector<1x16xf32>
    %cst_211 = arith.constant 3.125000e-02 : f32
    %268 = vector.broadcast %cst_211 : f32 to vector<1x16xf32>
    %269 = arith.mulf %265, %268 : vector<1x16xf32>
    %270 = arith.mulf %267, %267 : vector<1x16xf32>
    %271 = arith.subf %269, %270 : vector<1x16xf32>
    %cst_212 = arith.constant 9.99999974E-6 : f32
    %272 = vector.broadcast %cst_212 : f32 to vector<1x16xf32>
    %273 = arith.addf %271, %272 : vector<1x16xf32>
    %274 = math.rsqrt %273 : vector<1x16xf32>
    %275 = arith.mulf %252, %274 : vector<1x16xf32>
    %276 = arith.mulf %267, %275 : vector<1x16xf32>
    %277 = arith.subf %253, %276 : vector<1x16xf32>
    %278 = vector.broadcast %275 : vector<1x16xf32> to vector<16x16xf32>
    %279 = arith.mulf %248, %278 : vector<16x16xf32>
    %280 = vector.broadcast %277 : vector<1x16xf32> to vector<16x16xf32>
    %281 = arith.addf %279, %280 : vector<16x16xf32>
    %cst_213 = arith.constant 0.000000e+00 : f32
    %282 = vector.broadcast %cst_213 : f32 to vector<16x16xf32>
    %283 = arith.maximumf %281, %282 : vector<16x16xf32>
    %284 = vector.broadcast %275 : vector<1x16xf32> to vector<16x16xf32>
    %285 = arith.mulf %251, %284 : vector<16x16xf32>
    %286 = vector.broadcast %277 : vector<1x16xf32> to vector<16x16xf32>
    %287 = arith.addf %285, %286 : vector<16x16xf32>
    %cst_214 = arith.constant 0.000000e+00 : f32
    %288 = vector.broadcast %cst_214 : f32 to vector<16x16xf32>
    %289 = arith.maximumf %287, %288 : vector<16x16xf32>
    %cst_215 = arith.constant 0.000000e+00 : f32
    %290 = vector.broadcast %cst_215 : f32 to vector<4x32xf32>
    %cst_216 = arith.constant 0.000000e+00 : f32
    %291 = vector.broadcast %cst_216 : f32 to vector<4x32xf32>
    %c0_217 = arith.constant 0 : index
    %c0_218 = arith.constant 0 : index
    %c0_219 = arith.constant 0 : index
    %292 = vector.load %arg13[%c0_217, %c0_218, %c0_219] : memref<9x4x16xf32, #tpu.memory_space<vmem>>, vector<1x4x16xf32>
    %293 = vector.shape_cast %292 : vector<1x4x16xf32> to vector<4x16xf32>
    %c0_220 = arith.constant 0 : index
    %c0_221 = arith.constant 0 : index
    %c0_222 = arith.constant 0 : index
    %294 = vector.load %arg14[%c0_220, %c0_221, %c0_222] : memref<9x16x32xf32, #tpu.memory_space<vmem>>, vector<1x16x32xf32>
    %295 = vector.shape_cast %294 : vector<1x16x32xf32> to vector<16x32xf32>
    %cst_223 = arith.constant dense<0.000000e+00> : vector<4x16xf32>
    %296 = tpu.matmul %293, %283, %cst_223 {dimension_numbers = #tpu.dot_dimension_numbers<[1], [0], [0], [1], [0, 0, 1, 1], [], []>} : vector<4x16xf32>, vector<16x16xf32>, vector<4x16xf32> -> vector<4x16xf32>
    %cst_224 = arith.constant dense<0.000000e+00> : vector<4x32xf32>
    %297 = tpu.matmul %296, %295, %cst_224 {dimension_numbers = #tpu.dot_dimension_numbers<[1], [0], [0], [1], [0, 0, 1, 1], [], []>} : vector<4x16xf32>, vector<16x32xf32>, vector<4x32xf32> -> vector<4x32xf32>
    %298 = arith.addf %290, %297 : vector<4x32xf32>
    %cst_225 = arith.constant dense<0.000000e+00> : vector<4x16xf32>
    %299 = tpu.matmul %293, %289, %cst_225 {dimension_numbers = #tpu.dot_dimension_numbers<[1], [0], [0], [1], [0, 0, 1, 1], [], []>} : vector<4x16xf32>, vector<16x16xf32>, vector<4x16xf32> -> vector<4x16xf32>
    %cst_226 = arith.constant dense<0.000000e+00> : vector<4x32xf32>
    %300 = tpu.matmul %299, %295, %cst_226 {dimension_numbers = #tpu.dot_dimension_numbers<[1], [0], [0], [1], [0, 0, 1, 1], [], []>} : vector<4x16xf32>, vector<16x32xf32>, vector<4x32xf32> -> vector<4x32xf32>
    %301 = arith.addf %291, %300 : vector<4x32xf32>
    %c1_227 = arith.constant 1 : index
    %c0_228 = arith.constant 0 : index
    %c0_229 = arith.constant 0 : index
    %302 = vector.load %arg13[%c1_227, %c0_228, %c0_229] : memref<9x4x16xf32, #tpu.memory_space<vmem>>, vector<1x4x16xf32>
    %303 = vector.shape_cast %302 : vector<1x4x16xf32> to vector<4x16xf32>
    %c1_230 = arith.constant 1 : index
    %c0_231 = arith.constant 0 : index
    %c0_232 = arith.constant 0 : index
    %304 = vector.load %arg14[%c1_230, %c0_231, %c0_232] : memref<9x16x32xf32, #tpu.memory_space<vmem>>, vector<1x16x32xf32>
    %305 = vector.shape_cast %304 : vector<1x16x32xf32> to vector<16x32xf32>
    %cst_233 = arith.constant dense<0.000000e+00> : vector<4x16xf32>
    %306 = tpu.matmul %303, %283, %cst_233 {dimension_numbers = #tpu.dot_dimension_numbers<[1], [0], [0], [1], [0, 0, 1, 1], [], []>} : vector<4x16xf32>, vector<16x16xf32>, vector<4x16xf32> -> vector<4x16xf32>
    %cst_234 = arith.constant dense<0.000000e+00> : vector<4x32xf32>
    %307 = tpu.matmul %306, %305, %cst_234 {dimension_numbers = #tpu.dot_dimension_numbers<[1], [0], [0], [1], [0, 0, 1, 1], [], []>} : vector<4x16xf32>, vector<16x32xf32>, vector<4x32xf32> -> vector<4x32xf32>
    %308 = arith.addf %298, %307 : vector<4x32xf32>
    %cst_235 = arith.constant dense<0.000000e+00> : vector<4x16xf32>
    %309 = tpu.matmul %303, %289, %cst_235 {dimension_numbers = #tpu.dot_dimension_numbers<[1], [0], [0], [1], [0, 0, 1, 1], [], []>} : vector<4x16xf32>, vector<16x16xf32>, vector<4x16xf32> -> vector<4x16xf32>
    %cst_236 = arith.constant dense<0.000000e+00> : vector<4x32xf32>
    %310 = tpu.matmul %309, %305, %cst_236 {dimension_numbers = #tpu.dot_dimension_numbers<[1], [0], [0], [1], [0, 0, 1, 1], [], []>} : vector<4x16xf32>, vector<16x32xf32>, vector<4x32xf32> -> vector<4x32xf32>
    %311 = arith.addf %301, %310 : vector<4x32xf32>
    %c2_237 = arith.constant 2 : index
    %c0_238 = arith.constant 0 : index
    %c0_239 = arith.constant 0 : index
    %312 = vector.load %arg13[%c2_237, %c0_238, %c0_239] : memref<9x4x16xf32, #tpu.memory_space<vmem>>, vector<1x4x16xf32>
    %313 = vector.shape_cast %312 : vector<1x4x16xf32> to vector<4x16xf32>
    %c2_240 = arith.constant 2 : index
    %c0_241 = arith.constant 0 : index
    %c0_242 = arith.constant 0 : index
    %314 = vector.load %arg14[%c2_240, %c0_241, %c0_242] : memref<9x16x32xf32, #tpu.memory_space<vmem>>, vector<1x16x32xf32>
    %315 = vector.shape_cast %314 : vector<1x16x32xf32> to vector<16x32xf32>
    %cst_243 = arith.constant dense<0.000000e+00> : vector<4x16xf32>
    %316 = tpu.matmul %313, %283, %cst_243 {dimension_numbers = #tpu.dot_dimension_numbers<[1], [0], [0], [1], [0, 0, 1, 1], [], []>} : vector<4x16xf32>, vector<16x16xf32>, vector<4x16xf32> -> vector<4x16xf32>
    %cst_244 = arith.constant dense<0.000000e+00> : vector<4x32xf32>
    %317 = tpu.matmul %316, %315, %cst_244 {dimension_numbers = #tpu.dot_dimension_numbers<[1], [0], [0], [1], [0, 0, 1, 1], [], []>} : vector<4x16xf32>, vector<16x32xf32>, vector<4x32xf32> -> vector<4x32xf32>
    %318 = arith.addf %308, %317 : vector<4x32xf32>
    %cst_245 = arith.constant dense<0.000000e+00> : vector<4x16xf32>
    %319 = tpu.matmul %313, %289, %cst_245 {dimension_numbers = #tpu.dot_dimension_numbers<[1], [0], [0], [1], [0, 0, 1, 1], [], []>} : vector<4x16xf32>, vector<16x16xf32>, vector<4x16xf32> -> vector<4x16xf32>
    %cst_246 = arith.constant dense<0.000000e+00> : vector<4x32xf32>
    %320 = tpu.matmul %319, %315, %cst_246 {dimension_numbers = #tpu.dot_dimension_numbers<[1], [0], [0], [1], [0, 0, 1, 1], [], []>} : vector<4x16xf32>, vector<16x32xf32>, vector<4x32xf32> -> vector<4x32xf32>
    %321 = arith.addf %311, %320 : vector<4x32xf32>
    %c3_247 = arith.constant 3 : index
    %c0_248 = arith.constant 0 : index
    %c0_249 = arith.constant 0 : index
    %322 = vector.load %arg13[%c3_247, %c0_248, %c0_249] : memref<9x4x16xf32, #tpu.memory_space<vmem>>, vector<1x4x16xf32>
    %323 = vector.shape_cast %322 : vector<1x4x16xf32> to vector<4x16xf32>
    %c3_250 = arith.constant 3 : index
    %c0_251 = arith.constant 0 : index
    %c0_252 = arith.constant 0 : index
    %324 = vector.load %arg14[%c3_250, %c0_251, %c0_252] : memref<9x16x32xf32, #tpu.memory_space<vmem>>, vector<1x16x32xf32>
    %325 = vector.shape_cast %324 : vector<1x16x32xf32> to vector<16x32xf32>
    %cst_253 = arith.constant dense<0.000000e+00> : vector<4x16xf32>
    %326 = tpu.matmul %323, %283, %cst_253 {dimension_numbers = #tpu.dot_dimension_numbers<[1], [0], [0], [1], [0, 0, 1, 1], [], []>} : vector<4x16xf32>, vector<16x16xf32>, vector<4x16xf32> -> vector<4x16xf32>
    %cst_254 = arith.constant dense<0.000000e+00> : vector<4x32xf32>
    %327 = tpu.matmul %326, %325, %cst_254 {dimension_numbers = #tpu.dot_dimension_numbers<[1], [0], [0], [1], [0, 0, 1, 1], [], []>} : vector<4x16xf32>, vector<16x32xf32>, vector<4x32xf32> -> vector<4x32xf32>
    %328 = arith.addf %318, %327 : vector<4x32xf32>
    %cst_255 = arith.constant dense<0.000000e+00> : vector<4x16xf32>
    %329 = tpu.matmul %323, %289, %cst_255 {dimension_numbers = #tpu.dot_dimension_numbers<[1], [0], [0], [1], [0, 0, 1, 1], [], []>} : vector<4x16xf32>, vector<16x16xf32>, vector<4x16xf32> -> vector<4x16xf32>
    %cst_256 = arith.constant dense<0.000000e+00> : vector<4x32xf32>
    %330 = tpu.matmul %329, %325, %cst_256 {dimension_numbers = #tpu.dot_dimension_numbers<[1], [0], [0], [1], [0, 0, 1, 1], [], []>} : vector<4x16xf32>, vector<16x32xf32>, vector<4x32xf32> -> vector<4x32xf32>
    %331 = arith.addf %321, %330 : vector<4x32xf32>
    %c4_257 = arith.constant 4 : index
    %c0_258 = arith.constant 0 : index
    %c0_259 = arith.constant 0 : index
    %332 = vector.load %arg13[%c4_257, %c0_258, %c0_259] : memref<9x4x16xf32, #tpu.memory_space<vmem>>, vector<1x4x16xf32>
    %333 = vector.shape_cast %332 : vector<1x4x16xf32> to vector<4x16xf32>
    %c4_260 = arith.constant 4 : index
    %c0_261 = arith.constant 0 : index
    %c0_262 = arith.constant 0 : index
    %334 = vector.load %arg14[%c4_260, %c0_261, %c0_262] : memref<9x16x32xf32, #tpu.memory_space<vmem>>, vector<1x16x32xf32>
    %335 = vector.shape_cast %334 : vector<1x16x32xf32> to vector<16x32xf32>
    %cst_263 = arith.constant dense<0.000000e+00> : vector<4x16xf32>
    %336 = tpu.matmul %333, %283, %cst_263 {dimension_numbers = #tpu.dot_dimension_numbers<[1], [0], [0], [1], [0, 0, 1, 1], [], []>} : vector<4x16xf32>, vector<16x16xf32>, vector<4x16xf32> -> vector<4x16xf32>
    %cst_264 = arith.constant dense<0.000000e+00> : vector<4x32xf32>
    %337 = tpu.matmul %336, %335, %cst_264 {dimension_numbers = #tpu.dot_dimension_numbers<[1], [0], [0], [1], [0, 0, 1, 1], [], []>} : vector<4x16xf32>, vector<16x32xf32>, vector<4x32xf32> -> vector<4x32xf32>
    %338 = arith.addf %328, %337 : vector<4x32xf32>
    %cst_265 = arith.constant dense<0.000000e+00> : vector<4x16xf32>
    %339 = tpu.matmul %333, %289, %cst_265 {dimension_numbers = #tpu.dot_dimension_numbers<[1], [0], [0], [1], [0, 0, 1, 1], [], []>} : vector<4x16xf32>, vector<16x16xf32>, vector<4x16xf32> -> vector<4x16xf32>
    %cst_266 = arith.constant dense<0.000000e+00> : vector<4x32xf32>
    %340 = tpu.matmul %339, %335, %cst_266 {dimension_numbers = #tpu.dot_dimension_numbers<[1], [0], [0], [1], [0, 0, 1, 1], [], []>} : vector<4x16xf32>, vector<16x32xf32>, vector<4x32xf32> -> vector<4x32xf32>
    %341 = arith.addf %331, %340 : vector<4x32xf32>
    %c5_267 = arith.constant 5 : index
    %c0_268 = arith.constant 0 : index
    %c0_269 = arith.constant 0 : index
    %342 = vector.load %arg13[%c5_267, %c0_268, %c0_269] : memref<9x4x16xf32, #tpu.memory_space<vmem>>, vector<1x4x16xf32>
    %343 = vector.shape_cast %342 : vector<1x4x16xf32> to vector<4x16xf32>
    %c5_270 = arith.constant 5 : index
    %c0_271 = arith.constant 0 : index
    %c0_272 = arith.constant 0 : index
    %344 = vector.load %arg14[%c5_270, %c0_271, %c0_272] : memref<9x16x32xf32, #tpu.memory_space<vmem>>, vector<1x16x32xf32>
    %345 = vector.shape_cast %344 : vector<1x16x32xf32> to vector<16x32xf32>
    %cst_273 = arith.constant dense<0.000000e+00> : vector<4x16xf32>
    %346 = tpu.matmul %343, %283, %cst_273 {dimension_numbers = #tpu.dot_dimension_numbers<[1], [0], [0], [1], [0, 0, 1, 1], [], []>} : vector<4x16xf32>, vector<16x16xf32>, vector<4x16xf32> -> vector<4x16xf32>
    %cst_274 = arith.constant dense<0.000000e+00> : vector<4x32xf32>
    %347 = tpu.matmul %346, %345, %cst_274 {dimension_numbers = #tpu.dot_dimension_numbers<[1], [0], [0], [1], [0, 0, 1, 1], [], []>} : vector<4x16xf32>, vector<16x32xf32>, vector<4x32xf32> -> vector<4x32xf32>
    %348 = arith.addf %338, %347 : vector<4x32xf32>
    %cst_275 = arith.constant dense<0.000000e+00> : vector<4x16xf32>
    %349 = tpu.matmul %343, %289, %cst_275 {dimension_numbers = #tpu.dot_dimension_numbers<[1], [0], [0], [1], [0, 0, 1, 1], [], []>} : vector<4x16xf32>, vector<16x16xf32>, vector<4x16xf32> -> vector<4x16xf32>
    %cst_276 = arith.constant dense<0.000000e+00> : vector<4x32xf32>
    %350 = tpu.matmul %349, %345, %cst_276 {dimension_numbers = #tpu.dot_dimension_numbers<[1], [0], [0], [1], [0, 0, 1, 1], [], []>} : vector<4x16xf32>, vector<16x32xf32>, vector<4x32xf32> -> vector<4x32xf32>
    %351 = arith.addf %341, %350 : vector<4x32xf32>
    %c6_277 = arith.constant 6 : index
    %c0_278 = arith.constant 0 : index
    %c0_279 = arith.constant 0 : index
    %352 = vector.load %arg13[%c6_277, %c0_278, %c0_279] : memref<9x4x16xf32, #tpu.memory_space<vmem>>, vector<1x4x16xf32>
    %353 = vector.shape_cast %352 : vector<1x4x16xf32> to vector<4x16xf32>
    %c6_280 = arith.constant 6 : index
    %c0_281 = arith.constant 0 : index
    %c0_282 = arith.constant 0 : index
    %354 = vector.load %arg14[%c6_280, %c0_281, %c0_282] : memref<9x16x32xf32, #tpu.memory_space<vmem>>, vector<1x16x32xf32>
    %355 = vector.shape_cast %354 : vector<1x16x32xf32> to vector<16x32xf32>
    %cst_283 = arith.constant dense<0.000000e+00> : vector<4x16xf32>
    %356 = tpu.matmul %353, %283, %cst_283 {dimension_numbers = #tpu.dot_dimension_numbers<[1], [0], [0], [1], [0, 0, 1, 1], [], []>} : vector<4x16xf32>, vector<16x16xf32>, vector<4x16xf32> -> vector<4x16xf32>
    %cst_284 = arith.constant dense<0.000000e+00> : vector<4x32xf32>
    %357 = tpu.matmul %356, %355, %cst_284 {dimension_numbers = #tpu.dot_dimension_numbers<[1], [0], [0], [1], [0, 0, 1, 1], [], []>} : vector<4x16xf32>, vector<16x32xf32>, vector<4x32xf32> -> vector<4x32xf32>
    %358 = arith.addf %348, %357 : vector<4x32xf32>
    %cst_285 = arith.constant dense<0.000000e+00> : vector<4x16xf32>
    %359 = tpu.matmul %353, %289, %cst_285 {dimension_numbers = #tpu.dot_dimension_numbers<[1], [0], [0], [1], [0, 0, 1, 1], [], []>} : vector<4x16xf32>, vector<16x16xf32>, vector<4x16xf32> -> vector<4x16xf32>
    %cst_286 = arith.constant dense<0.000000e+00> : vector<4x32xf32>
    %360 = tpu.matmul %359, %355, %cst_286 {dimension_numbers = #tpu.dot_dimension_numbers<[1], [0], [0], [1], [0, 0, 1, 1], [], []>} : vector<4x16xf32>, vector<16x32xf32>, vector<4x32xf32> -> vector<4x32xf32>
    %361 = arith.addf %351, %360 : vector<4x32xf32>
    %c7_287 = arith.constant 7 : index
    %c0_288 = arith.constant 0 : index
    %c0_289 = arith.constant 0 : index
    %362 = vector.load %arg13[%c7_287, %c0_288, %c0_289] : memref<9x4x16xf32, #tpu.memory_space<vmem>>, vector<1x4x16xf32>
    %363 = vector.shape_cast %362 : vector<1x4x16xf32> to vector<4x16xf32>
    %c7_290 = arith.constant 7 : index
    %c0_291 = arith.constant 0 : index
    %c0_292 = arith.constant 0 : index
    %364 = vector.load %arg14[%c7_290, %c0_291, %c0_292] : memref<9x16x32xf32, #tpu.memory_space<vmem>>, vector<1x16x32xf32>
    %365 = vector.shape_cast %364 : vector<1x16x32xf32> to vector<16x32xf32>
    %cst_293 = arith.constant dense<0.000000e+00> : vector<4x16xf32>
    %366 = tpu.matmul %363, %283, %cst_293 {dimension_numbers = #tpu.dot_dimension_numbers<[1], [0], [0], [1], [0, 0, 1, 1], [], []>} : vector<4x16xf32>, vector<16x16xf32>, vector<4x16xf32> -> vector<4x16xf32>
    %cst_294 = arith.constant dense<0.000000e+00> : vector<4x32xf32>
    %367 = tpu.matmul %366, %365, %cst_294 {dimension_numbers = #tpu.dot_dimension_numbers<[1], [0], [0], [1], [0, 0, 1, 1], [], []>} : vector<4x16xf32>, vector<16x32xf32>, vector<4x32xf32> -> vector<4x32xf32>
    %368 = arith.addf %358, %367 : vector<4x32xf32>
    %cst_295 = arith.constant dense<0.000000e+00> : vector<4x16xf32>
    %369 = tpu.matmul %363, %289, %cst_295 {dimension_numbers = #tpu.dot_dimension_numbers<[1], [0], [0], [1], [0, 0, 1, 1], [], []>} : vector<4x16xf32>, vector<16x16xf32>, vector<4x16xf32> -> vector<4x16xf32>
    %cst_296 = arith.constant dense<0.000000e+00> : vector<4x32xf32>
    %370 = tpu.matmul %369, %365, %cst_296 {dimension_numbers = #tpu.dot_dimension_numbers<[1], [0], [0], [1], [0, 0, 1, 1], [], []>} : vector<4x16xf32>, vector<16x32xf32>, vector<4x32xf32> -> vector<4x32xf32>
    %371 = arith.addf %361, %370 : vector<4x32xf32>
    %c8_297 = arith.constant 8 : index
    %c0_298 = arith.constant 0 : index
    %c0_299 = arith.constant 0 : index
    %372 = vector.load %arg13[%c8_297, %c0_298, %c0_299] : memref<9x4x16xf32, #tpu.memory_space<vmem>>, vector<1x4x16xf32>
    %373 = vector.shape_cast %372 : vector<1x4x16xf32> to vector<4x16xf32>
    %c8_300 = arith.constant 8 : index
    %c0_301 = arith.constant 0 : index
    %c0_302 = arith.constant 0 : index
    %374 = vector.load %arg14[%c8_300, %c0_301, %c0_302] : memref<9x16x32xf32, #tpu.memory_space<vmem>>, vector<1x16x32xf32>
    %375 = vector.shape_cast %374 : vector<1x16x32xf32> to vector<16x32xf32>
    %cst_303 = arith.constant dense<0.000000e+00> : vector<4x16xf32>
    %376 = tpu.matmul %373, %283, %cst_303 {dimension_numbers = #tpu.dot_dimension_numbers<[1], [0], [0], [1], [0, 0, 1, 1], [], []>} : vector<4x16xf32>, vector<16x16xf32>, vector<4x16xf32> -> vector<4x16xf32>
    %cst_304 = arith.constant dense<0.000000e+00> : vector<4x32xf32>
    %377 = tpu.matmul %376, %375, %cst_304 {dimension_numbers = #tpu.dot_dimension_numbers<[1], [0], [0], [1], [0, 0, 1, 1], [], []>} : vector<4x16xf32>, vector<16x32xf32>, vector<4x32xf32> -> vector<4x32xf32>
    %378 = arith.addf %368, %377 : vector<4x32xf32>
    %cst_305 = arith.constant dense<0.000000e+00> : vector<4x16xf32>
    %379 = tpu.matmul %373, %289, %cst_305 {dimension_numbers = #tpu.dot_dimension_numbers<[1], [0], [0], [1], [0, 0, 1, 1], [], []>} : vector<4x16xf32>, vector<16x16xf32>, vector<4x16xf32> -> vector<4x16xf32>
    %cst_306 = arith.constant dense<0.000000e+00> : vector<4x32xf32>
    %380 = tpu.matmul %379, %375, %cst_306 {dimension_numbers = #tpu.dot_dimension_numbers<[1], [0], [0], [1], [0, 0, 1, 1], [], []>} : vector<4x16xf32>, vector<16x32xf32>, vector<4x32xf32> -> vector<4x32xf32>
    %381 = arith.addf %371, %380 : vector<4x32xf32>
    %c0_307 = arith.constant 0 : index
    %c0_308 = arith.constant 0 : index
    %382 = vector.load %arg15[%c0_307, %c0_308] : memref<1x32xf32, #tpu.memory_space<vmem>>, vector<1x32xf32>
    %c0_309 = arith.constant 0 : index
    %c0_310 = arith.constant 0 : index
    %383 = vector.load %arg16[%c0_309, %c0_310] : memref<1x32xf32, #tpu.memory_space<vmem>>, vector<1x32xf32>
    %cst_311 = arith.constant dense<0.000000e+00> : vector<32xf32>
    %384 = vector.multi_reduction <add>, %378, %cst_311 [0] : vector<4x32xf32> to vector<32xf32>
    %385 = vector.shape_cast %384 : vector<32xf32> to vector<1x32xf32>
    %386 = arith.mulf %378, %378 : vector<4x32xf32>
    %cst_312 = arith.constant dense<0.000000e+00> : vector<32xf32>
    %387 = vector.multi_reduction <add>, %386, %cst_312 [0] : vector<4x32xf32> to vector<32xf32>
    %388 = vector.shape_cast %387 : vector<32xf32> to vector<1x32xf32>
    %cst_313 = arith.constant dense<0.000000e+00> : vector<32xf32>
    %389 = vector.multi_reduction <add>, %381, %cst_313 [0] : vector<4x32xf32> to vector<32xf32>
    %390 = vector.shape_cast %389 : vector<32xf32> to vector<1x32xf32>
    %391 = arith.addf %385, %390 : vector<1x32xf32>
    %392 = arith.mulf %381, %381 : vector<4x32xf32>
    %cst_314 = arith.constant dense<0.000000e+00> : vector<32xf32>
    %393 = vector.multi_reduction <add>, %392, %cst_314 [0] : vector<4x32xf32> to vector<32xf32>
    %394 = vector.shape_cast %393 : vector<32xf32> to vector<1x32xf32>
    %395 = arith.addf %388, %394 : vector<1x32xf32>
    %cst_315 = arith.constant 1.250000e-01 : f32
    %396 = vector.broadcast %cst_315 : f32 to vector<1x32xf32>
    %397 = arith.mulf %391, %396 : vector<1x32xf32>
    %cst_316 = arith.constant 1.250000e-01 : f32
    %398 = vector.broadcast %cst_316 : f32 to vector<1x32xf32>
    %399 = arith.mulf %395, %398 : vector<1x32xf32>
    %400 = arith.mulf %397, %397 : vector<1x32xf32>
    %401 = arith.subf %399, %400 : vector<1x32xf32>
    %cst_317 = arith.constant 9.99999974E-6 : f32
    %402 = vector.broadcast %cst_317 : f32 to vector<1x32xf32>
    %403 = arith.addf %401, %402 : vector<1x32xf32>
    %404 = math.rsqrt %403 : vector<1x32xf32>
    %405 = arith.mulf %382, %404 : vector<1x32xf32>
    %406 = arith.mulf %397, %405 : vector<1x32xf32>
    %407 = arith.subf %383, %406 : vector<1x32xf32>
    %408 = vector.broadcast %405 : vector<1x32xf32> to vector<4x32xf32>
    %409 = arith.mulf %378, %408 : vector<4x32xf32>
    %410 = vector.broadcast %407 : vector<1x32xf32> to vector<4x32xf32>
    %411 = arith.addf %409, %410 : vector<4x32xf32>
    %cst_318 = arith.constant 0.000000e+00 : f32
    %412 = vector.broadcast %cst_318 : f32 to vector<4x32xf32>
    %413 = arith.maximumf %411, %412 : vector<4x32xf32>
    %414 = vector.broadcast %405 : vector<1x32xf32> to vector<4x32xf32>
    %415 = arith.mulf %381, %414 : vector<4x32xf32>
    %416 = vector.broadcast %407 : vector<1x32xf32> to vector<4x32xf32>
    %417 = arith.addf %415, %416 : vector<4x32xf32>
    %cst_319 = arith.constant 0.000000e+00 : f32
    %418 = vector.broadcast %cst_319 : f32 to vector<4x32xf32>
    %419 = arith.maximumf %417, %418 : vector<4x32xf32>
    %cst_320 = arith.constant 0.000000e+00 : f32
    %420 = vector.broadcast %cst_320 : f32 to vector<1x1xf32>
    %cst_321 = arith.constant 0.000000e+00 : f32
    %421 = vector.broadcast %cst_321 : f32 to vector<1x1xf32>
    %c0_322 = arith.constant 0 : index
    %c0_323 = arith.constant 0 : index
    %c0_324 = arith.constant 0 : index
    %422 = vector.load %arg17[%c0_322, %c0_323, %c0_324] : memref<4x1x4xf32, #tpu.memory_space<vmem>>, vector<1x1x4xf32>
    %423 = vector.shape_cast %422 : vector<1x1x4xf32> to vector<1x4xf32>
    %c0_325 = arith.constant 0 : index
    %c0_326 = arith.constant 0 : index
    %c0_327 = arith.constant 0 : index
    %424 = vector.load %arg18[%c0_325, %c0_326, %c0_327] : memref<4x32x1xf32, #tpu.memory_space<vmem>>, vector<1x32x1xf32>
    %425 = vector.shape_cast %424 : vector<1x32x1xf32> to vector<32x1xf32>
    %cst_328 = arith.constant dense<0.000000e+00> : vector<1x32xf32>
    %426 = tpu.matmul %423, %413, %cst_328 {dimension_numbers = #tpu.dot_dimension_numbers<[1], [0], [0], [1], [0, 0, 1, 1], [], []>} : vector<1x4xf32>, vector<4x32xf32>, vector<1x32xf32> -> vector<1x32xf32>
    %cst_329 = arith.constant dense<0.000000e+00> : vector<1x1xf32>
    %427 = tpu.matmul %426, %425, %cst_329 {dimension_numbers = #tpu.dot_dimension_numbers<[1], [0], [0], [1], [0, 0, 1, 1], [], []>} : vector<1x32xf32>, vector<32x1xf32>, vector<1x1xf32> -> vector<1x1xf32>
    %428 = arith.addf %420, %427 : vector<1x1xf32>
    %cst_330 = arith.constant dense<0.000000e+00> : vector<1x32xf32>
    %429 = tpu.matmul %423, %419, %cst_330 {dimension_numbers = #tpu.dot_dimension_numbers<[1], [0], [0], [1], [0, 0, 1, 1], [], []>} : vector<1x4xf32>, vector<4x32xf32>, vector<1x32xf32> -> vector<1x32xf32>
    %cst_331 = arith.constant dense<0.000000e+00> : vector<1x1xf32>
    %430 = tpu.matmul %429, %425, %cst_331 {dimension_numbers = #tpu.dot_dimension_numbers<[1], [0], [0], [1], [0, 0, 1, 1], [], []>} : vector<1x32xf32>, vector<32x1xf32>, vector<1x1xf32> -> vector<1x1xf32>
    %431 = arith.addf %421, %430 : vector<1x1xf32>
    %c1_332 = arith.constant 1 : index
    %c0_333 = arith.constant 0 : index
    %c0_334 = arith.constant 0 : index
    %432 = vector.load %arg17[%c1_332, %c0_333, %c0_334] : memref<4x1x4xf32, #tpu.memory_space<vmem>>, vector<1x1x4xf32>
    %433 = vector.shape_cast %432 : vector<1x1x4xf32> to vector<1x4xf32>
    %c1_335 = arith.constant 1 : index
    %c0_336 = arith.constant 0 : index
    %c0_337 = arith.constant 0 : index
    %434 = vector.load %arg18[%c1_335, %c0_336, %c0_337] : memref<4x32x1xf32, #tpu.memory_space<vmem>>, vector<1x32x1xf32>
    %435 = vector.shape_cast %434 : vector<1x32x1xf32> to vector<32x1xf32>
    %cst_338 = arith.constant dense<0.000000e+00> : vector<1x32xf32>
    %436 = tpu.matmul %433, %413, %cst_338 {dimension_numbers = #tpu.dot_dimension_numbers<[1], [0], [0], [1], [0, 0, 1, 1], [], []>} : vector<1x4xf32>, vector<4x32xf32>, vector<1x32xf32> -> vector<1x32xf32>
    %cst_339 = arith.constant dense<0.000000e+00> : vector<1x1xf32>
    %437 = tpu.matmul %436, %435, %cst_339 {dimension_numbers = #tpu.dot_dimension_numbers<[1], [0], [0], [1], [0, 0, 1, 1], [], []>} : vector<1x32xf32>, vector<32x1xf32>, vector<1x1xf32> -> vector<1x1xf32>
    %438 = arith.addf %428, %437 : vector<1x1xf32>
    %cst_340 = arith.constant dense<0.000000e+00> : vector<1x32xf32>
    %439 = tpu.matmul %433, %419, %cst_340 {dimension_numbers = #tpu.dot_dimension_numbers<[1], [0], [0], [1], [0, 0, 1, 1], [], []>} : vector<1x4xf32>, vector<4x32xf32>, vector<1x32xf32> -> vector<1x32xf32>
    %cst_341 = arith.constant dense<0.000000e+00> : vector<1x1xf32>
    %440 = tpu.matmul %439, %435, %cst_341 {dimension_numbers = #tpu.dot_dimension_numbers<[1], [0], [0], [1], [0, 0, 1, 1], [], []>} : vector<1x32xf32>, vector<32x1xf32>, vector<1x1xf32> -> vector<1x1xf32>
    %441 = arith.addf %431, %440 : vector<1x1xf32>
    %c2_342 = arith.constant 2 : index
    %c0_343 = arith.constant 0 : index
    %c0_344 = arith.constant 0 : index
    %442 = vector.load %arg17[%c2_342, %c0_343, %c0_344] : memref<4x1x4xf32, #tpu.memory_space<vmem>>, vector<1x1x4xf32>
    %443 = vector.shape_cast %442 : vector<1x1x4xf32> to vector<1x4xf32>
    %c2_345 = arith.constant 2 : index
    %c0_346 = arith.constant 0 : index
    %c0_347 = arith.constant 0 : index
    %444 = vector.load %arg18[%c2_345, %c0_346, %c0_347] : memref<4x32x1xf32, #tpu.memory_space<vmem>>, vector<1x32x1xf32>
    %445 = vector.shape_cast %444 : vector<1x32x1xf32> to vector<32x1xf32>
    %cst_348 = arith.constant dense<0.000000e+00> : vector<1x32xf32>
    %446 = tpu.matmul %443, %413, %cst_348 {dimension_numbers = #tpu.dot_dimension_numbers<[1], [0], [0], [1], [0, 0, 1, 1], [], []>} : vector<1x4xf32>, vector<4x32xf32>, vector<1x32xf32> -> vector<1x32xf32>
    %cst_349 = arith.constant dense<0.000000e+00> : vector<1x1xf32>
    %447 = tpu.matmul %446, %445, %cst_349 {dimension_numbers = #tpu.dot_dimension_numbers<[1], [0], [0], [1], [0, 0, 1, 1], [], []>} : vector<1x32xf32>, vector<32x1xf32>, vector<1x1xf32> -> vector<1x1xf32>
    %448 = arith.addf %438, %447 : vector<1x1xf32>
    %cst_350 = arith.constant dense<0.000000e+00> : vector<1x32xf32>
    %449 = tpu.matmul %443, %419, %cst_350 {dimension_numbers = #tpu.dot_dimension_numbers<[1], [0], [0], [1], [0, 0, 1, 1], [], []>} : vector<1x4xf32>, vector<4x32xf32>, vector<1x32xf32> -> vector<1x32xf32>
    %cst_351 = arith.constant dense<0.000000e+00> : vector<1x1xf32>
    %450 = tpu.matmul %449, %445, %cst_351 {dimension_numbers = #tpu.dot_dimension_numbers<[1], [0], [0], [1], [0, 0, 1, 1], [], []>} : vector<1x32xf32>, vector<32x1xf32>, vector<1x1xf32> -> vector<1x1xf32>
    %451 = arith.addf %441, %450 : vector<1x1xf32>
    %c3_352 = arith.constant 3 : index
    %c0_353 = arith.constant 0 : index
    %c0_354 = arith.constant 0 : index
    %452 = vector.load %arg17[%c3_352, %c0_353, %c0_354] : memref<4x1x4xf32, #tpu.memory_space<vmem>>, vector<1x1x4xf32>
    %453 = vector.shape_cast %452 : vector<1x1x4xf32> to vector<1x4xf32>
    %c3_355 = arith.constant 3 : index
    %c0_356 = arith.constant 0 : index
    %c0_357 = arith.constant 0 : index
    %454 = vector.load %arg18[%c3_355, %c0_356, %c0_357] : memref<4x32x1xf32, #tpu.memory_space<vmem>>, vector<1x32x1xf32>
    %455 = vector.shape_cast %454 : vector<1x32x1xf32> to vector<32x1xf32>
    %cst_358 = arith.constant dense<0.000000e+00> : vector<1x32xf32>
    %456 = tpu.matmul %453, %413, %cst_358 {dimension_numbers = #tpu.dot_dimension_numbers<[1], [0], [0], [1], [0, 0, 1, 1], [], []>} : vector<1x4xf32>, vector<4x32xf32>, vector<1x32xf32> -> vector<1x32xf32>
    %cst_359 = arith.constant dense<0.000000e+00> : vector<1x1xf32>
    %457 = tpu.matmul %456, %455, %cst_359 {dimension_numbers = #tpu.dot_dimension_numbers<[1], [0], [0], [1], [0, 0, 1, 1], [], []>} : vector<1x32xf32>, vector<32x1xf32>, vector<1x1xf32> -> vector<1x1xf32>
    %458 = arith.addf %448, %457 : vector<1x1xf32>
    %cst_360 = arith.constant dense<0.000000e+00> : vector<1x32xf32>
    %459 = tpu.matmul %453, %419, %cst_360 {dimension_numbers = #tpu.dot_dimension_numbers<[1], [0], [0], [1], [0, 0, 1, 1], [], []>} : vector<1x4xf32>, vector<4x32xf32>, vector<1x32xf32> -> vector<1x32xf32>
    %cst_361 = arith.constant dense<0.000000e+00> : vector<1x1xf32>
    %460 = tpu.matmul %459, %455, %cst_361 {dimension_numbers = #tpu.dot_dimension_numbers<[1], [0], [0], [1], [0, 0, 1, 1], [], []>} : vector<1x32xf32>, vector<32x1xf32>, vector<1x1xf32> -> vector<1x1xf32>
    %461 = arith.addf %451, %460 : vector<1x1xf32>
    %462 = tpu.concatenate %458, %461 in 0 : vector<1x1xf32>, vector<1x1xf32> -> vector<2x1xf32>
    %cst_362 = arith.constant 0.000000e+00 : f32
    %463 = vector.broadcast %cst_362 : f32 to vector<2x1xf32>
    %464 = arith.subf %463, %462 : vector<2x1xf32>
    %465 = math.exp %464 : vector<2x1xf32>
    %cst_363 = arith.constant 1.000000e+00 : f32
    %466 = vector.broadcast %cst_363 : f32 to vector<2x1xf32>
    %467 = arith.addf %466, %465 : vector<2x1xf32>
    %468 = tpu.reciprocal %467 {approx = true} : vector<2x1xf32> -> vector<2x1xf32>
    %c0_364 = arith.constant 0 : index
    %c0_365 = arith.constant 0 : index
    %469 = vector.load %arg19[%c0_364, %c0_365] : memref<2x1xf32, #tpu.memory_space<vmem>>, vector<2x1xf32>
    tpu.vector_store %arg19[%c0_364, %c0_365], %468 {strides = array<i32>} : memref<2x1xf32, #tpu.memory_space<vmem>>, vector<2x1xf32>,
    return
  }
  func.func @transform_0(%arg0: i32) -> (i32, i32) {
    %c0_i32 = arith.constant 0 : i32
    %c0_i32_0 = arith.constant 0 : i32
    %c0_i32_1 = arith.constant 0 : i32
    return %c0_i32, %c0_i32_0 : i32, i32
  }
  func.func @transform_1(%arg0: i32) -> (i32, i32) {
    %c0_i32 = arith.constant 0 : i32
    %c0_i32_0 = arith.constant 0 : i32
    %c0_i32_1 = arith.constant 0 : i32
    return %c0_i32, %c0_i32_0 : i32, i32
  }
  func.func @transform_2(%arg0: i32) -> (i32, i32) {
    %c0_i32 = arith.constant 0 : i32
    %c0_i32_0 = arith.constant 0 : i32
    %c0_i32_1 = arith.constant 0 : i32
    return %c0_i32, %c0_i32_0 : i32, i32
  }
  func.func @transform_3(%arg0: i32) -> (i32, i32) {
    %c0_i32 = arith.constant 0 : i32
    %c0_i32_0 = arith.constant 0 : i32
    %c0_i32_1 = arith.constant 0 : i32
    return %c0_i32, %c0_i32_0 : i32, i32
  }
  func.func @transform_4(%arg0: i32) -> (i32, i32, i32) {
    %c0_i32 = arith.constant 0 : i32
    %c0_i32_0 = arith.constant 0 : i32
    %c0_i32_1 = arith.constant 0 : i32
    %c0_i32_2 = arith.constant 0 : i32
    return %c0_i32, %c0_i32_0, %c0_i32_1 : i32, i32, i32
  }
  func.func @transform_5(%arg0: i32) -> (i32, i32, i32) {
    %c0_i32 = arith.constant 0 : i32
    %c0_i32_0 = arith.constant 0 : i32
    %c0_i32_1 = arith.constant 0 : i32
    %c0_i32_2 = arith.constant 0 : i32
    return %c0_i32, %c0_i32_0, %c0_i32_1 : i32, i32, i32
  }
  func.func @transform_6(%arg0: i32) -> (i32, i32) {
    %c0_i32 = arith.constant 0 : i32
    %c0_i32_0 = arith.constant 0 : i32
    %c0_i32_1 = arith.constant 0 : i32
    return %c0_i32, %c0_i32_0 : i32, i32
  }
  func.func @transform_7(%arg0: i32) -> (i32, i32) {
    %c0_i32 = arith.constant 0 : i32
    %c0_i32_0 = arith.constant 0 : i32
    %c0_i32_1 = arith.constant 0 : i32
    return %c0_i32, %c0_i32_0 : i32, i32
  }
  func.func @transform_8(%arg0: i32) -> (i32, i32, i32) {
    %c0_i32 = arith.constant 0 : i32
    %c0_i32_0 = arith.constant 0 : i32
    %c0_i32_1 = arith.constant 0 : i32
    %c0_i32_2 = arith.constant 0 : i32
    return %c0_i32, %c0_i32_0, %c0_i32_1 : i32, i32, i32
  }
  func.func @transform_9(%arg0: i32) -> (i32, i32, i32) {
    %c0_i32 = arith.constant 0 : i32
    %c0_i32_0 = arith.constant 0 : i32
    %c0_i32_1 = arith.constant 0 : i32
    %c0_i32_2 = arith.constant 0 : i32
    return %c0_i32, %c0_i32_0, %c0_i32_1 : i32, i32, i32
  }
  func.func @transform_10(%arg0: i32) -> (i32, i32) {
    %c0_i32 = arith.constant 0 : i32
    %c0_i32_0 = arith.constant 0 : i32
    %c0_i32_1 = arith.constant 0 : i32
    return %c0_i32, %c0_i32_0 : i32, i32
  }
  func.func @transform_11(%arg0: i32) -> (i32, i32) {
    %c0_i32 = arith.constant 0 : i32
    %c0_i32_0 = arith.constant 0 : i32
    %c0_i32_1 = arith.constant 0 : i32
    return %c0_i32, %c0_i32_0 : i32, i32
  }
  func.func @transform_12(%arg0: i32) -> (i32, i32, i32) {
    %c0_i32 = arith.constant 0 : i32
    %c0_i32_0 = arith.constant 0 : i32
    %c0_i32_1 = arith.constant 0 : i32
    %c0_i32_2 = arith.constant 0 : i32
    return %c0_i32, %c0_i32_0, %c0_i32_1 : i32, i32, i32
  }
  func.func @transform_13(%arg0: i32) -> (i32, i32, i32) {
    %c0_i32 = arith.constant 0 : i32
    %c0_i32_0 = arith.constant 0 : i32
    %c0_i32_1 = arith.constant 0 : i32
    %c0_i32_2 = arith.constant 0 : i32
    return %c0_i32, %c0_i32_0, %c0_i32_1 : i32, i32, i32
  }
  func.func @transform_14(%arg0: i32) -> (i32, i32) {
    %c0_i32 = arith.constant 0 : i32
    %c0_i32_0 = arith.constant 0 : i32
    %c0_i32_1 = arith.constant 0 : i32
    return %c0_i32, %c0_i32_0 : i32, i32
  }
  func.func @transform_15(%arg0: i32) -> (i32, i32) {
    %c0_i32 = arith.constant 0 : i32
    %c0_i32_0 = arith.constant 0 : i32
    %c0_i32_1 = arith.constant 0 : i32
    return %c0_i32, %c0_i32_0 : i32, i32
  }
  func.func @transform_16(%arg0: i32) -> (i32, i32, i32) {
    %c0_i32 = arith.constant 0 : i32
    %c0_i32_0 = arith.constant 0 : i32
    %c0_i32_1 = arith.constant 0 : i32
    %c0_i32_2 = arith.constant 0 : i32
    return %c0_i32, %c0_i32_0, %c0_i32_1 : i32, i32, i32
  }
  func.func @transform_17(%arg0: i32) -> (i32, i32, i32) {
    %c0_i32 = arith.constant 0 : i32
    %c0_i32_0 = arith.constant 0 : i32
    %c0_i32_1 = arith.constant 0 : i32
    %c0_i32_2 = arith.constant 0 : i32
    return %c0_i32, %c0_i32_0, %c0_i32_1 : i32, i32, i32
  }
  func.func @transform_18(%arg0: i32) -> (i32, i32) {
    %c0_i32 = arith.constant 0 : i32
    %c0_i32_0 = arith.constant 0 : i32
    %c0_i32_1 = arith.constant 0 : i32
    return %c0_i32, %c0_i32_0 : i32, i32
  }
}

</mosaic_0001>

<llo_original>
// kernel: mi_discriminator_forward.1
$region0: #{mi_discriminator_forward.1}
  #allocation0 [shape = 'u32[]', space=smem, size = 0x4, offset = 0x4, fixed_abs, tag = 'smem constant byte address 0x4 - core index']
  #allocation1 [shape = 'u32[72,128]{1,0:T(1,128)}', space=vmem, size = 0x9000, scoped, tag = 'internal scratch']
  %s0 = inlined_call_operand.vmem [shape: f32[512,27], index: 0, kind: input, shape index: {}]
  %s1 = inlined_call_operand.vmem [shape: f32[27,4], index: 1, kind: input, shape index: {}]
  %s2 = inlined_call_operand.vmem [shape: f32[1,4], index: 2, kind: input, shape index: {}]
  %s3 = inlined_call_operand.vmem [shape: f32[1,4], index: 3, kind: input, shape index: {}]
  %s4 = inlined_call_operand.vmem [shape: f32[9,64,256], index: 4, kind: input, shape index: {}]
  %s5 = inlined_call_operand.vmem [shape: f32[9,4,8], index: 5, kind: input, shape index: {}]
  %s6 = inlined_call_operand.vmem [shape: f32[1,8], index: 6, kind: input, shape index: {}]
  %s7 = inlined_call_operand.vmem [shape: f32[1,8], index: 7, kind: input, shape index: {}]
  %s8 = inlined_call_operand.vmem [shape: f32[9,16,64], index: 8, kind: input, shape index: {}]
  %s9 = inlined_call_operand.vmem [shape: f32[9,8,16], index: 9, kind: input, shape index: {}]
  %s10 = inlined_call_operand.vmem [shape: f32[1,16], index: 10, kind: input, shape index: {}]
  %s11 = inlined_call_operand.vmem [shape: f32[1,16], index: 11, kind: input, shape index: {}]
  %s12 = inlined_call_operand.vmem [shape: f32[9,4,16], index: 12, kind: input, shape index: {}]
  %s13 = inlined_call_operand.vmem [shape: f32[9,16,32], index: 13, kind: input, shape index: {}]
  %s14 = inlined_call_operand.vmem [shape: f32[1,32], index: 14, kind: input, shape index: {}]
  %s15 = inlined_call_operand.vmem [shape: f32[1,32], index: 15, kind: input, shape index: {}]
  %s16 = inlined_call_operand.vmem [shape: f32[4,1,4], index: 16, kind: input, shape index: {}]
  %s17 = inlined_call_operand.vmem [shape: f32[4,32,1], index: 17, kind: input, shape index: {}]
  %s18 = inlined_call_operand.vmem [shape: f32[2,1], index: 18, kind: output, shape index: {}]
  %s19 = sld [smem:[#allocation0]]
  $region82: #{mi_discriminator_forward.1} parent=0
    _
  %s21 = ssub.s32 1, %s19
  %s22 = scalar_select 0, %s21, %s19
  // Predicated region
  $region2: #{mi_discriminator_forward.1} parent=0 // pred_check
    _
  $region3: #{mi_discriminator_forward.1} parent=0 // pred_check_branch
    %24 = sbr.rel (0) target = $region5
  $region4: #{mi_discriminator_forward.1} parent=0 // pred_region
    _
  $region5: #{mi_discriminator_forward.1} parent=0 // pred_fallthru
    _
  // Predicated region
  $region6: #{mi_discriminator_forward.1} parent=0 // pred_check
    _
  $region7: #{mi_discriminator_forward.1} parent=0 // pred_check_branch
    %26 = sbr.rel (0) target = $region9
  $region8: #{mi_discriminator_forward.1} parent=0 // pred_region
    _
  $region9: #{mi_discriminator_forward.1} parent=0 // pred_fallthru
    _
  // Predicated region
  $region10: #{mi_discriminator_forward.1} parent=0 // pred_check
    _
  $region11: #{mi_discriminator_forward.1} parent=0 // pred_check_branch
    %28 = sbr.rel (0) target = $region13
  $region12: #{mi_discriminator_forward.1} parent=0 // pred_region
    _
  $region13: #{mi_discriminator_forward.1} parent=0 // pred_fallthru
    _
  // Predicated region
  $region14: #{mi_discriminator_forward.1} parent=0 // pred_check
    _
  $region15: #{mi_discriminator_forward.1} parent=0 // pred_check_branch
    %30 = sbr.rel (0) target = $region17
  $region16: #{mi_discriminator_forward.1} parent=0 // pred_region
    _
  $region17: #{mi_discriminator_forward.1} parent=0 // pred_fallthru
    _
  // Predicated region
  $region18: #{mi_discriminator_forward.1} parent=0 // pred_check
    _
  $region19: #{mi_discriminator_forward.1} parent=0 // pred_check_branch
    %32 = sbr.rel (0) target = $region21
  $region20: #{mi_discriminator_forward.1} parent=0 // pred_region
    _
  $region21: #{mi_discriminator_forward.1} parent=0 // pred_fallthru
    _
  // Predicated region
  $region22: #{mi_discriminator_forward.1} parent=0 // pred_check
    _
  $region23: #{mi_discriminator_forward.1} parent=0 // pred_check_branch
    %34 = sbr.rel (0) target = $region25
  $region24: #{mi_discriminator_forward.1} parent=0 // pred_region
    _
  $region25: #{mi_discriminator_forward.1} parent=0 // pred_fallthru
    _
  // Predicated region
  $region26: #{mi_discriminator_forward.1} parent=0 // pred_check
    _
  $region27: #{mi_discriminator_forward.1} parent=0 // pred_check_branch
    %36 = sbr.rel (0) target = $region29
  $region28: #{mi_discriminator_forward.1} parent=0 // pred_region
    _
  $region29: #{mi_discriminator_forward.1} parent=0 // pred_fallthru
    _
  // Predicated region
  $region30: #{mi_discriminator_forward.1} parent=0 // pred_check
    _
  $region31: #{mi_discriminator_forward.1} parent=0 // pred_check_branch
    %38 = sbr.rel (0) target = $region33
  $region32: #{mi_discriminator_forward.1} parent=0 // pred_region
    _
  $region33: #{mi_discriminator_forward.1} parent=0 // pred_fallthru
    _
  // Predicated region
  $region34: #{mi_discriminator_forward.1} parent=0 // pred_check
    _
  $region35: #{mi_discriminator_forward.1} parent=0 // pred_check_branch
    %40 = sbr.rel (0) target = $region37
  $region36: #{mi_discriminator_forward.1} parent=0 // pred_region
    _
  $region37: #{mi_discriminator_forward.1} parent=0 // pred_fallthru
    _
  // Predicated region
  $region38: #{mi_discriminator_forward.1} parent=0 // pred_check
    _
  $region39: #{mi_discriminator_forward.1} parent=0 // pred_check_branch
    %42 = sbr.rel (0) target = $region41
  $region40: #{mi_discriminator_forward.1} parent=0 // pred_region
    _
  $region41: #{mi_discriminator_forward.1} parent=0 // pred_fallthru
    _
  // Predicated region
  $region42: #{mi_discriminator_forward.1} parent=0 // pred_check
    _
  $region43: #{mi_discriminator_forward.1} parent=0 // pred_check_branch
    %44 = sbr.rel (0) target = $region45
  $region44: #{mi_discriminator_forward.1} parent=0 // pred_region
    _
  $region45: #{mi_discriminator_forward.1} parent=0 // pred_fallthru
    _
  // Predicated region
  $region46: #{mi_discriminator_forward.1} parent=0 // pred_check
    _
  $region47: #{mi_discriminator_forward.1} parent=0 // pred_check_branch
    %46 = sbr.rel (0) target = $region49
  $region48: #{mi_discriminator_forward.1} parent=0 // pred_region
    _
  $region49: #{mi_discriminator_forward.1} parent=0 // pred_fallthru
    _
  // Predicated region
  $region50: #{mi_discriminator_forward.1} parent=0 // pred_check
    _
  $region51: #{mi_discriminator_forward.1} parent=0 // pred_check_branch
    %48 = sbr.rel (0) target = $region53
  $region52: #{mi_discriminator_forward.1} parent=0 // pred_region
    _
  $region53: #{mi_discriminator_forward.1} parent=0 // pred_fallthru
    _
  // Predicated region
  $region54: #{mi_discriminator_forward.1} parent=0 // pred_check
    _
  $region55: #{mi_discriminator_forward.1} parent=0 // pred_check_branch
    %50 = sbr.rel (0) target = $region57
  $region56: #{mi_discriminator_forward.1} parent=0 // pred_region
    _
  $region57: #{mi_discriminator_forward.1} parent=0 // pred_fallthru
    _
  // Predicated region
  $region58: #{mi_discriminator_forward.1} parent=0 // pred_check
    _
  $region59: #{mi_discriminator_forward.1} parent=0 // pred_check_branch
    %52 = sbr.rel (0) target = $region61
  $region60: #{mi_discriminator_forward.1} parent=0 // pred_region
    _
  $region61: #{mi_discriminator_forward.1} parent=0 // pred_fallthru
    _
  // Predicated region
  $region62: #{mi_discriminator_forward.1} parent=0 // pred_check
    _
  $region63: #{mi_discriminator_forward.1} parent=0 // pred_check_branch
    %54 = sbr.rel (0) target = $region65
  $region64: #{mi_discriminator_forward.1} parent=0 // pred_region
    _
  $region65: #{mi_discriminator_forward.1} parent=0 // pred_fallthru
    _
  // Predicated region
  $region66: #{mi_discriminator_forward.1} parent=0 // pred_check
    _
  $region67: #{mi_discriminator_forward.1} parent=0 // pred_check_branch
    %56 = sbr.rel (0) target = $region69
  $region68: #{mi_discriminator_forward.1} parent=0 // pred_region
    _
  $region69: #{mi_discriminator_forward.1} parent=0 // pred_fallthru
    _
  // Predicated region
  $region70: #{mi_discriminator_forward.1} parent=0 // pred_check
    _
  $region71: #{mi_discriminator_forward.1} parent=0 // pred_check_branch
    %58 = sbr.rel (0) target = $region73
  $region72: #{mi_discriminator_forward.1} parent=0 // pred_region
    _
  $region73: #{mi_discriminator_forward.1} parent=0 // pred_fallthru
    _
  %v59 = vld [vmem:[%s0] sm:$0xff]
  %v60 = vld [vmem:[%s0 + $0x8] sm:$0xff]
  %v61 = vld [vmem:[%s0 + $0x10] sm:$0xff]
  %v62 = vld [vmem:[%s0 + $0x18] sm:$0xff]
  %v63 = vld [vmem:[%s0 + $0x20] sm:$0xff]
  %v64 = vld [vmem:[%s0 + $0x28] sm:$0xff]
  %v65 = vld [vmem:[%s0 + $0x30] sm:$0xff]
  %v66 = vld [vmem:[%s0 + $0x38] sm:$0xff]
  %v67 = vld [vmem:[%s0 + $0x40] sm:$0xff]
  %v68 = vld [vmem:[%s0 + $0x48] sm:$0xff]
  %v69 = vld [vmem:[%s0 + $0x50] sm:$0xff]
  %v70 = vld [vmem:[%s0 + $0x58] sm:$0xff]
  %v71 = vld [vmem:[%s0 + $0x60] sm:$0xff]
  %v72 = vld [vmem:[%s0 + $0x68] sm:$0xff]
  %v73 = vld [vmem:[%s0 + $0x70] sm:$0xff]
  %v74 = vld [vmem:[%s0 + $0x78] sm:$0xff]
  %v75 = vld [vmem:[%s0 + $0x80] sm:$0xff]
  %v76 = vld [vmem:[%s0 + $0x88] sm:$0xff]
  %v77 = vld [vmem:[%s0 + $0x90] sm:$0xff]
  %v78 = vld [vmem:[%s0 + $0x98] sm:$0xff]
  %v79 = vld [vmem:[%s0 + $0xa0] sm:$0xff]
  %v80 = vld [vmem:[%s0 + $0xa8] sm:$0xff]
  %v81 = vld [vmem:[%s0 + $0xb0] sm:$0xff]
  %v82 = vld [vmem:[%s0 + $0xb8] sm:$0xff]
  %v83 = vld [vmem:[%s0 + $0xc0] sm:$0xff]
  %v84 = vld [vmem:[%s0 + $0xc8] sm:$0xff]
  %v85 = vld [vmem:[%s0 + $0xd0] sm:$0xff]
  %v86 = vld [vmem:[%s0 + $0xd8] sm:$0xff]
  %v87 = vld [vmem:[%s0 + $0xe0] sm:$0xff]
  %v88 = vld [vmem:[%s0 + $0xe8] sm:$0xff]
  %v89 = vld [vmem:[%s0 + $0xf0] sm:$0xff]
  %v90 = vld [vmem:[%s0 + $0xf8] sm:$0xff]
  %v91 = vld [vmem:[%s0 + $0x100] sm:$0xff]
  %v92 = vld [vmem:[%s0 + $0x108] sm:$0xff]
  %v93 = vld [vmem:[%s0 + $0x110] sm:$0xff]
  %v94 = vld [vmem:[%s0 + $0x118] sm:$0xff]
  %v95 = vld [vmem:[%s0 + $0x120] sm:$0xff]
  %v96 = vld [vmem:[%s0 + $0x128] sm:$0xff]
  %v97 = vld [vmem:[%s0 + $0x130] sm:$0xff]
  %v98 = vld [vmem:[%s0 + $0x138] sm:$0xff]
  %v99 = vld [vmem:[%s0 + $0x140] sm:$0xff]
  %v100 = vld [vmem:[%s0 + $0x148] sm:$0xff]
  %v101 = vld [vmem:[%s0 + $0x150] sm:$0xff]
  %v102 = vld [vmem:[%s0 + $0x158] sm:$0xff]
  %v103 = vld [vmem:[%s0 + $0x160] sm:$0xff]
  %v104 = vld [vmem:[%s0 + $0x168] sm:$0xff]
  %v105 = vld [vmem:[%s0 + $0x170] sm:$0xff]
  %v106 = vld [vmem:[%s0 + $0x178] sm:$0xff]
  %v107 = vld [vmem:[%s0 + $0x180] sm:$0xff]
  %v108 = vld [vmem:[%s0 + $0x188] sm:$0xff]
  %v109 = vld [vmem:[%s0 + $0x190] sm:$0xff]
  %v110 = vld [vmem:[%s0 + $0x198] sm:$0xff]
  %v111 = vld [vmem:[%s0 + $0x1a0] sm:$0xff]
  %v112 = vld [vmem:[%s0 + $0x1a8] sm:$0xff]
  %v113 = vld [vmem:[%s0 + $0x1b0] sm:$0xff]
  %v114 = vld [vmem:[%s0 + $0x1b8] sm:$0xff]
  %v115 = vld [vmem:[%s0 + $0x1c0] sm:$0xff]
  %v116 = vld [vmem:[%s0 + $0x1c8] sm:$0xff]
  %v117 = vld [vmem:[%s0 + $0x1d0] sm:$0xff]
  %v118 = vld [vmem:[%s0 + $0x1d8] sm:$0xff]
  %v119 = vld [vmem:[%s0 + $0x1e0] sm:$0xff]
  %v120 = vld [vmem:[%s0 + $0x1e8] sm:$0xff]
  %v121 = vld [vmem:[%s0 + $0x1f0] sm:$0xff]
  %v122 = vld [vmem:[%s0 + $0x1f8] sm:$0xff]
  %v123 = vld [vmem:[%s1] sm:$0xff]
  %v124 = vld [vmem:[%s1 + $0x8] sm:$0xff]
  %v125 = vld [vmem:[%s1 + $0x10] sm:$0xff]
  %v126 = vld [vmem:[%s1 + $0x18] sm:$0x7]
  %vm127 = vcmask 220160
  %v129 = vsel %vm127, %v59, 0
  %v132 = vsel %vm127, %v60, 0
  %v135 = vsel %vm127, %v61, 0
  %v138 = vsel %vm127, %v62, 0
  %v141 = vsel %vm127, %v63, 0
  %v144 = vsel %vm127, %v64, 0
  %v147 = vsel %vm127, %v65, 0
  %v150 = vsel %vm127, %v66, 0
  %v153 = vsel %vm127, %v67, 0
  %v156 = vsel %vm127, %v68, 0
  %v159 = vsel %vm127, %v69, 0
  %v162 = vsel %vm127, %v70, 0
  %v165 = vsel %vm127, %v71, 0
  %v168 = vsel %vm127, %v72, 0
  %v171 = vsel %vm127, %v73, 0
  %v174 = vsel %vm127, %v74, 0
  %v177 = vsel %vm127, %v75, 0
  %v180 = vsel %vm127, %v76, 0
  %v183 = vsel %vm127, %v77, 0
  %v186 = vsel %vm127, %v78, 0
  %v189 = vsel %vm127, %v79, 0
  %v192 = vsel %vm127, %v80, 0
  %v195 = vsel %vm127, %v81, 0
  %v198 = vsel %vm127, %v82, 0
  %v201 = vsel %vm127, %v83, 0
  %v204 = vsel %vm127, %v84, 0
  %v207 = vsel %vm127, %v85, 0
  %v210 = vsel %vm127, %v86, 0
  %v213 = vsel %vm127, %v87, 0
  %v216 = vsel %vm127, %v88, 0
  %v219 = vsel %vm127, %v89, 0
  %v222 = vsel %vm127, %v90, 0
  %v225 = vsel %vm127, %v91, 0
  %v228 = vsel %vm127, %v92, 0
  %v231 = vsel %vm127, %v93, 0
  %v234 = vsel %vm127, %v94, 0
  %v237 = vsel %vm127, %v95, 0
  %v240 = vsel %vm127, %v96, 0
  %v243 = vsel %vm127, %v97, 0
  %v246 = vsel %vm127, %v98, 0
  %v249 = vsel %vm127, %v99, 0
  %v252 = vsel %vm127, %v100, 0
  %v255 = vsel %vm127, %v101, 0
  %v258 = vsel %vm127, %v102, 0
  %v261 = vsel %vm127, %v103, 0
  %v264 = vsel %vm127, %v104, 0
  %v267 = vsel %vm127, %v105, 0
  %v270 = vsel %vm127, %v106, 0
  %v273 = vsel %vm127, %v107, 0
  %v276 = vsel %vm127, %v108, 0
  %v279 = vsel %vm127, %v109, 0
  %v282 = vsel %vm127, %v110, 0
  %v285 = vsel %vm127, %v111, 0
  %v288 = vsel %vm127, %v112, 0
  %v291 = vsel %vm127, %v113, 0
  %v294 = vsel %vm127, %v114, 0
  %v297 = vsel %vm127, %v115, 0
  %v300 = vsel %vm127, %v116, 0
  %v303 = vsel %vm127, %v117, 0
  %v306 = vsel %vm127, %v118, 0
  %v309 = vsel %vm127, %v119, 0
  %v312 = vsel %vm127, %v120, 0
  %v315 = vsel %vm127, %v121, 0
  %v318 = vsel %vm127, %v122, 0
  %vm320 = vcmask 1042432
  %v322 = vsel %vm320, %v126, 0
  %324 = vmatpush.msra.mxu0 0.0
  %325 = vmatpush.msra.mxu0 0.0
  %326 = vmatpush.msra.mxu0 0.0
  %327 = vmatpush.msra.mxu0 0.0
  %328 = vmatpush.msra.mxu0 0.0
  %329 = vmatpush.msra.mxu0 0.0
  %330 = vmatpush.msra.mxu0 0.0
  %331 = vmatpush.msra.mxu0 0.0
  %332 = vmatpush.msra.mxu0 0.0
  %333 = vmatpush.msra.mxu0 0.0
  %334 = vmatpush.msra.mxu0 0.0
  %335 = vmatpush.msra.mxu0 0.0
  %336 = vmatpush.msra.mxu0 %v322
  %337 = vmatpush.msra.mxu0 %v125
  %338 = vmatpush.msra.mxu0 %v124
  %339 = vmatpush.msra.mxu0 %v123
  %340 = vmatmul.f32.gmra.mxu0 %v129
  %v341 = vpop.f32.mrf.mxu0
  %v342 = vadd.f32 0.0, %v341
  %343 = vmatmul.f32.gmra.mxu0 %v132
  %v344 = vpop.f32.mrf.mxu0
  %v345 = vadd.f32 0.0, %v344
  %346 = vmatmul.f32.gmra.mxu0 %v135
  %v347 = vpop.f32.mrf.mxu0
  %v348 = vadd.f32 0.0, %v347
  %349 = vmatmul.f32.gmra.mxu0 %v138
  %v350 = vpop.f32.mrf.mxu0
  %v351 = vadd.f32 0.0, %v350
  %352 = vmatmul.f32.gmra.mxu0 %v141
  %v353 = vpop.f32.mrf.mxu0
  %v354 = vadd.f32 0.0, %v353
  %355 = vmatmul.f32.gmra.mxu0 %v144
  %v356 = vpop.f32.mrf.mxu0
  %v357 = vadd.f32 0.0, %v356
  %358 = vmatmul.f32.gmra.mxu0 %v147
  %v359 = vpop.f32.mrf.mxu0
  %v360 = vadd.f32 0.0, %v359
  %361 = vmatmul.f32.gmra.mxu0 %v150
  %v362 = vpop.f32.mrf.mxu0
  %v363 = vadd.f32 0.0, %v362
  %364 = vmatmul.f32.gmra.mxu0 %v153
  %v365 = vpop.f32.mrf.mxu0
  %v366 = vadd.f32 0.0, %v365
  %367 = vmatmul.f32.gmra.mxu0 %v156
  %v368 = vpop.f32.mrf.mxu0
  %v369 = vadd.f32 0.0, %v368
  %370 = vmatmul.f32.gmra.mxu0 %v159
  %v371 = vpop.f32.mrf.mxu0
  %v372 = vadd.f32 0.0, %v371
  %373 = vmatmul.f32.gmra.mxu0 %v162
  %v374 = vpop.f32.mrf.mxu0
  %v375 = vadd.f32 0.0, %v374
  %376 = vmatmul.f32.gmra.mxu0 %v165
  %v377 = vpop.f32.mrf.mxu0
  %v378 = vadd.f32 0.0, %v377
  %379 = vmatmul.f32.gmra.mxu0 %v168
  %v380 = vpop.f32.mrf.mxu0
  %v381 = vadd.f32 0.0, %v380
  %382 = vmatmul.f32.gmra.mxu0 %v171
  %v383 = vpop.f32.mrf.mxu0
  %v384 = vadd.f32 0.0, %v383
  %385 = vmatmul.f32.gmra.mxu0 %v174
  %v386 = vpop.f32.mrf.mxu0
  %v387 = vadd.f32 0.0, %v386
  %388 = vmatmul.f32.gmra.mxu0 %v177
  %v389 = vpop.f32.mrf.mxu0
  %v390 = vadd.f32 0.0, %v389
  %391 = vmatmul.f32.gmra.mxu0 %v180
  %v392 = vpop.f32.mrf.mxu0
  %v393 = vadd.f32 0.0, %v392
  %394 = vmatmul.f32.gmra.mxu0 %v183
  %v395 = vpop.f32.mrf.mxu0
  %v396 = vadd.f32 0.0, %v395
  %397 = vmatmul.f32.gmra.mxu0 %v186
  %v398 = vpop.f32.mrf.mxu0
  %v399 = vadd.f32 0.0, %v398
  %400 = vmatmul.f32.gmra.mxu0 %v189
  %v401 = vpop.f32.mrf.mxu0
  %v402 = vadd.f32 0.0, %v401
  %403 = vmatmul.f32.gmra.mxu0 %v192
  %v404 = vpop.f32.mrf.mxu0
  %v405 = vadd.f32 0.0, %v404
  %406 = vmatmul.f32.gmra.mxu0 %v195
  %v407 = vpop.f32.mrf.mxu0
  %v408 = vadd.f32 0.0, %v407
  %409 = vmatmul.f32.gmra.mxu0 %v198
  %v410 = vpop.f32.mrf.mxu0
  %v411 = vadd.f32 0.0, %v410
  %412 = vmatmul.f32.gmra.mxu0 %v201
  %v413 = vpop.f32.mrf.mxu0
  %v414 = vadd.f32 0.0, %v413
  %415 = vmatmul.f32.gmra.mxu0 %v204
  %v416 = vpop.f32.mrf.mxu0
  %v417 = vadd.f32 0.0, %v416
  %418 = vmatmul.f32.gmra.mxu0 %v207
  %v419 = vpop.f32.mrf.mxu0
  %v420 = vadd.f32 0.0, %v419
  %421 = vmatmul.f32.gmra.mxu0 %v210
  %v422 = vpop.f32.mrf.mxu0
  %v423 = vadd.f32 0.0, %v422
  %424 = vmatmul.f32.gmra.mxu0 %v213
  %v425 = vpop.f32.mrf.mxu0
  %v426 = vadd.f32 0.0, %v425
  %427 = vmatmul.f32.gmra.mxu0 %v216
  %v428 = vpop.f32.mrf.mxu0
  %v429 = vadd.f32 0.0, %v428
  %430 = vmatmul.f32.gmra.mxu0 %v219
  %v431 = vpop.f32.mrf.mxu0
  %v432 = vadd.f32 0.0, %v431
  %433 = vmatmul.f32.gmra.mxu0 %v222
  %v434 = vpop.f32.mrf.mxu0
  %v435 = vadd.f32 0.0, %v434
  %436 = vmatmul.f32.gmra.mxu0 %v225
  %v437 = vpop.f32.mrf.mxu0
  %v438 = vadd.f32 0.0, %v437
  %439 = vmatmul.f32.gmra.mxu0 %v228
  %v440 = vpop.f32.mrf.mxu0
  %v441 = vadd.f32 0.0, %v440
  %442 = vmatmul.f32.gmra.mxu0 %v231
  %v443 = vpop.f32.mrf.mxu0
  %v444 = vadd.f32 0.0, %v443
  %445 = vmatmul.f32.gmra.mxu0 %v234
  %v446 = vpop.f32.mrf.mxu0
  %v447 = vadd.f32 0.0, %v446
  %448 = vmatmul.f32.gmra.mxu0 %v237
  %v449 = vpop.f32.mrf.mxu0
  %v450 = vadd.f32 0.0, %v449
  %451 = vmatmul.f32.gmra.mxu0 %v240
  %v452 = vpop.f32.mrf.mxu0
  %v453 = vadd.f32 0.0, %v452
  %454 = vmatmul.f32.gmra.mxu0 %v243
  %v455 = vpop.f32.mrf.mxu0
  %v456 = vadd.f32 0.0, %v455
  %457 = vmatmul.f32.gmra.mxu0 %v246
  %v458 = vpop.f32.mrf.mxu0
  %v459 = vadd.f32 0.0, %v458
  %460 = vmatmul.f32.gmra.mxu0 %v249
  %v461 = vpop.f32.mrf.mxu0
  %v462 = vadd.f32 0.0, %v461
  %463 = vmatmul.f32.gmra.mxu0 %v252
  %v464 = vpop.f32.mrf.mxu0
  %v465 = vadd.f32 0.0, %v464
  %466 = vmatmul.f32.gmra.mxu0 %v255
  %v467 = vpop.f32.mrf.mxu0
  %v468 = vadd.f32 0.0, %v467
  %469 = vmatmul.f32.gmra.mxu0 %v258
  %v470 = vpop.f32.mrf.mxu0
  %v471 = vadd.f32 0.0, %v470
  %472 = vmatmul.f32.gmra.mxu0 %v261
  %v473 = vpop.f32.mrf.mxu0
  %v474 = vadd.f32 0.0, %v473
  %475 = vmatmul.f32.gmra.mxu0 %v264
  %v476 = vpop.f32.mrf.mxu0
  %v477 = vadd.f32 0.0, %v476
  %478 = vmatmul.f32.gmra.mxu0 %v267
  %v479 = vpop.f32.mrf.mxu0
  %v480 = vadd.f32 0.0, %v479
  %481 = vmatmul.f32.gmra.mxu0 %v270
  %v482 = vpop.f32.mrf.mxu0
  %v483 = vadd.f32 0.0, %v482
  %484 = vmatmul.f32.gmra.mxu0 %v273
  %v485 = vpop.f32.mrf.mxu0
  %v486 = vadd.f32 0.0, %v485
  %487 = vmatmul.f32.gmra.mxu0 %v276
  %v488 = vpop.f32.mrf.mxu0
  %v489 = vadd.f32 0.0, %v488
  %490 = vmatmul.f32.gmra.mxu0 %v279
  %v491 = vpop.f32.mrf.mxu0
  %v492 = vadd.f32 0.0, %v491
  %493 = vmatmul.f32.gmra.mxu0 %v282
  %v494 = vpop.f32.mrf.mxu0
  %v495 = vadd.f32 0.0, %v494
  %496 = vmatmul.f32.gmra.mxu0 %v285
  %v497 = vpop.f32.mrf.mxu0
  %v498 = vadd.f32 0.0, %v497
  %499 = vmatmul.f32.gmra.mxu0 %v288
  %v500 = vpop.f32.mrf.mxu0
  %v501 = vadd.f32 0.0, %v500
  %502 = vmatmul.f32.gmra.mxu0 %v291
  %v503 = vpop.f32.mrf.mxu0
  %v504 = vadd.f32 0.0, %v503
  %505 = vmatmul.f32.gmra.mxu0 %v294
  %v506 = vpop.f32.mrf.mxu0
  %v507 = vadd.f32 0.0, %v506
  %508 = vmatmul.f32.gmra.mxu0 %v297
  %v509 = vpop.f32.mrf.mxu0
  %v510 = vadd.f32 0.0, %v509
  %511 = vmatmul.f32.gmra.mxu0 %v300
  %v512 = vpop.f32.mrf.mxu0
  %v513 = vadd.f32 0.0, %v512
  %514 = vmatmul.f32.gmra.mxu0 %v303
  %v515 = vpop.f32.mrf.mxu0
  %v516 = vadd.f32 0.0, %v515
  %517 = vmatmul.f32.gmra.mxu0 %v306
  %v518 = vpop.f32.mrf.mxu0
  %v519 = vadd.f32 0.0, %v518
  %520 = vmatmul.f32.gmra.mxu0 %v309
  %v521 = vpop.f32.mrf.mxu0
  %v522 = vadd.f32 0.0, %v521
  %523 = vmatmul.f32.gmra.mxu0 %v312
  %v524 = vpop.f32.mrf.mxu0
  %v525 = vadd.f32 0.0, %v524
  %526 = vmatmul.f32.gmra.mxu0 %v315
  %v527 = vpop.f32.mrf.mxu0
  %v528 = vadd.f32 0.0, %v527
  %529 = vmatmul.f32.gmra.mxu0 %v318
  %v530 = vpop.f32.mrf.mxu0
  %v531 = vadd.f32 0.0, %v530
  %532 = vdwg.mxu0
  %v533 = vld [vmem:[%s2] sm:$0x1]
  %v534 = vld [vmem:[%s3] sm:$0x1]
  %vm535 = vcmask 31744
  %v536 = vsel %vm535, %v342, 0.0
  %v537 = vsel %vm535, %v345, 0.0
  %v538 = vadd.f32 %v536, %v537
  %v539 = vsel %vm535, %v348, 0.0
  %v540 = vadd.f32 %v538, %v539
  %v541 = vsel %vm535, %v351, 0.0
  %v542 = vadd.f32 %v540, %v541
  %v543 = vsel %vm535, %v354, 0.0
  %v544 = vadd.f32 %v542, %v543
  %v545 = vsel %vm535, %v357, 0.0
  %v546 = vadd.f32 %v544, %v545
  %v547 = vsel %vm535, %v360, 0.0
  %v548 = vadd.f32 %v546, %v547
  %v549 = vsel %vm535, %v363, 0.0
  %v550 = vadd.f32 %v548, %v549
  %v551 = vsel %vm535, %v366, 0.0
  %v552 = vadd.f32 %v550, %v551
  %v553 = vsel %vm535, %v369, 0.0
  %v554 = vadd.f32 %v552, %v553
  %v555 = vsel %vm535, %v372, 0.0
  %v556 = vadd.f32 %v554, %v555
  %v557 = vsel %vm535, %v375, 0.0
  %v558 = vadd.f32 %v556, %v557
  %v559 = vsel %vm535, %v378, 0.0
  %v560 = vadd.f32 %v558, %v559
  %v561 = vsel %vm535, %v381, 0.0
  %v562 = vadd.f32 %v560, %v561
  %v563 = vsel %vm535, %v384, 0.0
  %v564 = vadd.f32 %v562, %v563
  %v565 = vsel %vm535, %v387, 0.0
  %v566 = vadd.f32 %v564, %v565
  %v567 = vsel %vm535, %v390, 0.0
  %v568 = vadd.f32 %v566, %v567
  %v569 = vsel %vm535, %v393, 0.0
  %v570 = vadd.f32 %v568, %v569
  %v571 = vsel %vm535, %v396, 0.0
  %v572 = vadd.f32 %v570, %v571
  %v573 = vsel %vm535, %v399, 0.0
  %v574 = vadd.f32 %v572, %v573
  %v575 = vsel %vm535, %v402, 0.0
  %v576 = vadd.f32 %v574, %v575
  %v577 = vsel %vm535, %v405, 0.0
  %v578 = vadd.f32 %v576, %v577
  %v579 = vsel %vm535, %v408, 0.0
  %v580 = vadd.f32 %v578, %v579
  %v581 = vsel %vm535, %v411, 0.0
  %v582 = vadd.f32 %v580, %v581
  %v583 = vsel %vm535, %v414, 0.0
  %v584 = vadd.f32 %v582, %v583
  %v585 = vsel %vm535, %v417, 0.0
  %v586 = vadd.f32 %v584, %v585
  %v587 = vsel %vm535, %v420, 0.0
  %v588 = vadd.f32 %v586, %v587
  %v589 = vsel %vm535, %v423, 0.0
  %v590 = vadd.f32 %v588, %v589
  %v591 = vsel %vm535, %v426, 0.0
  %v592 = vadd.f32 %v590, %v591
  %v593 = vsel %vm535, %v429, 0.0
  %v594 = vadd.f32 %v592, %v593
  %v595 = vsel %vm535, %v432, 0.0
  %v596 = vadd.f32 %v594, %v595
  %v597 = vsel %vm535, %v435, 0.0
  %v598 = vadd.f32 %v596, %v597
  %v599 = vsel %vm535, %v438, 0.0
  %v600 = vadd.f32 %v598, %v599
  %v601 = vsel %vm535, %v441, 0.0
  %v602 = vadd.f32 %v600, %v601
  %v603 = vsel %vm535, %v444, 0.0
  %v604 = vadd.f32 %v602, %v603
  %v605 = vsel %vm535, %v447, 0.0
  %v606 = vadd.f32 %v604, %v605
  %v607 = vsel %vm535, %v450, 0.0
  %v608 = vadd.f32 %v606, %v607
  %v609 = vsel %vm535, %v453, 0.0
  %v610 = vadd.f32 %v608, %v609
  %v611 = vsel %vm535, %v456, 0.0
  %v612 = vadd.f32 %v610, %v611
  %v613 = vsel %vm535, %v459, 0.0
  %v614 = vadd.f32 %v612, %v613
  %v615 = vsel %vm535, %v462, 0.0
  %v616 = vadd.f32 %v614, %v615
  %v617 = vsel %vm535, %v465, 0.0
  %v618 = vadd.f32 %v616, %v617
  %v619 = vsel %vm535, %v468, 0.0
  %v620 = vadd.f32 %v618, %v619
  %v621 = vsel %vm535, %v471, 0.0
  %v622 = vadd.f32 %v620, %v621
  %v623 = vsel %vm535, %v474, 0.0
  %v624 = vadd.f32 %v622, %v623
  %v625 = vsel %vm535, %v477, 0.0
  %v626 = vadd.f32 %v624, %v625
  %v627 = vsel %vm535, %v480, 0.0
  %v628 = vadd.f32 %v626, %v627
  %v629 = vsel %vm535, %v483, 0.0
  %v630 = vadd.f32 %v628, %v629
  %v631 = vsel %vm535, %v486, 0.0
  %v632 = vadd.f32 %v630, %v631
  %v633 = vsel %vm535, %v489, 0.0
  %v634 = vadd.f32 %v632, %v633
  %v635 = vsel %vm535, %v492, 0.0
  %v636 = vadd.f32 %v634, %v635
  %v637 = vsel %vm535, %v495, 0.0
  %v638 = vadd.f32 %v636, %v637
  %v639 = vsel %vm535, %v498, 0.0
  %v640 = vadd.f32 %v638, %v639
  %v641 = vsel %vm535, %v501, 0.0
  %v642 = vadd.f32 %v640, %v641
  %v643 = vsel %vm535, %v504, 0.0
  %v644 = vadd.f32 %v642, %v643
  %v645 = vsel %vm535, %v507, 0.0
  %v646 = vadd.f32 %v644, %v645
  %v647 = vsel %vm535, %v510, 0.0
  %v648 = vadd.f32 %v646, %v647
  %v649 = vsel %vm535, %v513, 0.0
  %v650 = vadd.f32 %v648, %v649
  %v651 = vsel %vm535, %v516, 0.0
  %v652 = vadd.f32 %v650, %v651
  %v653 = vsel %vm535, %v519, 0.0
  %v654 = vadd.f32 %v652, %v653
  %v655 = vsel %vm535, %v522, 0.0
  %v656 = vadd.f32 %v654, %v655
  %v657 = vsel %vm535, %v525, 0.0
  %v658 = vadd.f32 %v656, %v657
  %v659 = vsel %vm535, %v528, 0.0
  %v660 = vadd.f32 %v658, %v659
  %v661 = vsel %vm535, %v531, 0.0
  %v662 = vadd.f32 %v660, %v661
  %v663 = vrot.slane %v662, 4
  %v664 = vadd.f32 %v662, %v663
  %v665 = vrot.slane %v664, 2
  %v666 = vadd.f32 %v664, %v665
  %v667 = vrot.slane %v666, 1
  %v668 = vadd.f32 %v666, %v667
  %v669 = vmul.f32 %v342, %v342
  %v670 = vmul.f32 %v345, %v345
  %v671 = vmul.f32 %v348, %v348
  %v672 = vmul.f32 %v351, %v351
  %v673 = vmul.f32 %v354, %v354
  %v674 = vmul.f32 %v357, %v357
  %v675 = vmul.f32 %v360, %v360
  %v676 = vmul.f32 %v363, %v363
  %v677 = vmul.f32 %v366, %v366
  %v678 = vmul.f32 %v369, %v369
  %v679 = vmul.f32 %v372, %v372
  %v680 = vmul.f32 %v375, %v375
  %v681 = vmul.f32 %v378, %v378
  %v682 = vmul.f32 %v381, %v381
  %v683 = vmul.f32 %v384, %v384
  %v684 = vmul.f32 %v387, %v387
  %v685 = vmul.f32 %v390, %v390
  %v686 = vmul.f32 %v393, %v393
  %v687 = vmul.f32 %v396, %v396
  %v688 = vmul.f32 %v399, %v399
  %v689 = vmul.f32 %v402, %v402
  %v690 = vmul.f32 %v405, %v405
  %v691 = vmul.f32 %v408, %v408
  %v692 = vmul.f32 %v411, %v411
  %v693 = vmul.f32 %v414, %v414
  %v694 = vmul.f32 %v417, %v417
  %v695 = vmul.f32 %v420, %v420
  %v696 = vmul.f32 %v423, %v423
  %v697 = vmul.f32 %v426, %v426
  %v698 = vmul.f32 %v429, %v429
  %v699 = vmul.f32 %v432, %v432
  %v700 = vmul.f32 %v435, %v435
  %v701 = vmul.f32 %v438, %v438
  %v702 = vmul.f32 %v441, %v441
  %v703 = vmul.f32 %v444, %v444
  %v704 = vmul.f32 %v447, %v447
  %v705 = vmul.f32 %v450, %v450
  %v706 = vmul.f32 %v453, %v453
  %v707 = vmul.f32 %v456, %v456
  %v708 = vmul.f32 %v459, %v459
  %v709 = vmul.f32 %v462, %v462
  %v710 = vmul.f32 %v465, %v465
  %v711 = vmul.f32 %v468, %v468
  %v712 = vmul.f32 %v471, %v471
  %v713 = vmul.f32 %v474, %v474
  %v714 = vmul.f32 %v477, %v477
  %v715 = vmul.f32 %v480, %v480
  %v716 = vmul.f32 %v483, %v483
  %v717 = vmul.f32 %v486, %v486
  %v718 = vmul.f32 %v489, %v489
  %v719 = vmul.f32 %v492, %v492
  %v720 = vmul.f32 %v495, %v495
  %v721 = vmul.f32 %v498, %v498
  %v722 = vmul.f32 %v501, %v501
  %v723 = vmul.f32 %v504, %v504
  %v724 = vmul.f32 %v507, %v507
  %v725 = vmul.f32 %v510, %v510
  %v726 = vmul.f32 %v513, %v513
  %v727 = vmul.f32 %v516, %v516
  %v728 = vmul.f32 %v519, %v519
  %v729 = vmul.f32 %v522, %v522
  %v730 = vmul.f32 %v525, %v525
  %v731 = vmul.f32 %v528, %v528
  %v732 = vmul.f32 %v531, %v531
  %v733 = vsel %vm535, %v669, 0.0
  %v734 = vsel %vm535, %v670, 0.0
  %v735 = vadd.f32 %v733, %v734
  %v736 = vsel %vm535, %v671, 0.0
  %v737 = vadd.f32 %v735, %v736
  %v738 = vsel %vm535, %v672, 0.0
  %v739 = vadd.f32 %v737, %v738
  %v740 = vsel %vm535, %v673, 0.0
  %v741 = vadd.f32 %v739, %v740
  %v742 = vsel %vm535, %v674, 0.0
  %v743 = vadd.f32 %v741, %v742
  %v744 = vsel %vm535, %v675, 0.0
  %v745 = vadd.f32 %v743, %v744
  %v746 = vsel %vm535, %v676, 0.0
  %v747 = vadd.f32 %v745, %v746
  %v748 = vsel %vm535, %v677, 0.0
  %v749 = vadd.f32 %v747, %v748
  %v750 = vsel %vm535, %v678, 0.0
  %v751 = vadd.f32 %v749, %v750
  %v752 = vsel %vm535, %v679, 0.0
  %v753 = vadd.f32 %v751, %v752
  %v754 = vsel %vm535, %v680, 0.0
  %v755 = vadd.f32 %v753, %v754
  %v756 = vsel %vm535, %v681, 0.0
  %v757 = vadd.f32 %v755, %v756
  %v758 = vsel %vm535, %v682, 0.0
  %v759 = vadd.f32 %v757, %v758
  %v760 = vsel %vm535, %v683, 0.0
  %v761 = vadd.f32 %v759, %v760
  %v762 = vsel %vm535, %v684, 0.0
  %v763 = vadd.f32 %v761, %v762
  %v764 = vsel %vm535, %v685, 0.0
  %v765 = vadd.f32 %v763, %v764
  %v766 = vsel %vm535, %v686, 0.0
  %v767 = vadd.f32 %v765, %v766
  %v768 = vsel %vm535, %v687, 0.0
  %v769 = vadd.f32 %v767, %v768
  %v770 = vsel %vm535, %v688, 0.0
  %v771 = vadd.f32 %v769, %v770
  %v772 = vsel %vm535, %v689, 0.0
  %v773 = vadd.f32 %v771, %v772
  %v774 = vsel %vm535, %v690, 0.0
  %v775 = vadd.f32 %v773, %v774
  %v776 = vsel %vm535, %v691, 0.0
  %v777 = vadd.f32 %v775, %v776
  %v778 = vsel %vm535, %v692, 0.0
  %v779 = vadd.f32 %v777, %v778
  %v780 = vsel %vm535, %v693, 0.0
  %v781 = vadd.f32 %v779, %v780
  %v782 = vsel %vm535, %v694, 0.0
  %v783 = vadd.f32 %v781, %v782
  %v784 = vsel %vm535, %v695, 0.0
  %v785 = vadd.f32 %v783, %v784
  %v786 = vsel %vm535, %v696, 0.0
  %v787 = vadd.f32 %v785, %v786
  %v788 = vsel %vm535, %v697, 0.0
  %v789 = vadd.f32 %v787, %v788
  %v790 = vsel %vm535, %v698, 0.0
  %v791 = vadd.f32 %v789, %v790
  %v792 = vsel %vm535, %v699, 0.0
  %v793 = vadd.f32 %v791, %v792
  %v794 = vsel %vm535, %v700, 0.0
  %v795 = vadd.f32 %v793, %v794
  %v796 = vsel %vm535, %v701, 0.0
  %v797 = vadd.f32 %v795, %v796
  %v798 = vsel %vm535, %v702, 0.0
  %v799 = vadd.f32 %v797, %v798
  %v800 = vsel %vm535, %v703, 0.0
  %v801 = vadd.f32 %v799, %v800
  %v802 = vsel %vm535, %v704, 0.0
  %v803 = vadd.f32 %v801, %v802
  %v804 = vsel %vm535, %v705, 0.0
  %v805 = vadd.f32 %v803, %v804
  %v806 = vsel %vm535, %v706, 0.0
  %v807 = vadd.f32 %v805, %v806
  %v808 = vsel %vm535, %v707, 0.0
  %v809 = vadd.f32 %v807, %v808
  %v810 = vsel %vm535, %v708, 0.0
  %v811 = vadd.f32 %v809, %v810
  %v812 = vsel %vm535, %v709, 0.0
  %v813 = vadd.f32 %v811, %v812
  %v814 = vsel %vm535, %v710, 0.0
  %v815 = vadd.f32 %v813, %v814
  %v816 = vsel %vm535, %v711, 0.0
  %v817 = vadd.f32 %v815, %v816
  %v818 = vsel %vm535, %v712, 0.0
  %v819 = vadd.f32 %v817, %v818
  %v820 = vsel %vm535, %v713, 0.0
  %v821 = vadd.f32 %v819, %v820
  %v822 = vsel %vm535, %v714, 0.0
  %v823 = vadd.f32 %v821, %v822
  %v824 = vsel %vm535, %v715, 0.0
  %v825 = vadd.f32 %v823, %v824
  %v826 = vsel %vm535, %v716, 0.0
  %v827 = vadd.f32 %v825, %v826
  %v828 = vsel %vm535, %v717, 0.0
  %v829 = vadd.f32 %v827, %v828
  %v830 = vsel %vm535, %v718, 0.0
  %v831 = vadd.f32 %v829, %v830
  %v832 = vsel %vm535, %v719, 0.0
  %v833 = vadd.f32 %v831, %v832
  %v834 = vsel %vm535, %v720, 0.0
  %v835 = vadd.f32 %v833, %v834
  %v836 = vsel %vm535, %v721, 0.0
  %v837 = vadd.f32 %v835, %v836
  %v838 = vsel %vm535, %v722, 0.0
  %v839 = vadd.f32 %v837, %v838
  %v840 = vsel %vm535, %v723, 0.0
  %v841 = vadd.f32 %v839, %v840
  %v842 = vsel %vm535, %v724, 0.0
  %v843 = vadd.f32 %v841, %v842
  %v844 = vsel %vm535, %v725, 0.0
  %v845 = vadd.f32 %v843, %v844
  %v846 = vsel %vm535, %v726, 0.0
  %v847 = vadd.f32 %v845, %v846
  %v848 = vsel %vm535, %v727, 0.0
  %v849 = vadd.f32 %v847, %v848
  %v850 = vsel %vm535, %v728, 0.0
  %v851 = vadd.f32 %v849, %v850
  %v852 = vsel %vm535, %v729, 0.0
  %v853 = vadd.f32 %v851, %v852
  %v854 = vsel %vm535, %v730, 0.0
  %v855 = vadd.f32 %v853, %v854
  %v856 = vsel %vm535, %v731, 0.0
  %v857 = vadd.f32 %v855, %v856
  %v858 = vsel %vm535, %v732, 0.0
  %v859 = vadd.f32 %v857, %v858
  %v860 = vrot.slane %v859, 4
  %v861 = vadd.f32 %v859, %v860
  %v862 = vrot.slane %v861, 2
  %v863 = vadd.f32 %v861, %v862
  %v864 = vrot.slane %v863, 1
  %v865 = vadd.f32 %v863, %v864
  %v866 = vmul.f32 %v668, 0.001953125
  %v867 = vmul.f32 %v865, 0.001953125
  %v868 = vmul.f32 %v866, %v866
  %v869 = vsub.f32 %v867, %v868
  %v870 = vadd.f32 %v869, 1e-05
  %v871 = vrsqrt.pop %v870
  %v872 = vmul.f32 %v871, %v870
  %v873 = vmul.f32 %v872, %v871
  %v874 = vmul.f32 0.5, %v873
  %v875 = vsub.f32 1.5, %v874
  %v876 = vmul.f32 %v871, %v875
  %vm877 = vweird.f32 %v870
  %vm878 = vweird.f32 %v871
  %vm879 = vmor %vm877, %vm878
  %v880 = vsel %vm879, %v871, %v876
  %v881 = vmul.f32 %v533, %v880
  %v882 = vmul.f32 %v866, %v881
  %v883 = vsub.f32 %v534, %v882
  %v885 = vperm.slane %v881, 0
  %v887 = vmul.f32 %v342, %v885
  %v888 = vmul.f32 %v345, %v885
  %v889 = vmul.f32 %v348, %v885
  %v890 = vmul.f32 %v351, %v885
  %v891 = vmul.f32 %v354, %v885
  %v892 = vmul.f32 %v357, %v885
  %v893 = vmul.f32 %v360, %v885
  %v894 = vmul.f32 %v363, %v885
  %v895 = vmul.f32 %v366, %v885
  %v896 = vmul.f32 %v369, %v885
  %v897 = vmul.f32 %v372, %v885
  %v898 = vmul.f32 %v375, %v885
  %v899 = vmul.f32 %v378, %v885
  %v900 = vmul.f32 %v381, %v885
  %v901 = vmul.f32 %v384, %v885
  %v902 = vmul.f32 %v387, %v885
  %v903 = vmul.f32 %v390, %v885
  %v904 = vmul.f32 %v393, %v885
  %v905 = vmul.f32 %v396, %v885
  %v906 = vmul.f32 %v399, %v885
  %v907 = vmul.f32 %v402, %v885
  %v908 = vmul.f32 %v405, %v885
  %v909 = vmul.f32 %v408, %v885
  %v910 = vmul.f32 %v411, %v885
  %v911 = vmul.f32 %v414, %v885
  %v912 = vmul.f32 %v417, %v885
  %v913 = vmul.f32 %v420, %v885
  %v914 = vmul.f32 %v423, %v885
  %v915 = vmul.f32 %v426, %v885
  %v916 = vmul.f32 %v429, %v885
  %v917 = vmul.f32 %v432, %v885
  %v918 = vmul.f32 %v435, %v885
  %v919 = vmul.f32 %v438, %v885
  %v920 = vmul.f32 %v441, %v885
  %v921 = vmul.f32 %v444, %v885
  %v922 = vmul.f32 %v447, %v885
  %v923 = vmul.f32 %v450, %v885
  %v924 = vmul.f32 %v453, %v885
  %v925 = vmul.f32 %v456, %v885
  %v926 = vmul.f32 %v459, %v885
  %v927 = vmul.f32 %v462, %v885
  %v928 = vmul.f32 %v465, %v885
  %v929 = vmul.f32 %v468, %v885
  %v930 = vmul.f32 %v471, %v885
  %v931 = vmul.f32 %v474, %v885
  %v932 = vmul.f32 %v477, %v885
  %v933 = vmul.f32 %v480, %v885
  %v934 = vmul.f32 %v483, %v885
  %v935 = vmul.f32 %v486, %v885
  %v936 = vmul.f32 %v489, %v885
  %v937 = vmul.f32 %v492, %v885
  %v938 = vmul.f32 %v495, %v885
  %v939 = vmul.f32 %v498, %v885
  %v940 = vmul.f32 %v501, %v885
  %v941 = vmul.f32 %v504, %v885
  %v942 = vmul.f32 %v507, %v885
  %v943 = vmul.f32 %v510, %v885
  %v944 = vmul.f32 %v513, %v885
  %v945 = vmul.f32 %v516, %v885
  %v946 = vmul.f32 %v519, %v885
  %v947 = vmul.f32 %v522, %v885
  %v948 = vmul.f32 %v525, %v885
  %v949 = vmul.f32 %v528, %v885
  %v950 = vmul.f32 %v531, %v885
  %v952 = vperm.slane %v883, 0
  %v954 = vadd.f32 %v887, %v952
  %v955 = vadd.f32 %v888, %v952
  %v956 = vadd.f32 %v889, %v952
  %v957 = vadd.f32 %v890, %v952
  %v958 = vadd.f32 %v891, %v952
  %v959 = vadd.f32 %v892, %v952
  %v960 = vadd.f32 %v893, %v952
  %v961 = vadd.f32 %v894, %v952
  %v962 = vadd.f32 %v895, %v952
  %v963 = vadd.f32 %v896, %v952
  %v964 = vadd.f32 %v897, %v952
  %v965 = vadd.f32 %v898, %v952
  %v966 = vadd.f32 %v899, %v952
  %v967 = vadd.f32 %v900, %v952
  %v968 = vadd.f32 %v901, %v952
  %v969 = vadd.f32 %v902, %v952
  %v970 = vadd.f32 %v903, %v952
  %v971 = vadd.f32 %v904, %v952
  %v972 = vadd.f32 %v905, %v952
  %v973 = vadd.f32 %v906, %v952
  %v974 = vadd.f32 %v907, %v952
  %v975 = vadd.f32 %v908, %v952
  %v976 = vadd.f32 %v909, %v952
  %v977 = vadd.f32 %v910, %v952
  %v978 = vadd.f32 %v911, %v952
  %v979 = vadd.f32 %v912, %v952
  %v980 = vadd.f32 %v913, %v952
  %v981 = vadd.f32 %v914, %v952
  %v982 = vadd.f32 %v915, %v952
  %v983 = vadd.f32 %v916, %v952
  %v984 = vadd.f32 %v917, %v952
  %v985 = vadd.f32 %v918, %v952
  %v986 = vadd.f32 %v919, %v952
  %v987 = vadd.f32 %v920, %v952
  %v988 = vadd.f32 %v921, %v952
  %v989 = vadd.f32 %v922, %v952
  %v990 = vadd.f32 %v923, %v952
  %v991 = vadd.f32 %v924, %v952
  %v992 = vadd.f32 %v925, %v952
  %v993 = vadd.f32 %v926, %v952
  %v994 = vadd.f32 %v927, %v952
  %v995 = vadd.f32 %v928, %v952
  %v996 = vadd.f32 %v929, %v952
  %v997 = vadd.f32 %v930, %v952
  %v998 = vadd.f32 %v931, %v952
  %v999 = vadd.f32 %v932, %v952
  %v1000 = vadd.f32 %v933, %v952
  %v1001 = vadd.f32 %v934, %v952
  %v1002 = vadd.f32 %v935, %v952
  %v1003 = vadd.f32 %v936, %v952
  %v1004 = vadd.f32 %v937, %v952
  %v1005 = vadd.f32 %v938, %v952
  %v1006 = vadd.f32 %v939, %v952
  %v1007 = vadd.f32 %v940, %v952
  %v1008 = vadd.f32 %v941, %v952
  %v1009 = vadd.f32 %v942, %v952
  %v1010 = vadd.f32 %v943, %v952
  %v1011 = vadd.f32 %v944, %v952
  %v1012 = vadd.f32 %v945, %v952
  %v1013 = vadd.f32 %v946, %v952
  %v1014 = vadd.f32 %v947, %v952
  %v1015 = vadd.f32 %v948, %v952
  %v1016 = vadd.f32 %v949, %v952
  %v1017 = vadd.f32 %v950, %v952
  %v1018 = vmax.f32 %v954, 0.0
  %v1019 = vmax.f32 %v955, 0.0
  %v1020 = vmax.f32 %v956, 0.0
  %v1021 = vmax.f32 %v957, 0.0
  %v1022 = vmax.f32 %v958, 0.0
  %v1023 = vmax.f32 %v959, 0.0
  %v1024 = vmax.f32 %v960, 0.0
  %v1025 = vmax.f32 %v961, 0.0
  %v1026 = vmax.f32 %v962, 0.0
  %v1027 = vmax.f32 %v963, 0.0
  %v1028 = vmax.f32 %v964, 0.0
  %v1029 = vmax.f32 %v965, 0.0
  %v1030 = vmax.f32 %v966, 0.0
  %v1031 = vmax.f32 %v967, 0.0
  %v1032 = vmax.f32 %v968, 0.0
  %v1033 = vmax.f32 %v969, 0.0
  %v1034 = vmax.f32 %v970, 0.0
  %v1035 = vmax.f32 %v971, 0.0
  %v1036 = vmax.f32 %v972, 0.0
  %v1037 = vmax.f32 %v973, 0.0
  %v1038 = vmax.f32 %v974, 0.0
  %v1039 = vmax.f32 %v975, 0.0
  %v1040 = vmax.f32 %v976, 0.0
  %v1041 = vmax.f32 %v977, 0.0
  %v1042 = vmax.f32 %v978, 0.0
  %v1043 = vmax.f32 %v979, 0.0
  %v1044 = vmax.f32 %v980, 0.0
  %v1045 = vmax.f32 %v981, 0.0
  %v1046 = vmax.f32 %v982, 0.0
  %v1047 = vmax.f32 %v983, 0.0
  %v1048 = vmax.f32 %v984, 0.0
  %v1049 = vmax.f32 %v985, 0.0
  %v1050 = vmax.f32 %v986, 0.0
  %v1051 = vmax.f32 %v987, 0.0
  %v1052 = vmax.f32 %v988, 0.0
  %v1053 = vmax.f32 %v989, 0.0
  %v1054 = vmax.f32 %v990, 0.0
  %v1055 = vmax.f32 %v991, 0.0
  %v1056 = vmax.f32 %v992, 0.0
  %v1057 = vmax.f32 %v993, 0.0
  %v1058 = vmax.f32 %v994, 0.0
  %v1059 = vmax.f32 %v995, 0.0
  %v1060 = vmax.f32 %v996, 0.0
  %v1061 = vmax.f32 %v997, 0.0
  %v1062 = vmax.f32 %v998, 0.0
  %v1063 = vmax.f32 %v999, 0.0
  %v1064 = vmax.f32 %v1000, 0.0
  %v1065 = vmax.f32 %v1001, 0.0
  %v1066 = vmax.f32 %v1002, 0.0
  %v1067 = vmax.f32 %v1003, 0.0
  %v1068 = vmax.f32 %v1004, 0.0
  %v1069 = vmax.f32 %v1005, 0.0
  %v1070 = vmax.f32 %v1006, 0.0
  %v1071 = vmax.f32 %v1007, 0.0
  %v1072 = vmax.f32 %v1008, 0.0
  %v1073 = vmax.f32 %v1009, 0.0
  %v1074 = vmax.f32 %v1010, 0.0
  %v1075 = vmax.f32 %v1011, 0.0
  %v1076 = vmax.f32 %v1012, 0.0
  %v1077 = vmax.f32 %v1013, 0.0
  %v1078 = vmax.f32 %v1014, 0.0
  %v1079 = vmax.f32 %v1015, 0.0
  %v1080 = vmax.f32 %v1016, 0.0
  %v1081 = vmax.f32 %v1017, 0.0
  %v1082 = vld [vmem:[%s4] sm:$0xff]
  %v1083 = vld [vmem:[%s4 + $0x8] sm:$0xff]
  %v1084 = vld [vmem:[%s4 + $0x10] sm:$0xff]
  %v1085 = vld [vmem:[%s4 + $0x18] sm:$0xff]
  %v1086 = vld [vmem:[%s4 + $0x20] sm:$0xff]
  %v1087 = vld [vmem:[%s4 + $0x28] sm:$0xff]
  %v1088 = vld [vmem:[%s4 + $0x30] sm:$0xff]
  %v1089 = vld [vmem:[%s4 + $0x38] sm:$0xff]
  %v1090 = vld [vmem:[%s4 + $0x40] sm:$0xff]
  %v1091 = vld [vmem:[%s4 + $0x48] sm:$0xff]
  %v1092 = vld [vmem:[%s4 + $0x50] sm:$0xff]
  %v1093 = vld [vmem:[%s4 + $0x58] sm:$0xff]
  %v1094 = vld [vmem:[%s4 + $0x60] sm:$0xff]
  %v1095 = vld [vmem:[%s4 + $0x68] sm:$0xff]
  %v1096 = vld [vmem:[%s4 + $0x70] sm:$0xff]
  %v1097 = vld [vmem:[%s4 + $0x78] sm:$0xff]
  %v1098 = vld [vmem:[%s5] sm:$0xf]
  %1099 = vmatpush.msra.mxu0 %v1033
  %1100 = vmatpush.msra.mxu0 %v1032
  %1101 = vmatpush.msra.mxu0 %v1031
  %1102 = vmatpush.msra.mxu0 %v1030
  %1103 = vmatpush.msra.mxu0 %v1029
  %1104 = vmatpush.msra.mxu0 %v1028
  %1105 = vmatpush.msra.mxu0 %v1027
  %1106 = vmatpush.msra.mxu0 %v1026
  %1107 = vmatpush.msra.mxu0 %v1025
  %1108 = vmatpush.msra.mxu0 %v1024
  %1109 = vmatpush.msra.mxu0 %v1023
  %1110 = vmatpush.msra.mxu0 %v1022
  %1111 = vmatpush.msra.mxu0 %v1021
  %1112 = vmatpush.msra.mxu0 %v1020
  %1113 = vmatpush.msra.mxu0 %v1019
  %1114 = vmatpush.msra.mxu0 %v1018
  %1115 = vmatmul.f32.gmra.mxu0 %v1082
  %v1116 = vpop.f32.mrf.mxu0
  %v1117 = vadd.f32 0.0, %v1116
  %1118 = vmatmul.f32.gmra.mxu0 %v1084
  %v1119 = vpop.f32.mrf.mxu0
  %v1120 = vadd.f32 0.0, %v1119
  %1121 = vmatmul.f32.gmra.mxu0 %v1086
  %v1122 = vpop.f32.mrf.mxu0
  %v1123 = vadd.f32 0.0, %v1122
  %1124 = vmatmul.f32.gmra.mxu0 %v1088
  %v1125 = vpop.f32.mrf.mxu0
  %v1126 = vadd.f32 0.0, %v1125
  %1127 = vmatmul.f32.gmra.mxu0 %v1090
  %v1128 = vpop.f32.mrf.mxu0
  %v1129 = vadd.f32 0.0, %v1128
  %1130 = vmatmul.f32.gmra.mxu0 %v1092
  %v1131 = vpop.f32.mrf.mxu0
  %v1132 = vadd.f32 0.0, %v1131
  %1133 = vmatmul.f32.gmra.mxu0 %v1094
  %v1134 = vpop.f32.mrf.mxu0
  %v1135 = vadd.f32 0.0, %v1134
  %1136 = vmatmul.f32.gmra.mxu0 %v1096
  %v1137 = vpop.f32.mrf.mxu0
  %v1138 = vadd.f32 0.0, %v1137
  %1139 = vdwg.mxu0
  %1140 = vmatpush.msra.mxu0 %v1049
  %1141 = vmatpush.msra.mxu0 %v1048
  %1142 = vmatpush.msra.mxu0 %v1047
  %1143 = vmatpush.msra.mxu0 %v1046
  %1144 = vmatpush.msra.mxu0 %v1045
  %1145 = vmatpush.msra.mxu0 %v1044
  %1146 = vmatpush.msra.mxu0 %v1043
  %1147 = vmatpush.msra.mxu0 %v1042
  %1148 = vmatpush.msra.mxu0 %v1041
  %1149 = vmatpush.msra.mxu0 %v1040
  %1150 = vmatpush.msra.mxu0 %v1039
  %1151 = vmatpush.msra.mxu0 %v1038
  %1152 = vmatpush.msra.mxu0 %v1037
  %1153 = vmatpush.msra.mxu0 %v1036
  %1154 = vmatpush.msra.mxu0 %v1035
  %1155 = vmatpush.msra.mxu0 %v1034
  %1156 = vmatmul.f32.gmra.mxu0 %v1083
  %v1157 = vpop.f32.mrf.mxu0
  %v1158 = vadd.f32 %v1117, %v1157
  %1159 = vmatmul.f32.gmra.mxu0 %v1085
  %v1160 = vpop.f32.mrf.mxu0
  %v1161 = vadd.f32 %v1120, %v1160
  %1162 = vmatmul.f32.gmra.mxu0 %v1087
  %v1163 = vpop.f32.mrf.mxu0
  %v1164 = vadd.f32 %v1123, %v1163
  %1165 = vmatmul.f32.gmra.mxu0 %v1089
  %v1166 = vpop.f32.mrf.mxu0
  %v1167 = vadd.f32 %v1126, %v1166
  %1168 = vmatmul.f32.gmra.mxu0 %v1091
  %v1169 = vpop.f32.mrf.mxu0
  %v1170 = vadd.f32 %v1129, %v1169
  %1171 = vmatmul.f32.gmra.mxu0 %v1093
  %v1172 = vpop.f32.mrf.mxu0
  %v1173 = vadd.f32 %v1132, %v1172
  %1174 = vmatmul.f32.gmra.mxu0 %v1095
  %v1175 = vpop.f32.mrf.mxu0
  %v1176 = vadd.f32 %v1135, %v1175
  %1177 = vmatmul.f32.gmra.mxu0 %v1097
  %v1178 = vpop.f32.mrf.mxu0
  %v1179 = vadd.f32 %v1138, %v1178
  %1180 = vdwg.mxu0
  %1181 = vmatpush.msra.mxu0 %v1065
  %1182 = vmatpush.msra.mxu0 %v1064
  %1183 = vmatpush.msra.mxu0 %v1063
  %1184 = vmatpush.msra.mxu0 %v1062
  %1185 = vmatpush.msra.mxu0 %v1061
  %1186 = vmatpush.msra.mxu0 %v1060
  %1187 = vmatpush.msra.mxu0 %v1059
  %1188 = vmatpush.msra.mxu0 %v1058
  %1189 = vmatpush.msra.mxu0 %v1057
  %1190 = vmatpush.msra.mxu0 %v1056
  %1191 = vmatpush.msra.mxu0 %v1055
  %1192 = vmatpush.msra.mxu0 %v1054
  %1193 = vmatpush.msra.mxu0 %v1053
  %1194 = vmatpush.msra.mxu0 %v1052
  %1195 = vmatpush.msra.mxu0 %v1051
  %1196 = vmatpush.msra.mxu0 %v1050
  %1197 = vmatmul.f32.gmra.mxu0 %v1082
  %v1198 = vpop.f32.mrf.mxu0
  %v1199 = vadd.f32 0.0, %v1198
  %1200 = vmatmul.f32.gmra.mxu0 %v1084
  %v1201 = vpop.f32.mrf.mxu0
  %v1202 = vadd.f32 0.0, %v1201
  %1203 = vmatmul.f32.gmra.mxu0 %v1086
  %v1204 = vpop.f32.mrf.mxu0
  %v1205 = vadd.f32 0.0, %v1204
  %1206 = vmatmul.f32.gmra.mxu0 %v1088
  %v1207 = vpop.f32.mrf.mxu0
  %v1208 = vadd.f32 0.0, %v1207
  %1209 = vmatmul.f32.gmra.mxu0 %v1090
  %v1210 = vpop.f32.mrf.mxu0
  %v1211 = vadd.f32 0.0, %v1210
  %1212 = vmatmul.f32.gmra.mxu0 %v1092
  %v1213 = vpop.f32.mrf.mxu0
  %v1214 = vadd.f32 0.0, %v1213
  %1215 = vmatmul.f32.gmra.mxu0 %v1094
  %v1216 = vpop.f32.mrf.mxu0
  %v1217 = vadd.f32 0.0, %v1216
  %1218 = vmatmul.f32.gmra.mxu0 %v1096
  %v1219 = vpop.f32.mrf.mxu0
  %v1220 = vadd.f32 0.0, %v1219
  %1221 = vdwg.mxu0
  %1222 = vmatpush.msra.mxu0 %v1081
  %1223 = vmatpush.msra.mxu0 %v1080
  %1224 = vmatpush.msra.mxu0 %v1079
  %1225 = vmatpush.msra.mxu0 %v1078
  %1226 = vmatpush.msra.mxu0 %v1077
  %1227 = vmatpush.msra.mxu0 %v1076
  %1228 = vmatpush.msra.mxu0 %v1075
  %1229 = vmatpush.msra.mxu0 %v1074
  %1230 = vmatpush.msra.mxu0 %v1073
  %1231 = vmatpush.msra.mxu0 %v1072
  %1232 = vmatpush.msra.mxu0 %v1071
  %1233 = vmatpush.msra.mxu0 %v1070
  %1234 = vmatpush.msra.mxu0 %v1069
  %1235 = vmatpush.msra.mxu0 %v1068
  %1236 = vmatpush.msra.mxu0 %v1067
  %1237 = vmatpush.msra.mxu0 %v1066
  %1238 = vmatmul.f32.gmra.mxu0 %v1083
  %v1239 = vpop.f32.mrf.mxu0
  %v1240 = vadd.f32 %v1199, %v1239
  %1241 = vmatmul.f32.gmra.mxu0 %v1085
  %v1242 = vpop.f32.mrf.mxu0
  %v1243 = vadd.f32 %v1202, %v1242
  %1244 = vmatmul.f32.gmra.mxu0 %v1087
  %v1245 = vpop.f32.mrf.mxu0
  %v1246 = vadd.f32 %v1205, %v1245
  %1247 = vmatmul.f32.gmra.mxu0 %v1089
  %v1248 = vpop.f32.mrf.mxu0
  %v1249 = vadd.f32 %v1208, %v1248
  %1250 = vmatmul.f32.gmra.mxu0 %v1091
  %v1251 = vpop.f32.mrf.mxu0
  %v1252 = vadd.f32 %v1211, %v1251
  %1253 = vmatmul.f32.gmra.mxu0 %v1093
  %v1254 = vpop.f32.mrf.mxu0
  %v1255 = vadd.f32 %v1214, %v1254
  %1256 = vmatmul.f32.gmra.mxu0 %v1095
  %v1257 = vpop.f32.mrf.mxu0
  %v1258 = vadd.f32 %v1217, %v1257
  %1259 = vmatmul.f32.gmra.mxu0 %v1097
  %v1260 = vpop.f32.mrf.mxu0
  %v1261 = vadd.f32 %v1220, %v1260
  %1262 = vdwg.mxu0
  %s1263 = scalar_lea.vmem %s4, 128
  %v1264 = vld [vmem:[%s1263] sm:$0xff]
  %v1265 = vld [vmem:[%s1263 + $0x8] sm:$0xff]
  %v1266 = vld [vmem:[%s1263 + $0x10] sm:$0xff]
  %v1267 = vld [vmem:[%s1263 + $0x18] sm:$0xff]
  %v1268 = vld [vmem:[%s1263 + $0x20] sm:$0xff]
  %v1269 = vld [vmem:[%s1263 + $0x28] sm:$0xff]
  %v1270 = vld [vmem:[%s1263 + $0x30] sm:$0xff]
  %v1271 = vld [vmem:[%s1263 + $0x38] sm:$0xff]
  %v1272 = vld [vmem:[%s1263 + $0x40] sm:$0xff]
  %v1273 = vld [vmem:[%s1263 + $0x48] sm:$0xff]
  %v1274 = vld [vmem:[%s1263 + $0x50] sm:$0xff]
  %v1275 = vld [vmem:[%s1263 + $0x58] sm:$0xff]
  %v1276 = vld [vmem:[%s1263 + $0x60] sm:$0xff]
  %v1277 = vld [vmem:[%s1263 + $0x68] sm:$0xff]
  %v1278 = vld [vmem:[%s1263 + $0x70] sm:$0xff]
  %v1279 = vld [vmem:[%s1263 + $0x78] sm:$0xff]
  %s1280 = scalar_lea.vmem %s5, 4
  %v1281 = vld [vmem:[%s1280] sm:$0xf]
  %1282 = vmatpush.msra.mxu0 %v1033
  %1283 = vmatpush.msra.mxu0 %v1032
  %1284 = vmatpush.msra.mxu0 %v1031
  %1285 = vmatpush.msra.mxu0 %v1030
  %1286 = vmatpush.msra.mxu0 %v1029
  %1287 = vmatpush.msra.mxu0 %v1028
  %1288 = vmatpush.msra.mxu0 %v1027
  %1289 = vmatpush.msra.mxu0 %v1026
  %1290 = vmatpush.msra.mxu0 %v1025
  %1291 = vmatpush.msra.mxu0 %v1024
  %1292 = vmatpush.msra.mxu0 %v1023
  %1293 = vmatpush.msra.mxu0 %v1022
  %1294 = vmatpush.msra.mxu0 %v1021
  %1295 = vmatpush.msra.mxu0 %v1020
  %1296 = vmatpush.msra.mxu0 %v1019
  %1297 = vmatpush.msra.mxu0 %v1018
  %1298 = vmatmul.f32.gmra.mxu0 %v1264
  %v1299 = vpop.f32.mrf.mxu0
  %v1300 = vadd.f32 0.0, %v1299
  %1301 = vmatmul.f32.gmra.mxu0 %v1266
  %v1302 = vpop.f32.mrf.mxu0
  %v1303 = vadd.f32 0.0, %v1302
  %1304 = vmatmul.f32.gmra.mxu0 %v1268
  %v1305 = vpop.f32.mrf.mxu0
  %v1306 = vadd.f32 0.0, %v1305
  %1307 = vmatmul.f32.gmra.mxu0 %v1270
  %v1308 = vpop.f32.mrf.mxu0
  %v1309 = vadd.f32 0.0, %v1308
  %1310 = vmatmul.f32.gmra.mxu0 %v1272
  %v1311 = vpop.f32.mrf.mxu0
  %v1312 = vadd.f32 0.0, %v1311
  %1313 = vmatmul.f32.gmra.mxu0 %v1274
  %v1314 = vpop.f32.mrf.mxu0
  %v1315 = vadd.f32 0.0, %v1314
  %1316 = vmatmul.f32.gmra.mxu0 %v1276
  %v1317 = vpop.f32.mrf.mxu0
  %v1318 = vadd.f32 0.0, %v1317
  %1319 = vmatmul.f32.gmra.mxu0 %v1278
  %v1320 = vpop.f32.mrf.mxu0
  %v1321 = vadd.f32 0.0, %v1320
  %1322 = vdwg.mxu0
  %1323 = vmatpush.msra.mxu0 %v1049
  %1324 = vmatpush.msra.mxu0 %v1048
  %1325 = vmatpush.msra.mxu0 %v1047
  %1326 = vmatpush.msra.mxu0 %v1046
  %1327 = vmatpush.msra.mxu0 %v1045
  %1328 = vmatpush.msra.mxu0 %v1044
  %1329 = vmatpush.msra.mxu0 %v1043
  %1330 = vmatpush.msra.mxu0 %v1042
  %1331 = vmatpush.msra.mxu0 %v1041
  %1332 = vmatpush.msra.mxu0 %v1040
  %1333 = vmatpush.msra.mxu0 %v1039
  %1334 = vmatpush.msra.mxu0 %v1038
  %1335 = vmatpush.msra.mxu0 %v1037
  %1336 = vmatpush.msra.mxu0 %v1036
  %1337 = vmatpush.msra.mxu0 %v1035
  %1338 = vmatpush.msra.mxu0 %v1034
  %1339 = vmatmul.f32.gmra.mxu0 %v1265
  %v1340 = vpop.f32.mrf.mxu0
  %v1341 = vadd.f32 %v1300, %v1340
  %1342 = vmatmul.f32.gmra.mxu0 %v1267
  %v1343 = vpop.f32.mrf.mxu0
  %v1344 = vadd.f32 %v1303, %v1343
  %1345 = vmatmul.f32.gmra.mxu0 %v1269
  %v1346 = vpop.f32.mrf.mxu0
  %v1347 = vadd.f32 %v1306, %v1346
  %1348 = vmatmul.f32.gmra.mxu0 %v1271
  %v1349 = vpop.f32.mrf.mxu0
  %v1350 = vadd.f32 %v1309, %v1349
  %1351 = vmatmul.f32.gmra.mxu0 %v1273
  %v1352 = vpop.f32.mrf.mxu0
  %v1353 = vadd.f32 %v1312, %v1352
  %1354 = vmatmul.f32.gmra.mxu0 %v1275
  %v1355 = vpop.f32.mrf.mxu0
  %v1356 = vadd.f32 %v1315, %v1355
  %1357 = vmatmul.f32.gmra.mxu0 %v1277
  %v1358 = vpop.f32.mrf.mxu0
  %v1359 = vadd.f32 %v1318, %v1358
  %1360 = vmatmul.f32.gmra.mxu0 %v1279
  %v1361 = vpop.f32.mrf.mxu0
  %v1362 = vadd.f32 %v1321, %v1361
  %1363 = vdwg.mxu0
  %v1365 = vsel %vm535, %v1341, 0
  %v1368 = vsel %vm535, %v1344, 0
  %v1371 = vsel %vm535, %v1347, 0
  %v1374 = vsel %vm535, %v1350, 0
  %v1377 = vsel %vm535, %v1353, 0
  %v1380 = vsel %vm535, %v1356, 0
  %v1383 = vsel %vm535, %v1359, 0
  %v1386 = vsel %vm535, %v1362, 0
  %vm1388 = vcmask 1043456
  %v1390 = vsel %vm1388, %v1281, 0
  %1392 = vmatpush.msra.mxu0 0.0
  %1393 = vmatpush.msra.mxu0 0.0
  %1394 = vmatpush.msra.mxu0 0.0
  %1395 = vmatpush.msra.mxu0 0.0
  %1396 = vmatpush.msra.mxu0 0.0
  %1397 = vmatpush.msra.mxu0 0.0
  %1398 = vmatpush.msra.mxu0 0.0
  %1399 = vmatpush.msra.mxu0 0.0
  %1400 = vmatpush.msra.mxu0 0.0
  %1401 = vmatpush.msra.mxu0 0.0
  %1402 = vmatpush.msra.mxu0 0.0
  %1403 = vmatpush.msra.mxu0 0.0
  %1404 = vmatpush.msra.mxu0 0.0
  %1405 = vmatpush.msra.mxu0 0.0
  %1406 = vmatpush.msra.mxu0 0.0
  %1407 = vmatpush.msra.mxu0 %v1390
  %1408 = vmatmul.f32.gmra.mxu0 %v1365
  %v1409 = vpop.f32.mrf.mxu0
  %v1410 = vadd.f32 0.0, %v1409
  %1411 = vmatmul.f32.gmra.mxu0 %v1368
  %v1412 = vpop.f32.mrf.mxu0
  %v1413 = vadd.f32 0.0, %v1412
  %1414 = vmatmul.f32.gmra.mxu0 %v1371
  %v1415 = vpop.f32.mrf.mxu0
  %v1416 = vadd.f32 0.0, %v1415
  %1417 = vmatmul.f32.gmra.mxu0 %v1374
  %v1418 = vpop.f32.mrf.mxu0
  %v1419 = vadd.f32 0.0, %v1418
  %1420 = vmatmul.f32.gmra.mxu0 %v1377
  %v1421 = vpop.f32.mrf.mxu0
  %v1422 = vadd.f32 0.0, %v1421
  %1423 = vmatmul.f32.gmra.mxu0 %v1380
  %v1424 = vpop.f32.mrf.mxu0
  %v1425 = vadd.f32 0.0, %v1424
  %1426 = vmatmul.f32.gmra.mxu0 %v1383
  %v1427 = vpop.f32.mrf.mxu0
  %v1428 = vadd.f32 0.0, %v1427
  %1429 = vmatmul.f32.gmra.mxu0 %v1386
  %v1430 = vpop.f32.mrf.mxu0
  %v1431 = vadd.f32 0.0, %v1430
  %1432 = vdwg.mxu0
  %v1434 = vsel %vm535, %v1158, 0
  %v1437 = vsel %vm535, %v1161, 0
  %v1440 = vsel %vm535, %v1164, 0
  %v1443 = vsel %vm535, %v1167, 0
  %v1446 = vsel %vm535, %v1170, 0
  %v1449 = vsel %vm535, %v1173, 0
  %v1452 = vsel %vm535, %v1176, 0
  %v1455 = vsel %vm535, %v1179, 0
  %v1458 = vsel %vm1388, %v1098, 0
  %1460 = vmatpush.msra.mxu0 0.0
  %1461 = vmatpush.msra.mxu0 0.0
  %1462 = vmatpush.msra.mxu0 0.0
  %1463 = vmatpush.msra.mxu0 0.0
  %1464 = vmatpush.msra.mxu0 0.0
  %1465 = vmatpush.msra.mxu0 0.0
  %1466 = vmatpush.msra.mxu0 0.0
  %1467 = vmatpush.msra.mxu0 0.0
  %1468 = vmatpush.msra.mxu0 0.0
  %1469 = vmatpush.msra.mxu0 0.0
  %1470 = vmatpush.msra.mxu0 0.0
  %1471 = vmatpush.msra.mxu0 0.0
  %1472 = vmatpush.msra.mxu0 0.0
  %1473 = vmatpush.msra.mxu0 0.0
  %1474 = vmatpush.msra.mxu0 0.0
  %1475 = vmatpush.msra.mxu0 %v1458
  %1476 = vmatmul.f32.gmra.mxu0 %v1434
  %v1477 = vpop.f32.mrf.mxu0
  %v1478 = vadd.f32 %v1410, %v1477
  %1479 = vmatmul.f32.gmra.mxu0 %v1437
  %v1480 = vpop.f32.mrf.mxu0
  %v1481 = vadd.f32 %v1413, %v1480
  %1482 = vmatmul.f32.gmra.mxu0 %v1440
  %v1483 = vpop.f32.mrf.mxu0
  %v1484 = vadd.f32 %v1416, %v1483
  %1485 = vmatmul.f32.gmra.mxu0 %v1443
  %v1486 = vpop.f32.mrf.mxu0
  %v1487 = vadd.f32 %v1419, %v1486
  %1488 = vmatmul.f32.gmra.mxu0 %v1446
  %v1489 = vpop.f32.mrf.mxu0
  %v1490 = vadd.f32 %v1422, %v1489
  %1491 = vmatmul.f32.gmra.mxu0 %v1449
  %v1492 = vpop.f32.mrf.mxu0
  %v1493 = vadd.f32 %v1425, %v1492
  %1494 = vmatmul.f32.gmra.mxu0 %v1452
  %v1495 = vpop.f32.mrf.mxu0
  %v1496 = vadd.f32 %v1428, %v1495
  %1497 = vmatmul.f32.gmra.mxu0 %v1455
  %v1498 = vpop.f32.mrf.mxu0
  %v1499 = vadd.f32 %v1431, %v1498
  %1500 = vdwg.mxu0
  %1501 = vmatpush.msra.mxu0 %v1065
  %1502 = vmatpush.msra.mxu0 %v1064
  %1503 = vmatpush.msra.mxu0 %v1063
  %1504 = vmatpush.msra.mxu0 %v1062
  %1505 = vmatpush.msra.mxu0 %v1061
  %1506 = vmatpush.msra.mxu0 %v1060
  %1507 = vmatpush.msra.mxu0 %v1059
  %1508 = vmatpush.msra.mxu0 %v1058
  %1509 = vmatpush.msra.mxu0 %v1057
  %1510 = vmatpush.msra.mxu0 %v1056
  %1511 = vmatpush.msra.mxu0 %v1055
  %1512 = vmatpush.msra.mxu0 %v1054
  %1513 = vmatpush.msra.mxu0 %v1053
  %1514 = vmatpush.msra.mxu0 %v1052
  %1515 = vmatpush.msra.mxu0 %v1051
  %1516 = vmatpush.msra.mxu0 %v1050
  %1517 = vmatmul.f32.gmra.mxu0 %v1264
  %v1518 = vpop.f32.mrf.mxu0
  %v1519 = vadd.f32 0.0, %v1518
  %1520 = vmatmul.f32.gmra.mxu0 %v1266
  %v1521 = vpop.f32.mrf.mxu0
  %v1522 = vadd.f32 0.0, %v1521
  %1523 = vmatmul.f32.gmra.mxu0 %v1268
  %v1524 = vpop.f32.mrf.mxu0
  %v1525 = vadd.f32 0.0, %v1524
  %1526 = vmatmul.f32.gmra.mxu0 %v1270
  %v1527 = vpop.f32.mrf.mxu0
  %v1528 = vadd.f32 0.0, %v1527
  %1529 = vmatmul.f32.gmra.mxu0 %v1272
  %v1530 = vpop.f32.mrf.mxu0
  %v1531 = vadd.f32 0.0, %v1530
  %1532 = vmatmul.f32.gmra.mxu0 %v1274
  %v1533 = vpop.f32.mrf.mxu0
  %v1534 = vadd.f32 0.0, %v1533
  %1535 = vmatmul.f32.gmra.mxu0 %v1276
  %v1536 = vpop.f32.mrf.mxu0
  %v1537 = vadd.f32 0.0, %v1536
  %1538 = vmatmul.f32.gmra.mxu0 %v1278
  %v1539 = vpop.f32.mrf.mxu0
  %v1540 = vadd.f32 0.0, %v1539
  %1541 = vdwg.mxu0
  %1542 = vmatpush.msra.mxu0 %v1081
  %1543 = vmatpush.msra.mxu0 %v1080
  %1544 = vmatpush.msra.mxu0 %v1079
  %1545 = vmatpush.msra.mxu0 %v1078
  %1546 = vmatpush.msra.mxu0 %v1077
  %1547 = vmatpush.msra.mxu0 %v1076
  %1548 = vmatpush.msra.mxu0 %v1075
  %1549 = vmatpush.msra.mxu0 %v1074
  %1550 = vmatpush.msra.mxu0 %v1073
  %1551 = vmatpush.msra.mxu0 %v1072
  %1552 = vmatpush.msra.mxu0 %v1071
  %1553 = vmatpush.msra.mxu0 %v1070
  %1554 = vmatpush.msra.mxu0 %v1069
  %1555 = vmatpush.msra.mxu0 %v1068
  %1556 = vmatpush.msra.mxu0 %v1067
  %1557 = vmatpush.msra.mxu0 %v1066
  %1558 = vmatmul.f32.gmra.mxu0 %v1265
  %v1559 = vpop.f32.mrf.mxu0
  %v1560 = vadd.f32 %v1519, %v1559
  %1561 = vmatmul.f32.gmra.mxu0 %v1267
  %v1562 = vpop.f32.mrf.mxu0
  %v1563 = vadd.f32 %v1522, %v1562
  %1564 = vmatmul.f32.gmra.mxu0 %v1269
  %v1565 = vpop.f32.mrf.mxu0
  %v1566 = vadd.f32 %v1525, %v1565
  %1567 = vmatmul.f32.gmra.mxu0 %v1271
  %v1568 = vpop.f32.mrf.mxu0
  %v1569 = vadd.f32 %v1528, %v1568
  %1570 = vmatmul.f32.gmra.mxu0 %v1273
  %v1571 = vpop.f32.mrf.mxu0
  %v1572 = vadd.f32 %v1531, %v1571
  %1573 = vmatmul.f32.gmra.mxu0 %v1275
  %v1574 = vpop.f32.mrf.mxu0
  %v1575 = vadd.f32 %v1534, %v1574
  %1576 = vmatmul.f32.gmra.mxu0 %v1277
  %v1577 = vpop.f32.mrf.mxu0
  %v1578 = vadd.f32 %v1537, %v1577
  %1579 = vmatmul.f32.gmra.mxu0 %v1279
  %v1580 = vpop.f32.mrf.mxu0
  %v1581 = vadd.f32 %v1540, %v1580
  %1582 = vdwg.mxu0
  %v1584 = vsel %vm535, %v1560, 0
  %v1587 = vsel %vm535, %v1563, 0
  %v1590 = vsel %vm535, %v1566, 0
  %v1593 = vsel %vm535, %v1569, 0
  %v1596 = vsel %vm535, %v1572, 0
  %v1599 = vsel %vm535, %v1575, 0
  %v1602 = vsel %vm535, %v1578, 0
  %v1605 = vsel %vm535, %v1581, 0
  %1607 = vmatpush.msra.mxu0 0.0
  %1608 = vmatpush.msra.mxu0 0.0
  %1609 = vmatpush.msra.mxu0 0.0
  %1610 = vmatpush.msra.mxu0 0.0
  %1611 = vmatpush.msra.mxu0 0.0
  %1612 = vmatpush.msra.mxu0 0.0
  %1613 = vmatpush.msra.mxu0 0.0
  %1614 = vmatpush.msra.mxu0 0.0
  %1615 = vmatpush.msra.mxu0 0.0
  %1616 = vmatpush.msra.mxu0 0.0
  %1617 = vmatpush.msra.mxu0 0.0
  %1618 = vmatpush.msra.mxu0 0.0
  %1619 = vmatpush.msra.mxu0 0.0
  %1620 = vmatpush.msra.mxu0 0.0
  %1621 = vmatpush.msra.mxu0 0.0
  %1622 = vmatpush.msra.mxu0 %v1390
  %1623 = vmatmul.f32.gmra.mxu0 %v1584
  %v1624 = vpop.f32.mrf.mxu0
  %v1625 = vadd.f32 0.0, %v1624
  %1626 = vmatmul.f32.gmra.mxu0 %v1587
  %v1627 = vpop.f32.mrf.mxu0
  %v1628 = vadd.f32 0.0, %v1627
  %1629 = vmatmul.f32.gmra.mxu0 %v1590
  %v1630 = vpop.f32.mrf.mxu0
  %v1631 = vadd.f32 0.0, %v1630
  %1632 = vmatmul.f32.gmra.mxu0 %v1593
  %v1633 = vpop.f32.mrf.mxu0
  %v1634 = vadd.f32 0.0, %v1633
  %1635 = vmatmul.f32.gmra.mxu0 %v1596
  %v1636 = vpop.f32.mrf.mxu0
  %v1637 = vadd.f32 0.0, %v1636
  %1638 = vmatmul.f32.gmra.mxu0 %v1599
  %v1639 = vpop.f32.mrf.mxu0
  %v1640 = vadd.f32 0.0, %v1639
  %1641 = vmatmul.f32.gmra.mxu0 %v1602
  %v1642 = vpop.f32.mrf.mxu0
  %v1643 = vadd.f32 0.0, %v1642
  %1644 = vmatmul.f32.gmra.mxu0 %v1605
  %v1645 = vpop.f32.mrf.mxu0
  %v1646 = vadd.f32 0.0, %v1645
  %1647 = vdwg.mxu0
  %v1649 = vsel %vm535, %v1240, 0
  %v1652 = vsel %vm535, %v1243, 0
  %v1655 = vsel %vm535, %v1246, 0
  %v1658 = vsel %vm535, %v1249, 0
  %v1661 = vsel %vm535, %v1252, 0
  %v1664 = vsel %vm535, %v1255, 0
  %v1667 = vsel %vm535, %v1258, 0
  %v1670 = vsel %vm535, %v1261, 0
  %1672 = vmatpush.msra.mxu0 0.0
  %1673 = vmatpush.msra.mxu0 0.0
  %1674 = vmatpush.msra.mxu0 0.0
  %1675 = vmatpush.msra.mxu0 0.0
  %1676 = vmatpush.msra.mxu0 0.0
  %1677 = vmatpush.msra.mxu0 0.0
  %1678 = vmatpush.msra.mxu0 0.0
  %1679 = vmatpush.msra.mxu0 0.0
  %1680 = vmatpush.msra.mxu0 0.0
  %1681 = vmatpush.msra.mxu0 0.0
  %1682 = vmatpush.msra.mxu0 0.0
  %1683 = vmatpush.msra.mxu0 0.0
  %1684 = vmatpush.msra.mxu0 0.0
  %1685 = vmatpush.msra.mxu0 0.0
  %1686 = vmatpush.msra.mxu0 0.0
  %1687 = vmatpush.msra.mxu0 %v1458
  %1688 = vmatmul.f32.gmra.mxu0 %v1649
  %v1689 = vpop.f32.mrf.mxu0
  %v1690 = vadd.f32 %v1625, %v1689
  %1691 = vmatmul.f32.gmra.mxu0 %v1652
  %v1692 = vpop.f32.mrf.mxu0
  %v1693 = vadd.f32 %v1628, %v1692
  %1694 = vmatmul.f32.gmra.mxu0 %v1655
  %v1695 = vpop.f32.mrf.mxu0
  %v1696 = vadd.f32 %v1631, %v1695
  %1697 = vmatmul.f32.gmra.mxu0 %v1658
  %v1698 = vpop.f32.mrf.mxu0
  %v1699 = vadd.f32 %v1634, %v1698
  %1700 = vmatmul.f32.gmra.mxu0 %v1661
  %v1701 = vpop.f32.mrf.mxu0
  %v1702 = vadd.f32 %v1637, %v1701
  %1703 = vmatmul.f32.gmra.mxu0 %v1664
  %v1704 = vpop.f32.mrf.mxu0
  %v1705 = vadd.f32 %v1640, %v1704
  %1706 = vmatmul.f32.gmra.mxu0 %v1667
  %v1707 = vpop.f32.mrf.mxu0
  %v1708 = vadd.f32 %v1643, %v1707
  %1709 = vmatmul.f32.gmra.mxu0 %v1670
  %v1710 = vpop.f32.mrf.mxu0
  %v1711 = vadd.f32 %v1646, %v1710
  %1712 = vdwg.mxu0
  %s1713 = scalar_lea.vmem %s4, 256
  %v1714 = vld [vmem:[%s1713] sm:$0xff]
  %v1715 = vld [vmem:[%s1713 + $0x8] sm:$0xff]
  %v1716 = vld [vmem:[%s1713 + $0x10] sm:$0xff]
  %v1717 = vld [vmem:[%s1713 + $0x18] sm:$0xff]
  %v1718 = vld [vmem:[%s1713 + $0x20] sm:$0xff]
  %v1719 = vld [vmem:[%s1713 + $0x28] sm:$0xff]
  %v1720 = vld [vmem:[%s1713 + $0x30] sm:$0xff]
  %v1721 = vld [vmem:[%s1713 + $0x38] sm:$0xff]
  %v1722 = vld [vmem:[%s1713 + $0x40] sm:$0xff]
  %v1723 = vld [vmem:[%s1713 + $0x48] sm:$0xff]
  %v1724 = vld [vmem:[%s1713 + $0x50] sm:$0xff]
  %v1725 = vld [vmem:[%s1713 + $0x58] sm:$0xff]
  %v1726 = vld [vmem:[%s1713 + $0x60] sm:$0xff]
  %v1727 = vld [vmem:[%s1713 + $0x68] sm:$0xff]
  %v1728 = vld [vmem:[%s1713 + $0x70] sm:$0xff]
  %v1729 = vld [vmem:[%s1713 + $0x78] sm:$0xff]
  %s1730 = scalar_lea.vmem %s5, 8
  %v1731 = vld [vmem:[%s1730] sm:$0xf]
  %1732 = vmatpush.msra.mxu0 %v1033
  %1733 = vmatpush.msra.mxu0 %v1032
  %1734 = vmatpush.msra.mxu0 %v1031
  %1735 = vmatpush.msra.mxu0 %v1030
  %1736 = vmatpush.msra.mxu0 %v1029
  %1737 = vmatpush.msra.mxu0 %v1028
  %1738 = vmatpush.msra.mxu0 %v1027
  %1739 = vmatpush.msra.mxu0 %v1026
  %1740 = vmatpush.msra.mxu0 %v1025
  %1741 = vmatpush.msra.mxu0 %v1024
  %1742 = vmatpush.msra.mxu0 %v1023
  %1743 = vmatpush.msra.mxu0 %v1022
  %1744 = vmatpush.msra.mxu0 %v1021
  %1745 = vmatpush.msra.mxu0 %v1020
  %1746 = vmatpush.msra.mxu0 %v1019
  %1747 = vmatpush.msra.mxu0 %v1018
  %1748 = vmatmul.f32.gmra.mxu0 %v1714
  %v1749 = vpop.f32.mrf.mxu0
  %v1750 = vadd.f32 0.0, %v1749
  %1751 = vmatmul.f32.gmra.mxu0 %v1716
  %v1752 = vpop.f32.mrf.mxu0
  %v1753 = vadd.f32 0.0, %v1752
  %1754 = vmatmul.f32.gmra.mxu0 %v1718
  %v1755 = vpop.f32.mrf.mxu0
  %v1756 = vadd.f32 0.0, %v1755
  %1757 = vmatmul.f32.gmra.mxu0 %v1720
  %v1758 = vpop.f32.mrf.mxu0
  %v1759 = vadd.f32 0.0, %v1758
  %1760 = vmatmul.f32.gmra.mxu0 %v1722
  %v1761 = vpop.f32.mrf.mxu0
  %v1762 = vadd.f32 0.0, %v1761
  %1763 = vmatmul.f32.gmra.mxu0 %v1724
  %v1764 = vpop.f32.mrf.mxu0
  %v1765 = vadd.f32 0.0, %v1764
  %1766 = vmatmul.f32.gmra.mxu0 %v1726
  %v1767 = vpop.f32.mrf.mxu0
  %v1768 = vadd.f32 0.0, %v1767
  %1769 = vmatmul.f32.gmra.mxu0 %v1728
  %v1770 = vpop.f32.mrf.mxu0
  %v1771 = vadd.f32 0.0, %v1770
  %1772 = vdwg.mxu0
  %1773 = vmatpush.msra.mxu0 %v1049
  %1774 = vmatpush.msra.mxu0 %v1048
  %1775 = vmatpush.msra.mxu0 %v1047
  %1776 = vmatpush.msra.mxu0 %v1046
  %1777 = vmatpush.msra.mxu0 %v1045
  %1778 = vmatpush.msra.mxu0 %v1044
  %1779 = vmatpush.msra.mxu0 %v1043
  %1780 = vmatpush.msra.mxu0 %v1042
  %1781 = vmatpush.msra.mxu0 %v1041
  %1782 = vmatpush.msra.mxu0 %v1040
  %1783 = vmatpush.msra.mxu0 %v1039
  %1784 = vmatpush.msra.mxu0 %v1038
  %1785 = vmatpush.msra.mxu0 %v1037
  %1786 = vmatpush.msra.mxu0 %v1036
  %1787 = vmatpush.msra.mxu0 %v1035
  %1788 = vmatpush.msra.mxu0 %v1034
  %1789 = vmatmul.f32.gmra.mxu0 %v1715
  %v1790 = vpop.f32.mrf.mxu0
  %v1791 = vadd.f32 %v1750, %v1790
  %1792 = vmatmul.f32.gmra.mxu0 %v1717
  %v1793 = vpop.f32.mrf.mxu0
  %v1794 = vadd.f32 %v1753, %v1793
  %1795 = vmatmul.f32.gmra.mxu0 %v1719
  %v1796 = vpop.f32.mrf.mxu0
  %v1797 = vadd.f32 %v1756, %v1796
  %1798 = vmatmul.f32.gmra.mxu0 %v1721
  %v1799 = vpop.f32.mrf.mxu0
  %v1800 = vadd.f32 %v1759, %v1799
  %1801 = vmatmul.f32.gmra.mxu0 %v1723
  %v1802 = vpop.f32.mrf.mxu0
  %v1803 = vadd.f32 %v1762, %v1802
  %1804 = vmatmul.f32.gmra.mxu0 %v1725
  %v1805 = vpop.f32.mrf.mxu0
  %v1806 = vadd.f32 %v1765, %v1805
  %1807 = vmatmul.f32.gmra.mxu0 %v1727
  %v1808 = vpop.f32.mrf.mxu0
  %v1809 = vadd.f32 %v1768, %v1808
  %1810 = vmatmul.f32.gmra.mxu0 %v1729
  %v1811 = vpop.f32.mrf.mxu0
  %v1812 = vadd.f32 %v1771, %v1811
  %1813 = vdwg.mxu0
  %v1815 = vsel %vm535, %v1791, 0
  %v1818 = vsel %vm535, %v1794, 0
  %v1821 = vsel %vm535, %v1797, 0
  %v1824 = vsel %vm535, %v1800, 0
  %v1827 = vsel %vm535, %v1803, 0
  %v1830 = vsel %vm535, %v1806, 0
  %v1833 = vsel %vm535, %v1809, 0
  %v1836 = vsel %vm535, %v1812, 0
  %v1839 = vsel %vm1388, %v1731, 0
  %1841 = vmatpush.msra.mxu0 0.0
  %1842 = vmatpush.msra.mxu0 0.0
  %1843 = vmatpush.msra.mxu0 0.0
  %1844 = vmatpush.msra.mxu0 0.0
  %1845 = vmatpush.msra.mxu0 0.0
  %1846 = vmatpush.msra.mxu0 0.0
  %1847 = vmatpush.msra.mxu0 0.0
  %1848 = vmatpush.msra.mxu0 0.0
  %1849 = vmatpush.msra.mxu0 0.0
  %1850 = vmatpush.msra.mxu0 0.0
  %1851 = vmatpush.msra.mxu0 0.0
  %1852 = vmatpush.msra.mxu0 0.0
  %1853 = vmatpush.msra.mxu0 0.0
  %1854 = vmatpush.msra.mxu0 0.0
  %1855 = vmatpush.msra.mxu0 0.0
  %1856 = vmatpush.msra.mxu0 %v1839
  %1857 = vmatmul.f32.gmra.mxu0 %v1815
  %v1858 = vpop.f32.mrf.mxu0
  %v1859 = vadd.f32 0.0, %v1858
  %1860 = vmatmul.f32.gmra.mxu0 %v1818
  %v1861 = vpop.f32.mrf.mxu0
  %v1862 = vadd.f32 0.0, %v1861
  %1863 = vmatmul.f32.gmra.mxu0 %v1821
  %v1864 = vpop.f32.mrf.mxu0
  %v1865 = vadd.f32 0.0, %v1864
  %1866 = vmatmul.f32.gmra.mxu0 %v1824
  %v1867 = vpop.f32.mrf.mxu0
  %v1868 = vadd.f32 0.0, %v1867
  %1869 = vmatmul.f32.gmra.mxu0 %v1827
  %v1870 = vpop.f32.mrf.mxu0
  %v1871 = vadd.f32 0.0, %v1870
  %1872 = vmatmul.f32.gmra.mxu0 %v1830
  %v1873 = vpop.f32.mrf.mxu0
  %v1874 = vadd.f32 0.0, %v1873
  %1875 = vmatmul.f32.gmra.mxu0 %v1833
  %v1876 = vpop.f32.mrf.mxu0
  %v1877 = vadd.f32 0.0, %v1876
  %1878 = vmatmul.f32.gmra.mxu0 %v1836
  %v1879 = vpop.f32.mrf.mxu0
  %v1880 = vadd.f32 0.0, %v1879
  %1881 = vdwg.mxu0
  %v1882 = vadd.f32 %v1478, %v1859
  %v1883 = vadd.f32 %v1481, %v1862
  %v1884 = vadd.f32 %v1484, %v1865
  %v1885 = vadd.f32 %v1487, %v1868
  %v1886 = vadd.f32 %v1490, %v1871
  %v1887 = vadd.f32 %v1493, %v1874
  %v1888 = vadd.f32 %v1496, %v1877
  %v1889 = vadd.f32 %v1499, %v1880
  %1890 = vmatpush.msra.mxu0 %v1065
  %1891 = vmatpush.msra.mxu0 %v1064
  %1892 = vmatpush.msra.mxu0 %v1063
  %1893 = vmatpush.msra.mxu0 %v1062
  %1894 = vmatpush.msra.mxu0 %v1061
  %1895 = vmatpush.msra.mxu0 %v1060
  %1896 = vmatpush.msra.mxu0 %v1059
  %1897 = vmatpush.msra.mxu0 %v1058
  %1898 = vmatpush.msra.mxu0 %v1057
  %1899 = vmatpush.msra.mxu0 %v1056
  %1900 = vmatpush.msra.mxu0 %v1055
  %1901 = vmatpush.msra.mxu0 %v1054
  %1902 = vmatpush.msra.mxu0 %v1053
  %1903 = vmatpush.msra.mxu0 %v1052
  %1904 = vmatpush.msra.mxu0 %v1051
  %1905 = vmatpush.msra.mxu0 %v1050
  %1906 = vmatmul.f32.gmra.mxu0 %v1714
  %v1907 = vpop.f32.mrf.mxu0
  %v1908 = vadd.f32 0.0, %v1907
  %1909 = vmatmul.f32.gmra.mxu0 %v1716
  %v1910 = vpop.f32.mrf.mxu0
  %v1911 = vadd.f32 0.0, %v1910
  %1912 = vmatmul.f32.gmra.mxu0 %v1718
  %v1913 = vpop.f32.mrf.mxu0
  %v1914 = vadd.f32 0.0, %v1913
  %1915 = vmatmul.f32.gmra.mxu0 %v1720
  %v1916 = vpop.f32.mrf.mxu0
  %v1917 = vadd.f32 0.0, %v1916
  %1918 = vmatmul.f32.gmra.mxu0 %v1722
  %v1919 = vpop.f32.mrf.mxu0
  %v1920 = vadd.f32 0.0, %v1919
  %1921 = vmatmul.f32.gmra.mxu0 %v1724
  %v1922 = vpop.f32.mrf.mxu0
  %v1923 = vadd.f32 0.0, %v1922
  %1924 = vmatmul.f32.gmra.mxu0 %v1726
  %v1925 = vpop.f32.mrf.mxu0
  %v1926 = vadd.f32 0.0, %v1925
  %1927 = vmatmul.f32.gmra.mxu0 %v1728
  %v1928 = vpop.f32.mrf.mxu0
  %v1929 = vadd.f32 0.0, %v1928
  %1930 = vdwg.mxu0
  %1931 = vmatpush.msra.mxu0 %v1081
  %1932 = vmatpush.msra.mxu0 %v1080
  %1933 = vmatpush.msra.mxu0 %v1079
  %1934 = vmatpush.msra.mxu0 %v1078
  %1935 = vmatpush.msra.mxu0 %v1077
  %1936 = vmatpush.msra.mxu0 %v1076
  %1937 = vmatpush.msra.mxu0 %v1075
  %1938 = vmatpush.msra.mxu0 %v1074
  %1939 = vmatpush.msra.mxu0 %v1073
  %1940 = vmatpush.msra.mxu0 %v1072
  %1941 = vmatpush.msra.mxu0 %v1071
  %1942 = vmatpush.msra.mxu0 %v1070
  %1943 = vmatpush.msra.mxu0 %v1069
  %1944 = vmatpush.msra.mxu0 %v1068
  %1945 = vmatpush.msra.mxu0 %v1067
  %1946 = vmatpush.msra.mxu0 %v1066
  %1947 = vmatmul.f32.gmra.mxu0 %v1715
  %v1948 = vpop.f32.mrf.mxu0
  %v1949 = vadd.f32 %v1908, %v1948
  %1950 = vmatmul.f32.gmra.mxu0 %v1717
  %v1951 = vpop.f32.mrf.mxu0
  %v1952 = vadd.f32 %v1911, %v1951
  %1953 = vmatmul.f32.gmra.mxu0 %v1719
  %v1954 = vpop.f32.mrf.mxu0
  %v1955 = vadd.f32 %v1914, %v1954
  %1956 = vmatmul.f32.gmra.mxu0 %v1721
  %v1957 = vpop.f32.mrf.mxu0
  %v1958 = vadd.f32 %v1917, %v1957
  %1959 = vmatmul.f32.gmra.mxu0 %v1723
  %v1960 = vpop.f32.mrf.mxu0
  %v1961 = vadd.f32 %v1920, %v1960
  %1962 = vmatmul.f32.gmra.mxu0 %v1725
  %v1963 = vpop.f32.mrf.mxu0
  %v1964 = vadd.f32 %v1923, %v1963
  %1965 = vmatmul.f32.gmra.mxu0 %v1727
  %v1966 = vpop.f32.mrf.mxu0
  %v1967 = vadd.f32 %v1926, %v1966
  %1968 = vmatmul.f32.gmra.mxu0 %v1729
  %v1969 = vpop.f32.mrf.mxu0
  %v1970 = vadd.f32 %v1929, %v1969
  %1971 = vdwg.mxu0
  %v1973 = vsel %vm535, %v1949, 0
  %v1976 = vsel %vm535, %v1952, 0
  %v1979 = vsel %vm535, %v1955, 0
  %v1982 = vsel %vm535, %v1958, 0
  %v1985 = vsel %vm535, %v1961, 0
  %v1988 = vsel %vm535, %v1964, 0
  %v1991 = vsel %vm535, %v1967, 0
  %v1994 = vsel %vm535, %v1970, 0
  %1996 = vmatpush.msra.mxu0 0.0
  %1997 = vmatpush.msra.mxu0 0.0
  %1998 = vmatpush.msra.mxu0 0.0
  %1999 = vmatpush.msra.mxu0 0.0
  %2000 = vmatpush.msra.mxu0 0.0
  %2001 = vmatpush.msra.mxu0 0.0
  %2002 = vmatpush.msra.mxu0 0.0
  %2003 = vmatpush.msra.mxu0 0.0
  %2004 = vmatpush.msra.mxu0 0.0
  %2005 = vmatpush.msra.mxu0 0.0
  %2006 = vmatpush.msra.mxu0 0.0
  %2007 = vmatpush.msra.mxu0 0.0
  %2008 = vmatpush.msra.mxu0 0.0
  %2009 = vmatpush.msra.mxu0 0.0
  %2010 = vmatpush.msra.mxu0 0.0
  %2011 = vmatpush.msra.mxu0 %v1839
  %2012 = vmatmul.f32.gmra.mxu0 %v1973
  %v2013 = vpop.f32.mrf.mxu0
  %v2014 = vadd.f32 0.0, %v2013
  %2015 = vmatmul.f32.gmra.mxu0 %v1976
  %v2016 = vpop.f32.mrf.mxu0
  %v2017 = vadd.f32 0.0, %v2016
  %2018 = vmatmul.f32.gmra.mxu0 %v1979
  %v2019 = vpop.f32.mrf.mxu0
  %v2020 = vadd.f32 0.0, %v2019
  %2021 = vmatmul.f32.gmra.mxu0 %v1982
  %v2022 = vpop.f32.mrf.mxu0
  %v2023 = vadd.f32 0.0, %v2022
  %2024 = vmatmul.f32.gmra.mxu0 %v1985
  %v2025 = vpop.f32.mrf.mxu0
  %v2026 = vadd.f32 0.0, %v2025
  %2027 = vmatmul.f32.gmra.mxu0 %v1988
  %v2028 = vpop.f32.mrf.mxu0
  %v2029 = vadd.f32 0.0, %v2028
  %2030 = vmatmul.f32.gmra.mxu0 %v1991
  %v2031 = vpop.f32.mrf.mxu0
  %v2032 = vadd.f32 0.0, %v2031
  %2033 = vmatmul.f32.gmra.mxu0 %v1994
  %v2034 = vpop.f32.mrf.mxu0
  %v2035 = vadd.f32 0.0, %v2034
  %2036 = vdwg.mxu0
  %v2037 = vadd.f32 %v1690, %v2014
  %v2038 = vadd.f32 %v1693, %v2017
  %v2039 = vadd.f32 %v1696, %v2020
  %v2040 = vadd.f32 %v1699, %v2023
  %v2041 = vadd.f32 %v1702, %v2026
  %v2042 = vadd.f32 %v1705, %v2029
  %v2043 = vadd.f32 %v1708, %v2032
  %v2044 = vadd.f32 %v1711, %v2035
  %s2045 = scalar_lea.vmem %s4, 384
  %v2046 = vld [vmem:[%s2045] sm:$0xff]
  %v2047 = vld [vmem:[%s2045 + $0x8] sm:$0xff]
  %v2048 = vld [vmem:[%s2045 + $0x10] sm:$0xff]
  %v2049 = vld [vmem:[%s2045 + $0x18] sm:$0xff]
  %v2050 = vld [vmem:[%s2045 + $0x20] sm:$0xff]
  %v2051 = vld [vmem:[%s2045 + $0x28] sm:$0xff]
  %v2052 = vld [vmem:[%s2045 + $0x30] sm:$0xff]
  %v2053 = vld [vmem:[%s2045 + $0x38] sm:$0xff]
  %v2054 = vld [vmem:[%s2045 + $0x40] sm:$0xff]
  %v2055 = vld [vmem:[%s2045 + $0x48] sm:$0xff]
  %v2056 = vld [vmem:[%s2045 + $0x50] sm:$0xff]
  %v2057 = vld [vmem:[%s2045 + $0x58] sm:$0xff]
  %v2058 = vld [vmem:[%s2045 + $0x60] sm:$0xff]
  %v2059 = vld [vmem:[%s2045 + $0x68] sm:$0xff]
  %v2060 = vld [vmem:[%s2045 + $0x70] sm:$0xff]
  %v2061 = vld [vmem:[%s2045 + $0x78] sm:$0xff]
  %s2062 = scalar_lea.vmem %s5, 12
  %v2063 = vld [vmem:[%s2062] sm:$0xf]
  %2064 = vmatpush.msra.mxu0 %v1033
  %2065 = vmatpush.msra.mxu0 %v1032
  %2066 = vmatpush.msra.mxu0 %v1031
  %2067 = vmatpush.msra.mxu0 %v1030
  %2068 = vmatpush.msra.mxu0 %v1029
  %2069 = vmatpush.msra.mxu0 %v1028
  %2070 = vmatpush.msra.mxu0 %v1027
  %2071 = vmatpush.msra.mxu0 %v1026
  %2072 = vmatpush.msra.mxu0 %v1025
  %2073 = vmatpush.msra.mxu0 %v1024
  %2074 = vmatpush.msra.mxu0 %v1023
  %2075 = vmatpush.msra.mxu0 %v1022
  %2076 = vmatpush.msra.mxu0 %v1021
  %2077 = vmatpush.msra.mxu0 %v1020
  %2078 = vmatpush.msra.mxu0 %v1019
  %2079 = vmatpush.msra.mxu0 %v1018
  %2080 = vmatmul.f32.gmra.mxu0 %v2046
  %v2081 = vpop.f32.mrf.mxu0
  %v2082 = vadd.f32 0.0, %v2081
  %2083 = vmatmul.f32.gmra.mxu0 %v2048
  %v2084 = vpop.f32.mrf.mxu0
  %v2085 = vadd.f32 0.0, %v2084
  %2086 = vmatmul.f32.gmra.mxu0 %v2050
  %v2087 = vpop.f32.mrf.mxu0
  %v2088 = vadd.f32 0.0, %v2087
  %2089 = vmatmul.f32.gmra.mxu0 %v2052
  %v2090 = vpop.f32.mrf.mxu0
  %v2091 = vadd.f32 0.0, %v2090
  %2092 = vmatmul.f32.gmra.mxu0 %v2054
  %v2093 = vpop.f32.mrf.mxu0
  %v2094 = vadd.f32 0.0, %v2093
  %2095 = vmatmul.f32.gmra.mxu0 %v2056
  %v2096 = vpop.f32.mrf.mxu0
  %v2097 = vadd.f32 0.0, %v2096
  %2098 = vmatmul.f32.gmra.mxu0 %v2058
  %v2099 = vpop.f32.mrf.mxu0
  %v2100 = vadd.f32 0.0, %v2099
  %2101 = vmatmul.f32.gmra.mxu0 %v2060
  %v2102 = vpop.f32.mrf.mxu0
  %v2103 = vadd.f32 0.0, %v2102
  %2104 = vdwg.mxu0
  %2105 = vmatpush.msra.mxu0 %v1049
  %2106 = vmatpush.msra.mxu0 %v1048
  %2107 = vmatpush.msra.mxu0 %v1047
  %2108 = vmatpush.msra.mxu0 %v1046
  %2109 = vmatpush.msra.mxu0 %v1045
  %2110 = vmatpush.msra.mxu0 %v1044
  %2111 = vmatpush.msra.mxu0 %v1043
  %2112 = vmatpush.msra.mxu0 %v1042
  %2113 = vmatpush.msra.mxu0 %v1041
  %2114 = vmatpush.msra.mxu0 %v1040
  %2115 = vmatpush.msra.mxu0 %v1039
  %2116 = vmatpush.msra.mxu0 %v1038
  %2117 = vmatpush.msra.mxu0 %v1037
  %2118 = vmatpush.msra.mxu0 %v1036
  %2119 = vmatpush.msra.mxu0 %v1035
  %2120 = vmatpush.msra.mxu0 %v1034
  %2121 = vmatmul.f32.gmra.mxu0 %v2047
  %v2122 = vpop.f32.mrf.mxu0
  %v2123 = vadd.f32 %v2082, %v2122
  %2124 = vmatmul.f32.gmra.mxu0 %v2049
  %v2125 = vpop.f32.mrf.mxu0
  %v2126 = vadd.f32 %v2085, %v2125
  %2127 = vmatmul.f32.gmra.mxu0 %v2051
  %v2128 = vpop.f32.mrf.mxu0
  %v2129 = vadd.f32 %v2088, %v2128
  %2130 = vmatmul.f32.gmra.mxu0 %v2053
  %v2131 = vpop.f32.mrf.mxu0
  %v2132 = vadd.f32 %v2091, %v2131
  %2133 = vmatmul.f32.gmra.mxu0 %v2055
  %v2134 = vpop.f32.mrf.mxu0
  %v2135 = vadd.f32 %v2094, %v2134
  %2136 = vmatmul.f32.gmra.mxu0 %v2057
  %v2137 = vpop.f32.mrf.mxu0
  %v2138 = vadd.f32 %v2097, %v2137
  %2139 = vmatmul.f32.gmra.mxu0 %v2059
  %v2140 = vpop.f32.mrf.mxu0
  %v2141 = vadd.f32 %v2100, %v2140
  %2142 = vmatmul.f32.gmra.mxu0 %v2061
  %v2143 = vpop.f32.mrf.mxu0
  %v2144 = vadd.f32 %v2103, %v2143
  %2145 = vdwg.mxu0
  %v2147 = vsel %vm535, %v2123, 0
  %v2150 = vsel %vm535, %v2126, 0
  %v2153 = vsel %vm535, %v2129, 0
  %v2156 = vsel %vm535, %v2132, 0
  %v2159 = vsel %vm535, %v2135, 0
  %v2162 = vsel %vm535, %v2138, 0
  %v2165 = vsel %vm535, %v2141, 0
  %v2168 = vsel %vm535, %v2144, 0
  %v2171 = vsel %vm1388, %v2063, 0
  %2173 = vmatpush.msra.mxu0 0.0
  %2174 = vmatpush.msra.mxu0 0.0
  %2175 = vmatpush.msra.mxu0 0.0
  %2176 = vmatpush.msra.mxu0 0.0
  %2177 = vmatpush.msra.mxu0 0.0
  %2178 = vmatpush.msra.mxu0 0.0
  %2179 = vmatpush.msra.mxu0 0.0
  %2180 = vmatpush.msra.mxu0 0.0
  %2181 = vmatpush.msra.mxu0 0.0
  %2182 = vmatpush.msra.mxu0 0.0
  %2183 = vmatpush.msra.mxu0 0.0
  %2184 = vmatpush.msra.mxu0 0.0
  %2185 = vmatpush.msra.mxu0 0.0
  %2186 = vmatpush.msra.mxu0 0.0
  %2187 = vmatpush.msra.mxu0 0.0
  %2188 = vmatpush.msra.mxu0 %v2171
  %2189 = vmatmul.f32.gmra.mxu0 %v2147
  %v2190 = vpop.f32.mrf.mxu0
  %v2191 = vadd.f32 0.0, %v2190
  %2192 = vmatmul.f32.gmra.mxu0 %v2150
  %v2193 = vpop.f32.mrf.mxu0
  %v2194 = vadd.f32 0.0, %v2193
  %2195 = vmatmul.f32.gmra.mxu0 %v2153
  %v2196 = vpop.f32.mrf.mxu0
  %v2197 = vadd.f32 0.0, %v2196
  %2198 = vmatmul.f32.gmra.mxu0 %v2156
  %v2199 = vpop.f32.mrf.mxu0
  %v2200 = vadd.f32 0.0, %v2199
  %2201 = vmatmul.f32.gmra.mxu0 %v2159
  %v2202 = vpop.f32.mrf.mxu0
  %v2203 = vadd.f32 0.0, %v2202
  %2204 = vmatmul.f32.gmra.mxu0 %v2162
  %v2205 = vpop.f32.mrf.mxu0
  %v2206 = vadd.f32 0.0, %v2205
  %2207 = vmatmul.f32.gmra.mxu0 %v2165
  %v2208 = vpop.f32.mrf.mxu0
  %v2209 = vadd.f32 0.0, %v2208
  %2210 = vmatmul.f32.gmra.mxu0 %v2168
  %v2211 = vpop.f32.mrf.mxu0
  %v2212 = vadd.f32 0.0, %v2211
  %2213 = vdwg.mxu0
  %v2214 = vadd.f32 %v1882, %v2191
  %v2215 = vadd.f32 %v1883, %v2194
  %v2216 = vadd.f32 %v1884, %v2197
  %v2217 = vadd.f32 %v1885, %v2200
  %v2218 = vadd.f32 %v1886, %v2203
  %v2219 = vadd.f32 %v1887, %v2206
  %v2220 = vadd.f32 %v1888, %v2209
  %v2221 = vadd.f32 %v1889, %v2212
  %2222 = vmatpush.msra.mxu0 %v1065
  %2223 = vmatpush.msra.mxu0 %v1064
  %2224 = vmatpush.msra.mxu0 %v1063
  %2225 = vmatpush.msra.mxu0 %v1062
  %2226 = vmatpush.msra.mxu0 %v1061
  %2227 = vmatpush.msra.mxu0 %v1060
  %2228 = vmatpush.msra.mxu0 %v1059
  %2229 = vmatpush.msra.mxu0 %v1058
  %2230 = vmatpush.msra.mxu0 %v1057
  %2231 = vmatpush.msra.mxu0 %v1056
  %2232 = vmatpush.msra.mxu0 %v1055
  %2233 = vmatpush.msra.mxu0 %v1054
  %2234 = vmatpush.msra.mxu0 %v1053
  %2235 = vmatpush.msra.mxu0 %v1052
  %2236 = vmatpush.msra.mxu0 %v1051
  %2237 = vmatpush.msra.mxu0 %v1050
  %2238 = vmatmul.f32.gmra.mxu0 %v2046
  %v2239 = vpop.f32.mrf.mxu0
  %v2240 = vadd.f32 0.0, %v2239
  %2241 = vmatmul.f32.gmra.mxu0 %v2048
  %v2242 = vpop.f32.mrf.mxu0
  %v2243 = vadd.f32 0.0, %v2242
  %2244 = vmatmul.f32.gmra.mxu0 %v2050
  %v2245 = vpop.f32.mrf.mxu0
  %v2246 = vadd.f32 0.0, %v2245
  %2247 = vmatmul.f32.gmra.mxu0 %v2052
  %v2248 = vpop.f32.mrf.mxu0
  %v2249 = vadd.f32 0.0, %v2248
  %2250 = vmatmul.f32.gmra.mxu0 %v2054
  %v2251 = vpop.f32.mrf.mxu0
  %v2252 = vadd.f32 0.0, %v2251
  %2253 = vmatmul.f32.gmra.mxu0 %v2056
  %v2254 = vpop.f32.mrf.mxu0
  %v2255 = vadd.f32 0.0, %v2254
  %2256 = vmatmul.f32.gmra.mxu0 %v2058
  %v2257 = vpop.f32.mrf.mxu0
  %v2258 = vadd.f32 0.0, %v2257
  %2259 = vmatmul.f32.gmra.mxu0 %v2060
  %v2260 = vpop.f32.mrf.mxu0
  %v2261 = vadd.f32 0.0, %v2260
  %2262 = vdwg.mxu0
  %2263 = vmatpush.msra.mxu0 %v1081
  %2264 = vmatpush.msra.mxu0 %v1080
  %2265 = vmatpush.msra.mxu0 %v1079
  %2266 = vmatpush.msra.mxu0 %v1078
  %2267 = vmatpush.msra.mxu0 %v1077
  %2268 = vmatpush.msra.mxu0 %v1076
  %2269 = vmatpush.msra.mxu0 %v1075
  %2270 = vmatpush.msra.mxu0 %v1074
  %2271 = vmatpush.msra.mxu0 %v1073
  %2272 = vmatpush.msra.mxu0 %v1072
  %2273 = vmatpush.msra.mxu0 %v1071
  %2274 = vmatpush.msra.mxu0 %v1070
  %2275 = vmatpush.msra.mxu0 %v1069
  %2276 = vmatpush.msra.mxu0 %v1068
  %2277 = vmatpush.msra.mxu0 %v1067
  %2278 = vmatpush.msra.mxu0 %v1066
  %2279 = vmatmul.f32.gmra.mxu0 %v2047
  %v2280 = vpop.f32.mrf.mxu0
  %v2281 = vadd.f32 %v2240, %v2280
  %2282 = vmatmul.f32.gmra.mxu0 %v2049
  %v2283 = vpop.f32.mrf.mxu0
  %v2284 = vadd.f32 %v2243, %v2283
  %2285 = vmatmul.f32.gmra.mxu0 %v2051
  %v2286 = vpop.f32.mrf.mxu0
  %v2287 = vadd.f32 %v2246, %v2286
  %2288 = vmatmul.f32.gmra.mxu0 %v2053
  %v2289 = vpop.f32.mrf.mxu0
  %v2290 = vadd.f32 %v2249, %v2289
  %2291 = vmatmul.f32.gmra.mxu0 %v2055
  %v2292 = vpop.f32.mrf.mxu0
  %v2293 = vadd.f32 %v2252, %v2292
  %2294 = vmatmul.f32.gmra.mxu0 %v2057
  %v2295 = vpop.f32.mrf.mxu0
  %v2296 = vadd.f32 %v2255, %v2295
  %2297 = vmatmul.f32.gmra.mxu0 %v2059
  %v2298 = vpop.f32.mrf.mxu0
  %v2299 = vadd.f32 %v2258, %v2298
  %2300 = vmatmul.f32.gmra.mxu0 %v2061
  %v2301 = vpop.f32.mrf.mxu0
  %v2302 = vadd.f32 %v2261, %v2301
  %2303 = vdwg.mxu0
  %v2305 = vsel %vm535, %v2281, 0
  %v2308 = vsel %vm535, %v2284, 0
  %v2311 = vsel %vm535, %v2287, 0
  %v2314 = vsel %vm535, %v2290, 0
  %v2317 = vsel %vm535, %v2293, 0
  %v2320 = vsel %vm535, %v2296, 0
  %v2323 = vsel %vm535, %v2299, 0
  %v2326 = vsel %vm535, %v2302, 0
  %2328 = vmatpush.msra.mxu0 0.0
  %2329 = vmatpush.msra.mxu0 0.0
  %2330 = vmatpush.msra.mxu0 0.0
  %2331 = vmatpush.msra.mxu0 0.0
  %2332 = vmatpush.msra.mxu0 0.0
  %2333 = vmatpush.msra.mxu0 0.0
  %2334 = vmatpush.msra.mxu0 0.0
  %2335 = vmatpush.msra.mxu0 0.0
  %2336 = vmatpush.msra.mxu0 0.0
  %2337 = vmatpush.msra.mxu0 0.0
  %2338 = vmatpush.msra.mxu0 0.0
  %2339 = vmatpush.msra.mxu0 0.0
  %2340 = vmatpush.msra.mxu0 0.0
  %2341 = vmatpush.msra.mxu0 0.0
  %2342 = vmatpush.msra.mxu0 0.0
  %2343 = vmatpush.msra.mxu0 %v2171
  %2344 = vmatmul.f32.gmra.mxu0 %v2305
  %v2345 = vpop.f32.mrf.mxu0
  %v2346 = vadd.f32 0.0, %v2345
  %2347 = vmatmul.f32.gmra.mxu0 %v2308
  %v2348 = vpop.f32.mrf.mxu0
  %v2349 = vadd.f32 0.0, %v2348
  %2350 = vmatmul.f32.gmra.mxu0 %v2311
  %v2351 = vpop.f32.mrf.mxu0
  %v2352 = vadd.f32 0.0, %v2351
  %2353 = vmatmul.f32.gmra.mxu0 %v2314
  %v2354 = vpop.f32.mrf.mxu0
  %v2355 = vadd.f32 0.0, %v2354
  %2356 = vmatmul.f32.gmra.mxu0 %v2317
  %v2357 = vpop.f32.mrf.mxu0
  %v2358 = vadd.f32 0.0, %v2357
  %2359 = vmatmul.f32.gmra.mxu0 %v2320
  %v2360 = vpop.f32.mrf.mxu0
  %v2361 = vadd.f32 0.0, %v2360
  %2362 = vmatmul.f32.gmra.mxu0 %v2323
  %v2363 = vpop.f32.mrf.mxu0
  %v2364 = vadd.f32 0.0, %v2363
  %2365 = vmatmul.f32.gmra.mxu0 %v2326
  %v2366 = vpop.f32.mrf.mxu0
  %v2367 = vadd.f32 0.0, %v2366
  %2368 = vdwg.mxu0
  %v2369 = vadd.f32 %v2037, %v2346
  %v2370 = vadd.f32 %v2038, %v2349
  %v2371 = vadd.f32 %v2039, %v2352
  %v2372 = vadd.f32 %v2040, %v2355
  %v2373 = vadd.f32 %v2041, %v2358
  %v2374 = vadd.f32 %v2042, %v2361
  %v2375 = vadd.f32 %v2043, %v2364
  %v2376 = vadd.f32 %v2044, %v2367
  %s2377 = scalar_lea.vmem %s4, 512
  %v2378 = vld [vmem:[%s2377] sm:$0xff]
  %v2379 = vld [vmem:[%s2377 + $0x8] sm:$0xff]
  %v2380 = vld [vmem:[%s2377 + $0x10] sm:$0xff]
  %v2381 = vld [vmem:[%s2377 + $0x18] sm:$0xff]
  %v2382 = vld [vmem:[%s2377 + $0x20] sm:$0xff]
  %v2383 = vld [vmem:[%s2377 + $0x28] sm:$0xff]
  %v2384 = vld [vmem:[%s2377 + $0x30] sm:$0xff]
  %v2385 = vld [vmem:[%s2377 + $0x38] sm:$0xff]
  %v2386 = vld [vmem:[%s2377 + $0x40] sm:$0xff]
  %v2387 = vld [vmem:[%s2377 + $0x48] sm:$0xff]
  %v2388 = vld [vmem:[%s2377 + $0x50] sm:$0xff]
  %v2389 = vld [vmem:[%s2377 + $0x58] sm:$0xff]
  %v2390 = vld [vmem:[%s2377 + $0x60] sm:$0xff]
  %v2391 = vld [vmem:[%s2377 + $0x68] sm:$0xff]
  %v2392 = vld [vmem:[%s2377 + $0x70] sm:$0xff]
  %v2393 = vld [vmem:[%s2377 + $0x78] sm:$0xff]
  %s2394 = scalar_lea.vmem %s5, 16
  %v2395 = vld [vmem:[%s2394] sm:$0xf]
  %2396 = vmatpush.msra.mxu0 %v1033
  %2397 = vmatpush.msra.mxu0 %v1032
  %2398 = vmatpush.msra.mxu0 %v1031
  %2399 = vmatpush.msra.mxu0 %v1030
  %2400 = vmatpush.msra.mxu0 %v1029
  %2401 = vmatpush.msra.mxu0 %v1028
  %2402 = vmatpush.msra.mxu0 %v1027
  %2403 = vmatpush.msra.mxu0 %v1026
  %2404 = vmatpush.msra.mxu0 %v1025
  %2405 = vmatpush.msra.mxu0 %v1024
  %2406 = vmatpush.msra.mxu0 %v1023
  %2407 = vmatpush.msra.mxu0 %v1022
  %2408 = vmatpush.msra.mxu0 %v1021
  %2409 = vmatpush.msra.mxu0 %v1020
  %2410 = vmatpush.msra.mxu0 %v1019
  %2411 = vmatpush.msra.mxu0 %v1018
  %2412 = vmatmul.f32.gmra.mxu0 %v2378
  %v2413 = vpop.f32.mrf.mxu0
  %v2414 = vadd.f32 0.0, %v2413
  %2415 = vmatmul.f32.gmra.mxu0 %v2380
  %v2416 = vpop.f32.mrf.mxu0
  %v2417 = vadd.f32 0.0, %v2416
  %2418 = vmatmul.f32.gmra.mxu0 %v2382
  %v2419 = vpop.f32.mrf.mxu0
  %v2420 = vadd.f32 0.0, %v2419
  %2421 = vmatmul.f32.gmra.mxu0 %v2384
  %v2422 = vpop.f32.mrf.mxu0
  %v2423 = vadd.f32 0.0, %v2422
  %2424 = vmatmul.f32.gmra.mxu0 %v2386
  %v2425 = vpop.f32.mrf.mxu0
  %v2426 = vadd.f32 0.0, %v2425
  %2427 = vmatmul.f32.gmra.mxu0 %v2388
  %v2428 = vpop.f32.mrf.mxu0
  %v2429 = vadd.f32 0.0, %v2428
  %2430 = vmatmul.f32.gmra.mxu0 %v2390
  %v2431 = vpop.f32.mrf.mxu0
  %v2432 = vadd.f32 0.0, %v2431
  %2433 = vmatmul.f32.gmra.mxu0 %v2392
  %v2434 = vpop.f32.mrf.mxu0
  %v2435 = vadd.f32 0.0, %v2434
  %2436 = vdwg.mxu0
  %2437 = vmatpush.msra.mxu0 %v1049
  %2438 = vmatpush.msra.mxu0 %v1048
  %2439 = vmatpush.msra.mxu0 %v1047
  %2440 = vmatpush.msra.mxu0 %v1046
  %2441 = vmatpush.msra.mxu0 %v1045
  %2442 = vmatpush.msra.mxu0 %v1044
  %2443 = vmatpush.msra.mxu0 %v1043
  %2444 = vmatpush.msra.mxu0 %v1042
  %2445 = vmatpush.msra.mxu0 %v1041
  %2446 = vmatpush.msra.mxu0 %v1040
  %2447 = vmatpush.msra.mxu0 %v1039
  %2448 = vmatpush.msra.mxu0 %v1038
  %2449 = vmatpush.msra.mxu0 %v1037
  %2450 = vmatpush.msra.mxu0 %v1036
  %2451 = vmatpush.msra.mxu0 %v1035
  %2452 = vmatpush.msra.mxu0 %v1034
  %2453 = vmatmul.f32.gmra.mxu0 %v2379
  %v2454 = vpop.f32.mrf.mxu0
  %v2455 = vadd.f32 %v2414, %v2454
  %2456 = vmatmul.f32.gmra.mxu0 %v2381
  %v2457 = vpop.f32.mrf.mxu0
  %v2458 = vadd.f32 %v2417, %v2457
  %2459 = vmatmul.f32.gmra.mxu0 %v2383
  %v2460 = vpop.f32.mrf.mxu0
  %v2461 = vadd.f32 %v2420, %v2460
  %2462 = vmatmul.f32.gmra.mxu0 %v2385
  %v2463 = vpop.f32.mrf.mxu0
  %v2464 = vadd.f32 %v2423, %v2463
  %2465 = vmatmul.f32.gmra.mxu0 %v2387
  %v2466 = vpop.f32.mrf.mxu0
  %v2467 = vadd.f32 %v2426, %v2466
  %2468 = vmatmul.f32.gmra.mxu0 %v2389
  %v2469 = vpop.f32.mrf.mxu0
  %v2470 = vadd.f32 %v2429, %v2469
  %2471 = vmatmul.f32.gmra.mxu0 %v2391
  %v2472 = vpop.f32.mrf.mxu0
  %v2473 = vadd.f32 %v2432, %v2472
  %2474 = vmatmul.f32.gmra.mxu0 %v2393
  %v2475 = vpop.f32.mrf.mxu0
  %v2476 = vadd.f32 %v2435, %v2475
  %2477 = vdwg.mxu0
  %v2479 = vsel %vm535, %v2455, 0
  %v2482 = vsel %vm535, %v2458, 0
  %v2485 = vsel %vm535, %v2461, 0
  %v2488 = vsel %vm535, %v2464, 0
  %v2491 = vsel %vm535, %v2467, 0
  %v2494 = vsel %vm535, %v2470, 0
  %v2497 = vsel %vm535, %v2473, 0
  %v2500 = vsel %vm535, %v2476, 0
  %v2503 = vsel %vm1388, %v2395, 0
  %2505 = vmatpush.msra.mxu0 0.0
  %2506 = vmatpush.msra.mxu0 0.0
  %2507 = vmatpush.msra.mxu0 0.0
  %2508 = vmatpush.msra.mxu0 0.0
  %2509 = vmatpush.msra.mxu0 0.0
  %2510 = vmatpush.msra.mxu0 0.0
  %2511 = vmatpush.msra.mxu0 0.0
  %2512 = vmatpush.msra.mxu0 0.0
  %2513 = vmatpush.msra.mxu0 0.0
  %2514 = vmatpush.msra.mxu0 0.0
  %2515 = vmatpush.msra.mxu0 0.0
  %2516 = vmatpush.msra.mxu0 0.0
  %2517 = vmatpush.msra.mxu0 0.0
  %2518 = vmatpush.msra.mxu0 0.0
  %2519 = vmatpush.msra.mxu0 0.0
  %2520 = vmatpush.msra.mxu0 %v2503
  %2521 = vmatmul.f32.gmra.mxu0 %v2479
  %v2522 = vpop.f32.mrf.mxu0
  %v2523 = vadd.f32 0.0, %v2522
  %2524 = vmatmul.f32.gmra.mxu0 %v2482
  %v2525 = vpop.f32.mrf.mxu0
  %v2526 = vadd.f32 0.0, %v2525
  %2527 = vmatmul.f32.gmra.mxu0 %v2485
  %v2528 = vpop.f32.mrf.mxu0
  %v2529 = vadd.f32 0.0, %v2528
  %2530 = vmatmul.f32.gmra.mxu0 %v2488
  %v2531 = vpop.f32.mrf.mxu0
  %v2532 = vadd.f32 0.0, %v2531
  %2533 = vmatmul.f32.gmra.mxu0 %v2491
  %v2534 = vpop.f32.mrf.mxu0
  %v2535 = vadd.f32 0.0, %v2534
  %2536 = vmatmul.f32.gmra.mxu0 %v2494
  %v2537 = vpop.f32.mrf.mxu0
  %v2538 = vadd.f32 0.0, %v2537
  %2539 = vmatmul.f32.gmra.mxu0 %v2497
  %v2540 = vpop.f32.mrf.mxu0
  %v2541 = vadd.f32 0.0, %v2540
  %2542 = vmatmul.f32.gmra.mxu0 %v2500
  %v2543 = vpop.f32.mrf.mxu0
  %v2544 = vadd.f32 0.0, %v2543
  %2545 = vdwg.mxu0
  %v2546 = vadd.f32 %v2214, %v2523
  %v2547 = vadd.f32 %v2215, %v2526
  %v2548 = vadd.f32 %v2216, %v2529
  %v2549 = vadd.f32 %v2217, %v2532
  %v2550 = vadd.f32 %v2218, %v2535
  %v2551 = vadd.f32 %v2219, %v2538
  %v2552 = vadd.f32 %v2220, %v2541
  %v2553 = vadd.f32 %v2221, %v2544
  %2554 = vmatpush.msra.mxu0 %v1065
  %2555 = vmatpush.msra.mxu0 %v1064
  %2556 = vmatpush.msra.mxu0 %v1063
  %2557 = vmatpush.msra.mxu0 %v1062
  %2558 = vmatpush.msra.mxu0 %v1061
  %2559 = vmatpush.msra.mxu0 %v1060
  %2560 = vmatpush.msra.mxu0 %v1059
  %2561 = vmatpush.msra.mxu0 %v1058
  %2562 = vmatpush.msra.mxu0 %v1057
  %2563 = vmatpush.msra.mxu0 %v1056
  %2564 = vmatpush.msra.mxu0 %v1055
  %2565 = vmatpush.msra.mxu0 %v1054
  %2566 = vmatpush.msra.mxu0 %v1053
  %2567 = vmatpush.msra.mxu0 %v1052
  %2568 = vmatpush.msra.mxu0 %v1051
  %2569 = vmatpush.msra.mxu0 %v1050
  %2570 = vmatmul.f32.gmra.mxu0 %v2378
  %v2571 = vpop.f32.mrf.mxu0
  %v2572 = vadd.f32 0.0, %v2571
  %2573 = vmatmul.f32.gmra.mxu0 %v2380
  %v2574 = vpop.f32.mrf.mxu0
  %v2575 = vadd.f32 0.0, %v2574
  %2576 = vmatmul.f32.gmra.mxu0 %v2382
  %v2577 = vpop.f32.mrf.mxu0
  %v2578 = vadd.f32 0.0, %v2577
  %2579 = vmatmul.f32.gmra.mxu0 %v2384
  %v2580 = vpop.f32.mrf.mxu0
  %v2581 = vadd.f32 0.0, %v2580
  %2582 = vmatmul.f32.gmra.mxu0 %v2386
  %v2583 = vpop.f32.mrf.mxu0
  %v2584 = vadd.f32 0.0, %v2583
  %2585 = vmatmul.f32.gmra.mxu0 %v2388
  %v2586 = vpop.f32.mrf.mxu0
  %v2587 = vadd.f32 0.0, %v2586
  %2588 = vmatmul.f32.gmra.mxu0 %v2390
  %v2589 = vpop.f32.mrf.mxu0
  %v2590 = vadd.f32 0.0, %v2589
  %2591 = vmatmul.f32.gmra.mxu0 %v2392
  %v2592 = vpop.f32.mrf.mxu0
  %v2593 = vadd.f32 0.0, %v2592
  %2594 = vdwg.mxu0
  %2595 = vmatpush.msra.mxu0 %v1081
  %2596 = vmatpush.msra.mxu0 %v1080
  %2597 = vmatpush.msra.mxu0 %v1079
  %2598 = vmatpush.msra.mxu0 %v1078
  %2599 = vmatpush.msra.mxu0 %v1077
  %2600 = vmatpush.msra.mxu0 %v1076
  %2601 = vmatpush.msra.mxu0 %v1075
  %2602 = vmatpush.msra.mxu0 %v1074
  %2603 = vmatpush.msra.mxu0 %v1073
  %2604 = vmatpush.msra.mxu0 %v1072
  %2605 = vmatpush.msra.mxu0 %v1071
  %2606 = vmatpush.msra.mxu0 %v1070
  %2607 = vmatpush.msra.mxu0 %v1069
  %2608 = vmatpush.msra.mxu0 %v1068
  %2609 = vmatpush.msra.mxu0 %v1067
  %2610 = vmatpush.msra.mxu0 %v1066
  %2611 = vmatmul.f32.gmra.mxu0 %v2379
  %v2612 = vpop.f32.mrf.mxu0
  %v2613 = vadd.f32 %v2572, %v2612
  %2614 = vmatmul.f32.gmra.mxu0 %v2381
  %v2615 = vpop.f32.mrf.mxu0
  %v2616 = vadd.f32 %v2575, %v2615
  %2617 = vmatmul.f32.gmra.mxu0 %v2383
  %v2618 = vpop.f32.mrf.mxu0
  %v2619 = vadd.f32 %v2578, %v2618
  %2620 = vmatmul.f32.gmra.mxu0 %v2385
  %v2621 = vpop.f32.mrf.mxu0
  %v2622 = vadd.f32 %v2581, %v2621
  %2623 = vmatmul.f32.gmra.mxu0 %v2387
  %v2624 = vpop.f32.mrf.mxu0
  %v2625 = vadd.f32 %v2584, %v2624
  %2626 = vmatmul.f32.gmra.mxu0 %v2389
  %v2627 = vpop.f32.mrf.mxu0
  %v2628 = vadd.f32 %v2587, %v2627
  %2629 = vmatmul.f32.gmra.mxu0 %v2391
  %v2630 = vpop.f32.mrf.mxu0
  %v2631 = vadd.f32 %v2590, %v2630
  %2632 = vmatmul.f32.gmra.mxu0 %v2393
  %v2633 = vpop.f32.mrf.mxu0
  %v2634 = vadd.f32 %v2593, %v2633
  %2635 = vdwg.mxu0
  %v2637 = vsel %vm535, %v2613, 0
  %v2640 = vsel %vm535, %v2616, 0
  %v2643 = vsel %vm535, %v2619, 0
  %v2646 = vsel %vm535, %v2622, 0
  %v2649 = vsel %vm535, %v2625, 0
  %v2652 = vsel %vm535, %v2628, 0
  %v2655 = vsel %vm535, %v2631, 0
  %v2658 = vsel %vm535, %v2634, 0
  %2660 = vmatpush.msra.mxu0 0.0
  %2661 = vmatpush.msra.mxu0 0.0
  %2662 = vmatpush.msra.mxu0 0.0
  %2663 = vmatpush.msra.mxu0 0.0
  %2664 = vmatpush.msra.mxu0 0.0
  %2665 = vmatpush.msra.mxu0 0.0
  %2666 = vmatpush.msra.mxu0 0.0
  %2667 = vmatpush.msra.mxu0 0.0
  %2668 = vmatpush.msra.mxu0 0.0
  %2669 = vmatpush.msra.mxu0 0.0
  %2670 = vmatpush.msra.mxu0 0.0
  %2671 = vmatpush.msra.mxu0 0.0
  %2672 = vmatpush.msra.mxu0 0.0
  %2673 = vmatpush.msra.mxu0 0.0
  %2674 = vmatpush.msra.mxu0 0.0
  %2675 = vmatpush.msra.mxu0 %v2503
  %2676 = vmatmul.f32.gmra.mxu0 %v2637
  %v2677 = vpop.f32.mrf.mxu0
  %v2678 = vadd.f32 0.0, %v2677
  %2679 = vmatmul.f32.gmra.mxu0 %v2640
  %v2680 = vpop.f32.mrf.mxu0
  %v2681 = vadd.f32 0.0, %v2680
  %2682 = vmatmul.f32.gmra.mxu0 %v2643
  %v2683 = vpop.f32.mrf.mxu0
  %v2684 = vadd.f32 0.0, %v2683
  %2685 = vmatmul.f32.gmra.mxu0 %v2646
  %v2686 = vpop.f32.mrf.mxu0
  %v2687 = vadd.f32 0.0, %v2686
  %2688 = vmatmul.f32.gmra.mxu0 %v2649
  %v2689 = vpop.f32.mrf.mxu0
  %v2690 = vadd.f32 0.0, %v2689
  %2691 = vmatmul.f32.gmra.mxu0 %v2652
  %v2692 = vpop.f32.mrf.mxu0
  %v2693 = vadd.f32 0.0, %v2692
  %2694 = vmatmul.f32.gmra.mxu0 %v2655
  %v2695 = vpop.f32.mrf.mxu0
  %v2696 = vadd.f32 0.0, %v2695
  %2697 = vmatmul.f32.gmra.mxu0 %v2658
  %v2698 = vpop.f32.mrf.mxu0
  %v2699 = vadd.f32 0.0, %v2698
  %2700 = vdwg.mxu0
  %v2701 = vadd.f32 %v2369, %v2678
  %v2702 = vadd.f32 %v2370, %v2681
  %v2703 = vadd.f32 %v2371, %v2684
  %v2704 = vadd.f32 %v2372, %v2687
  %v2705 = vadd.f32 %v2373, %v2690
  %v2706 = vadd.f32 %v2374, %v2693
  %v2707 = vadd.f32 %v2375, %v2696
  %v2708 = vadd.f32 %v2376, %v2699
  %s2709 = scalar_lea.vmem %s4, 640
  %v2710 = vld [vmem:[%s2709] sm:$0xff]
  %v2711 = vld [vmem:[%s2709 + $0x8] sm:$0xff]
  %v2712 = vld [vmem:[%s2709 + $0x10] sm:$0xff]
  %v2713 = vld [vmem:[%s2709 + $0x18] sm:$0xff]
  %v2714 = vld [vmem:[%s2709 + $0x20] sm:$0xff]
  %v2715 = vld [vmem:[%s2709 + $0x28] sm:$0xff]
  %v2716 = vld [vmem:[%s2709 + $0x30] sm:$0xff]
  %v2717 = vld [vmem:[%s2709 + $0x38] sm:$0xff]
  %v2718 = vld [vmem:[%s2709 + $0x40] sm:$0xff]
  %v2719 = vld [vmem:[%s2709 + $0x48] sm:$0xff]
  %v2720 = vld [vmem:[%s2709 + $0x50] sm:$0xff]
  %v2721 = vld [vmem:[%s2709 + $0x58] sm:$0xff]
  %v2722 = vld [vmem:[%s2709 + $0x60] sm:$0xff]
  %v2723 = vld [vmem:[%s2709 + $0x68] sm:$0xff]
  %v2724 = vld [vmem:[%s2709 + $0x70] sm:$0xff]
  %v2725 = vld [vmem:[%s2709 + $0x78] sm:$0xff]
  %s2726 = scalar_lea.vmem %s5, 20
  %v2727 = vld [vmem:[%s2726] sm:$0xf]
  %2728 = vmatpush.msra.mxu0 %v1033
  %2729 = vmatpush.msra.mxu0 %v1032
  %2730 = vmatpush.msra.mxu0 %v1031
  %2731 = vmatpush.msra.mxu0 %v1030
  %2732 = vmatpush.msra.mxu0 %v1029
  %2733 = vmatpush.msra.mxu0 %v1028
  %2734 = vmatpush.msra.mxu0 %v1027
  %2735 = vmatpush.msra.mxu0 %v1026
  %2736 = vmatpush.msra.mxu0 %v1025
  %2737 = vmatpush.msra.mxu0 %v1024
  %2738 = vmatpush.msra.mxu0 %v1023
  %2739 = vmatpush.msra.mxu0 %v1022
  %2740 = vmatpush.msra.mxu0 %v1021
  %2741 = vmatpush.msra.mxu0 %v1020
  %2742 = vmatpush.msra.mxu0 %v1019
  %2743 = vmatpush.msra.mxu0 %v1018
  %2744 = vmatmul.f32.gmra.mxu0 %v2710
  %v2745 = vpop.f32.mrf.mxu0
  %v2746 = vadd.f32 0.0, %v2745
  %2747 = vmatmul.f32.gmra.mxu0 %v2712
  %v2748 = vpop.f32.mrf.mxu0
  %v2749 = vadd.f32 0.0, %v2748
  %2750 = vmatmul.f32.gmra.mxu0 %v2714
  %v2751 = vpop.f32.mrf.mxu0
  %v2752 = vadd.f32 0.0, %v2751
  %2753 = vmatmul.f32.gmra.mxu0 %v2716
  %v2754 = vpop.f32.mrf.mxu0
  %v2755 = vadd.f32 0.0, %v2754
  %2756 = vmatmul.f32.gmra.mxu0 %v2718
  %v2757 = vpop.f32.mrf.mxu0
  %v2758 = vadd.f32 0.0, %v2757
  %2759 = vmatmul.f32.gmra.mxu0 %v2720
  %v2760 = vpop.f32.mrf.mxu0
  %v2761 = vadd.f32 0.0, %v2760
  %2762 = vmatmul.f32.gmra.mxu0 %v2722
  %v2763 = vpop.f32.mrf.mxu0
  %v2764 = vadd.f32 0.0, %v2763
  %2765 = vmatmul.f32.gmra.mxu0 %v2724
  %v2766 = vpop.f32.mrf.mxu0
  %v2767 = vadd.f32 0.0, %v2766
  %2768 = vdwg.mxu0
  %2769 = vmatpush.msra.mxu0 %v1049
  %2770 = vmatpush.msra.mxu0 %v1048
  %2771 = vmatpush.msra.mxu0 %v1047
  %2772 = vmatpush.msra.mxu0 %v1046
  %2773 = vmatpush.msra.mxu0 %v1045
  %2774 = vmatpush.msra.mxu0 %v1044
  %2775 = vmatpush.msra.mxu0 %v1043
  %2776 = vmatpush.msra.mxu0 %v1042
  %2777 = vmatpush.msra.mxu0 %v1041
  %2778 = vmatpush.msra.mxu0 %v1040
  %2779 = vmatpush.msra.mxu0 %v1039
  %2780 = vmatpush.msra.mxu0 %v1038
  %2781 = vmatpush.msra.mxu0 %v1037
  %2782 = vmatpush.msra.mxu0 %v1036
  %2783 = vmatpush.msra.mxu0 %v1035
  %2784 = vmatpush.msra.mxu0 %v1034
  %2785 = vmatmul.f32.gmra.mxu0 %v2711
  %v2786 = vpop.f32.mrf.mxu0
  %v2787 = vadd.f32 %v2746, %v2786
  %2788 = vmatmul.f32.gmra.mxu0 %v2713
  %v2789 = vpop.f32.mrf.mxu0
  %v2790 = vadd.f32 %v2749, %v2789
  %2791 = vmatmul.f32.gmra.mxu0 %v2715
  %v2792 = vpop.f32.mrf.mxu0
  %v2793 = vadd.f32 %v2752, %v2792
  %2794 = vmatmul.f32.gmra.mxu0 %v2717
  %v2795 = vpop.f32.mrf.mxu0
  %v2796 = vadd.f32 %v2755, %v2795
  %2797 = vmatmul.f32.gmra.mxu0 %v2719
  %v2798 = vpop.f32.mrf.mxu0
  %v2799 = vadd.f32 %v2758, %v2798
  %2800 = vmatmul.f32.gmra.mxu0 %v2721
  %v2801 = vpop.f32.mrf.mxu0
  %v2802 = vadd.f32 %v2761, %v2801
  %2803 = vmatmul.f32.gmra.mxu0 %v2723
  %v2804 = vpop.f32.mrf.mxu0
  %v2805 = vadd.f32 %v2764, %v2804
  %2806 = vmatmul.f32.gmra.mxu0 %v2725
  %v2807 = vpop.f32.mrf.mxu0
  %v2808 = vadd.f32 %v2767, %v2807
  %2809 = vdwg.mxu0
  %v2811 = vsel %vm535, %v2787, 0
  %v2814 = vsel %vm535, %v2790, 0
  %v2817 = vsel %vm535, %v2793, 0
  %v2820 = vsel %vm535, %v2796, 0
  %v2823 = vsel %vm535, %v2799, 0
  %v2826 = vsel %vm535, %v2802, 0
  %v2829 = vsel %vm535, %v2805, 0
  %v2832 = vsel %vm535, %v2808, 0
  %v2835 = vsel %vm1388, %v2727, 0
  %2837 = vmatpush.msra.mxu0 0.0
  %2838 = vmatpush.msra.mxu0 0.0
  %2839 = vmatpush.msra.mxu0 0.0
  %2840 = vmatpush.msra.mxu0 0.0
  %2841 = vmatpush.msra.mxu0 0.0
  %2842 = vmatpush.msra.mxu0 0.0
  %2843 = vmatpush.msra.mxu0 0.0
  %2844 = vmatpush.msra.mxu0 0.0
  %2845 = vmatpush.msra.mxu0 0.0
  %2846 = vmatpush.msra.mxu0 0.0
  %2847 = vmatpush.msra.mxu0 0.0
  %2848 = vmatpush.msra.mxu0 0.0
  %2849 = vmatpush.msra.mxu0 0.0
  %2850 = vmatpush.msra.mxu0 0.0
  %2851 = vmatpush.msra.mxu0 0.0
  %2852 = vmatpush.msra.mxu0 %v2835
  %2853 = vmatmul.f32.gmra.mxu0 %v2811
  %v2854 = vpop.f32.mrf.mxu0
  %v2855 = vadd.f32 0.0, %v2854
  %2856 = vmatmul.f32.gmra.mxu0 %v2814
  %v2857 = vpop.f32.mrf.mxu0
  %v2858 = vadd.f32 0.0, %v2857
  %2859 = vmatmul.f32.gmra.mxu0 %v2817
  %v2860 = vpop.f32.mrf.mxu0
  %v2861 = vadd.f32 0.0, %v2860
  %2862 = vmatmul.f32.gmra.mxu0 %v2820
  %v2863 = vpop.f32.mrf.mxu0
  %v2864 = vadd.f32 0.0, %v2863
  %2865 = vmatmul.f32.gmra.mxu0 %v2823
  %v2866 = vpop.f32.mrf.mxu0
  %v2867 = vadd.f32 0.0, %v2866
  %2868 = vmatmul.f32.gmra.mxu0 %v2826
  %v2869 = vpop.f32.mrf.mxu0
  %v2870 = vadd.f32 0.0, %v2869
  %2871 = vmatmul.f32.gmra.mxu0 %v2829
  %v2872 = vpop.f32.mrf.mxu0
  %v2873 = vadd.f32 0.0, %v2872
  %2874 = vmatmul.f32.gmra.mxu0 %v2832
  %v2875 = vpop.f32.mrf.mxu0
  %v2876 = vadd.f32 0.0, %v2875
  %2877 = vdwg.mxu0
  %v2878 = vadd.f32 %v2546, %v2855
  %v2879 = vadd.f32 %v2547, %v2858
  %v2880 = vadd.f32 %v2548, %v2861
  %v2881 = vadd.f32 %v2549, %v2864
  %v2882 = vadd.f32 %v2550, %v2867
  %v2883 = vadd.f32 %v2551, %v2870
  %v2884 = vadd.f32 %v2552, %v2873
  %v2885 = vadd.f32 %v2553, %v2876
  %2886 = vmatpush.msra.mxu0 %v1065
  %2887 = vmatpush.msra.mxu0 %v1064
  %2888 = vmatpush.msra.mxu0 %v1063
  %2889 = vmatpush.msra.mxu0 %v1062
  %2890 = vmatpush.msra.mxu0 %v1061
  %2891 = vmatpush.msra.mxu0 %v1060
  %2892 = vmatpush.msra.mxu0 %v1059
  %2893 = vmatpush.msra.mxu0 %v1058
  %2894 = vmatpush.msra.mxu0 %v1057
  %2895 = vmatpush.msra.mxu0 %v1056
  %2896 = vmatpush.msra.mxu0 %v1055
  %2897 = vmatpush.msra.mxu0 %v1054
  %2898 = vmatpush.msra.mxu0 %v1053
  %2899 = vmatpush.msra.mxu0 %v1052
  %2900 = vmatpush.msra.mxu0 %v1051
  %2901 = vmatpush.msra.mxu0 %v1050
  %2902 = vmatmul.f32.gmra.mxu0 %v2710
  %v2903 = vpop.f32.mrf.mxu0
  %v2904 = vadd.f32 0.0, %v2903
  %2905 = vmatmul.f32.gmra.mxu0 %v2712
  %v2906 = vpop.f32.mrf.mxu0
  %v2907 = vadd.f32 0.0, %v2906
  %2908 = vmatmul.f32.gmra.mxu0 %v2714
  %v2909 = vpop.f32.mrf.mxu0
  %v2910 = vadd.f32 0.0, %v2909
  %2911 = vmatmul.f32.gmra.mxu0 %v2716
  %v2912 = vpop.f32.mrf.mxu0
  %v2913 = vadd.f32 0.0, %v2912
  %2914 = vmatmul.f32.gmra.mxu0 %v2718
  %v2915 = vpop.f32.mrf.mxu0
  %v2916 = vadd.f32 0.0, %v2915
  %2917 = vmatmul.f32.gmra.mxu0 %v2720
  %v2918 = vpop.f32.mrf.mxu0
  %v2919 = vadd.f32 0.0, %v2918
  %2920 = vmatmul.f32.gmra.mxu0 %v2722
  %v2921 = vpop.f32.mrf.mxu0
  %v2922 = vadd.f32 0.0, %v2921
  %2923 = vmatmul.f32.gmra.mxu0 %v2724
  %v2924 = vpop.f32.mrf.mxu0
  %v2925 = vadd.f32 0.0, %v2924
  %2926 = vdwg.mxu0
  %2927 = vmatpush.msra.mxu0 %v1081
  %2928 = vmatpush.msra.mxu0 %v1080
  %2929 = vmatpush.msra.mxu0 %v1079
  %2930 = vmatpush.msra.mxu0 %v1078
  %2931 = vmatpush.msra.mxu0 %v1077
  %2932 = vmatpush.msra.mxu0 %v1076
  %2933 = vmatpush.msra.mxu0 %v1075
  %2934 = vmatpush.msra.mxu0 %v1074
  %2935 = vmatpush.msra.mxu0 %v1073
  %2936 = vmatpush.msra.mxu0 %v1072
  %2937 = vmatpush.msra.mxu0 %v1071
  %2938 = vmatpush.msra.mxu0 %v1070
  %2939 = vmatpush.msra.mxu0 %v1069
  %2940 = vmatpush.msra.mxu0 %v1068
  %2941 = vmatpush.msra.mxu0 %v1067
  %2942 = vmatpush.msra.mxu0 %v1066
  %2943 = vmatmul.f32.gmra.mxu0 %v2711
  %v2944 = vpop.f32.mrf.mxu0
  %v2945 = vadd.f32 %v2904, %v2944
  %2946 = vmatmul.f32.gmra.mxu0 %v2713
  %v2947 = vpop.f32.mrf.mxu0
  %v2948 = vadd.f32 %v2907, %v2947
  %2949 = vmatmul.f32.gmra.mxu0 %v2715
  %v2950 = vpop.f32.mrf.mxu0
  %v2951 = vadd.f32 %v2910, %v2950
  %2952 = vmatmul.f32.gmra.mxu0 %v2717
  %v2953 = vpop.f32.mrf.mxu0
  %v2954 = vadd.f32 %v2913, %v2953
  %2955 = vmatmul.f32.gmra.mxu0 %v2719
  %v2956 = vpop.f32.mrf.mxu0
  %v2957 = vadd.f32 %v2916, %v2956
  %2958 = vmatmul.f32.gmra.mxu0 %v2721
  %v2959 = vpop.f32.mrf.mxu0
  %v2960 = vadd.f32 %v2919, %v2959
  %2961 = vmatmul.f32.gmra.mxu0 %v2723
  %v2962 = vpop.f32.mrf.mxu0
  %v2963 = vadd.f32 %v2922, %v2962
  %2964 = vmatmul.f32.gmra.mxu0 %v2725
  %v2965 = vpop.f32.mrf.mxu0
  %v2966 = vadd.f32 %v2925, %v2965
  %2967 = vdwg.mxu0
  %v2969 = vsel %vm535, %v2945, 0
  %v2972 = vsel %vm535, %v2948, 0
  %v2975 = vsel %vm535, %v2951, 0
  %v2978 = vsel %vm535, %v2954, 0
  %v2981 = vsel %vm535, %v2957, 0
  %v2984 = vsel %vm535, %v2960, 0
  %v2987 = vsel %vm535, %v2963, 0
  %v2990 = vsel %vm535, %v2966, 0
  %2992 = vmatpush.msra.mxu0 0.0
  %2993 = vmatpush.msra.mxu0 0.0
  %2994 = vmatpush.msra.mxu0 0.0
  %2995 = vmatpush.msra.mxu0 0.0
  %2996 = vmatpush.msra.mxu0 0.0
  %2997 = vmatpush.msra.mxu0 0.0
  %2998 = vmatpush.msra.mxu0 0.0
  %2999 = vmatpush.msra.mxu0 0.0
  %3000 = vmatpush.msra.mxu0 0.0
  %3001 = vmatpush.msra.mxu0 0.0
  %3002 = vmatpush.msra.mxu0 0.0
  %3003 = vmatpush.msra.mxu0 0.0
  %3004 = vmatpush.msra.mxu0 0.0
  %3005 = vmatpush.msra.mxu0 0.0
  %3006 = vmatpush.msra.mxu0 0.0
  %3007 = vmatpush.msra.mxu0 %v2835
  %3008 = vmatmul.f32.gmra.mxu0 %v2969
  %v3009 = vpop.f32.mrf.mxu0
  %v3010 = vadd.f32 0.0, %v3009
  %3011 = vmatmul.f32.gmra.mxu0 %v2972
  %v3012 = vpop.f32.mrf.mxu0
  %v3013 = vadd.f32 0.0, %v3012
  %3014 = vmatmul.f32.gmra.mxu0 %v2975
  %v3015 = vpop.f32.mrf.mxu0
  %v3016 = vadd.f32 0.0, %v3015
  %3017 = vmatmul.f32.gmra.mxu0 %v2978
  %v3018 = vpop.f32.mrf.mxu0
  %v3019 = vadd.f32 0.0, %v3018
  %3020 = vmatmul.f32.gmra.mxu0 %v2981
  %v3021 = vpop.f32.mrf.mxu0
  %v3022 = vadd.f32 0.0, %v3021
  %3023 = vmatmul.f32.gmra.mxu0 %v2984
  %v3024 = vpop.f32.mrf.mxu0
  %v3025 = vadd.f32 0.0, %v3024
  %3026 = vmatmul.f32.gmra.mxu0 %v2987
  %v3027 = vpop.f32.mrf.mxu0
  %v3028 = vadd.f32 0.0, %v3027
  %3029 = vmatmul.f32.gmra.mxu0 %v2990
  %v3030 = vpop.f32.mrf.mxu0
  %v3031 = vadd.f32 0.0, %v3030
  %3032 = vdwg.mxu0
  %v3033 = vadd.f32 %v2701, %v3010
  %v3034 = vadd.f32 %v2702, %v3013
  %v3035 = vadd.f32 %v2703, %v3016
  %v3036 = vadd.f32 %v2704, %v3019
  %v3037 = vadd.f32 %v2705, %v3022
  %v3038 = vadd.f32 %v2706, %v3025
  %v3039 = vadd.f32 %v2707, %v3028
  %v3040 = vadd.f32 %v2708, %v3031
  %s3041 = scalar_lea.vmem %s4, 768
  %v3042 = vld [vmem:[%s3041] sm:$0xff]
  %v3043 = vld [vmem:[%s3041 + $0x8] sm:$0xff]
  %v3044 = vld [vmem:[%s3041 + $0x10] sm:$0xff]
  %v3045 = vld [vmem:[%s3041 + $0x18] sm:$0xff]
  %v3046 = vld [vmem:[%s3041 + $0x20] sm:$0xff]
  %v3047 = vld [vmem:[%s3041 + $0x28] sm:$0xff]
  %v3048 = vld [vmem:[%s3041 + $0x30] sm:$0xff]
  %v3049 = vld [vmem:[%s3041 + $0x38] sm:$0xff]
  %v3050 = vld [vmem:[%s3041 + $0x40] sm:$0xff]
  %v3051 = vld [vmem:[%s3041 + $0x48] sm:$0xff]
  %v3052 = vld [vmem:[%s3041 + $0x50] sm:$0xff]
  %v3053 = vld [vmem:[%s3041 + $0x58] sm:$0xff]
  %v3054 = vld [vmem:[%s3041 + $0x60] sm:$0xff]
  %v3055 = vld [vmem:[%s3041 + $0x68] sm:$0xff]
  %v3056 = vld [vmem:[%s3041 + $0x70] sm:$0xff]
  %v3057 = vld [vmem:[%s3041 + $0x78] sm:$0xff]
  %s3058 = scalar_lea.vmem %s5, 24
  %v3059 = vld [vmem:[%s3058] sm:$0xf]
  %3060 = vmatpush.msra.mxu0 %v1033
  %3061 = vmatpush.msra.mxu0 %v1032
  %3062 = vmatpush.msra.mxu0 %v1031
  %3063 = vmatpush.msra.mxu0 %v1030
  %3064 = vmatpush.msra.mxu0 %v1029
  %3065 = vmatpush.msra.mxu0 %v1028
  %3066 = vmatpush.msra.mxu0 %v1027
  %3067 = vmatpush.msra.mxu0 %v1026
  %3068 = vmatpush.msra.mxu0 %v1025
  %3069 = vmatpush.msra.mxu0 %v1024
  %3070 = vmatpush.msra.mxu0 %v1023
  %3071 = vmatpush.msra.mxu0 %v1022
  %3072 = vmatpush.msra.mxu0 %v1021
  %3073 = vmatpush.msra.mxu0 %v1020
  %3074 = vmatpush.msra.mxu0 %v1019
  %3075 = vmatpush.msra.mxu0 %v1018
  %3076 = vmatmul.f32.gmra.mxu0 %v3042
  %v3077 = vpop.f32.mrf.mxu0
  %v3078 = vadd.f32 0.0, %v3077
  %3079 = vmatmul.f32.gmra.mxu0 %v3044
  %v3080 = vpop.f32.mrf.mxu0
  %v3081 = vadd.f32 0.0, %v3080
  %3082 = vmatmul.f32.gmra.mxu0 %v3046
  %v3083 = vpop.f32.mrf.mxu0
  %v3084 = vadd.f32 0.0, %v3083
  %3085 = vmatmul.f32.gmra.mxu0 %v3048
  %v3086 = vpop.f32.mrf.mxu0
  %v3087 = vadd.f32 0.0, %v3086
  %3088 = vmatmul.f32.gmra.mxu0 %v3050
  %v3089 = vpop.f32.mrf.mxu0
  %v3090 = vadd.f32 0.0, %v3089
  %3091 = vmatmul.f32.gmra.mxu0 %v3052
  %v3092 = vpop.f32.mrf.mxu0
  %v3093 = vadd.f32 0.0, %v3092
  %3094 = vmatmul.f32.gmra.mxu0 %v3054
  %v3095 = vpop.f32.mrf.mxu0
  %v3096 = vadd.f32 0.0, %v3095
  %3097 = vmatmul.f32.gmra.mxu0 %v3056
  %v3098 = vpop.f32.mrf.mxu0
  %v3099 = vadd.f32 0.0, %v3098
  %3100 = vdwg.mxu0
  %3101 = vmatpush.msra.mxu0 %v1049
  %3102 = vmatpush.msra.mxu0 %v1048
  %3103 = vmatpush.msra.mxu0 %v1047
  %3104 = vmatpush.msra.mxu0 %v1046
  %3105 = vmatpush.msra.mxu0 %v1045
  %3106 = vmatpush.msra.mxu0 %v1044
  %3107 = vmatpush.msra.mxu0 %v1043
  %3108 = vmatpush.msra.mxu0 %v1042
  %3109 = vmatpush.msra.mxu0 %v1041
  %3110 = vmatpush.msra.mxu0 %v1040
  %3111 = vmatpush.msra.mxu0 %v1039
  %3112 = vmatpush.msra.mxu0 %v1038
  %3113 = vmatpush.msra.mxu0 %v1037
  %3114 = vmatpush.msra.mxu0 %v1036
  %3115 = vmatpush.msra.mxu0 %v1035
  %3116 = vmatpush.msra.mxu0 %v1034
  %3117 = vmatmul.f32.gmra.mxu0 %v3043
  %v3118 = vpop.f32.mrf.mxu0
  %v3119 = vadd.f32 %v3078, %v3118
  %3120 = vmatmul.f32.gmra.mxu0 %v3045
  %v3121 = vpop.f32.mrf.mxu0
  %v3122 = vadd.f32 %v3081, %v3121
  %3123 = vmatmul.f32.gmra.mxu0 %v3047
  %v3124 = vpop.f32.mrf.mxu0
  %v3125 = vadd.f32 %v3084, %v3124
  %3126 = vmatmul.f32.gmra.mxu0 %v3049
  %v3127 = vpop.f32.mrf.mxu0
  %v3128 = vadd.f32 %v3087, %v3127
  %3129 = vmatmul.f32.gmra.mxu0 %v3051
  %v3130 = vpop.f32.mrf.mxu0
  %v3131 = vadd.f32 %v3090, %v3130
  %3132 = vmatmul.f32.gmra.mxu0 %v3053
  %v3133 = vpop.f32.mrf.mxu0
  %v3134 = vadd.f32 %v3093, %v3133
  %3135 = vmatmul.f32.gmra.mxu0 %v3055
  %v3136 = vpop.f32.mrf.mxu0
  %v3137 = vadd.f32 %v3096, %v3136
  %3138 = vmatmul.f32.gmra.mxu0 %v3057
  %v3139 = vpop.f32.mrf.mxu0
  %v3140 = vadd.f32 %v3099, %v3139
  %3141 = vdwg.mxu0
  %v3143 = vsel %vm535, %v3119, 0
  %v3146 = vsel %vm535, %v3122, 0
  %v3149 = vsel %vm535, %v3125, 0
  %v3152 = vsel %vm535, %v3128, 0
  %v3155 = vsel %vm535, %v3131, 0
  %v3158 = vsel %vm535, %v3134, 0
  %v3161 = vsel %vm535, %v3137, 0
  %v3164 = vsel %vm535, %v3140, 0
  %v3167 = vsel %vm1388, %v3059, 0
  %3169 = vmatpush.msra.mxu0 0.0
  %3170 = vmatpush.msra.mxu0 0.0
  %3171 = vmatpush.msra.mxu0 0.0
  %3172 = vmatpush.msra.mxu0 0.0
  %3173 = vmatpush.msra.mxu0 0.0
  %3174 = vmatpush.msra.mxu0 0.0
  %3175 = vmatpush.msra.mxu0 0.0
  %3176 = vmatpush.msra.mxu0 0.0
  %3177 = vmatpush.msra.mxu0 0.0
  %3178 = vmatpush.msra.mxu0 0.0
  %3179 = vmatpush.msra.mxu0 0.0
  %3180 = vmatpush.msra.mxu0 0.0
  %3181 = vmatpush.msra.mxu0 0.0
  %3182 = vmatpush.msra.mxu0 0.0
  %3183 = vmatpush.msra.mxu0 0.0
  %3184 = vmatpush.msra.mxu0 %v3167
  %3185 = vmatmul.f32.gmra.mxu0 %v3143
  %v3186 = vpop.f32.mrf.mxu0
  %v3187 = vadd.f32 0.0, %v3186
  %3188 = vmatmul.f32.gmra.mxu0 %v3146
  %v3189 = vpop.f32.mrf.mxu0
  %v3190 = vadd.f32 0.0, %v3189
  %3191 = vmatmul.f32.gmra.mxu0 %v3149
  %v3192 = vpop.f32.mrf.mxu0
  %v3193 = vadd.f32 0.0, %v3192
  %3194 = vmatmul.f32.gmra.mxu0 %v3152
  %v3195 = vpop.f32.mrf.mxu0
  %v3196 = vadd.f32 0.0, %v3195
  %3197 = vmatmul.f32.gmra.mxu0 %v3155
  %v3198 = vpop.f32.mrf.mxu0
  %v3199 = vadd.f32 0.0, %v3198
  %3200 = vmatmul.f32.gmra.mxu0 %v3158
  %v3201 = vpop.f32.mrf.mxu0
  %v3202 = vadd.f32 0.0, %v3201
  %3203 = vmatmul.f32.gmra.mxu0 %v3161
  %v3204 = vpop.f32.mrf.mxu0
  %v3205 = vadd.f32 0.0, %v3204
  %3206 = vmatmul.f32.gmra.mxu0 %v3164
  %v3207 = vpop.f32.mrf.mxu0
  %v3208 = vadd.f32 0.0, %v3207
  %3209 = vdwg.mxu0
  %v3210 = vadd.f32 %v2878, %v3187
  %v3211 = vadd.f32 %v2879, %v3190
  %v3212 = vadd.f32 %v2880, %v3193
  %v3213 = vadd.f32 %v2881, %v3196
  %v3214 = vadd.f32 %v2882, %v3199
  %v3215 = vadd.f32 %v2883, %v3202
  %v3216 = vadd.f32 %v2884, %v3205
  %v3217 = vadd.f32 %v2885, %v3208
  %3218 = vmatpush.msra.mxu0 %v1065
  %3219 = vmatpush.msra.mxu0 %v1064
  %3220 = vmatpush.msra.mxu0 %v1063
  %3221 = vmatpush.msra.mxu0 %v1062
  %3222 = vmatpush.msra.mxu0 %v1061
  %3223 = vmatpush.msra.mxu0 %v1060
  %3224 = vmatpush.msra.mxu0 %v1059
  %3225 = vmatpush.msra.mxu0 %v1058
  %3226 = vmatpush.msra.mxu0 %v1057
  %3227 = vmatpush.msra.mxu0 %v1056
  %3228 = vmatpush.msra.mxu0 %v1055
  %3229 = vmatpush.msra.mxu0 %v1054
  %3230 = vmatpush.msra.mxu0 %v1053
  %3231 = vmatpush.msra.mxu0 %v1052
  %3232 = vmatpush.msra.mxu0 %v1051
  %3233 = vmatpush.msra.mxu0 %v1050
  %3234 = vmatmul.f32.gmra.mxu0 %v3042
  %v3235 = vpop.f32.mrf.mxu0
  %v3236 = vadd.f32 0.0, %v3235
  %3237 = vmatmul.f32.gmra.mxu0 %v3044
  %v3238 = vpop.f32.mrf.mxu0
  %v3239 = vadd.f32 0.0, %v3238
  %3240 = vmatmul.f32.gmra.mxu0 %v3046
  %v3241 = vpop.f32.mrf.mxu0
  %v3242 = vadd.f32 0.0, %v3241
  %3243 = vmatmul.f32.gmra.mxu0 %v3048
  %v3244 = vpop.f32.mrf.mxu0
  %v3245 = vadd.f32 0.0, %v3244
  %3246 = vmatmul.f32.gmra.mxu0 %v3050
  %v3247 = vpop.f32.mrf.mxu0
  %v3248 = vadd.f32 0.0, %v3247
  %3249 = vmatmul.f32.gmra.mxu0 %v3052
  %v3250 = vpop.f32.mrf.mxu0
  %v3251 = vadd.f32 0.0, %v3250
  %3252 = vmatmul.f32.gmra.mxu0 %v3054
  %v3253 = vpop.f32.mrf.mxu0
  %v3254 = vadd.f32 0.0, %v3253
  %3255 = vmatmul.f32.gmra.mxu0 %v3056
  %v3256 = vpop.f32.mrf.mxu0
  %v3257 = vadd.f32 0.0, %v3256
  %3258 = vdwg.mxu0
  %3259 = vmatpush.msra.mxu0 %v1081
  %3260 = vmatpush.msra.mxu0 %v1080
  %3261 = vmatpush.msra.mxu0 %v1079
  %3262 = vmatpush.msra.mxu0 %v1078
  %3263 = vmatpush.msra.mxu0 %v1077
  %3264 = vmatpush.msra.mxu0 %v1076
  %3265 = vmatpush.msra.mxu0 %v1075
  %3266 = vmatpush.msra.mxu0 %v1074
  %3267 = vmatpush.msra.mxu0 %v1073
  %3268 = vmatpush.msra.mxu0 %v1072
  %3269 = vmatpush.msra.mxu0 %v1071
  %3270 = vmatpush.msra.mxu0 %v1070
  %3271 = vmatpush.msra.mxu0 %v1069
  %3272 = vmatpush.msra.mxu0 %v1068
  %3273 = vmatpush.msra.mxu0 %v1067
  %3274 = vmatpush.msra.mxu0 %v1066
  %3275 = vmatmul.f32.gmra.mxu0 %v3043
  %v3276 = vpop.f32.mrf.mxu0
  %v3277 = vadd.f32 %v3236, %v3276
  %3278 = vmatmul.f32.gmra.mxu0 %v3045
  %v3279 = vpop.f32.mrf.mxu0
  %v3280 = vadd.f32 %v3239, %v3279
  %3281 = vmatmul.f32.gmra.mxu0 %v3047
  %v3282 = vpop.f32.mrf.mxu0
  %v3283 = vadd.f32 %v3242, %v3282
  %3284 = vmatmul.f32.gmra.mxu0 %v3049
  %v3285 = vpop.f32.mrf.mxu0
  %v3286 = vadd.f32 %v3245, %v3285
  %3287 = vmatmul.f32.gmra.mxu0 %v3051
  %v3288 = vpop.f32.mrf.mxu0
  %v3289 = vadd.f32 %v3248, %v3288
  %3290 = vmatmul.f32.gmra.mxu0 %v3053
  %v3291 = vpop.f32.mrf.mxu0
  %v3292 = vadd.f32 %v3251, %v3291
  %3293 = vmatmul.f32.gmra.mxu0 %v3055
  %v3294 = vpop.f32.mrf.mxu0
  %v3295 = vadd.f32 %v3254, %v3294
  %3296 = vmatmul.f32.gmra.mxu0 %v3057
  %v3297 = vpop.f32.mrf.mxu0
  %v3298 = vadd.f32 %v3257, %v3297
  %3299 = vdwg.mxu0
  %v3301 = vsel %vm535, %v3277, 0
  %v3304 = vsel %vm535, %v3280, 0
  %v3307 = vsel %vm535, %v3283, 0
  %v3310 = vsel %vm535, %v3286, 0
  %v3313 = vsel %vm535, %v3289, 0
  %v3316 = vsel %vm535, %v3292, 0
  %v3319 = vsel %vm535, %v3295, 0
  %v3322 = vsel %vm535, %v3298, 0
  %3324 = vmatpush.msra.mxu0 0.0
  %3325 = vmatpush.msra.mxu0 0.0
  %3326 = vmatpush.msra.mxu0 0.0
  %3327 = vmatpush.msra.mxu0 0.0
  %3328 = vmatpush.msra.mxu0 0.0
  %3329 = vmatpush.msra.mxu0 0.0
  %3330 = vmatpush.msra.mxu0 0.0
  %3331 = vmatpush.msra.mxu0 0.0
  %3332 = vmatpush.msra.mxu0 0.0
  %3333 = vmatpush.msra.mxu0 0.0
  %3334 = vmatpush.msra.mxu0 0.0
  %3335 = vmatpush.msra.mxu0 0.0
  %3336 = vmatpush.msra.mxu0 0.0
  %3337 = vmatpush.msra.mxu0 0.0
  %3338 = vmatpush.msra.mxu0 0.0
  %3339 = vmatpush.msra.mxu0 %v3167
  %3340 = vmatmul.f32.gmra.mxu0 %v3301
  %v3341 = vpop.f32.mrf.mxu0
  %v3342 = vadd.f32 0.0, %v3341
  %3343 = vmatmul.f32.gmra.mxu0 %v3304
  %v3344 = vpop.f32.mrf.mxu0
  %v3345 = vadd.f32 0.0, %v3344
  %3346 = vmatmul.f32.gmra.mxu0 %v3307
  %v3347 = vpop.f32.mrf.mxu0
  %v3348 = vadd.f32 0.0, %v3347
  %3349 = vmatmul.f32.gmra.mxu0 %v3310
  %v3350 = vpop.f32.mrf.mxu0
  %v3351 = vadd.f32 0.0, %v3350
  %3352 = vmatmul.f32.gmra.mxu0 %v3313
  %v3353 = vpop.f32.mrf.mxu0
  %v3354 = vadd.f32 0.0, %v3353
  %3355 = vmatmul.f32.gmra.mxu0 %v3316
  %v3356 = vpop.f32.mrf.mxu0
  %v3357 = vadd.f32 0.0, %v3356
  %3358 = vmatmul.f32.gmra.mxu0 %v3319
  %v3359 = vpop.f32.mrf.mxu0
  %v3360 = vadd.f32 0.0, %v3359
  %3361 = vmatmul.f32.gmra.mxu0 %v3322
  %v3362 = vpop.f32.mrf.mxu0
  %v3363 = vadd.f32 0.0, %v3362
  %3364 = vdwg.mxu0
  %v3365 = vadd.f32 %v3033, %v3342
  %v3366 = vadd.f32 %v3034, %v3345
  %v3367 = vadd.f32 %v3035, %v3348
  %v3368 = vadd.f32 %v3036, %v3351
  %v3369 = vadd.f32 %v3037, %v3354
  %v3370 = vadd.f32 %v3038, %v3357
  %v3371 = vadd.f32 %v3039, %v3360
  %v3372 = vadd.f32 %v3040, %v3363
  %s3373 = scalar_lea.vmem %s4, 896
  %v3374 = vld [vmem:[%s3373] sm:$0xff]
  %v3375 = vld [vmem:[%s3373 + $0x8] sm:$0xff]
  %v3376 = vld [vmem:[%s3373 + $0x10] sm:$0xff]
  %v3377 = vld [vmem:[%s3373 + $0x18] sm:$0xff]
  %v3378 = vld [vmem:[%s3373 + $0x20] sm:$0xff]
  %v3379 = vld [vmem:[%s3373 + $0x28] sm:$0xff]
  %v3380 = vld [vmem:[%s3373 + $0x30] sm:$0xff]
  %v3381 = vld [vmem:[%s3373 + $0x38] sm:$0xff]
  %v3382 = vld [vmem:[%s3373 + $0x40] sm:$0xff]
  %v3383 = vld [vmem:[%s3373 + $0x48] sm:$0xff]
  %v3384 = vld [vmem:[%s3373 + $0x50] sm:$0xff]
  %v3385 = vld [vmem:[%s3373 + $0x58] sm:$0xff]
  %v3386 = vld [vmem:[%s3373 + $0x60] sm:$0xff]
  %v3387 = vld [vmem:[%s3373 + $0x68] sm:$0xff]
  %v3388 = vld [vmem:[%s3373 + $0x70] sm:$0xff]
  %v3389 = vld [vmem:[%s3373 + $0x78] sm:$0xff]
  %s3390 = scalar_lea.vmem %s5, 28
  %v3391 = vld [vmem:[%s3390] sm:$0xf]
  %3392 = vmatpush.msra.mxu0 %v1033
  %3393 = vmatpush.msra.mxu0 %v1032
  %3394 = vmatpush.msra.mxu0 %v1031
  %3395 = vmatpush.msra.mxu0 %v1030
  %3396 = vmatpush.msra.mxu0 %v1029
  %3397 = vmatpush.msra.mxu0 %v1028
  %3398 = vmatpush.msra.mxu0 %v1027
  %3399 = vmatpush.msra.mxu0 %v1026
  %3400 = vmatpush.msra.mxu0 %v1025
  %3401 = vmatpush.msra.mxu0 %v1024
  %3402 = vmatpush.msra.mxu0 %v1023
  %3403 = vmatpush.msra.mxu0 %v1022
  %3404 = vmatpush.msra.mxu0 %v1021
  %3405 = vmatpush.msra.mxu0 %v1020
  %3406 = vmatpush.msra.mxu0 %v1019
  %3407 = vmatpush.msra.mxu0 %v1018
  %3408 = vmatmul.f32.gmra.mxu0 %v3374
  %v3409 = vpop.f32.mrf.mxu0
  %v3410 = vadd.f32 0.0, %v3409
  %3411 = vmatmul.f32.gmra.mxu0 %v3376
  %v3412 = vpop.f32.mrf.mxu0
  %v3413 = vadd.f32 0.0, %v3412
  %3414 = vmatmul.f32.gmra.mxu0 %v3378
  %v3415 = vpop.f32.mrf.mxu0
  %v3416 = vadd.f32 0.0, %v3415
  %3417 = vmatmul.f32.gmra.mxu0 %v3380
  %v3418 = vpop.f32.mrf.mxu0
  %v3419 = vadd.f32 0.0, %v3418
  %3420 = vmatmul.f32.gmra.mxu0 %v3382
  %v3421 = vpop.f32.mrf.mxu0
  %v3422 = vadd.f32 0.0, %v3421
  %3423 = vmatmul.f32.gmra.mxu0 %v3384
  %v3424 = vpop.f32.mrf.mxu0
  %v3425 = vadd.f32 0.0, %v3424
  %3426 = vmatmul.f32.gmra.mxu0 %v3386
  %v3427 = vpop.f32.mrf.mxu0
  %v3428 = vadd.f32 0.0, %v3427
  %3429 = vmatmul.f32.gmra.mxu0 %v3388
  %v3430 = vpop.f32.mrf.mxu0
  %v3431 = vadd.f32 0.0, %v3430
  %3432 = vdwg.mxu0
  %3433 = vmatpush.msra.mxu0 %v1049
  %3434 = vmatpush.msra.mxu0 %v1048
  %3435 = vmatpush.msra.mxu0 %v1047
  %3436 = vmatpush.msra.mxu0 %v1046
  %3437 = vmatpush.msra.mxu0 %v1045
  %3438 = vmatpush.msra.mxu0 %v1044
  %3439 = vmatpush.msra.mxu0 %v1043
  %3440 = vmatpush.msra.mxu0 %v1042
  %3441 = vmatpush.msra.mxu0 %v1041
  %3442 = vmatpush.msra.mxu0 %v1040
  %3443 = vmatpush.msra.mxu0 %v1039
  %3444 = vmatpush.msra.mxu0 %v1038
  %3445 = vmatpush.msra.mxu0 %v1037
  %3446 = vmatpush.msra.mxu0 %v1036
  %3447 = vmatpush.msra.mxu0 %v1035
  %3448 = vmatpush.msra.mxu0 %v1034
  %3449 = vmatmul.f32.gmra.mxu0 %v3375
  %v3450 = vpop.f32.mrf.mxu0
  %v3451 = vadd.f32 %v3410, %v3450
  %3452 = vmatmul.f32.gmra.mxu0 %v3377
  %v3453 = vpop.f32.mrf.mxu0
  %v3454 = vadd.f32 %v3413, %v3453
  %3455 = vmatmul.f32.gmra.mxu0 %v3379
  %v3456 = vpop.f32.mrf.mxu0
  %v3457 = vadd.f32 %v3416, %v3456
  %3458 = vmatmul.f32.gmra.mxu0 %v3381
  %v3459 = vpop.f32.mrf.mxu0
  %v3460 = vadd.f32 %v3419, %v3459
  %3461 = vmatmul.f32.gmra.mxu0 %v3383
  %v3462 = vpop.f32.mrf.mxu0
  %v3463 = vadd.f32 %v3422, %v3462
  %3464 = vmatmul.f32.gmra.mxu0 %v3385
  %v3465 = vpop.f32.mrf.mxu0
  %v3466 = vadd.f32 %v3425, %v3465
  %3467 = vmatmul.f32.gmra.mxu0 %v3387
  %v3468 = vpop.f32.mrf.mxu0
  %v3469 = vadd.f32 %v3428, %v3468
  %3470 = vmatmul.f32.gmra.mxu0 %v3389
  %v3471 = vpop.f32.mrf.mxu0
  %v3472 = vadd.f32 %v3431, %v3471
  %3473 = vdwg.mxu0
  %v3475 = vsel %vm535, %v3451, 0
  %v3478 = vsel %vm535, %v3454, 0
  %v3481 = vsel %vm535, %v3457, 0
  %v3484 = vsel %vm535, %v3460, 0
  %v3487 = vsel %vm535, %v3463, 0
  %v3490 = vsel %vm535, %v3466, 0
  %v3493 = vsel %vm535, %v3469, 0
  %v3496 = vsel %vm535, %v3472, 0
  %v3499 = vsel %vm1388, %v3391, 0
  %3501 = vmatpush.msra.mxu0 0.0
  %3502 = vmatpush.msra.mxu0 0.0
  %3503 = vmatpush.msra.mxu0 0.0
  %3504 = vmatpush.msra.mxu0 0.0
  %3505 = vmatpush.msra.mxu0 0.0
  %3506 = vmatpush.msra.mxu0 0.0
  %3507 = vmatpush.msra.mxu0 0.0
  %3508 = vmatpush.msra.mxu0 0.0
  %3509 = vmatpush.msra.mxu0 0.0
  %3510 = vmatpush.msra.mxu0 0.0
  %3511 = vmatpush.msra.mxu0 0.0
  %3512 = vmatpush.msra.mxu0 0.0
  %3513 = vmatpush.msra.mxu0 0.0
  %3514 = vmatpush.msra.mxu0 0.0
  %3515 = vmatpush.msra.mxu0 0.0
  %3516 = vmatpush.msra.mxu0 %v3499
  %3517 = vmatmul.f32.gmra.mxu0 %v3475
  %v3518 = vpop.f32.mrf.mxu0
  %v3519 = vadd.f32 0.0, %v3518
  %3520 = vmatmul.f32.gmra.mxu0 %v3478
  %v3521 = vpop.f32.mrf.mxu0
  %v3522 = vadd.f32 0.0, %v3521
  %3523 = vmatmul.f32.gmra.mxu0 %v3481
  %v3524 = vpop.f32.mrf.mxu0
  %v3525 = vadd.f32 0.0, %v3524
  %3526 = vmatmul.f32.gmra.mxu0 %v3484
  %v3527 = vpop.f32.mrf.mxu0
  %v3528 = vadd.f32 0.0, %v3527
  %3529 = vmatmul.f32.gmra.mxu0 %v3487
  %v3530 = vpop.f32.mrf.mxu0
  %v3531 = vadd.f32 0.0, %v3530
  %3532 = vmatmul.f32.gmra.mxu0 %v3490
  %v3533 = vpop.f32.mrf.mxu0
  %v3534 = vadd.f32 0.0, %v3533
  %3535 = vmatmul.f32.gmra.mxu0 %v3493
  %v3536 = vpop.f32.mrf.mxu0
  %v3537 = vadd.f32 0.0, %v3536
  %3538 = vmatmul.f32.gmra.mxu0 %v3496
  %v3539 = vpop.f32.mrf.mxu0
  %v3540 = vadd.f32 0.0, %v3539
  %3541 = vdwg.mxu0
  %v3542 = vadd.f32 %v3210, %v3519
  %v3543 = vadd.f32 %v3211, %v3522
  %v3544 = vadd.f32 %v3212, %v3525
  %v3545 = vadd.f32 %v3213, %v3528
  %v3546 = vadd.f32 %v3214, %v3531
  %v3547 = vadd.f32 %v3215, %v3534
  %v3548 = vadd.f32 %v3216, %v3537
  %v3549 = vadd.f32 %v3217, %v3540
  %3550 = vmatpush.msra.mxu0 %v1065
  %3551 = vmatpush.msra.mxu0 %v1064
  %3552 = vmatpush.msra.mxu0 %v1063
  %3553 = vmatpush.msra.mxu0 %v1062
  %3554 = vmatpush.msra.mxu0 %v1061
  %3555 = vmatpush.msra.mxu0 %v1060
  %3556 = vmatpush.msra.mxu0 %v1059
  %3557 = vmatpush.msra.mxu0 %v1058
  %3558 = vmatpush.msra.mxu0 %v1057
  %3559 = vmatpush.msra.mxu0 %v1056
  %3560 = vmatpush.msra.mxu0 %v1055
  %3561 = vmatpush.msra.mxu0 %v1054
  %3562 = vmatpush.msra.mxu0 %v1053
  %3563 = vmatpush.msra.mxu0 %v1052
  %3564 = vmatpush.msra.mxu0 %v1051
  %3565 = vmatpush.msra.mxu0 %v1050
  %3566 = vmatmul.f32.gmra.mxu0 %v3374
  %v3567 = vpop.f32.mrf.mxu0
  %v3568 = vadd.f32 0.0, %v3567
  %3569 = vmatmul.f32.gmra.mxu0 %v3376
  %v3570 = vpop.f32.mrf.mxu0
  %v3571 = vadd.f32 0.0, %v3570
  %3572 = vmatmul.f32.gmra.mxu0 %v3378
  %v3573 = vpop.f32.mrf.mxu0
  %v3574 = vadd.f32 0.0, %v3573
  %3575 = vmatmul.f32.gmra.mxu0 %v3380
  %v3576 = vpop.f32.mrf.mxu0
  %v3577 = vadd.f32 0.0, %v3576
  %3578 = vmatmul.f32.gmra.mxu0 %v3382
  %v3579 = vpop.f32.mrf.mxu0
  %v3580 = vadd.f32 0.0, %v3579
  %3581 = vmatmul.f32.gmra.mxu0 %v3384
  %v3582 = vpop.f32.mrf.mxu0
  %v3583 = vadd.f32 0.0, %v3582
  %3584 = vmatmul.f32.gmra.mxu0 %v3386
  %v3585 = vpop.f32.mrf.mxu0
  %v3586 = vadd.f32 0.0, %v3585
  %3587 = vmatmul.f32.gmra.mxu0 %v3388
  %v3588 = vpop.f32.mrf.mxu0
  %v3589 = vadd.f32 0.0, %v3588
  %3590 = vdwg.mxu0
  %3591 = vmatpush.msra.mxu0 %v1081
  %3592 = vmatpush.msra.mxu0 %v1080
  %3593 = vmatpush.msra.mxu0 %v1079
  %3594 = vmatpush.msra.mxu0 %v1078
  %3595 = vmatpush.msra.mxu0 %v1077
  %3596 = vmatpush.msra.mxu0 %v1076
  %3597 = vmatpush.msra.mxu0 %v1075
  %3598 = vmatpush.msra.mxu0 %v1074
  %3599 = vmatpush.msra.mxu0 %v1073
  %3600 = vmatpush.msra.mxu0 %v1072
  %3601 = vmatpush.msra.mxu0 %v1071
  %3602 = vmatpush.msra.mxu0 %v1070
  %3603 = vmatpush.msra.mxu0 %v1069
  %3604 = vmatpush.msra.mxu0 %v1068
  %3605 = vmatpush.msra.mxu0 %v1067
  %3606 = vmatpush.msra.mxu0 %v1066
  %3607 = vmatmul.f32.gmra.mxu0 %v3375
  %v3608 = vpop.f32.mrf.mxu0
  %v3609 = vadd.f32 %v3568, %v3608
  %3610 = vmatmul.f32.gmra.mxu0 %v3377
  %v3611 = vpop.f32.mrf.mxu0
  %v3612 = vadd.f32 %v3571, %v3611
  %3613 = vmatmul.f32.gmra.mxu0 %v3379
  %v3614 = vpop.f32.mrf.mxu0
  %v3615 = vadd.f32 %v3574, %v3614
  %3616 = vmatmul.f32.gmra.mxu0 %v3381
  %v3617 = vpop.f32.mrf.mxu0
  %v3618 = vadd.f32 %v3577, %v3617
  %3619 = vmatmul.f32.gmra.mxu0 %v3383
  %v3620 = vpop.f32.mrf.mxu0
  %v3621 = vadd.f32 %v3580, %v3620
  %3622 = vmatmul.f32.gmra.mxu0 %v3385
  %v3623 = vpop.f32.mrf.mxu0
  %v3624 = vadd.f32 %v3583, %v3623
  %3625 = vmatmul.f32.gmra.mxu0 %v3387
  %v3626 = vpop.f32.mrf.mxu0
  %v3627 = vadd.f32 %v3586, %v3626
  %3628 = vmatmul.f32.gmra.mxu0 %v3389
  %v3629 = vpop.f32.mrf.mxu0
  %v3630 = vadd.f32 %v3589, %v3629
  %3631 = vdwg.mxu0
  %v3633 = vsel %vm535, %v3609, 0
  %v3636 = vsel %vm535, %v3612, 0
  %v3639 = vsel %vm535, %v3615, 0
  %v3642 = vsel %vm535, %v3618, 0
  %v3645 = vsel %vm535, %v3621, 0
  %v3648 = vsel %vm535, %v3624, 0
  %v3651 = vsel %vm535, %v3627, 0
  %v3654 = vsel %vm535, %v3630, 0
  %3656 = vmatpush.msra.mxu0 0.0
  %3657 = vmatpush.msra.mxu0 0.0
  %3658 = vmatpush.msra.mxu0 0.0
  %3659 = vmatpush.msra.mxu0 0.0
  %3660 = vmatpush.msra.mxu0 0.0
  %3661 = vmatpush.msra.mxu0 0.0
  %3662 = vmatpush.msra.mxu0 0.0
  %3663 = vmatpush.msra.mxu0 0.0
  %3664 = vmatpush.msra.mxu0 0.0
  %3665 = vmatpush.msra.mxu0 0.0
  %3666 = vmatpush.msra.mxu0 0.0
  %3667 = vmatpush.msra.mxu0 0.0
  %3668 = vmatpush.msra.mxu0 0.0
  %3669 = vmatpush.msra.mxu0 0.0
  %3670 = vmatpush.msra.mxu0 0.0
  %3671 = vmatpush.msra.mxu0 %v3499
  %3672 = vmatmul.f32.gmra.mxu0 %v3633
  %v3673 = vpop.f32.mrf.mxu0
  %v3674 = vadd.f32 0.0, %v3673
  %3675 = vmatmul.f32.gmra.mxu0 %v3636
  %v3676 = vpop.f32.mrf.mxu0
  %v3677 = vadd.f32 0.0, %v3676
  %3678 = vmatmul.f32.gmra.mxu0 %v3639
  %v3679 = vpop.f32.mrf.mxu0
  %v3680 = vadd.f32 0.0, %v3679
  %3681 = vmatmul.f32.gmra.mxu0 %v3642
  %v3682 = vpop.f32.mrf.mxu0
  %v3683 = vadd.f32 0.0, %v3682
  %3684 = vmatmul.f32.gmra.mxu0 %v3645
  %v3685 = vpop.f32.mrf.mxu0
  %v3686 = vadd.f32 0.0, %v3685
  %3687 = vmatmul.f32.gmra.mxu0 %v3648
  %v3688 = vpop.f32.mrf.mxu0
  %v3689 = vadd.f32 0.0, %v3688
  %3690 = vmatmul.f32.gmra.mxu0 %v3651
  %v3691 = vpop.f32.mrf.mxu0
  %v3692 = vadd.f32 0.0, %v3691
  %3693 = vmatmul.f32.gmra.mxu0 %v3654
  %v3694 = vpop.f32.mrf.mxu0
  %v3695 = vadd.f32 0.0, %v3694
  %3696 = vdwg.mxu0
  %v3697 = vadd.f32 %v3365, %v3674
  %v3698 = vadd.f32 %v3366, %v3677
  %v3699 = vadd.f32 %v3367, %v3680
  %v3700 = vadd.f32 %v3368, %v3683
  %v3701 = vadd.f32 %v3369, %v3686
  %v3702 = vadd.f32 %v3370, %v3689
  %v3703 = vadd.f32 %v3371, %v3692
  %v3704 = vadd.f32 %v3372, %v3695
  %s3705 = scalar_lea.vmem %s4, 1024
  %v3706 = vld [vmem:[%s3705] sm:$0xff]
  %v3707 = vld [vmem:[%s3705 + $0x8] sm:$0xff]
  %v3708 = vld [vmem:[%s3705 + $0x10] sm:$0xff]
  %v3709 = vld [vmem:[%s3705 + $0x18] sm:$0xff]
  %v3710 = vld [vmem:[%s3705 + $0x20] sm:$0xff]
  %v3711 = vld [vmem:[%s3705 + $0x28] sm:$0xff]
  %v3712 = vld [vmem:[%s3705 + $0x30] sm:$0xff]
  %v3713 = vld [vmem:[%s3705 + $0x38] sm:$0xff]
  %v3714 = vld [vmem:[%s3705 + $0x40] sm:$0xff]
  %v3715 = vld [vmem:[%s3705 + $0x48] sm:$0xff]
  %v3716 = vld [vmem:[%s3705 + $0x50] sm:$0xff]
  %v3717 = vld [vmem:[%s3705 + $0x58] sm:$0xff]
  %v3718 = vld [vmem:[%s3705 + $0x60] sm:$0xff]
  %v3719 = vld [vmem:[%s3705 + $0x68] sm:$0xff]
  %v3720 = vld [vmem:[%s3705 + $0x70] sm:$0xff]
  %v3721 = vld [vmem:[%s3705 + $0x78] sm:$0xff]
  %s3722 = scalar_lea.vmem %s5, 32
  %v3723 = vld [vmem:[%s3722] sm:$0xf]
  %3724 = vmatpush.msra.mxu0 %v1033
  %3725 = vmatpush.msra.mxu0 %v1032
  %3726 = vmatpush.msra.mxu0 %v1031
  %3727 = vmatpush.msra.mxu0 %v1030
  %3728 = vmatpush.msra.mxu0 %v1029
  %3729 = vmatpush.msra.mxu0 %v1028
  %3730 = vmatpush.msra.mxu0 %v1027
  %3731 = vmatpush.msra.mxu0 %v1026
  %3732 = vmatpush.msra.mxu0 %v1025
  %3733 = vmatpush.msra.mxu0 %v1024
  %3734 = vmatpush.msra.mxu0 %v1023
  %3735 = vmatpush.msra.mxu0 %v1022
  %3736 = vmatpush.msra.mxu0 %v1021
  %3737 = vmatpush.msra.mxu0 %v1020
  %3738 = vmatpush.msra.mxu0 %v1019
  %3739 = vmatpush.msra.mxu0 %v1018
  %3740 = vmatmul.f32.gmra.mxu0 %v3706
  %v3741 = vpop.f32.mrf.mxu0
  %v3742 = vadd.f32 0.0, %v3741
  %3743 = vmatmul.f32.gmra.mxu0 %v3708
  %v3744 = vpop.f32.mrf.mxu0
  %v3745 = vadd.f32 0.0, %v3744
  %3746 = vmatmul.f32.gmra.mxu0 %v3710
  %v3747 = vpop.f32.mrf.mxu0
  %v3748 = vadd.f32 0.0, %v3747
  %3749 = vmatmul.f32.gmra.mxu0 %v3712
  %v3750 = vpop.f32.mrf.mxu0
  %v3751 = vadd.f32 0.0, %v3750
  %3752 = vmatmul.f32.gmra.mxu0 %v3714
  %v3753 = vpop.f32.mrf.mxu0
  %v3754 = vadd.f32 0.0, %v3753
  %3755 = vmatmul.f32.gmra.mxu0 %v3716
  %v3756 = vpop.f32.mrf.mxu0
  %v3757 = vadd.f32 0.0, %v3756
  %3758 = vmatmul.f32.gmra.mxu0 %v3718
  %v3759 = vpop.f32.mrf.mxu0
  %v3760 = vadd.f32 0.0, %v3759
  %3761 = vmatmul.f32.gmra.mxu0 %v3720
  %v3762 = vpop.f32.mrf.mxu0
  %v3763 = vadd.f32 0.0, %v3762
  %3764 = vdwg.mxu0
  %3765 = vmatpush.msra.mxu0 %v1049
  %3766 = vmatpush.msra.mxu0 %v1048
  %3767 = vmatpush.msra.mxu0 %v1047
  %3768 = vmatpush.msra.mxu0 %v1046
  %3769 = vmatpush.msra.mxu0 %v1045
  %3770 = vmatpush.msra.mxu0 %v1044
  %3771 = vmatpush.msra.mxu0 %v1043
  %3772 = vmatpush.msra.mxu0 %v1042
  %3773 = vmatpush.msra.mxu0 %v1041
  %3774 = vmatpush.msra.mxu0 %v1040
  %3775 = vmatpush.msra.mxu0 %v1039
  %3776 = vmatpush.msra.mxu0 %v1038
  %3777 = vmatpush.msra.mxu0 %v1037
  %3778 = vmatpush.msra.mxu0 %v1036
  %3779 = vmatpush.msra.mxu0 %v1035
  %3780 = vmatpush.msra.mxu0 %v1034
  %3781 = vmatmul.f32.gmra.mxu0 %v3707
  %v3782 = vpop.f32.mrf.mxu0
  %v3783 = vadd.f32 %v3742, %v3782
  %3784 = vmatmul.f32.gmra.mxu0 %v3709
  %v3785 = vpop.f32.mrf.mxu0
  %v3786 = vadd.f32 %v3745, %v3785
  %3787 = vmatmul.f32.gmra.mxu0 %v3711
  %v3788 = vpop.f32.mrf.mxu0
  %v3789 = vadd.f32 %v3748, %v3788
  %3790 = vmatmul.f32.gmra.mxu0 %v3713
  %v3791 = vpop.f32.mrf.mxu0
  %v3792 = vadd.f32 %v3751, %v3791
  %3793 = vmatmul.f32.gmra.mxu0 %v3715
  %v3794 = vpop.f32.mrf.mxu0
  %v3795 = vadd.f32 %v3754, %v3794
  %3796 = vmatmul.f32.gmra.mxu0 %v3717
  %v3797 = vpop.f32.mrf.mxu0
  %v3798 = vadd.f32 %v3757, %v3797
  %3799 = vmatmul.f32.gmra.mxu0 %v3719
  %v3800 = vpop.f32.mrf.mxu0
  %v3801 = vadd.f32 %v3760, %v3800
  %3802 = vmatmul.f32.gmra.mxu0 %v3721
  %v3803 = vpop.f32.mrf.mxu0
  %v3804 = vadd.f32 %v3763, %v3803
  %3805 = vdwg.mxu0
  %v3807 = vsel %vm535, %v3783, 0
  %v3810 = vsel %vm535, %v3786, 0
  %v3813 = vsel %vm535, %v3789, 0
  %v3816 = vsel %vm535, %v3792, 0
  %v3819 = vsel %vm535, %v3795, 0
  %v3822 = vsel %vm535, %v3798, 0
  %v3825 = vsel %vm535, %v3801, 0
  %v3828 = vsel %vm535, %v3804, 0
  %v3831 = vsel %vm1388, %v3723, 0
  %3833 = vmatpush.msra.mxu0 0.0
  %3834 = vmatpush.msra.mxu0 0.0
  %3835 = vmatpush.msra.mxu0 0.0
  %3836 = vmatpush.msra.mxu0 0.0
  %3837 = vmatpush.msra.mxu0 0.0
  %3838 = vmatpush.msra.mxu0 0.0
  %3839 = vmatpush.msra.mxu0 0.0
  %3840 = vmatpush.msra.mxu0 0.0
  %3841 = vmatpush.msra.mxu0 0.0
  %3842 = vmatpush.msra.mxu0 0.0
  %3843 = vmatpush.msra.mxu0 0.0
  %3844 = vmatpush.msra.mxu0 0.0
  %3845 = vmatpush.msra.mxu0 0.0
  %3846 = vmatpush.msra.mxu0 0.0
  %3847 = vmatpush.msra.mxu0 0.0
  %3848 = vmatpush.msra.mxu0 %v3831
  %3849 = vmatmul.f32.gmra.mxu0 %v3807
  %v3850 = vpop.f32.mrf.mxu0
  %v3851 = vadd.f32 0.0, %v3850
  %3852 = vmatmul.f32.gmra.mxu0 %v3810
  %v3853 = vpop.f32.mrf.mxu0
  %v3854 = vadd.f32 0.0, %v3853
  %3855 = vmatmul.f32.gmra.mxu0 %v3813
  %v3856 = vpop.f32.mrf.mxu0
  %v3857 = vadd.f32 0.0, %v3856
  %3858 = vmatmul.f32.gmra.mxu0 %v3816
  %v3859 = vpop.f32.mrf.mxu0
  %v3860 = vadd.f32 0.0, %v3859
  %3861 = vmatmul.f32.gmra.mxu0 %v3819
  %v3862 = vpop.f32.mrf.mxu0
  %v3863 = vadd.f32 0.0, %v3862
  %3864 = vmatmul.f32.gmra.mxu0 %v3822
  %v3865 = vpop.f32.mrf.mxu0
  %v3866 = vadd.f32 0.0, %v3865
  %3867 = vmatmul.f32.gmra.mxu0 %v3825
  %v3868 = vpop.f32.mrf.mxu0
  %v3869 = vadd.f32 0.0, %v3868
  %3870 = vmatmul.f32.gmra.mxu0 %v3828
  %v3871 = vpop.f32.mrf.mxu0
  %v3872 = vadd.f32 0.0, %v3871
  %3873 = vdwg.mxu0
  %v3874 = vadd.f32 %v3542, %v3851
  %v3875 = vadd.f32 %v3543, %v3854
  %v3876 = vadd.f32 %v3544, %v3857
  %v3877 = vadd.f32 %v3545, %v3860
  %v3878 = vadd.f32 %v3546, %v3863
  %v3879 = vadd.f32 %v3547, %v3866
  %v3880 = vadd.f32 %v3548, %v3869
  %v3881 = vadd.f32 %v3549, %v3872
  %3882 = vmatpush.msra.mxu0 %v1065
  %3883 = vmatpush.msra.mxu0 %v1064
  %3884 = vmatpush.msra.mxu0 %v1063
  %3885 = vmatpush.msra.mxu0 %v1062
  %3886 = vmatpush.msra.mxu0 %v1061
  %3887 = vmatpush.msra.mxu0 %v1060
  %3888 = vmatpush.msra.mxu0 %v1059
  %3889 = vmatpush.msra.mxu0 %v1058
  %3890 = vmatpush.msra.mxu0 %v1057
  %3891 = vmatpush.msra.mxu0 %v1056
  %3892 = vmatpush.msra.mxu0 %v1055
  %3893 = vmatpush.msra.mxu0 %v1054
  %3894 = vmatpush.msra.mxu0 %v1053
  %3895 = vmatpush.msra.mxu0 %v1052
  %3896 = vmatpush.msra.mxu0 %v1051
  %3897 = vmatpush.msra.mxu0 %v1050
  %3898 = vmatmul.f32.gmra.mxu0 %v3706
  %v3899 = vpop.f32.mrf.mxu0
  %v3900 = vadd.f32 0.0, %v3899
  %3901 = vmatmul.f32.gmra.mxu0 %v3708
  %v3902 = vpop.f32.mrf.mxu0
  %v3903 = vadd.f32 0.0, %v3902
  %3904 = vmatmul.f32.gmra.mxu0 %v3710
  %v3905 = vpop.f32.mrf.mxu0
  %v3906 = vadd.f32 0.0, %v3905
  %3907 = vmatmul.f32.gmra.mxu0 %v3712
  %v3908 = vpop.f32.mrf.mxu0
  %v3909 = vadd.f32 0.0, %v3908
  %3910 = vmatmul.f32.gmra.mxu0 %v3714
  %v3911 = vpop.f32.mrf.mxu0
  %v3912 = vadd.f32 0.0, %v3911
  %3913 = vmatmul.f32.gmra.mxu0 %v3716
  %v3914 = vpop.f32.mrf.mxu0
  %v3915 = vadd.f32 0.0, %v3914
  %3916 = vmatmul.f32.gmra.mxu0 %v3718
  %v3917 = vpop.f32.mrf.mxu0
  %v3918 = vadd.f32 0.0, %v3917
  %3919 = vmatmul.f32.gmra.mxu0 %v3720
  %v3920 = vpop.f32.mrf.mxu0
  %v3921 = vadd.f32 0.0, %v3920
  %3922 = vdwg.mxu0
  %3923 = vmatpush.msra.mxu0 %v1081
  %3924 = vmatpush.msra.mxu0 %v1080
  %3925 = vmatpush.msra.mxu0 %v1079
  %3926 = vmatpush.msra.mxu0 %v1078
  %3927 = vmatpush.msra.mxu0 %v1077
  %3928 = vmatpush.msra.mxu0 %v1076
  %3929 = vmatpush.msra.mxu0 %v1075
  %3930 = vmatpush.msra.mxu0 %v1074
  %3931 = vmatpush.msra.mxu0 %v1073
  %3932 = vmatpush.msra.mxu0 %v1072
  %3933 = vmatpush.msra.mxu0 %v1071
  %3934 = vmatpush.msra.mxu0 %v1070
  %3935 = vmatpush.msra.mxu0 %v1069
  %3936 = vmatpush.msra.mxu0 %v1068
  %3937 = vmatpush.msra.mxu0 %v1067
  %3938 = vmatpush.msra.mxu0 %v1066
  %3939 = vmatmul.f32.gmra.mxu0 %v3707
  %v3940 = vpop.f32.mrf.mxu0
  %v3941 = vadd.f32 %v3900, %v3940
  %3942 = vmatmul.f32.gmra.mxu0 %v3709
  %v3943 = vpop.f32.mrf.mxu0
  %v3944 = vadd.f32 %v3903, %v3943
  %3945 = vmatmul.f32.gmra.mxu0 %v3711
  %v3946 = vpop.f32.mrf.mxu0
  %v3947 = vadd.f32 %v3906, %v3946
  %3948 = vmatmul.f32.gmra.mxu0 %v3713
  %v3949 = vpop.f32.mrf.mxu0
  %v3950 = vadd.f32 %v3909, %v3949
  %3951 = vmatmul.f32.gmra.mxu0 %v3715
  %v3952 = vpop.f32.mrf.mxu0
  %v3953 = vadd.f32 %v3912, %v3952
  %3954 = vmatmul.f32.gmra.mxu0 %v3717
  %v3955 = vpop.f32.mrf.mxu0
  %v3956 = vadd.f32 %v3915, %v3955
  %3957 = vmatmul.f32.gmra.mxu0 %v3719
  %v3958 = vpop.f32.mrf.mxu0
  %v3959 = vadd.f32 %v3918, %v3958
  %3960 = vmatmul.f32.gmra.mxu0 %v3721
  %v3961 = vpop.f32.mrf.mxu0
  %v3962 = vadd.f32 %v3921, %v3961
  %3963 = vdwg.mxu0
  %v3965 = vsel %vm535, %v3941, 0
  %v3968 = vsel %vm535, %v3944, 0
  %v3971 = vsel %vm535, %v3947, 0
  %v3974 = vsel %vm535, %v3950, 0
  %v3977 = vsel %vm535, %v3953, 0
  %v3980 = vsel %vm535, %v3956, 0
  %v3983 = vsel %vm535, %v3959, 0
  %v3986 = vsel %vm535, %v3962, 0
  %3988 = vmatpush.msra.mxu0 0.0
  %3989 = vmatpush.msra.mxu0 0.0
  %3990 = vmatpush.msra.mxu0 0.0
  %3991 = vmatpush.msra.mxu0 0.0
  %3992 = vmatpush.msra.mxu0 0.0
  %3993 = vmatpush.msra.mxu0 0.0
  %3994 = vmatpush.msra.mxu0 0.0
  %3995 = vmatpush.msra.mxu0 0.0
  %3996 = vmatpush.msra.mxu0 0.0
  %3997 = vmatpush.msra.mxu0 0.0
  %3998 = vmatpush.msra.mxu0 0.0
  %3999 = vmatpush.msra.mxu0 0.0
  %4000 = vmatpush.msra.mxu0 0.0
  %4001 = vmatpush.msra.mxu0 0.0
  %4002 = vmatpush.msra.mxu0 0.0
  %4003 = vmatpush.msra.mxu0 %v3831
  %4004 = vmatmul.f32.gmra.mxu0 %v3965
  %v4005 = vpop.f32.mrf.mxu0
  %v4006 = vadd.f32 0.0, %v4005
  %4007 = vmatmul.f32.gmra.mxu0 %v3968
  %v4008 = vpop.f32.mrf.mxu0
  %v4009 = vadd.f32 0.0, %v4008
  %4010 = vmatmul.f32.gmra.mxu0 %v3971
  %v4011 = vpop.f32.mrf.mxu0
  %v4012 = vadd.f32 0.0, %v4011
  %4013 = vmatmul.f32.gmra.mxu0 %v3974
  %v4014 = vpop.f32.mrf.mxu0
  %v4015 = vadd.f32 0.0, %v4014
  %4016 = vmatmul.f32.gmra.mxu0 %v3977
  %v4017 = vpop.f32.mrf.mxu0
  %v4018 = vadd.f32 0.0, %v4017
  %4019 = vmatmul.f32.gmra.mxu0 %v3980
  %v4020 = vpop.f32.mrf.mxu0
  %v4021 = vadd.f32 0.0, %v4020
  %4022 = vmatmul.f32.gmra.mxu0 %v3983
  %v4023 = vpop.f32.mrf.mxu0
  %v4024 = vadd.f32 0.0, %v4023
  %4025 = vmatmul.f32.gmra.mxu0 %v3986
  %v4026 = vpop.f32.mrf.mxu0
  %v4027 = vadd.f32 0.0, %v4026
  %4028 = vdwg.mxu0
  %v4029 = vadd.f32 %v3697, %v4006
  %v4030 = vadd.f32 %v3698, %v4009
  %v4031 = vadd.f32 %v3699, %v4012
  %v4032 = vadd.f32 %v3700, %v4015
  %v4033 = vadd.f32 %v3701, %v4018
  %v4034 = vadd.f32 %v3702, %v4021
  %v4035 = vadd.f32 %v3703, %v4024
  %v4036 = vadd.f32 %v3704, %v4027
  %v4037 = vld [vmem:[%s6] sm:$0x1]
  %v4038 = vld [vmem:[%s7] sm:$0x1]
  %vm4039 = vcmask 64512
  %v4040 = vsel %vm4039, %v3874, 0.0
  %v4041 = vsel %vm4039, %v3875, 0.0
  %v4042 = vadd.f32 %v4040, %v4041
  %v4043 = vsel %vm4039, %v3876, 0.0
  %v4044 = vadd.f32 %v4042, %v4043
  %v4045 = vsel %vm4039, %v3877, 0.0
  %v4046 = vadd.f32 %v4044, %v4045
  %v4047 = vsel %vm4039, %v3878, 0.0
  %v4048 = vadd.f32 %v4046, %v4047
  %v4049 = vsel %vm4039, %v3879, 0.0
  %v4050 = vadd.f32 %v4048, %v4049
  %v4051 = vsel %vm4039, %v3880, 0.0
  %v4052 = vadd.f32 %v4050, %v4051
  %v4053 = vsel %vm4039, %v3881, 0.0
  %v4054 = vadd.f32 %v4052, %v4053
  %v4055 = vrot.slane %v4054, 4
  %v4056 = vadd.f32 %v4054, %v4055
  %v4057 = vrot.slane %v4056, 2
  %v4058 = vadd.f32 %v4056, %v4057
  %v4059 = vrot.slane %v4058, 1
  %v4060 = vadd.f32 %v4058, %v4059
  %v4061 = vmul.f32 %v3874, %v3874
  %v4062 = vmul.f32 %v3875, %v3875
  %v4063 = vmul.f32 %v3876, %v3876
  %v4064 = vmul.f32 %v3877, %v3877
  %v4065 = vmul.f32 %v3878, %v3878
  %v4066 = vmul.f32 %v3879, %v3879
  %v4067 = vmul.f32 %v3880, %v3880
  %v4068 = vmul.f32 %v3881, %v3881
  %v4069 = vsel %vm4039, %v4061, 0.0
  %v4070 = vsel %vm4039, %v4062, 0.0
  %v4071 = vadd.f32 %v4069, %v4070
  %v4072 = vsel %vm4039, %v4063, 0.0
  %v4073 = vadd.f32 %v4071, %v4072
  %v4074 = vsel %vm4039, %v4064, 0.0
  %v4075 = vadd.f32 %v4073, %v4074
  %v4076 = vsel %vm4039, %v4065, 0.0
  %v4077 = vadd.f32 %v4075, %v4076
  %v4078 = vsel %vm4039, %v4066, 0.0
  %v4079 = vadd.f32 %v4077, %v4078
  %v4080 = vsel %vm4039, %v4067, 0.0
  %v4081 = vadd.f32 %v4079, %v4080
  %v4082 = vsel %vm4039, %v4068, 0.0
  %v4083 = vadd.f32 %v4081, %v4082
  %v4084 = vrot.slane %v4083, 4
  %v4085 = vadd.f32 %v4083, %v4084
  %v4086 = vrot.slane %v4085, 2
  %v4087 = vadd.f32 %v4085, %v4086
  %v4088 = vrot.slane %v4087, 1
  %v4089 = vadd.f32 %v4087, %v4088
  %v4090 = vsel %vm4039, %v4029, 0.0
  %v4091 = vsel %vm4039, %v4030, 0.0
  %v4092 = vadd.f32 %v4090, %v4091
  %v4093 = vsel %vm4039, %v4031, 0.0
  %v4094 = vadd.f32 %v4092, %v4093
  %v4095 = vsel %vm4039, %v4032, 0.0
  %v4096 = vadd.f32 %v4094, %v4095
  %v4097 = vsel %vm4039, %v4033, 0.0
  %v4098 = vadd.f32 %v4096, %v4097
  %v4099 = vsel %vm4039, %v4034, 0.0
  %v4100 = vadd.f32 %v4098, %v4099
  %v4101 = vsel %vm4039, %v4035, 0.0
  %v4102 = vadd.f32 %v4100, %v4101
  %v4103 = vsel %vm4039, %v4036, 0.0
  %v4104 = vadd.f32 %v4102, %v4103
  %v4105 = vrot.slane %v4104, 4
  %v4106 = vadd.f32 %v4104, %v4105
  %v4107 = vrot.slane %v4106, 2
  %v4108 = vadd.f32 %v4106, %v4107
  %v4109 = vrot.slane %v4108, 1
  %v4110 = vadd.f32 %v4108, %v4109
  %v4111 = vadd.f32 %v4060, %v4110
  %v4112 = vmul.f32 %v4029, %v4029
  %v4113 = vmul.f32 %v4030, %v4030
  %v4114 = vmul.f32 %v4031, %v4031
  %v4115 = vmul.f32 %v4032, %v4032
  %v4116 = vmul.f32 %v4033, %v4033
  %v4117 = vmul.f32 %v4034, %v4034
  %v4118 = vmul.f32 %v4035, %v4035
  %v4119 = vmul.f32 %v4036, %v4036
  %v4120 = vsel %vm4039, %v4112, 0.0
  %v4121 = vsel %vm4039, %v4113, 0.0
  %v4122 = vadd.f32 %v4120, %v4121
  %v4123 = vsel %vm4039, %v4114, 0.0
  %v4124 = vadd.f32 %v4122, %v4123
  %v4125 = vsel %vm4039, %v4115, 0.0
  %v4126 = vadd.f32 %v4124, %v4125
  %v4127 = vsel %vm4039, %v4116, 0.0
  %v4128 = vadd.f32 %v4126, %v4127
  %v4129 = vsel %vm4039, %v4117, 0.0
  %v4130 = vadd.f32 %v4128, %v4129
  %v4131 = vsel %vm4039, %v4118, 0.0
  %v4132 = vadd.f32 %v4130, %v4131
  %v4133 = vsel %vm4039, %v4119, 0.0
  %v4134 = vadd.f32 %v4132, %v4133
  %v4135 = vrot.slane %v4134, 4
  %v4136 = vadd.f32 %v4134, %v4135
  %v4137 = vrot.slane %v4136, 2
  %v4138 = vadd.f32 %v4136, %v4137
  %v4139 = vrot.slane %v4138, 1
  %v4140 = vadd.f32 %v4138, %v4139
  %v4141 = vadd.f32 %v4089, %v4140
  %v4142 = vmul.f32 %v4111, 0.0078125
  %v4143 = vmul.f32 %v4141, 0.0078125
  %v4144 = vmul.f32 %v4142, %v4142
  %v4145 = vsub.f32 %v4143, %v4144
  %v4146 = vadd.f32 %v4145, 1e-05
  %v4147 = vrsqrt.pop %v4146
  %v4148 = vmul.f32 %v4147, %v4146
  %v4149 = vmul.f32 %v4148, %v4147
  %v4150 = vmul.f32 0.5, %v4149
  %v4151 = vsub.f32 1.5, %v4150
  %v4152 = vmul.f32 %v4147, %v4151
  %vm4153 = vweird.f32 %v4146
  %vm4154 = vweird.f32 %v4147
  %vm4155 = vmor %vm4153, %vm4154
  %v4156 = vsel %vm4155, %v4147, %v4152
  %v4157 = vmul.f32 %v4037, %v4156
  %v4158 = vmul.f32 %v4142, %v4157
  %v4159 = vsub.f32 %v4038, %v4158
  %v4161 = vperm.slane %v4157, 0
  %v4163 = vmul.f32 %v3874, %v4161
  %v4164 = vmul.f32 %v3875, %v4161
  %v4165 = vmul.f32 %v3876, %v4161
  %v4166 = vmul.f32 %v3877, %v4161
  %v4167 = vmul.f32 %v3878, %v4161
  %v4168 = vmul.f32 %v3879, %v4161
  %v4169 = vmul.f32 %v3880, %v4161
  %v4170 = vmul.f32 %v3881, %v4161
  %v4172 = vperm.slane %v4159, 0
  %v4174 = vadd.f32 %v4163, %v4172
  %v4175 = vadd.f32 %v4164, %v4172
  %v4176 = vadd.f32 %v4165, %v4172
  %v4177 = vadd.f32 %v4166, %v4172
  %v4178 = vadd.f32 %v4167, %v4172
  %v4179 = vadd.f32 %v4168, %v4172
  %v4180 = vadd.f32 %v4169, %v4172
  %v4181 = vadd.f32 %v4170, %v4172
  %v4182 = vmax.f32 %v4174, 0.0
  %v4183 = vmax.f32 %v4175, 0.0
  %v4184 = vmax.f32 %v4176, 0.0
  %v4185 = vmax.f32 %v4177, 0.0
  %v4186 = vmax.f32 %v4178, 0.0
  %v4187 = vmax.f32 %v4179, 0.0
  %v4188 = vmax.f32 %v4180, 0.0
  %v4189 = vmax.f32 %v4181, 0.0
  %v4190 = vmul.f32 %v4029, %v4161
  %v4191 = vmul.f32 %v4030, %v4161
  %v4192 = vmul.f32 %v4031, %v4161
  %v4193 = vmul.f32 %v4032, %v4161
  %v4194 = vmul.f32 %v4033, %v4161
  %v4195 = vmul.f32 %v4034, %v4161
  %v4196 = vmul.f32 %v4035, %v4161
  %v4197 = vmul.f32 %v4036, %v4161
  %v4198 = vadd.f32 %v4190, %v4172
  %v4199 = vadd.f32 %v4191, %v4172
  %v4200 = vadd.f32 %v4192, %v4172
  %v4201 = vadd.f32 %v4193, %v4172
  %v4202 = vadd.f32 %v4194, %v4172
  %v4203 = vadd.f32 %v4195, %v4172
  %v4204 = vadd.f32 %v4196, %v4172
  %v4205 = vadd.f32 %v4197, %v4172
  %v4206 = vmax.f32 %v4198, 0.0
  %v4207 = vmax.f32 %v4199, 0.0
  %v4208 = vmax.f32 %v4200, 0.0
  %v4209 = vmax.f32 %v4201, 0.0
  %v4210 = vmax.f32 %v4202, 0.0
  %v4211 = vmax.f32 %v4203, 0.0
  %v4212 = vmax.f32 %v4204, 0.0
  %v4213 = vmax.f32 %v4205, 0.0
  %v4214 = vld [vmem:[%s8] sm:$0xff]
  %v4215 = vld [vmem:[%s8 + $0x8] sm:$0xff]
  %v4216 = vld [vmem:[%s9] sm:$0xff]
  %vm4217 = vcmask 523264
  %v4219 = vsel %vm4217, %v4214, 0
  %v4222 = vsel %vm4217, %v4215, 0
  %4224 = vmatpush.msra.mxu0 0.0
  %4225 = vmatpush.msra.mxu0 0.0
  %4226 = vmatpush.msra.mxu0 0.0
  %4227 = vmatpush.msra.mxu0 0.0
  %4228 = vmatpush.msra.mxu0 0.0
  %4229 = vmatpush.msra.mxu0 0.0
  %4230 = vmatpush.msra.mxu0 0.0
  %4231 = vmatpush.msra.mxu0 0.0
  %4232 = vmatpush.msra.mxu0 %v4189
  %4233 = vmatpush.msra.mxu0 %v4188
  %4234 = vmatpush.msra.mxu0 %v4187
  %4235 = vmatpush.msra.mxu0 %v4186
  %4236 = vmatpush.msra.mxu0 %v4185
  %4237 = vmatpush.msra.mxu0 %v4184
  %4238 = vmatpush.msra.mxu0 %v4183
  %4239 = vmatpush.msra.mxu0 %v4182
  %4240 = vmatmul.f32.gmra.mxu0 %v4219
  %v4241 = vpop.f32.mrf.mxu0
  %v4242 = vadd.f32 0.0, %v4241
  %4243 = vmatmul.f32.gmra.mxu0 %v4222
  %v4244 = vpop.f32.mrf.mxu0
  %v4245 = vadd.f32 0.0, %v4244
  %4246 = vdwg.mxu0
  %4247 = vmatpush.msra.mxu0 0.0
  %4248 = vmatpush.msra.mxu0 0.0
  %4249 = vmatpush.msra.mxu0 0.0
  %4250 = vmatpush.msra.mxu0 0.0
  %4251 = vmatpush.msra.mxu0 0.0
  %4252 = vmatpush.msra.mxu0 0.0
  %4253 = vmatpush.msra.mxu0 0.0
  %4254 = vmatpush.msra.mxu0 0.0
  %4255 = vmatpush.msra.mxu0 %v4213
  %4256 = vmatpush.msra.mxu0 %v4212
  %4257 = vmatpush.msra.mxu0 %v4211
  %4258 = vmatpush.msra.mxu0 %v4210
  %4259 = vmatpush.msra.mxu0 %v4209
  %4260 = vmatpush.msra.mxu0 %v4208
  %4261 = vmatpush.msra.mxu0 %v4207
  %4262 = vmatpush.msra.mxu0 %v4206
  %4263 = vmatmul.f32.gmra.mxu0 %v4219
  %v4264 = vpop.f32.mrf.mxu0
  %v4265 = vadd.f32 0.0, %v4264
  %4266 = vmatmul.f32.gmra.mxu0 %v4222
  %v4267 = vpop.f32.mrf.mxu0
  %v4268 = vadd.f32 0.0, %v4267
  %4269 = vdwg.mxu0
  %s4270 = scalar_lea.vmem %s8, 16
  %v4271 = vld [vmem:[%s4270] sm:$0xff]
  %v4272 = vld [vmem:[%s4270 + $0x8] sm:$0xff]
  %s4273 = scalar_lea.vmem %s9, 8
  %v4274 = vld [vmem:[%s4273] sm:$0xff]
  %v4276 = vsel %vm4217, %v4271, 0
  %v4279 = vsel %vm4217, %v4272, 0
  %4281 = vmatpush.msra.mxu0 0.0
  %4282 = vmatpush.msra.mxu0 0.0
  %4283 = vmatpush.msra.mxu0 0.0
  %4284 = vmatpush.msra.mxu0 0.0
  %4285 = vmatpush.msra.mxu0 0.0
  %4286 = vmatpush.msra.mxu0 0.0
  %4287 = vmatpush.msra.mxu0 0.0
  %4288 = vmatpush.msra.mxu0 0.0
  %4289 = vmatpush.msra.mxu0 %v4189
  %4290 = vmatpush.msra.mxu0 %v4188
  %4291 = vmatpush.msra.mxu0 %v4187
  %4292 = vmatpush.msra.mxu0 %v4186
  %4293 = vmatpush.msra.mxu0 %v4185
  %4294 = vmatpush.msra.mxu0 %v4184
  %4295 = vmatpush.msra.mxu0 %v4183
  %4296 = vmatpush.msra.mxu0 %v4182
  %4297 = vmatmul.f32.gmra.mxu0 %v4276
  %v4298 = vpop.f32.mrf.mxu0
  %v4299 = vadd.f32 0.0, %v4298
  %4300 = vmatmul.f32.gmra.mxu0 %v4279
  %v4301 = vpop.f32.mrf.mxu0
  %v4302 = vadd.f32 0.0, %v4301
  %4303 = vdwg.mxu0
  %v4305 = vsel %vm4039, %v4299, 0
  %v4308 = vsel %vm4039, %v4302, 0
  %4310 = vmatpush.msra.mxu0 0.0
  %4311 = vmatpush.msra.mxu0 0.0
  %4312 = vmatpush.msra.mxu0 0.0
  %4313 = vmatpush.msra.mxu0 0.0
  %4314 = vmatpush.msra.mxu0 0.0
  %4315 = vmatpush.msra.mxu0 0.0
  %4316 = vmatpush.msra.mxu0 0.0
  %4317 = vmatpush.msra.mxu0 0.0
  %4318 = vmatpush.msra.mxu0 0.0
  %4319 = vmatpush.msra.mxu0 0.0
  %4320 = vmatpush.msra.mxu0 0.0
  %4321 = vmatpush.msra.mxu0 0.0
  %4322 = vmatpush.msra.mxu0 0.0
  %4323 = vmatpush.msra.mxu0 0.0
  %4324 = vmatpush.msra.mxu0 0.0
  %4325 = vmatpush.msra.mxu0 %v4274
  %4326 = vmatmul.f32.gmra.mxu0 %v4305
  %v4327 = vpop.f32.mrf.mxu0
  %v4328 = vadd.f32 0.0, %v4327
  %4329 = vmatmul.f32.gmra.mxu0 %v4308
  %v4330 = vpop.f32.mrf.mxu0
  %v4331 = vadd.f32 0.0, %v4330
  %4332 = vdwg.mxu0
  %v4334 = vsel %vm4039, %v4242, 0
  %v4337 = vsel %vm4039, %v4245, 0
  %4339 = vmatpush.msra.mxu0 0.0
  %4340 = vmatpush.msra.mxu0 0.0
  %4341 = vmatpush.msra.mxu0 0.0
  %4342 = vmatpush.msra.mxu0 0.0
  %4343 = vmatpush.msra.mxu0 0.0
  %4344 = vmatpush.msra.mxu0 0.0
  %4345 = vmatpush.msra.mxu0 0.0
  %4346 = vmatpush.msra.mxu0 0.0
  %4347 = vmatpush.msra.mxu0 0.0
  %4348 = vmatpush.msra.mxu0 0.0
  %4349 = vmatpush.msra.mxu0 0.0
  %4350 = vmatpush.msra.mxu0 0.0
  %4351 = vmatpush.msra.mxu0 0.0
  %4352 = vmatpush.msra.mxu0 0.0
  %4353 = vmatpush.msra.mxu0 0.0
  %4354 = vmatpush.msra.mxu0 %v4216
  %4355 = vmatmul.f32.gmra.mxu0 %v4334
  %v4356 = vpop.f32.mrf.mxu0
  %v4357 = vadd.f32 %v4328, %v4356
  %4358 = vmatmul.f32.gmra.mxu0 %v4337
  %v4359 = vpop.f32.mrf.mxu0
  %v4360 = vadd.f32 %v4331, %v4359
  %4361 = vdwg.mxu0
  %4362 = vmatpush.msra.mxu0 0.0
  %4363 = vmatpush.msra.mxu0 0.0
  %4364 = vmatpush.msra.mxu0 0.0
  %4365 = vmatpush.msra.mxu0 0.0
  %4366 = vmatpush.msra.mxu0 0.0
  %4367 = vmatpush.msra.mxu0 0.0
  %4368 = vmatpush.msra.mxu0 0.0
  %4369 = vmatpush.msra.mxu0 0.0
  %4370 = vmatpush.msra.mxu0 %v4213
  %4371 = vmatpush.msra.mxu0 %v4212
  %4372 = vmatpush.msra.mxu0 %v4211
  %4373 = vmatpush.msra.mxu0 %v4210
  %4374 = vmatpush.msra.mxu0 %v4209
  %4375 = vmatpush.msra.mxu0 %v4208
  %4376 = vmatpush.msra.mxu0 %v4207
  %4377 = vmatpush.msra.mxu0 %v4206
  %4378 = vmatmul.f32.gmra.mxu0 %v4276
  %v4379 = vpop.f32.mrf.mxu0
  %v4380 = vadd.f32 0.0, %v4379
  %4381 = vmatmul.f32.gmra.mxu0 %v4279
  %v4382 = vpop.f32.mrf.mxu0
  %v4383 = vadd.f32 0.0, %v4382
  %4384 = vdwg.mxu0
  %v4386 = vsel %vm4039, %v4380, 0
  %v4389 = vsel %vm4039, %v4383, 0
  %4391 = vmatpush.msra.mxu0 0.0
  %4392 = vmatpush.msra.mxu0 0.0
  %4393 = vmatpush.msra.mxu0 0.0
  %4394 = vmatpush.msra.mxu0 0.0
  %4395 = vmatpush.msra.mxu0 0.0
  %4396 = vmatpush.msra.mxu0 0.0
  %4397 = vmatpush.msra.mxu0 0.0
  %4398 = vmatpush.msra.mxu0 0.0
  %4399 = vmatpush.msra.mxu0 0.0
  %4400 = vmatpush.msra.mxu0 0.0
  %4401 = vmatpush.msra.mxu0 0.0
  %4402 = vmatpush.msra.mxu0 0.0
  %4403 = vmatpush.msra.mxu0 0.0
  %4404 = vmatpush.msra.mxu0 0.0
  %4405 = vmatpush.msra.mxu0 0.0
  %4406 = vmatpush.msra.mxu0 %v4274
  %4407 = vmatmul.f32.gmra.mxu0 %v4386
  %v4408 = vpop.f32.mrf.mxu0
  %v4409 = vadd.f32 0.0, %v4408
  %4410 = vmatmul.f32.gmra.mxu0 %v4389
  %v4411 = vpop.f32.mrf.mxu0
  %v4412 = vadd.f32 0.0, %v4411
  %4413 = vdwg.mxu0
  %v4415 = vsel %vm4039, %v4265, 0
  %v4418 = vsel %vm4039, %v4268, 0
  %4420 = vmatpush.msra.mxu0 0.0
  %4421 = vmatpush.msra.mxu0 0.0
  %4422 = vmatpush.msra.mxu0 0.0
  %4423 = vmatpush.msra.mxu0 0.0
  %4424 = vmatpush.msra.mxu0 0.0
  %4425 = vmatpush.msra.mxu0 0.0
  %4426 = vmatpush.msra.mxu0 0.0
  %4427 = vmatpush.msra.mxu0 0.0
  %4428 = vmatpush.msra.mxu0 0.0
  %4429 = vmatpush.msra.mxu0 0.0
  %4430 = vmatpush.msra.mxu0 0.0
  %4431 = vmatpush.msra.mxu0 0.0
  %4432 = vmatpush.msra.mxu0 0.0
  %4433 = vmatpush.msra.mxu0 0.0
  %4434 = vmatpush.msra.mxu0 0.0
  %4435 = vmatpush.msra.mxu0 %v4216
  %4436 = vmatmul.f32.gmra.mxu0 %v4415
  %v4437 = vpop.f32.mrf.mxu0
  %v4438 = vadd.f32 %v4409, %v4437
  %4439 = vmatmul.f32.gmra.mxu0 %v4418
  %v4440 = vpop.f32.mrf.mxu0
  %v4441 = vadd.f32 %v4412, %v4440
  %4442 = vdwg.mxu0
  %s4443 = scalar_lea.vmem %s8, 32
  %v4444 = vld [vmem:[%s4443] sm:$0xff]
  %v4445 = vld [vmem:[%s4443 + $0x8] sm:$0xff]
  %s4446 = scalar_lea.vmem %s9, 16
  %v4447 = vld [vmem:[%s4446] sm:$0xff]
  %v4449 = vsel %vm4217, %v4444, 0
  %v4452 = vsel %vm4217, %v4445, 0
  %4454 = vmatpush.msra.mxu0 0.0
  %4455 = vmatpush.msra.mxu0 0.0
  %4456 = vmatpush.msra.mxu0 0.0
  %4457 = vmatpush.msra.mxu0 0.0
  %4458 = vmatpush.msra.mxu0 0.0
  %4459 = vmatpush.msra.mxu0 0.0
  %4460 = vmatpush.msra.mxu0 0.0
  %4461 = vmatpush.msra.mxu0 0.0
  %4462 = vmatpush.msra.mxu0 %v4189
  %4463 = vmatpush.msra.mxu0 %v4188
  %4464 = vmatpush.msra.mxu0 %v4187
  %4465 = vmatpush.msra.mxu0 %v4186
  %4466 = vmatpush.msra.mxu0 %v4185
  %4467 = vmatpush.msra.mxu0 %v4184
  %4468 = vmatpush.msra.mxu0 %v4183
  %4469 = vmatpush.msra.mxu0 %v4182
  %4470 = vmatmul.f32.gmra.mxu0 %v4449
  %v4471 = vpop.f32.mrf.mxu0
  %v4472 = vadd.f32 0.0, %v4471
  %4473 = vmatmul.f32.gmra.mxu0 %v4452
  %v4474 = vpop.f32.mrf.mxu0
  %v4475 = vadd.f32 0.0, %v4474
  %4476 = vdwg.mxu0
  %v4478 = vsel %vm4039, %v4472, 0
  %v4481 = vsel %vm4039, %v4475, 0
  %4483 = vmatpush.msra.mxu0 0.0
  %4484 = vmatpush.msra.mxu0 0.0
  %4485 = vmatpush.msra.mxu0 0.0
  %4486 = vmatpush.msra.mxu0 0.0
  %4487 = vmatpush.msra.mxu0 0.0
  %4488 = vmatpush.msra.mxu0 0.0
  %4489 = vmatpush.msra.mxu0 0.0
  %4490 = vmatpush.msra.mxu0 0.0
  %4491 = vmatpush.msra.mxu0 0.0
  %4492 = vmatpush.msra.mxu0 0.0
  %4493 = vmatpush.msra.mxu0 0.0
  %4494 = vmatpush.msra.mxu0 0.0
  %4495 = vmatpush.msra.mxu0 0.0
  %4496 = vmatpush.msra.mxu0 0.0
  %4497 = vmatpush.msra.mxu0 0.0
  %4498 = vmatpush.msra.mxu0 %v4447
  %4499 = vmatmul.f32.gmra.mxu0 %v4478
  %v4500 = vpop.f32.mrf.mxu0
  %v4501 = vadd.f32 0.0, %v4500
  %4502 = vmatmul.f32.gmra.mxu0 %v4481
  %v4503 = vpop.f32.mrf.mxu0
  %v4504 = vadd.f32 0.0, %v4503
  %4505 = vdwg.mxu0
  %v4506 = vadd.f32 %v4357, %v4501
  %v4507 = vadd.f32 %v4360, %v4504
  %4508 = vmatpush.msra.mxu0 0.0
  %4509 = vmatpush.msra.mxu0 0.0
  %4510 = vmatpush.msra.mxu0 0.0
  %4511 = vmatpush.msra.mxu0 0.0
  %4512 = vmatpush.msra.mxu0 0.0
  %4513 = vmatpush.msra.mxu0 0.0
  %4514 = vmatpush.msra.mxu0 0.0
  %4515 = vmatpush.msra.mxu0 0.0
  %4516 = vmatpush.msra.mxu0 %v4213
  %4517 = vmatpush.msra.mxu0 %v4212
  %4518 = vmatpush.msra.mxu0 %v4211
  %4519 = vmatpush.msra.mxu0 %v4210
  %4520 = vmatpush.msra.mxu0 %v4209
  %4521 = vmatpush.msra.mxu0 %v4208
  %4522 = vmatpush.msra.mxu0 %v4207
  %4523 = vmatpush.msra.mxu0 %v4206
  %4524 = vmatmul.f32.gmra.mxu0 %v4449
  %v4525 = vpop.f32.mrf.mxu0
  %v4526 = vadd.f32 0.0, %v4525
  %4527 = vmatmul.f32.gmra.mxu0 %v4452
  %v4528 = vpop.f32.mrf.mxu0
  %v4529 = vadd.f32 0.0, %v4528
  %4530 = vdwg.mxu0
  %v4532 = vsel %vm4039, %v4526, 0
  %v4535 = vsel %vm4039, %v4529, 0
  %4537 = vmatpush.msra.mxu0 0.0
  %4538 = vmatpush.msra.mxu0 0.0
  %4539 = vmatpush.msra.mxu0 0.0
  %4540 = vmatpush.msra.mxu0 0.0
  %4541 = vmatpush.msra.mxu0 0.0
  %4542 = vmatpush.msra.mxu0 0.0
  %4543 = vmatpush.msra.mxu0 0.0
  %4544 = vmatpush.msra.mxu0 0.0
  %4545 = vmatpush.msra.mxu0 0.0
  %4546 = vmatpush.msra.mxu0 0.0
  %4547 = vmatpush.msra.mxu0 0.0
  %4548 = vmatpush.msra.mxu0 0.0
  %4549 = vmatpush.msra.mxu0 0.0
  %4550 = vmatpush.msra.mxu0 0.0
  %4551 = vmatpush.msra.mxu0 0.0
  %4552 = vmatpush.msra.mxu0 %v4447
  %4553 = vmatmul.f32.gmra.mxu0 %v4532
  %v4554 = vpop.f32.mrf.mxu0
  %v4555 = vadd.f32 0.0, %v4554
  %4556 = vmatmul.f32.gmra.mxu0 %v4535
  %v4557 = vpop.f32.mrf.mxu0
  %v4558 = vadd.f32 0.0, %v4557
  %4559 = vdwg.mxu0
  %v4560 = vadd.f32 %v4438, %v4555
  %v4561 = vadd.f32 %v4441, %v4558
  %s4562 = scalar_lea.vmem %s8, 48
  %v4563 = vld [vmem:[%s4562] sm:$0xff]
  %v4564 = vld [vmem:[%s4562 + $0x8] sm:$0xff]
  %s4565 = scalar_lea.vmem %s9, 24
  %v4566 = vld [vmem:[%s4565] sm:$0xff]
  %v4568 = vsel %vm4217, %v4563, 0
  %v4571 = vsel %vm4217, %v4564, 0
  %4573 = vmatpush.msra.mxu0 0.0
  %4574 = vmatpush.msra.mxu0 0.0
  %4575 = vmatpush.msra.mxu0 0.0
  %4576 = vmatpush.msra.mxu0 0.0
  %4577 = vmatpush.msra.mxu0 0.0
  %4578 = vmatpush.msra.mxu0 0.0
  %4579 = vmatpush.msra.mxu0 0.0
  %4580 = vmatpush.msra.mxu0 0.0
  %4581 = vmatpush.msra.mxu0 %v4189
  %4582 = vmatpush.msra.mxu0 %v4188
  %4583 = vmatpush.msra.mxu0 %v4187
  %4584 = vmatpush.msra.mxu0 %v4186
  %4585 = vmatpush.msra.mxu0 %v4185
  %4586 = vmatpush.msra.mxu0 %v4184
  %4587 = vmatpush.msra.mxu0 %v4183
  %4588 = vmatpush.msra.mxu0 %v4182
  %4589 = vmatmul.f32.gmra.mxu0 %v4568
  %v4590 = vpop.f32.mrf.mxu0
  %v4591 = vadd.f32 0.0, %v4590
  %4592 = vmatmul.f32.gmra.mxu0 %v4571
  %v4593 = vpop.f32.mrf.mxu0
  %v4594 = vadd.f32 0.0, %v4593
  %4595 = vdwg.mxu0
  %v4597 = vsel %vm4039, %v4591, 0
  %v4600 = vsel %vm4039, %v4594, 0
  %4602 = vmatpush.msra.mxu0 0.0
  %4603 = vmatpush.msra.mxu0 0.0
  %4604 = vmatpush.msra.mxu0 0.0
  %4605 = vmatpush.msra.mxu0 0.0
  %4606 = vmatpush.msra.mxu0 0.0
  %4607 = vmatpush.msra.mxu0 0.0
  %4608 = vmatpush.msra.mxu0 0.0
  %4609 = vmatpush.msra.mxu0 0.0
  %4610 = vmatpush.msra.mxu0 0.0
  %4611 = vmatpush.msra.mxu0 0.0
  %4612 = vmatpush.msra.mxu0 0.0
  %4613 = vmatpush.msra.mxu0 0.0
  %4614 = vmatpush.msra.mxu0 0.0
  %4615 = vmatpush.msra.mxu0 0.0
  %4616 = vmatpush.msra.mxu0 0.0
  %4617 = vmatpush.msra.mxu0 %v4566
  %4618 = vmatmul.f32.gmra.mxu0 %v4597
  %v4619 = vpop.f32.mrf.mxu0
  %v4620 = vadd.f32 0.0, %v4619
  %4621 = vmatmul.f32.gmra.mxu0 %v4600
  %v4622 = vpop.f32.mrf.mxu0
  %v4623 = vadd.f32 0.0, %v4622
  %4624 = vdwg.mxu0
  %v4625 = vadd.f32 %v4506, %v4620
  %v4626 = vadd.f32 %v4507, %v4623
  %4627 = vmatpush.msra.mxu0 0.0
  %4628 = vmatpush.msra.mxu0 0.0
  %4629 = vmatpush.msra.mxu0 0.0
  %4630 = vmatpush.msra.mxu0 0.0
  %4631 = vmatpush.msra.mxu0 0.0
  %4632 = vmatpush.msra.mxu0 0.0
  %4633 = vmatpush.msra.mxu0 0.0
  %4634 = vmatpush.msra.mxu0 0.0
  %4635 = vmatpush.msra.mxu0 %v4213
  %4636 = vmatpush.msra.mxu0 %v4212
  %4637 = vmatpush.msra.mxu0 %v4211
  %4638 = vmatpush.msra.mxu0 %v4210
  %4639 = vmatpush.msra.mxu0 %v4209
  %4640 = vmatpush.msra.mxu0 %v4208
  %4641 = vmatpush.msra.mxu0 %v4207
  %4642 = vmatpush.msra.mxu0 %v4206
  %4643 = vmatmul.f32.gmra.mxu0 %v4568
  %v4644 = vpop.f32.mrf.mxu0
  %v4645 = vadd.f32 0.0, %v4644
  %4646 = vmatmul.f32.gmra.mxu0 %v4571
  %v4647 = vpop.f32.mrf.mxu0
  %v4648 = vadd.f32 0.0, %v4647
  %4649 = vdwg.mxu0
  %v4651 = vsel %vm4039, %v4645, 0
  %v4654 = vsel %vm4039, %v4648, 0
  %4656 = vmatpush.msra.mxu0 0.0
  %4657 = vmatpush.msra.mxu0 0.0
  %4658 = vmatpush.msra.mxu0 0.0
  %4659 = vmatpush.msra.mxu0 0.0
  %4660 = vmatpush.msra.mxu0 0.0
  %4661 = vmatpush.msra.mxu0 0.0
  %4662 = vmatpush.msra.mxu0 0.0
  %4663 = vmatpush.msra.mxu0 0.0
  %4664 = vmatpush.msra.mxu0 0.0
  %4665 = vmatpush.msra.mxu0 0.0
  %4666 = vmatpush.msra.mxu0 0.0
  %4667 = vmatpush.msra.mxu0 0.0
  %4668 = vmatpush.msra.mxu0 0.0
  %4669 = vmatpush.msra.mxu0 0.0
  %4670 = vmatpush.msra.mxu0 0.0
  %4671 = vmatpush.msra.mxu0 %v4566
  %4672 = vmatmul.f32.gmra.mxu0 %v4651
  %v4673 = vpop.f32.mrf.mxu0
  %v4674 = vadd.f32 0.0, %v4673
  %4675 = vmatmul.f32.gmra.mxu0 %v4654
  %v4676 = vpop.f32.mrf.mxu0
  %v4677 = vadd.f32 0.0, %v4676
  %4678 = vdwg.mxu0
  %v4679 = vadd.f32 %v4560, %v4674
  %v4680 = vadd.f32 %v4561, %v4677
  %s4681 = scalar_lea.vmem %s8, 64
  %v4682 = vld [vmem:[%s4681] sm:$0xff]
  %v4683 = vld [vmem:[%s4681 + $0x8] sm:$0xff]
  %s4684 = scalar_lea.vmem %s9, 32
  %v4685 = vld [vmem:[%s4684] sm:$0xff]
  %v4687 = vsel %vm4217, %v4682, 0
  %v4690 = vsel %vm4217, %v4683, 0
  %4692 = vmatpush.msra.mxu0 0.0
  %4693 = vmatpush.msra.mxu0 0.0
  %4694 = vmatpush.msra.mxu0 0.0
  %4695 = vmatpush.msra.mxu0 0.0
  %4696 = vmatpush.msra.mxu0 0.0
  %4697 = vmatpush.msra.mxu0 0.0
  %4698 = vmatpush.msra.mxu0 0.0
  %4699 = vmatpush.msra.mxu0 0.0
  %4700 = vmatpush.msra.mxu0 %v4189
  %4701 = vmatpush.msra.mxu0 %v4188
  %4702 = vmatpush.msra.mxu0 %v4187
  %4703 = vmatpush.msra.mxu0 %v4186
  %4704 = vmatpush.msra.mxu0 %v4185
  %4705 = vmatpush.msra.mxu0 %v4184
  %4706 = vmatpush.msra.mxu0 %v4183
  %4707 = vmatpush.msra.mxu0 %v4182
  %4708 = vmatmul.f32.gmra.mxu0 %v4687
  %v4709 = vpop.f32.mrf.mxu0
  %v4710 = vadd.f32 0.0, %v4709
  %4711 = vmatmul.f32.gmra.mxu0 %v4690
  %v4712 = vpop.f32.mrf.mxu0
  %v4713 = vadd.f32 0.0, %v4712
  %4714 = vdwg.mxu0
  %v4716 = vsel %vm4039, %v4710, 0
  %v4719 = vsel %vm4039, %v4713, 0
  %4721 = vmatpush.msra.mxu0 0.0
  %4722 = vmatpush.msra.mxu0 0.0
  %4723 = vmatpush.msra.mxu0 0.0
  %4724 = vmatpush.msra.mxu0 0.0
  %4725 = vmatpush.msra.mxu0 0.0
  %4726 = vmatpush.msra.mxu0 0.0
  %4727 = vmatpush.msra.mxu0 0.0
  %4728 = vmatpush.msra.mxu0 0.0
  %4729 = vmatpush.msra.mxu0 0.0
  %4730 = vmatpush.msra.mxu0 0.0
  %4731 = vmatpush.msra.mxu0 0.0
  %4732 = vmatpush.msra.mxu0 0.0
  %4733 = vmatpush.msra.mxu0 0.0
  %4734 = vmatpush.msra.mxu0 0.0
  %4735 = vmatpush.msra.mxu0 0.0
  %4736 = vmatpush.msra.mxu0 %v4685
  %4737 = vmatmul.f32.gmra.mxu0 %v4716
  %v4738 = vpop.f32.mrf.mxu0
  %v4739 = vadd.f32 0.0, %v4738
  %4740 = vmatmul.f32.gmra.mxu0 %v4719
  %v4741 = vpop.f32.mrf.mxu0
  %v4742 = vadd.f32 0.0, %v4741
  %4743 = vdwg.mxu0
  %v4744 = vadd.f32 %v4625, %v4739
  %v4745 = vadd.f32 %v4626, %v4742
  %4746 = vmatpush.msra.mxu0 0.0
  %4747 = vmatpush.msra.mxu0 0.0
  %4748 = vmatpush.msra.mxu0 0.0
  %4749 = vmatpush.msra.mxu0 0.0
  %4750 = vmatpush.msra.mxu0 0.0
  %4751 = vmatpush.msra.mxu0 0.0
  %4752 = vmatpush.msra.mxu0 0.0
  %4753 = vmatpush.msra.mxu0 0.0
  %4754 = vmatpush.msra.mxu0 %v4213
  %4755 = vmatpush.msra.mxu0 %v4212
  %4756 = vmatpush.msra.mxu0 %v4211
  %4757 = vmatpush.msra.mxu0 %v4210
  %4758 = vmatpush.msra.mxu0 %v4209
  %4759 = vmatpush.msra.mxu0 %v4208
  %4760 = vmatpush.msra.mxu0 %v4207
  %4761 = vmatpush.msra.mxu0 %v4206
  %4762 = vmatmul.f32.gmra.mxu0 %v4687
  %v4763 = vpop.f32.mrf.mxu0
  %v4764 = vadd.f32 0.0, %v4763
  %4765 = vmatmul.f32.gmra.mxu0 %v4690
  %v4766 = vpop.f32.mrf.mxu0
  %v4767 = vadd.f32 0.0, %v4766
  %4768 = vdwg.mxu0
  %v4770 = vsel %vm4039, %v4764, 0
  %v4773 = vsel %vm4039, %v4767, 0
  %4775 = vmatpush.msra.mxu0 0.0
  %4776 = vmatpush.msra.mxu0 0.0
  %4777 = vmatpush.msra.mxu0 0.0
  %4778 = vmatpush.msra.mxu0 0.0
  %4779 = vmatpush.msra.mxu0 0.0
  %4780 = vmatpush.msra.mxu0 0.0
  %4781 = vmatpush.msra.mxu0 0.0
  %4782 = vmatpush.msra.mxu0 0.0
  %4783 = vmatpush.msra.mxu0 0.0
  %4784 = vmatpush.msra.mxu0 0.0
  %4785 = vmatpush.msra.mxu0 0.0
  %4786 = vmatpush.msra.mxu0 0.0
  %4787 = vmatpush.msra.mxu0 0.0
  %4788 = vmatpush.msra.mxu0 0.0
  %4789 = vmatpush.msra.mxu0 0.0
  %4790 = vmatpush.msra.mxu0 %v4685
  %4791 = vmatmul.f32.gmra.mxu0 %v4770
  %v4792 = vpop.f32.mrf.mxu0
  %v4793 = vadd.f32 0.0, %v4792
  %4794 = vmatmul.f32.gmra.mxu0 %v4773
  %v4795 = vpop.f32.mrf.mxu0
  %v4796 = vadd.f32 0.0, %v4795
  %4797 = vdwg.mxu0
  %v4798 = vadd.f32 %v4679, %v4793
  %v4799 = vadd.f32 %v4680, %v4796
  %s4800 = scalar_lea.vmem %s8, 80
  %v4801 = vld [vmem:[%s4800] sm:$0xff]
  %v4802 = vld [vmem:[%s4800 + $0x8] sm:$0xff]
  %s4803 = scalar_lea.vmem %s9, 40
  %v4804 = vld [vmem:[%s4803] sm:$0xff]
  %v4806 = vsel %vm4217, %v4801, 0
  %v4809 = vsel %vm4217, %v4802, 0
  %4811 = vmatpush.msra.mxu0 0.0
  %4812 = vmatpush.msra.mxu0 0.0
  %4813 = vmatpush.msra.mxu0 0.0
  %4814 = vmatpush.msra.mxu0 0.0
  %4815 = vmatpush.msra.mxu0 0.0
  %4816 = vmatpush.msra.mxu0 0.0
  %4817 = vmatpush.msra.mxu0 0.0
  %4818 = vmatpush.msra.mxu0 0.0
  %4819 = vmatpush.msra.mxu0 %v4189
  %4820 = vmatpush.msra.mxu0 %v4188
  %4821 = vmatpush.msra.mxu0 %v4187
  %4822 = vmatpush.msra.mxu0 %v4186
  %4823 = vmatpush.msra.mxu0 %v4185
  %4824 = vmatpush.msra.mxu0 %v4184
  %4825 = vmatpush.msra.mxu0 %v4183
  %4826 = vmatpush.msra.mxu0 %v4182
  %4827 = vmatmul.f32.gmra.mxu0 %v4806
  %v4828 = vpop.f32.mrf.mxu0
  %v4829 = vadd.f32 0.0, %v4828
  %4830 = vmatmul.f32.gmra.mxu0 %v4809
  %v4831 = vpop.f32.mrf.mxu0
  %v4832 = vadd.f32 0.0, %v4831
  %4833 = vdwg.mxu0
  %v4835 = vsel %vm4039, %v4829, 0
  %v4838 = vsel %vm4039, %v4832, 0
  %4840 = vmatpush.msra.mxu0 0.0
  %4841 = vmatpush.msra.mxu0 0.0
  %4842 = vmatpush.msra.mxu0 0.0
  %4843 = vmatpush.msra.mxu0 0.0
  %4844 = vmatpush.msra.mxu0 0.0
  %4845 = vmatpush.msra.mxu0 0.0
  %4846 = vmatpush.msra.mxu0 0.0
  %4847 = vmatpush.msra.mxu0 0.0
  %4848 = vmatpush.msra.mxu0 0.0
  %4849 = vmatpush.msra.mxu0 0.0
  %4850 = vmatpush.msra.mxu0 0.0
  %4851 = vmatpush.msra.mxu0 0.0
  %4852 = vmatpush.msra.mxu0 0.0
  %4853 = vmatpush.msra.mxu0 0.0
  %4854 = vmatpush.msra.mxu0 0.0
  %4855 = vmatpush.msra.mxu0 %v4804
  %4856 = vmatmul.f32.gmra.mxu0 %v4835
  %v4857 = vpop.f32.mrf.mxu0
  %v4858 = vadd.f32 0.0, %v4857
  %4859 = vmatmul.f32.gmra.mxu0 %v4838
  %v4860 = vpop.f32.mrf.mxu0
  %v4861 = vadd.f32 0.0, %v4860
  %4862 = vdwg.mxu0
  %v4863 = vadd.f32 %v4744, %v4858
  %v4864 = vadd.f32 %v4745, %v4861
  %4865 = vmatpush.msra.mxu0 0.0
  %4866 = vmatpush.msra.mxu0 0.0
  %4867 = vmatpush.msra.mxu0 0.0
  %4868 = vmatpush.msra.mxu0 0.0
  %4869 = vmatpush.msra.mxu0 0.0
  %4870 = vmatpush.msra.mxu0 0.0
  %4871 = vmatpush.msra.mxu0 0.0
  %4872 = vmatpush.msra.mxu0 0.0
  %4873 = vmatpush.msra.mxu0 %v4213
  %4874 = vmatpush.msra.mxu0 %v4212
  %4875 = vmatpush.msra.mxu0 %v4211
  %4876 = vmatpush.msra.mxu0 %v4210
  %4877 = vmatpush.msra.mxu0 %v4209
  %4878 = vmatpush.msra.mxu0 %v4208
  %4879 = vmatpush.msra.mxu0 %v4207
  %4880 = vmatpush.msra.mxu0 %v4206
  %4881 = vmatmul.f32.gmra.mxu0 %v4806
  %v4882 = vpop.f32.mrf.mxu0
  %v4883 = vadd.f32 0.0, %v4882
  %4884 = vmatmul.f32.gmra.mxu0 %v4809
  %v4885 = vpop.f32.mrf.mxu0
  %v4886 = vadd.f32 0.0, %v4885
  %4887 = vdwg.mxu0
  %v4889 = vsel %vm4039, %v4883, 0
  %v4892 = vsel %vm4039, %v4886, 0
  %4894 = vmatpush.msra.mxu0 0.0
  %4895 = vmatpush.msra.mxu0 0.0
  %4896 = vmatpush.msra.mxu0 0.0
  %4897 = vmatpush.msra.mxu0 0.0
  %4898 = vmatpush.msra.mxu0 0.0
  %4899 = vmatpush.msra.mxu0 0.0
  %4900 = vmatpush.msra.mxu0 0.0
  %4901 = vmatpush.msra.mxu0 0.0
  %4902 = vmatpush.msra.mxu0 0.0
  %4903 = vmatpush.msra.mxu0 0.0
  %4904 = vmatpush.msra.mxu0 0.0
  %4905 = vmatpush.msra.mxu0 0.0
  %4906 = vmatpush.msra.mxu0 0.0
  %4907 = vmatpush.msra.mxu0 0.0
  %4908 = vmatpush.msra.mxu0 0.0
  %4909 = vmatpush.msra.mxu0 %v4804
  %4910 = vmatmul.f32.gmra.mxu0 %v4889
  %v4911 = vpop.f32.mrf.mxu0
  %v4912 = vadd.f32 0.0, %v4911
  %4913 = vmatmul.f32.gmra.mxu0 %v4892
  %v4914 = vpop.f32.mrf.mxu0
  %v4915 = vadd.f32 0.0, %v4914
  %4916 = vdwg.mxu0
  %v4917 = vadd.f32 %v4798, %v4912
  %v4918 = vadd.f32 %v4799, %v4915
  %s4919 = scalar_lea.vmem %s8, 96
  %v4920 = vld [vmem:[%s4919] sm:$0xff]
  %v4921 = vld [vmem:[%s4919 + $0x8] sm:$0xff]
  %s4922 = scalar_lea.vmem %s9, 48
  %v4923 = vld [vmem:[%s4922] sm:$0xff]
  %v4925 = vsel %vm4217, %v4920, 0
  %v4928 = vsel %vm4217, %v4921, 0
  %4930 = vmatpush.msra.mxu0 0.0
  %4931 = vmatpush.msra.mxu0 0.0
  %4932 = vmatpush.msra.mxu0 0.0
  %4933 = vmatpush.msra.mxu0 0.0
  %4934 = vmatpush.msra.mxu0 0.0
  %4935 = vmatpush.msra.mxu0 0.0
  %4936 = vmatpush.msra.mxu0 0.0
  %4937 = vmatpush.msra.mxu0 0.0
  %4938 = vmatpush.msra.mxu0 %v4189
  %4939 = vmatpush.msra.mxu0 %v4188
  %4940 = vmatpush.msra.mxu0 %v4187
  %4941 = vmatpush.msra.mxu0 %v4186
  %4942 = vmatpush.msra.mxu0 %v4185
  %4943 = vmatpush.msra.mxu0 %v4184
  %4944 = vmatpush.msra.mxu0 %v4183
  %4945 = vmatpush.msra.mxu0 %v4182
  %4946 = vmatmul.f32.gmra.mxu0 %v4925
  %v4947 = vpop.f32.mrf.mxu0
  %v4948 = vadd.f32 0.0, %v4947
  %4949 = vmatmul.f32.gmra.mxu0 %v4928
  %v4950 = vpop.f32.mrf.mxu0
  %v4951 = vadd.f32 0.0, %v4950
  %4952 = vdwg.mxu0
  %v4954 = vsel %vm4039, %v4948, 0
  %v4957 = vsel %vm4039, %v4951, 0
  %4959 = vmatpush.msra.mxu0 0.0
  %4960 = vmatpush.msra.mxu0 0.0
  %4961 = vmatpush.msra.mxu0 0.0
  %4962 = vmatpush.msra.mxu0 0.0
  %4963 = vmatpush.msra.mxu0 0.0
  %4964 = vmatpush.msra.mxu0 0.0
  %4965 = vmatpush.msra.mxu0 0.0
  %4966 = vmatpush.msra.mxu0 0.0
  %4967 = vmatpush.msra.mxu0 0.0
  %4968 = vmatpush.msra.mxu0 0.0
  %4969 = vmatpush.msra.mxu0 0.0
  %4970 = vmatpush.msra.mxu0 0.0
  %4971 = vmatpush.msra.mxu0 0.0
  %4972 = vmatpush.msra.mxu0 0.0
  %4973 = vmatpush.msra.mxu0 0.0
  %4974 = vmatpush.msra.mxu0 %v4923
  %4975 = vmatmul.f32.gmra.mxu0 %v4954
  %v4976 = vpop.f32.mrf.mxu0
  %v4977 = vadd.f32 0.0, %v4976
  %4978 = vmatmul.f32.gmra.mxu0 %v4957
  %v4979 = vpop.f32.mrf.mxu0
  %v4980 = vadd.f32 0.0, %v4979
  %4981 = vdwg.mxu0
  %v4982 = vadd.f32 %v4863, %v4977
  %v4983 = vadd.f32 %v4864, %v4980
  %4984 = vmatpush.msra.mxu0 0.0
  %4985 = vmatpush.msra.mxu0 0.0
  %4986 = vmatpush.msra.mxu0 0.0
  %4987 = vmatpush.msra.mxu0 0.0
  %4988 = vmatpush.msra.mxu0 0.0
  %4989 = vmatpush.msra.mxu0 0.0
  %4990 = vmatpush.msra.mxu0 0.0
  %4991 = vmatpush.msra.mxu0 0.0
  %4992 = vmatpush.msra.mxu0 %v4213
  %4993 = vmatpush.msra.mxu0 %v4212
  %4994 = vmatpush.msra.mxu0 %v4211
  %4995 = vmatpush.msra.mxu0 %v4210
  %4996 = vmatpush.msra.mxu0 %v4209
  %4997 = vmatpush.msra.mxu0 %v4208
  %4998 = vmatpush.msra.mxu0 %v4207
  %4999 = vmatpush.msra.mxu0 %v4206
  %5000 = vmatmul.f32.gmra.mxu0 %v4925
  %v5001 = vpop.f32.mrf.mxu0
  %v5002 = vadd.f32 0.0, %v5001
  %5003 = vmatmul.f32.gmra.mxu0 %v4928
  %v5004 = vpop.f32.mrf.mxu0
  %v5005 = vadd.f32 0.0, %v5004
  %5006 = vdwg.mxu0
  %v5008 = vsel %vm4039, %v5002, 0
  %v5011 = vsel %vm4039, %v5005, 0
  %5013 = vmatpush.msra.mxu0 0.0
  %5014 = vmatpush.msra.mxu0 0.0
  %5015 = vmatpush.msra.mxu0 0.0
  %5016 = vmatpush.msra.mxu0 0.0
  %5017 = vmatpush.msra.mxu0 0.0
  %5018 = vmatpush.msra.mxu0 0.0
  %5019 = vmatpush.msra.mxu0 0.0
  %5020 = vmatpush.msra.mxu0 0.0
  %5021 = vmatpush.msra.mxu0 0.0
  %5022 = vmatpush.msra.mxu0 0.0
  %5023 = vmatpush.msra.mxu0 0.0
  %5024 = vmatpush.msra.mxu0 0.0
  %5025 = vmatpush.msra.mxu0 0.0
  %5026 = vmatpush.msra.mxu0 0.0
  %5027 = vmatpush.msra.mxu0 0.0
  %5028 = vmatpush.msra.mxu0 %v4923
  %5029 = vmatmul.f32.gmra.mxu0 %v5008
  %v5030 = vpop.f32.mrf.mxu0
  %v5031 = vadd.f32 0.0, %v5030
  %5032 = vmatmul.f32.gmra.mxu0 %v5011
  %v5033 = vpop.f32.mrf.mxu0
  %v5034 = vadd.f32 0.0, %v5033
  %5035 = vdwg.mxu0
  %v5036 = vadd.f32 %v4917, %v5031
  %v5037 = vadd.f32 %v4918, %v5034
  %s5038 = scalar_lea.vmem %s8, 112
  %v5039 = vld [vmem:[%s5038] sm:$0xff]
  %v5040 = vld [vmem:[%s5038 + $0x8] sm:$0xff]
  %s5041 = scalar_lea.vmem %s9, 56
  %v5042 = vld [vmem:[%s5041] sm:$0xff]
  %v5044 = vsel %vm4217, %v5039, 0
  %v5047 = vsel %vm4217, %v5040, 0
  %5049 = vmatpush.msra.mxu0 0.0
  %5050 = vmatpush.msra.mxu0 0.0
  %5051 = vmatpush.msra.mxu0 0.0
  %5052 = vmatpush.msra.mxu0 0.0
  %5053 = vmatpush.msra.mxu0 0.0
  %5054 = vmatpush.msra.mxu0 0.0
  %5055 = vmatpush.msra.mxu0 0.0
  %5056 = vmatpush.msra.mxu0 0.0
  %5057 = vmatpush.msra.mxu0 %v4189
  %5058 = vmatpush.msra.mxu0 %v4188
  %5059 = vmatpush.msra.mxu0 %v4187
  %5060 = vmatpush.msra.mxu0 %v4186
  %5061 = vmatpush.msra.mxu0 %v4185
  %5062 = vmatpush.msra.mxu0 %v4184
  %5063 = vmatpush.msra.mxu0 %v4183
  %5064 = vmatpush.msra.mxu0 %v4182
  %5065 = vmatmul.f32.gmra.mxu0 %v5044
  %v5066 = vpop.f32.mrf.mxu0
  %v5067 = vadd.f32 0.0, %v5066
  %5068 = vmatmul.f32.gmra.mxu0 %v5047
  %v5069 = vpop.f32.mrf.mxu0
  %v5070 = vadd.f32 0.0, %v5069
  %5071 = vdwg.mxu0
  %v5073 = vsel %vm4039, %v5067, 0
  %v5076 = vsel %vm4039, %v5070, 0
  %5078 = vmatpush.msra.mxu0 0.0
  %5079 = vmatpush.msra.mxu0 0.0
  %5080 = vmatpush.msra.mxu0 0.0
  %5081 = vmatpush.msra.mxu0 0.0
  %5082 = vmatpush.msra.mxu0 0.0
  %5083 = vmatpush.msra.mxu0 0.0
  %5084 = vmatpush.msra.mxu0 0.0
  %5085 = vmatpush.msra.mxu0 0.0
  %5086 = vmatpush.msra.mxu0 0.0
  %5087 = vmatpush.msra.mxu0 0.0
  %5088 = vmatpush.msra.mxu0 0.0
  %5089 = vmatpush.msra.mxu0 0.0
  %5090 = vmatpush.msra.mxu0 0.0
  %5091 = vmatpush.msra.mxu0 0.0
  %5092 = vmatpush.msra.mxu0 0.0
  %5093 = vmatpush.msra.mxu0 %v5042
  %5094 = vmatmul.f32.gmra.mxu0 %v5073
  %v5095 = vpop.f32.mrf.mxu0
  %v5096 = vadd.f32 0.0, %v5095
  %5097 = vmatmul.f32.gmra.mxu0 %v5076
  %v5098 = vpop.f32.mrf.mxu0
  %v5099 = vadd.f32 0.0, %v5098
  %5100 = vdwg.mxu0
  %v5101 = vadd.f32 %v4982, %v5096
  %v5102 = vadd.f32 %v4983, %v5099
  %5103 = vmatpush.msra.mxu0 0.0
  %5104 = vmatpush.msra.mxu0 0.0
  %5105 = vmatpush.msra.mxu0 0.0
  %5106 = vmatpush.msra.mxu0 0.0
  %5107 = vmatpush.msra.mxu0 0.0
  %5108 = vmatpush.msra.mxu0 0.0
  %5109 = vmatpush.msra.mxu0 0.0
  %5110 = vmatpush.msra.mxu0 0.0
  %5111 = vmatpush.msra.mxu0 %v4213
  %5112 = vmatpush.msra.mxu0 %v4212
  %5113 = vmatpush.msra.mxu0 %v4211
  %5114 = vmatpush.msra.mxu0 %v4210
  %5115 = vmatpush.msra.mxu0 %v4209
  %5116 = vmatpush.msra.mxu0 %v4208
  %5117 = vmatpush.msra.mxu0 %v4207
  %5118 = vmatpush.msra.mxu0 %v4206
  %5119 = vmatmul.f32.gmra.mxu0 %v5044
  %v5120 = vpop.f32.mrf.mxu0
  %v5121 = vadd.f32 0.0, %v5120
  %5122 = vmatmul.f32.gmra.mxu0 %v5047
  %v5123 = vpop.f32.mrf.mxu0
  %v5124 = vadd.f32 0.0, %v5123
  %5125 = vdwg.mxu0
  %v5127 = vsel %vm4039, %v5121, 0
  %v5130 = vsel %vm4039, %v5124, 0
  %5132 = vmatpush.msra.mxu0 0.0
  %5133 = vmatpush.msra.mxu0 0.0
  %5134 = vmatpush.msra.mxu0 0.0
  %5135 = vmatpush.msra.mxu0 0.0
  %5136 = vmatpush.msra.mxu0 0.0
  %5137 = vmatpush.msra.mxu0 0.0
  %5138 = vmatpush.msra.mxu0 0.0
  %5139 = vmatpush.msra.mxu0 0.0
  %5140 = vmatpush.msra.mxu0 0.0
  %5141 = vmatpush.msra.mxu0 0.0
  %5142 = vmatpush.msra.mxu0 0.0
  %5143 = vmatpush.msra.mxu0 0.0
  %5144 = vmatpush.msra.mxu0 0.0
  %5145 = vmatpush.msra.mxu0 0.0
  %5146 = vmatpush.msra.mxu0 0.0
  %5147 = vmatpush.msra.mxu0 %v5042
  %5148 = vmatmul.f32.gmra.mxu0 %v5127
  %v5149 = vpop.f32.mrf.mxu0
  %v5150 = vadd.f32 0.0, %v5149
  %5151 = vmatmul.f32.gmra.mxu0 %v5130
  %v5152 = vpop.f32.mrf.mxu0
  %v5153 = vadd.f32 0.0, %v5152
  %5154 = vdwg.mxu0
  %v5155 = vadd.f32 %v5036, %v5150
  %v5156 = vadd.f32 %v5037, %v5153
  %s5157 = scalar_lea.vmem %s8, 128
  %v5158 = vld [vmem:[%s5157] sm:$0xff]
  %v5159 = vld [vmem:[%s5157 + $0x8] sm:$0xff]
  %s5160 = scalar_lea.vmem %s9, 64
  %v5161 = vld [vmem:[%s5160] sm:$0xff]
  %v5163 = vsel %vm4217, %v5158, 0
  %v5166 = vsel %vm4217, %v5159, 0
  %5168 = vmatpush.msra.mxu0 0.0
  %5169 = vmatpush.msra.mxu0 0.0
  %5170 = vmatpush.msra.mxu0 0.0
  %5171 = vmatpush.msra.mxu0 0.0
  %5172 = vmatpush.msra.mxu0 0.0
  %5173 = vmatpush.msra.mxu0 0.0
  %5174 = vmatpush.msra.mxu0 0.0
  %5175 = vmatpush.msra.mxu0 0.0
  %5176 = vmatpush.msra.mxu0 %v4189
  %5177 = vmatpush.msra.mxu0 %v4188
  %5178 = vmatpush.msra.mxu0 %v4187
  %5179 = vmatpush.msra.mxu0 %v4186
  %5180 = vmatpush.msra.mxu0 %v4185
  %5181 = vmatpush.msra.mxu0 %v4184
  %5182 = vmatpush.msra.mxu0 %v4183
  %5183 = vmatpush.msra.mxu0 %v4182
  %5184 = vmatmul.f32.gmra.mxu0 %v5163
  %v5185 = vpop.f32.mrf.mxu0
  %v5186 = vadd.f32 0.0, %v5185
  %5187 = vmatmul.f32.gmra.mxu0 %v5166
  %v5188 = vpop.f32.mrf.mxu0
  %v5189 = vadd.f32 0.0, %v5188
  %5190 = vdwg.mxu0
  %v5192 = vsel %vm4039, %v5186, 0
  %v5195 = vsel %vm4039, %v5189, 0
  %5197 = vmatpush.msra.mxu0 0.0
  %5198 = vmatpush.msra.mxu0 0.0
  %5199 = vmatpush.msra.mxu0 0.0
  %5200 = vmatpush.msra.mxu0 0.0
  %5201 = vmatpush.msra.mxu0 0.0
  %5202 = vmatpush.msra.mxu0 0.0
  %5203 = vmatpush.msra.mxu0 0.0
  %5204 = vmatpush.msra.mxu0 0.0
  %5205 = vmatpush.msra.mxu0 0.0
  %5206 = vmatpush.msra.mxu0 0.0
  %5207 = vmatpush.msra.mxu0 0.0
  %5208 = vmatpush.msra.mxu0 0.0
  %5209 = vmatpush.msra.mxu0 0.0
  %5210 = vmatpush.msra.mxu0 0.0
  %5211 = vmatpush.msra.mxu0 0.0
  %5212 = vmatpush.msra.mxu0 %v5161
  %5213 = vmatmul.f32.gmra.mxu0 %v5192
  %v5214 = vpop.f32.mrf.mxu0
  %v5215 = vadd.f32 0.0, %v5214
  %5216 = vmatmul.f32.gmra.mxu0 %v5195
  %v5217 = vpop.f32.mrf.mxu0
  %v5218 = vadd.f32 0.0, %v5217
  %5219 = vdwg.mxu0
  %v5220 = vadd.f32 %v5101, %v5215
  %v5221 = vadd.f32 %v5102, %v5218
  %5222 = vmatpush.msra.mxu0 0.0
  %5223 = vmatpush.msra.mxu0 0.0
  %5224 = vmatpush.msra.mxu0 0.0
  %5225 = vmatpush.msra.mxu0 0.0
  %5226 = vmatpush.msra.mxu0 0.0
  %5227 = vmatpush.msra.mxu0 0.0
  %5228 = vmatpush.msra.mxu0 0.0
  %5229 = vmatpush.msra.mxu0 0.0
  %5230 = vmatpush.msra.mxu0 %v4213
  %5231 = vmatpush.msra.mxu0 %v4212
  %5232 = vmatpush.msra.mxu0 %v4211
  %5233 = vmatpush.msra.mxu0 %v4210
  %5234 = vmatpush.msra.mxu0 %v4209
  %5235 = vmatpush.msra.mxu0 %v4208
  %5236 = vmatpush.msra.mxu0 %v4207
  %5237 = vmatpush.msra.mxu0 %v4206
  %5238 = vmatmul.f32.gmra.mxu0 %v5163
  %v5239 = vpop.f32.mrf.mxu0
  %v5240 = vadd.f32 0.0, %v5239
  %5241 = vmatmul.f32.gmra.mxu0 %v5166
  %v5242 = vpop.f32.mrf.mxu0
  %v5243 = vadd.f32 0.0, %v5242
  %5244 = vdwg.mxu0
  %v5246 = vsel %vm4039, %v5240, 0
  %v5249 = vsel %vm4039, %v5243, 0
  %5251 = vmatpush.msra.mxu0 0.0
  %5252 = vmatpush.msra.mxu0 0.0
  %5253 = vmatpush.msra.mxu0 0.0
  %5254 = vmatpush.msra.mxu0 0.0
  %5255 = vmatpush.msra.mxu0 0.0
  %5256 = vmatpush.msra.mxu0 0.0
  %5257 = vmatpush.msra.mxu0 0.0
  %5258 = vmatpush.msra.mxu0 0.0
  %5259 = vmatpush.msra.mxu0 0.0
  %5260 = vmatpush.msra.mxu0 0.0
  %5261 = vmatpush.msra.mxu0 0.0
  %5262 = vmatpush.msra.mxu0 0.0
  %5263 = vmatpush.msra.mxu0 0.0
  %5264 = vmatpush.msra.mxu0 0.0
  %5265 = vmatpush.msra.mxu0 0.0
  %5266 = vmatpush.msra.mxu0 %v5161
  %5267 = vmatmul.f32.gmra.mxu0 %v5246
  %v5268 = vpop.f32.mrf.mxu0
  %v5269 = vadd.f32 0.0, %v5268
  %5270 = vmatmul.f32.gmra.mxu0 %v5249
  %v5271 = vpop.f32.mrf.mxu0
  %v5272 = vadd.f32 0.0, %v5271
  %5273 = vdwg.mxu0
  %v5274 = vadd.f32 %v5155, %v5269
  %v5275 = vadd.f32 %v5156, %v5272
  %v5276 = vld [vmem:[%s10] sm:$0x1]
  %v5277 = vld [vmem:[%s11] sm:$0x1]
  %vm5278 = vcmask 130048
  %v5279 = vsel %vm5278, %v5220, 0.0
  %v5280 = vsel %vm5278, %v5221, 0.0
  %v5281 = vadd.f32 %v5279, %v5280
  %v5282 = vrot.slane %v5281, 4
  %v5283 = vadd.f32 %v5281, %v5282
  %v5284 = vrot.slane %v5283, 2
  %v5285 = vadd.f32 %v5283, %v5284
  %v5286 = vrot.slane %v5285, 1
  %v5287 = vadd.f32 %v5285, %v5286
  %v5288 = vmul.f32 %v5220, %v5220
  %v5289 = vmul.f32 %v5221, %v5221
  %v5290 = vsel %vm5278, %v5288, 0.0
  %v5291 = vsel %vm5278, %v5289, 0.0
  %v5292 = vadd.f32 %v5290, %v5291
  %v5293 = vrot.slane %v5292, 4
  %v5294 = vadd.f32 %v5292, %v5293
  %v5295 = vrot.slane %v5294, 2
  %v5296 = vadd.f32 %v5294, %v5295
  %v5297 = vrot.slane %v5296, 1
  %v5298 = vadd.f32 %v5296, %v5297
  %v5299 = vsel %vm5278, %v5274, 0.0
  %v5300 = vsel %vm5278, %v5275, 0.0
  %v5301 = vadd.f32 %v5299, %v5300
  %v5302 = vrot.slane %v5301, 4
  %v5303 = vadd.f32 %v5301, %v5302
  %v5304 = vrot.slane %v5303, 2
  %v5305 = vadd.f32 %v5303, %v5304
  %v5306 = vrot.slane %v5305, 1
  %v5307 = vadd.f32 %v5305, %v5306
  %v5308 = vadd.f32 %v5287, %v5307
  %v5309 = vmul.f32 %v5274, %v5274
  %v5310 = vmul.f32 %v5275, %v5275
  %v5311 = vsel %vm5278, %v5309, 0.0
  %v5312 = vsel %vm5278, %v5310, 0.0
  %v5313 = vadd.f32 %v5311, %v5312
  %v5314 = vrot.slane %v5313, 4
  %v5315 = vadd.f32 %v5313, %v5314
  %v5316 = vrot.slane %v5315, 2
  %v5317 = vadd.f32 %v5315, %v5316
  %v5318 = vrot.slane %v5317, 1
  %v5319 = vadd.f32 %v5317, %v5318
  %v5320 = vadd.f32 %v5298, %v5319
  %v5321 = vmul.f32 %v5308, 0.03125
  %v5322 = vmul.f32 %v5320, 0.03125
  %v5323 = vmul.f32 %v5321, %v5321
  %v5324 = vsub.f32 %v5322, %v5323
  %v5325 = vadd.f32 %v5324, 1e-05
  %v5326 = vrsqrt.pop %v5325
  %v5327 = vmul.f32 %v5326, %v5325
  %v5328 = vmul.f32 %v5327, %v5326
  %v5329 = vmul.f32 0.5, %v5328
  %v5330 = vsub.f32 1.5, %v5329
  %v5331 = vmul.f32 %v5326, %v5330
  %vm5332 = vweird.f32 %v5325
  %vm5333 = vweird.f32 %v5326
  %vm5334 = vmor %vm5332, %vm5333
  %v5335 = vsel %vm5334, %v5326, %v5331
  %v5336 = vmul.f32 %v5276, %v5335
  %v5337 = vmul.f32 %v5321, %v5336
  %v5338 = vsub.f32 %v5277, %v5337
  %v5340 = vperm.slane %v5336, 0
  %v5342 = vmul.f32 %v5220, %v5340
  %v5343 = vmul.f32 %v5221, %v5340
  %v5345 = vperm.slane %v5338, 0
  %v5347 = vadd.f32 %v5342, %v5345
  %v5348 = vadd.f32 %v5343, %v5345
  %v5349 = vmax.f32 %v5347, 0.0
  %v5350 = vmax.f32 %v5348, 0.0
  %v5351 = vmul.f32 %v5274, %v5340
  %v5352 = vmul.f32 %v5275, %v5340
  %v5353 = vadd.f32 %v5351, %v5345
  %v5354 = vadd.f32 %v5352, %v5345
  %v5355 = vmax.f32 %v5353, 0.0
  %v5356 = vmax.f32 %v5354, 0.0
  %v5357 = vld [vmem:[%s12] sm:$0xf]
  %v5358 = vld [vmem:[%s13] sm:$0xff]
  %v5359 = vld [vmem:[%s13 + $0x8] sm:$0xff]
  %v5361 = vsel %vm5278, %v5357, 0
  %5363 = vmatpush.msra.mxu0 0.0
  %5364 = vmatpush.msra.mxu0 0.0
  %5365 = vmatpush.msra.mxu0 0.0
  %5366 = vmatpush.msra.mxu0 0.0
  %5367 = vmatpush.msra.mxu0 0.0
  %5368 = vmatpush.msra.mxu0 0.0
  %5369 = vmatpush.msra.mxu0 0.0
  %5370 = vmatpush.msra.mxu0 0.0
  %5371 = vmatpush.msra.mxu0 0.0
  %5372 = vmatpush.msra.mxu0 0.0
  %5373 = vmatpush.msra.mxu0 0.0
  %5374 = vmatpush.msra.mxu0 0.0
  %5375 = vmatpush.msra.mxu0 0.0
  %5376 = vmatpush.msra.mxu0 0.0
  %5377 = vmatpush.msra.mxu0 %v5350
  %5378 = vmatpush.msra.mxu0 %v5349
  %5379 = vmatmul.f32.gmra.mxu0 %v5361
  %v5380 = vpop.f32.mrf.mxu0
  %v5381 = vadd.f32 0.0, %v5380
  %5382 = vdwg.mxu0
  %5383 = vmatpush.msra.mxu0 0.0
  %5384 = vmatpush.msra.mxu0 0.0
  %5385 = vmatpush.msra.mxu0 0.0
  %5386 = vmatpush.msra.mxu0 0.0
  %5387 = vmatpush.msra.mxu0 0.0
  %5388 = vmatpush.msra.mxu0 0.0
  %5389 = vmatpush.msra.mxu0 0.0
  %5390 = vmatpush.msra.mxu0 0.0
  %5391 = vmatpush.msra.mxu0 0.0
  %5392 = vmatpush.msra.mxu0 0.0
  %5393 = vmatpush.msra.mxu0 0.0
  %5394 = vmatpush.msra.mxu0 0.0
  %5395 = vmatpush.msra.mxu0 0.0
  %5396 = vmatpush.msra.mxu0 0.0
  %5397 = vmatpush.msra.mxu0 %v5356
  %5398 = vmatpush.msra.mxu0 %v5355
  %5399 = vmatmul.f32.gmra.mxu0 %v5361
  %v5400 = vpop.f32.mrf.mxu0
  %v5401 = vadd.f32 0.0, %v5400
  %5402 = vdwg.mxu0
  %s5403 = scalar_lea.vmem %s12, 4
  %v5404 = vld [vmem:[%s5403] sm:$0xf]
  %s5405 = scalar_lea.vmem %s13, 16
  %v5406 = vld [vmem:[%s5405] sm:$0xff]
  %v5407 = vld [vmem:[%s5405 + $0x8] sm:$0xff]
  %v5409 = vsel %vm5278, %v5404, 0
  %5411 = vmatpush.msra.mxu0 0.0
  %5412 = vmatpush.msra.mxu0 0.0
  %5413 = vmatpush.msra.mxu0 0.0
  %5414 = vmatpush.msra.mxu0 0.0
  %5415 = vmatpush.msra.mxu0 0.0
  %5416 = vmatpush.msra.mxu0 0.0
  %5417 = vmatpush.msra.mxu0 0.0
  %5418 = vmatpush.msra.mxu0 0.0
  %5419 = vmatpush.msra.mxu0 0.0
  %5420 = vmatpush.msra.mxu0 0.0
  %5421 = vmatpush.msra.mxu0 0.0
  %5422 = vmatpush.msra.mxu0 0.0
  %5423 = vmatpush.msra.mxu0 0.0
  %5424 = vmatpush.msra.mxu0 0.0
  %5425 = vmatpush.msra.mxu0 %v5350
  %5426 = vmatpush.msra.mxu0 %v5349
  %5427 = vmatmul.f32.gmra.mxu0 %v5409
  %v5428 = vpop.f32.mrf.mxu0
  %v5429 = vadd.f32 0.0, %v5428
  %5430 = vdwg.mxu0
  %v5432 = vsel %vm5278, %v5429, 0
  %5434 = vmatpush.msra.mxu0 0.0
  %5435 = vmatpush.msra.mxu0 0.0
  %5436 = vmatpush.msra.mxu0 0.0
  %5437 = vmatpush.msra.mxu0 0.0
  %5438 = vmatpush.msra.mxu0 0.0
  %5439 = vmatpush.msra.mxu0 0.0
  %5440 = vmatpush.msra.mxu0 0.0
  %5441 = vmatpush.msra.mxu0 0.0
  %5442 = vmatpush.msra.mxu0 0.0
  %5443 = vmatpush.msra.mxu0 0.0
  %5444 = vmatpush.msra.mxu0 0.0
  %5445 = vmatpush.msra.mxu0 0.0
  %5446 = vmatpush.msra.mxu0 0.0
  %5447 = vmatpush.msra.mxu0 0.0
  %5448 = vmatpush.msra.mxu0 %v5407
  %5449 = vmatpush.msra.mxu0 %v5406
  %5450 = vmatmul.f32.gmra.mxu0 %v5432
  %v5451 = vpop.f32.mrf.mxu0
  %v5452 = vadd.f32 0.0, %v5451
  %5453 = vdwg.mxu0
  %v5455 = vsel %vm5278, %v5381, 0
  %5457 = vmatpush.msra.mxu0 0.0
  %5458 = vmatpush.msra.mxu0 0.0
  %5459 = vmatpush.msra.mxu0 0.0
  %5460 = vmatpush.msra.mxu0 0.0
  %5461 = vmatpush.msra.mxu0 0.0
  %5462 = vmatpush.msra.mxu0 0.0
  %5463 = vmatpush.msra.mxu0 0.0
  %5464 = vmatpush.msra.mxu0 0.0
  %5465 = vmatpush.msra.mxu0 0.0
  %5466 = vmatpush.msra.mxu0 0.0
  %5467 = vmatpush.msra.mxu0 0.0
  %5468 = vmatpush.msra.mxu0 0.0
  %5469 = vmatpush.msra.mxu0 0.0
  %5470 = vmatpush.msra.mxu0 0.0
  %5471 = vmatpush.msra.mxu0 %v5359
  %5472 = vmatpush.msra.mxu0 %v5358
  %5473 = vmatmul.f32.gmra.mxu0 %v5455
  %v5474 = vpop.f32.mrf.mxu0
  %v5475 = vadd.f32 %v5452, %v5474
  %5476 = vdwg.mxu0
  %5477 = vmatpush.msra.mxu0 0.0
  %5478 = vmatpush.msra.mxu0 0.0
  %5479 = vmatpush.msra.mxu0 0.0
  %5480 = vmatpush.msra.mxu0 0.0
  %5481 = vmatpush.msra.mxu0 0.0
  %5482 = vmatpush.msra.mxu0 0.0
  %5483 = vmatpush.msra.mxu0 0.0
  %5484 = vmatpush.msra.mxu0 0.0
  %5485 = vmatpush.msra.mxu0 0.0
  %5486 = vmatpush.msra.mxu0 0.0
  %5487 = vmatpush.msra.mxu0 0.0
  %5488 = vmatpush.msra.mxu0 0.0
  %5489 = vmatpush.msra.mxu0 0.0
  %5490 = vmatpush.msra.mxu0 0.0
  %5491 = vmatpush.msra.mxu0 %v5356
  %5492 = vmatpush.msra.mxu0 %v5355
  %5493 = vmatmul.f32.gmra.mxu0 %v5409
  %v5494 = vpop.f32.mrf.mxu0
  %v5495 = vadd.f32 0.0, %v5494
  %5496 = vdwg.mxu0
  %v5498 = vsel %vm5278, %v5495, 0
  %5500 = vmatpush.msra.mxu0 0.0
  %5501 = vmatpush.msra.mxu0 0.0
  %5502 = vmatpush.msra.mxu0 0.0
  %5503 = vmatpush.msra.mxu0 0.0
  %5504 = vmatpush.msra.mxu0 0.0
  %5505 = vmatpush.msra.mxu0 0.0
  %5506 = vmatpush.msra.mxu0 0.0
  %5507 = vmatpush.msra.mxu0 0.0
  %5508 = vmatpush.msra.mxu0 0.0
  %5509 = vmatpush.msra.mxu0 0.0
  %5510 = vmatpush.msra.mxu0 0.0
  %5511 = vmatpush.msra.mxu0 0.0
  %5512 = vmatpush.msra.mxu0 0.0
  %5513 = vmatpush.msra.mxu0 0.0
  %5514 = vmatpush.msra.mxu0 %v5407
  %5515 = vmatpush.msra.mxu0 %v5406
  %5516 = vmatmul.f32.gmra.mxu0 %v5498
  %v5517 = vpop.f32.mrf.mxu0
  %v5518 = vadd.f32 0.0, %v5517
  %5519 = vdwg.mxu0
  %v5521 = vsel %vm5278, %v5401, 0
  %5523 = vmatpush.msra.mxu0 0.0
  %5524 = vmatpush.msra.mxu0 0.0
  %5525 = vmatpush.msra.mxu0 0.0
  %5526 = vmatpush.msra.mxu0 0.0
  %5527 = vmatpush.msra.mxu0 0.0
  %5528 = vmatpush.msra.mxu0 0.0
  %5529 = vmatpush.msra.mxu0 0.0
  %5530 = vmatpush.msra.mxu0 0.0
  %5531 = vmatpush.msra.mxu0 0.0
  %5532 = vmatpush.msra.mxu0 0.0
  %5533 = vmatpush.msra.mxu0 0.0
  %5534 = vmatpush.msra.mxu0 0.0
  %5535 = vmatpush.msra.mxu0 0.0
  %5536 = vmatpush.msra.mxu0 0.0
  %5537 = vmatpush.msra.mxu0 %v5359
  %5538 = vmatpush.msra.mxu0 %v5358
  %5539 = vmatmul.f32.gmra.mxu0 %v5521
  %v5540 = vpop.f32.mrf.mxu0
  %v5541 = vadd.f32 %v5518, %v5540
  %5542 = vdwg.mxu0
  %s5543 = scalar_lea.vmem %s12, 8
  %v5544 = vld [vmem:[%s5543] sm:$0xf]
  %s5545 = scalar_lea.vmem %s13, 32
  %v5546 = vld [vmem:[%s5545] sm:$0xff]
  %v5547 = vld [vmem:[%s5545 + $0x8] sm:$0xff]
  %v5549 = vsel %vm5278, %v5544, 0
  %5551 = vmatpush.msra.mxu0 0.0
  %5552 = vmatpush.msra.mxu0 0.0
  %5553 = vmatpush.msra.mxu0 0.0
  %5554 = vmatpush.msra.mxu0 0.0
  %5555 = vmatpush.msra.mxu0 0.0
  %5556 = vmatpush.msra.mxu0 0.0
  %5557 = vmatpush.msra.mxu0 0.0
  %5558 = vmatpush.msra.mxu0 0.0
  %5559 = vmatpush.msra.mxu0 0.0
  %5560 = vmatpush.msra.mxu0 0.0
  %5561 = vmatpush.msra.mxu0 0.0
  %5562 = vmatpush.msra.mxu0 0.0
  %5563 = vmatpush.msra.mxu0 0.0
  %5564 = vmatpush.msra.mxu0 0.0
  %5565 = vmatpush.msra.mxu0 %v5350
  %5566 = vmatpush.msra.mxu0 %v5349
  %5567 = vmatmul.f32.gmra.mxu0 %v5549
  %v5568 = vpop.f32.mrf.mxu0
  %v5569 = vadd.f32 0.0, %v5568
  %5570 = vdwg.mxu0
  %v5572 = vsel %vm5278, %v5569, 0
  %5574 = vmatpush.msra.mxu0 0.0
  %5575 = vmatpush.msra.mxu0 0.0
  %5576 = vmatpush.msra.mxu0 0.0
  %5577 = vmatpush.msra.mxu0 0.0
  %5578 = vmatpush.msra.mxu0 0.0
  %5579 = vmatpush.msra.mxu0 0.0
  %5580 = vmatpush.msra.mxu0 0.0
  %5581 = vmatpush.msra.mxu0 0.0
  %5582 = vmatpush.msra.mxu0 0.0
  %5583 = vmatpush.msra.mxu0 0.0
  %5584 = vmatpush.msra.mxu0 0.0
  %5585 = vmatpush.msra.mxu0 0.0
  %5586 = vmatpush.msra.mxu0 0.0
  %5587 = vmatpush.msra.mxu0 0.0
  %5588 = vmatpush.msra.mxu0 %v5547
  %5589 = vmatpush.msra.mxu0 %v5546
  %5590 = vmatmul.f32.gmra.mxu0 %v5572
  %v5591 = vpop.f32.mrf.mxu0
  %v5592 = vadd.f32 0.0, %v5591
  %5593 = vdwg.mxu0
  %v5594 = vadd.f32 %v5475, %v5592
  %5595 = vmatpush.msra.mxu0 0.0
  %5596 = vmatpush.msra.mxu0 0.0
  %5597 = vmatpush.msra.mxu0 0.0
  %5598 = vmatpush.msra.mxu0 0.0
  %5599 = vmatpush.msra.mxu0 0.0
  %5600 = vmatpush.msra.mxu0 0.0
  %5601 = vmatpush.msra.mxu0 0.0
  %5602 = vmatpush.msra.mxu0 0.0
  %5603 = vmatpush.msra.mxu0 0.0
  %5604 = vmatpush.msra.mxu0 0.0
  %5605 = vmatpush.msra.mxu0 0.0
  %5606 = vmatpush.msra.mxu0 0.0
  %5607 = vmatpush.msra.mxu0 0.0
  %5608 = vmatpush.msra.mxu0 0.0
  %5609 = vmatpush.msra.mxu0 %v5356
  %5610 = vmatpush.msra.mxu0 %v5355
  %5611 = vmatmul.f32.gmra.mxu0 %v5549
  %v5612 = vpop.f32.mrf.mxu0
  %v5613 = vadd.f32 0.0, %v5612
  %5614 = vdwg.mxu0
  %v5616 = vsel %vm5278, %v5613, 0
  %5618 = vmatpush.msra.mxu0 0.0
  %5619 = vmatpush.msra.mxu0 0.0
  %5620 = vmatpush.msra.mxu0 0.0
  %5621 = vmatpush.msra.mxu0 0.0
  %5622 = vmatpush.msra.mxu0 0.0
  %5623 = vmatpush.msra.mxu0 0.0
  %5624 = vmatpush.msra.mxu0 0.0
  %5625 = vmatpush.msra.mxu0 0.0
  %5626 = vmatpush.msra.mxu0 0.0
  %5627 = vmatpush.msra.mxu0 0.0
  %5628 = vmatpush.msra.mxu0 0.0
  %5629 = vmatpush.msra.mxu0 0.0
  %5630 = vmatpush.msra.mxu0 0.0
  %5631 = vmatpush.msra.mxu0 0.0
  %5632 = vmatpush.msra.mxu0 %v5547
  %5633 = vmatpush.msra.mxu0 %v5546
  %5634 = vmatmul.f32.gmra.mxu0 %v5616
  %v5635 = vpop.f32.mrf.mxu0
  %v5636 = vadd.f32 0.0, %v5635
  %5637 = vdwg.mxu0
  %v5638 = vadd.f32 %v5541, %v5636
  %s5639 = scalar_lea.vmem %s12, 12
  %v5640 = vld [vmem:[%s5639] sm:$0xf]
  %s5641 = scalar_lea.vmem %s13, 48
  %v5642 = vld [vmem:[%s5641] sm:$0xff]
  %v5643 = vld [vmem:[%s5641 + $0x8] sm:$0xff]
  %v5645 = vsel %vm5278, %v5640, 0
  %5647 = vmatpush.msra.mxu0 0.0
  %5648 = vmatpush.msra.mxu0 0.0
  %5649 = vmatpush.msra.mxu0 0.0
  %5650 = vmatpush.msra.mxu0 0.0
  %5651 = vmatpush.msra.mxu0 0.0
  %5652 = vmatpush.msra.mxu0 0.0
  %5653 = vmatpush.msra.mxu0 0.0
  %5654 = vmatpush.msra.mxu0 0.0
  %5655 = vmatpush.msra.mxu0 0.0
  %5656 = vmatpush.msra.mxu0 0.0
  %5657 = vmatpush.msra.mxu0 0.0
  %5658 = vmatpush.msra.mxu0 0.0
  %5659 = vmatpush.msra.mxu0 0.0
  %5660 = vmatpush.msra.mxu0 0.0
  %5661 = vmatpush.msra.mxu0 %v5350
  %5662 = vmatpush.msra.mxu0 %v5349
  %5663 = vmatmul.f32.gmra.mxu0 %v5645
  %v5664 = vpop.f32.mrf.mxu0
  %v5665 = vadd.f32 0.0, %v5664
  %5666 = vdwg.mxu0
  %v5668 = vsel %vm5278, %v5665, 0
  %5670 = vmatpush.msra.mxu0 0.0
  %5671 = vmatpush.msra.mxu0 0.0
  %5672 = vmatpush.msra.mxu0 0.0
  %5673 = vmatpush.msra.mxu0 0.0
  %5674 = vmatpush.msra.mxu0 0.0
  %5675 = vmatpush.msra.mxu0 0.0
  %5676 = vmatpush.msra.mxu0 0.0
  %5677 = vmatpush.msra.mxu0 0.0
  %5678 = vmatpush.msra.mxu0 0.0
  %5679 = vmatpush.msra.mxu0 0.0
  %5680 = vmatpush.msra.mxu0 0.0
  %5681 = vmatpush.msra.mxu0 0.0
  %5682 = vmatpush.msra.mxu0 0.0
  %5683 = vmatpush.msra.mxu0 0.0
  %5684 = vmatpush.msra.mxu0 %v5643
  %5685 = vmatpush.msra.mxu0 %v5642
  %5686 = vmatmul.f32.gmra.mxu0 %v5668
  %v5687 = vpop.f32.mrf.mxu0
  %v5688 = vadd.f32 0.0, %v5687
  %5689 = vdwg.mxu0
  %v5690 = vadd.f32 %v5594, %v5688
  %5691 = vmatpush.msra.mxu0 0.0
  %5692 = vmatpush.msra.mxu0 0.0
  %5693 = vmatpush.msra.mxu0 0.0
  %5694 = vmatpush.msra.mxu0 0.0
  %5695 = vmatpush.msra.mxu0 0.0
  %5696 = vmatpush.msra.mxu0 0.0
  %5697 = vmatpush.msra.mxu0 0.0
  %5698 = vmatpush.msra.mxu0 0.0
  %5699 = vmatpush.msra.mxu0 0.0
  %5700 = vmatpush.msra.mxu0 0.0
  %5701 = vmatpush.msra.mxu0 0.0
  %5702 = vmatpush.msra.mxu0 0.0
  %5703 = vmatpush.msra.mxu0 0.0
  %5704 = vmatpush.msra.mxu0 0.0
  %5705 = vmatpush.msra.mxu0 %v5356
  %5706 = vmatpush.msra.mxu0 %v5355
  %5707 = vmatmul.f32.gmra.mxu0 %v5645
  %v5708 = vpop.f32.mrf.mxu0
  %v5709 = vadd.f32 0.0, %v5708
  %5710 = vdwg.mxu0
  %v5712 = vsel %vm5278, %v5709, 0
  %5714 = vmatpush.msra.mxu0 0.0
  %5715 = vmatpush.msra.mxu0 0.0
  %5716 = vmatpush.msra.mxu0 0.0
  %5717 = vmatpush.msra.mxu0 0.0
  %5718 = vmatpush.msra.mxu0 0.0
  %5719 = vmatpush.msra.mxu0 0.0
  %5720 = vmatpush.msra.mxu0 0.0
  %5721 = vmatpush.msra.mxu0 0.0
  %5722 = vmatpush.msra.mxu0 0.0
  %5723 = vmatpush.msra.mxu0 0.0
  %5724 = vmatpush.msra.mxu0 0.0
  %5725 = vmatpush.msra.mxu0 0.0
  %5726 = vmatpush.msra.mxu0 0.0
  %5727 = vmatpush.msra.mxu0 0.0
  %5728 = vmatpush.msra.mxu0 %v5643
  %5729 = vmatpush.msra.mxu0 %v5642
  %5730 = vmatmul.f32.gmra.mxu0 %v5712
  %v5731 = vpop.f32.mrf.mxu0
  %v5732 = vadd.f32 0.0, %v5731
  %5733 = vdwg.mxu0
  %v5734 = vadd.f32 %v5638, %v5732
  %s5735 = scalar_lea.vmem %s12, 16
  %v5736 = vld [vmem:[%s5735] sm:$0xf]
  %s5737 = scalar_lea.vmem %s13, 64
  %v5738 = vld [vmem:[%s5737] sm:$0xff]
  %v5739 = vld [vmem:[%s5737 + $0x8] sm:$0xff]
  %v5741 = vsel %vm5278, %v5736, 0
  %5743 = vmatpush.msra.mxu0 0.0
  %5744 = vmatpush.msra.mxu0 0.0
  %5745 = vmatpush.msra.mxu0 0.0
  %5746 = vmatpush.msra.mxu0 0.0
  %5747 = vmatpush.msra.mxu0 0.0
  %5748 = vmatpush.msra.mxu0 0.0
  %5749 = vmatpush.msra.mxu0 0.0
  %5750 = vmatpush.msra.mxu0 0.0
  %5751 = vmatpush.msra.mxu0 0.0
  %5752 = vmatpush.msra.mxu0 0.0
  %5753 = vmatpush.msra.mxu0 0.0
  %5754 = vmatpush.msra.mxu0 0.0
  %5755 = vmatpush.msra.mxu0 0.0
  %5756 = vmatpush.msra.mxu0 0.0
  %5757 = vmatpush.msra.mxu0 %v5350
  %5758 = vmatpush.msra.mxu0 %v5349
  %5759 = vmatmul.f32.gmra.mxu0 %v5741
  %v5760 = vpop.f32.mrf.mxu0
  %v5761 = vadd.f32 0.0, %v5760
  %5762 = vdwg.mxu0
  %v5764 = vsel %vm5278, %v5761, 0
  %5766 = vmatpush.msra.mxu0 0.0
  %5767 = vmatpush.msra.mxu0 0.0
  %5768 = vmatpush.msra.mxu0 0.0
  %5769 = vmatpush.msra.mxu0 0.0
  %5770 = vmatpush.msra.mxu0 0.0
  %5771 = vmatpush.msra.mxu0 0.0
  %5772 = vmatpush.msra.mxu0 0.0
  %5773 = vmatpush.msra.mxu0 0.0
  %5774 = vmatpush.msra.mxu0 0.0
  %5775 = vmatpush.msra.mxu0 0.0
  %5776 = vmatpush.msra.mxu0 0.0
  %5777 = vmatpush.msra.mxu0 0.0
  %5778 = vmatpush.msra.mxu0 0.0
  %5779 = vmatpush.msra.mxu0 0.0
  %5780 = vmatpush.msra.mxu0 %v5739
  %5781 = vmatpush.msra.mxu0 %v5738
  %5782 = vmatmul.f32.gmra.mxu0 %v5764
  %v5783 = vpop.f32.mrf.mxu0
  %v5784 = vadd.f32 0.0, %v5783
  %5785 = vdwg.mxu0
  %v5786 = vadd.f32 %v5690, %v5784
  %5787 = vmatpush.msra.mxu0 0.0
  %5788 = vmatpush.msra.mxu0 0.0
  %5789 = vmatpush.msra.mxu0 0.0
  %5790 = vmatpush.msra.mxu0 0.0
  %5791 = vmatpush.msra.mxu0 0.0
  %5792 = vmatpush.msra.mxu0 0.0
  %5793 = vmatpush.msra.mxu0 0.0
  %5794 = vmatpush.msra.mxu0 0.0
  %5795 = vmatpush.msra.mxu0 0.0
  %5796 = vmatpush.msra.mxu0 0.0
  %5797 = vmatpush.msra.mxu0 0.0
  %5798 = vmatpush.msra.mxu0 0.0
  %5799 = vmatpush.msra.mxu0 0.0
  %5800 = vmatpush.msra.mxu0 0.0
  %5801 = vmatpush.msra.mxu0 %v5356
  %5802 = vmatpush.msra.mxu0 %v5355
  %5803 = vmatmul.f32.gmra.mxu0 %v5741
  %v5804 = vpop.f32.mrf.mxu0
  %v5805 = vadd.f32 0.0, %v5804
  %5806 = vdwg.mxu0
  %v5808 = vsel %vm5278, %v5805, 0
  %5810 = vmatpush.msra.mxu0 0.0
  %5811 = vmatpush.msra.mxu0 0.0
  %5812 = vmatpush.msra.mxu0 0.0
  %5813 = vmatpush.msra.mxu0 0.0
  %5814 = vmatpush.msra.mxu0 0.0
  %5815 = vmatpush.msra.mxu0 0.0
  %5816 = vmatpush.msra.mxu0 0.0
  %5817 = vmatpush.msra.mxu0 0.0
  %5818 = vmatpush.msra.mxu0 0.0
  %5819 = vmatpush.msra.mxu0 0.0
  %5820 = vmatpush.msra.mxu0 0.0
  %5821 = vmatpush.msra.mxu0 0.0
  %5822 = vmatpush.msra.mxu0 0.0
  %5823 = vmatpush.msra.mxu0 0.0
  %5824 = vmatpush.msra.mxu0 %v5739
  %5825 = vmatpush.msra.mxu0 %v5738
  %5826 = vmatmul.f32.gmra.mxu0 %v5808
  %v5827 = vpop.f32.mrf.mxu0
  %v5828 = vadd.f32 0.0, %v5827
  %5829 = vdwg.mxu0
  %v5830 = vadd.f32 %v5734, %v5828
  %s5831 = scalar_lea.vmem %s12, 20
  %v5832 = vld [vmem:[%s5831] sm:$0xf]
  %s5833 = scalar_lea.vmem %s13, 80
  %v5834 = vld [vmem:[%s5833] sm:$0xff]
  %v5835 = vld [vmem:[%s5833 + $0x8] sm:$0xff]
  %v5837 = vsel %vm5278, %v5832, 0
  %5839 = vmatpush.msra.mxu0 0.0
  %5840 = vmatpush.msra.mxu0 0.0
  %5841 = vmatpush.msra.mxu0 0.0
  %5842 = vmatpush.msra.mxu0 0.0
  %5843 = vmatpush.msra.mxu0 0.0
  %5844 = vmatpush.msra.mxu0 0.0
  %5845 = vmatpush.msra.mxu0 0.0
  %5846 = vmatpush.msra.mxu0 0.0
  %5847 = vmatpush.msra.mxu0 0.0
  %5848 = vmatpush.msra.mxu0 0.0
  %5849 = vmatpush.msra.mxu0 0.0
  %5850 = vmatpush.msra.mxu0 0.0
  %5851 = vmatpush.msra.mxu0 0.0
  %5852 = vmatpush.msra.mxu0 0.0
  %5853 = vmatpush.msra.mxu0 %v5350
  %5854 = vmatpush.msra.mxu0 %v5349
  %5855 = vmatmul.f32.gmra.mxu0 %v5837
  %v5856 = vpop.f32.mrf.mxu0
  %v5857 = vadd.f32 0.0, %v5856
  %5858 = vdwg.mxu0
  %v5860 = vsel %vm5278, %v5857, 0
  %5862 = vmatpush.msra.mxu0 0.0
  %5863 = vmatpush.msra.mxu0 0.0
  %5864 = vmatpush.msra.mxu0 0.0
  %5865 = vmatpush.msra.mxu0 0.0
  %5866 = vmatpush.msra.mxu0 0.0
  %5867 = vmatpush.msra.mxu0 0.0
  %5868 = vmatpush.msra.mxu0 0.0
  %5869 = vmatpush.msra.mxu0 0.0
  %5870 = vmatpush.msra.mxu0 0.0
  %5871 = vmatpush.msra.mxu0 0.0
  %5872 = vmatpush.msra.mxu0 0.0
  %5873 = vmatpush.msra.mxu0 0.0
  %5874 = vmatpush.msra.mxu0 0.0
  %5875 = vmatpush.msra.mxu0 0.0
  %5876 = vmatpush.msra.mxu0 %v5835
  %5877 = vmatpush.msra.mxu0 %v5834
  %5878 = vmatmul.f32.gmra.mxu0 %v5860
  %v5879 = vpop.f32.mrf.mxu0
  %v5880 = vadd.f32 0.0, %v5879
  %5881 = vdwg.mxu0
  %v5882 = vadd.f32 %v5786, %v5880
  %5883 = vmatpush.msra.mxu0 0.0
  %5884 = vmatpush.msra.mxu0 0.0
  %5885 = vmatpush.msra.mxu0 0.0
  %5886 = vmatpush.msra.mxu0 0.0
  %5887 = vmatpush.msra.mxu0 0.0
  %5888 = vmatpush.msra.mxu0 0.0
  %5889 = vmatpush.msra.mxu0 0.0
  %5890 = vmatpush.msra.mxu0 0.0
  %5891 = vmatpush.msra.mxu0 0.0
  %5892 = vmatpush.msra.mxu0 0.0
  %5893 = vmatpush.msra.mxu0 0.0
  %5894 = vmatpush.msra.mxu0 0.0
  %5895 = vmatpush.msra.mxu0 0.0
  %5896 = vmatpush.msra.mxu0 0.0
  %5897 = vmatpush.msra.mxu0 %v5356
  %5898 = vmatpush.msra.mxu0 %v5355
  %5899 = vmatmul.f32.gmra.mxu0 %v5837
  %v5900 = vpop.f32.mrf.mxu0
  %v5901 = vadd.f32 0.0, %v5900
  %5902 = vdwg.mxu0
  %v5904 = vsel %vm5278, %v5901, 0
  %5906 = vmatpush.msra.mxu0 0.0
  %5907 = vmatpush.msra.mxu0 0.0
  %5908 = vmatpush.msra.mxu0 0.0
  %5909 = vmatpush.msra.mxu0 0.0
  %5910 = vmatpush.msra.mxu0 0.0
  %5911 = vmatpush.msra.mxu0 0.0
  %5912 = vmatpush.msra.mxu0 0.0
  %5913 = vmatpush.msra.mxu0 0.0
  %5914 = vmatpush.msra.mxu0 0.0
  %5915 = vmatpush.msra.mxu0 0.0
  %5916 = vmatpush.msra.mxu0 0.0
  %5917 = vmatpush.msra.mxu0 0.0
  %5918 = vmatpush.msra.mxu0 0.0
  %5919 = vmatpush.msra.mxu0 0.0
  %5920 = vmatpush.msra.mxu0 %v5835
  %5921 = vmatpush.msra.mxu0 %v5834
  %5922 = vmatmul.f32.gmra.mxu0 %v5904
  %v5923 = vpop.f32.mrf.mxu0
  %v5924 = vadd.f32 0.0, %v5923
  %5925 = vdwg.mxu0
  %v5926 = vadd.f32 %v5830, %v5924
  %s5927 = scalar_lea.vmem %s12, 24
  %v5928 = vld [vmem:[%s5927] sm:$0xf]
  %s5929 = scalar_lea.vmem %s13, 96
  %v5930 = vld [vmem:[%s5929] sm:$0xff]
  %v5931 = vld [vmem:[%s5929 + $0x8] sm:$0xff]
  %v5933 = vsel %vm5278, %v5928, 0
  %5935 = vmatpush.msra.mxu0 0.0
  %5936 = vmatpush.msra.mxu0 0.0
  %5937 = vmatpush.msra.mxu0 0.0
  %5938 = vmatpush.msra.mxu0 0.0
  %5939 = vmatpush.msra.mxu0 0.0
  %5940 = vmatpush.msra.mxu0 0.0
  %5941 = vmatpush.msra.mxu0 0.0
  %5942 = vmatpush.msra.mxu0 0.0
  %5943 = vmatpush.msra.mxu0 0.0
  %5944 = vmatpush.msra.mxu0 0.0
  %5945 = vmatpush.msra.mxu0 0.0
  %5946 = vmatpush.msra.mxu0 0.0
  %5947 = vmatpush.msra.mxu0 0.0
  %5948 = vmatpush.msra.mxu0 0.0
  %5949 = vmatpush.msra.mxu0 %v5350
  %5950 = vmatpush.msra.mxu0 %v5349
  %5951 = vmatmul.f32.gmra.mxu0 %v5933
  %v5952 = vpop.f32.mrf.mxu0
  %v5953 = vadd.f32 0.0, %v5952
  %5954 = vdwg.mxu0
  %v5956 = vsel %vm5278, %v5953, 0
  %5958 = vmatpush.msra.mxu0 0.0
  %5959 = vmatpush.msra.mxu0 0.0
  %5960 = vmatpush.msra.mxu0 0.0
  %5961 = vmatpush.msra.mxu0 0.0
  %5962 = vmatpush.msra.mxu0 0.0
  %5963 = vmatpush.msra.mxu0 0.0
  %5964 = vmatpush.msra.mxu0 0.0
  %5965 = vmatpush.msra.mxu0 0.0
  %5966 = vmatpush.msra.mxu0 0.0
  %5967 = vmatpush.msra.mxu0 0.0
  %5968 = vmatpush.msra.mxu0 0.0
  %5969 = vmatpush.msra.mxu0 0.0
  %5970 = vmatpush.msra.mxu0 0.0
  %5971 = vmatpush.msra.mxu0 0.0
  %5972 = vmatpush.msra.mxu0 %v5931
  %5973 = vmatpush.msra.mxu0 %v5930
  %5974 = vmatmul.f32.gmra.mxu0 %v5956
  %v5975 = vpop.f32.mrf.mxu0
  %v5976 = vadd.f32 0.0, %v5975
  %5977 = vdwg.mxu0
  %v5978 = vadd.f32 %v5882, %v5976
  %5979 = vmatpush.msra.mxu0 0.0
  %5980 = vmatpush.msra.mxu0 0.0
  %5981 = vmatpush.msra.mxu0 0.0
  %5982 = vmatpush.msra.mxu0 0.0
  %5983 = vmatpush.msra.mxu0 0.0
  %5984 = vmatpush.msra.mxu0 0.0
  %5985 = vmatpush.msra.mxu0 0.0
  %5986 = vmatpush.msra.mxu0 0.0
  %5987 = vmatpush.msra.mxu0 0.0
  %5988 = vmatpush.msra.mxu0 0.0
  %5989 = vmatpush.msra.mxu0 0.0
  %5990 = vmatpush.msra.mxu0 0.0
  %5991 = vmatpush.msra.mxu0 0.0
  %5992 = vmatpush.msra.mxu0 0.0
  %5993 = vmatpush.msra.mxu0 %v5356
  %5994 = vmatpush.msra.mxu0 %v5355
  %5995 = vmatmul.f32.gmra.mxu0 %v5933
  %v5996 = vpop.f32.mrf.mxu0
  %v5997 = vadd.f32 0.0, %v5996
  %5998 = vdwg.mxu0
  %v6000 = vsel %vm5278, %v5997, 0
  %6002 = vmatpush.msra.mxu0 0.0
  %6003 = vmatpush.msra.mxu0 0.0
  %6004 = vmatpush.msra.mxu0 0.0
  %6005 = vmatpush.msra.mxu0 0.0
  %6006 = vmatpush.msra.mxu0 0.0
  %6007 = vmatpush.msra.mxu0 0.0
  %6008 = vmatpush.msra.mxu0 0.0
  %6009 = vmatpush.msra.mxu0 0.0
  %6010 = vmatpush.msra.mxu0 0.0
  %6011 = vmatpush.msra.mxu0 0.0
  %6012 = vmatpush.msra.mxu0 0.0
  %6013 = vmatpush.msra.mxu0 0.0
  %6014 = vmatpush.msra.mxu0 0.0
  %6015 = vmatpush.msra.mxu0 0.0
  %6016 = vmatpush.msra.mxu0 %v5931
  %6017 = vmatpush.msra.mxu0 %v5930
  %6018 = vmatmul.f32.gmra.mxu0 %v6000
  %v6019 = vpop.f32.mrf.mxu0
  %v6020 = vadd.f32 0.0, %v6019
  %6021 = vdwg.mxu0
  %v6022 = vadd.f32 %v5926, %v6020
  %s6023 = scalar_lea.vmem %s12, 28
  %v6024 = vld [vmem:[%s6023] sm:$0xf]
  %s6025 = scalar_lea.vmem %s13, 112
  %v6026 = vld [vmem:[%s6025] sm:$0xff]
  %v6027 = vld [vmem:[%s6025 + $0x8] sm:$0xff]
  %v6029 = vsel %vm5278, %v6024, 0
  %6031 = vmatpush.msra.mxu0 0.0
  %6032 = vmatpush.msra.mxu0 0.0
  %6033 = vmatpush.msra.mxu0 0.0
  %6034 = vmatpush.msra.mxu0 0.0
  %6035 = vmatpush.msra.mxu0 0.0
  %6036 = vmatpush.msra.mxu0 0.0
  %6037 = vmatpush.msra.mxu0 0.0
  %6038 = vmatpush.msra.mxu0 0.0
  %6039 = vmatpush.msra.mxu0 0.0
  %6040 = vmatpush.msra.mxu0 0.0
  %6041 = vmatpush.msra.mxu0 0.0
  %6042 = vmatpush.msra.mxu0 0.0
  %6043 = vmatpush.msra.mxu0 0.0
  %6044 = vmatpush.msra.mxu0 0.0
  %6045 = vmatpush.msra.mxu0 %v5350
  %6046 = vmatpush.msra.mxu0 %v5349
  %6047 = vmatmul.f32.gmra.mxu0 %v6029
  %v6048 = vpop.f32.mrf.mxu0
  %v6049 = vadd.f32 0.0, %v6048
  %6050 = vdwg.mxu0
  %v6052 = vsel %vm5278, %v6049, 0
  %6054 = vmatpush.msra.mxu0 0.0
  %6055 = vmatpush.msra.mxu0 0.0
  %6056 = vmatpush.msra.mxu0 0.0
  %6057 = vmatpush.msra.mxu0 0.0
  %6058 = vmatpush.msra.mxu0 0.0
  %6059 = vmatpush.msra.mxu0 0.0
  %6060 = vmatpush.msra.mxu0 0.0
  %6061 = vmatpush.msra.mxu0 0.0
  %6062 = vmatpush.msra.mxu0 0.0
  %6063 = vmatpush.msra.mxu0 0.0
  %6064 = vmatpush.msra.mxu0 0.0
  %6065 = vmatpush.msra.mxu0 0.0
  %6066 = vmatpush.msra.mxu0 0.0
  %6067 = vmatpush.msra.mxu0 0.0
  %6068 = vmatpush.msra.mxu0 %v6027
  %6069 = vmatpush.msra.mxu0 %v6026
  %6070 = vmatmul.f32.gmra.mxu0 %v6052
  %v6071 = vpop.f32.mrf.mxu0
  %v6072 = vadd.f32 0.0, %v6071
  %6073 = vdwg.mxu0
  %v6074 = vadd.f32 %v5978, %v6072
  %6075 = vmatpush.msra.mxu0 0.0
  %6076 = vmatpush.msra.mxu0 0.0
  %6077 = vmatpush.msra.mxu0 0.0
  %6078 = vmatpush.msra.mxu0 0.0
  %6079 = vmatpush.msra.mxu0 0.0
  %6080 = vmatpush.msra.mxu0 0.0
  %6081 = vmatpush.msra.mxu0 0.0
  %6082 = vmatpush.msra.mxu0 0.0
  %6083 = vmatpush.msra.mxu0 0.0
  %6084 = vmatpush.msra.mxu0 0.0
  %6085 = vmatpush.msra.mxu0 0.0
  %6086 = vmatpush.msra.mxu0 0.0
  %6087 = vmatpush.msra.mxu0 0.0
  %6088 = vmatpush.msra.mxu0 0.0
  %6089 = vmatpush.msra.mxu0 %v5356
  %6090 = vmatpush.msra.mxu0 %v5355
  %6091 = vmatmul.f32.gmra.mxu0 %v6029
  %v6092 = vpop.f32.mrf.mxu0
  %v6093 = vadd.f32 0.0, %v6092
  %6094 = vdwg.mxu0
  %v6096 = vsel %vm5278, %v6093, 0
  %6098 = vmatpush.msra.mxu0 0.0
  %6099 = vmatpush.msra.mxu0 0.0
  %6100 = vmatpush.msra.mxu0 0.0
  %6101 = vmatpush.msra.mxu0 0.0
  %6102 = vmatpush.msra.mxu0 0.0
  %6103 = vmatpush.msra.mxu0 0.0
  %6104 = vmatpush.msra.mxu0 0.0
  %6105 = vmatpush.msra.mxu0 0.0
  %6106 = vmatpush.msra.mxu0 0.0
  %6107 = vmatpush.msra.mxu0 0.0
  %6108 = vmatpush.msra.mxu0 0.0
  %6109 = vmatpush.msra.mxu0 0.0
  %6110 = vmatpush.msra.mxu0 0.0
  %6111 = vmatpush.msra.mxu0 0.0
  %6112 = vmatpush.msra.mxu0 %v6027
  %6113 = vmatpush.msra.mxu0 %v6026
  %6114 = vmatmul.f32.gmra.mxu0 %v6096
  %v6115 = vpop.f32.mrf.mxu0
  %v6116 = vadd.f32 0.0, %v6115
  %6117 = vdwg.mxu0
  %v6118 = vadd.f32 %v6022, %v6116
  %s6119 = scalar_lea.vmem %s12, 32
  %v6120 = vld [vmem:[%s6119] sm:$0xf]
  %s6121 = scalar_lea.vmem %s13, 128
  %v6122 = vld [vmem:[%s6121] sm:$0xff]
  %v6123 = vld [vmem:[%s6121 + $0x8] sm:$0xff]
  %v6125 = vsel %vm5278, %v6120, 0
  %6127 = vmatpush.msra.mxu0 0.0
  %6128 = vmatpush.msra.mxu0 0.0
  %6129 = vmatpush.msra.mxu0 0.0
  %6130 = vmatpush.msra.mxu0 0.0
  %6131 = vmatpush.msra.mxu0 0.0
  %6132 = vmatpush.msra.mxu0 0.0
  %6133 = vmatpush.msra.mxu0 0.0
  %6134 = vmatpush.msra.mxu0 0.0
  %6135 = vmatpush.msra.mxu0 0.0
  %6136 = vmatpush.msra.mxu0 0.0
  %6137 = vmatpush.msra.mxu0 0.0
  %6138 = vmatpush.msra.mxu0 0.0
  %6139 = vmatpush.msra.mxu0 0.0
  %6140 = vmatpush.msra.mxu0 0.0
  %6141 = vmatpush.msra.mxu0 %v5350
  %6142 = vmatpush.msra.mxu0 %v5349
  %6143 = vmatmul.f32.gmra.mxu0 %v6125
  %v6144 = vpop.f32.mrf.mxu0
  %v6145 = vadd.f32 0.0, %v6144
  %6146 = vdwg.mxu0
  %v6148 = vsel %vm5278, %v6145, 0
  %6150 = vmatpush.msra.mxu0 0.0
  %6151 = vmatpush.msra.mxu0 0.0
  %6152 = vmatpush.msra.mxu0 0.0
  %6153 = vmatpush.msra.mxu0 0.0
  %6154 = vmatpush.msra.mxu0 0.0
  %6155 = vmatpush.msra.mxu0 0.0
  %6156 = vmatpush.msra.mxu0 0.0
  %6157 = vmatpush.msra.mxu0 0.0
  %6158 = vmatpush.msra.mxu0 0.0
  %6159 = vmatpush.msra.mxu0 0.0
  %6160 = vmatpush.msra.mxu0 0.0
  %6161 = vmatpush.msra.mxu0 0.0
  %6162 = vmatpush.msra.mxu0 0.0
  %6163 = vmatpush.msra.mxu0 0.0
  %6164 = vmatpush.msra.mxu0 %v6123
  %6165 = vmatpush.msra.mxu0 %v6122
  %6166 = vmatmul.f32.gmra.mxu0 %v6148
  %v6167 = vpop.f32.mrf.mxu0
  %v6168 = vadd.f32 0.0, %v6167
  %6169 = vdwg.mxu0
  %v6170 = vadd.f32 %v6074, %v6168
  %6171 = vmatpush.msra.mxu0 0.0
  %6172 = vmatpush.msra.mxu0 0.0
  %6173 = vmatpush.msra.mxu0 0.0
  %6174 = vmatpush.msra.mxu0 0.0
  %6175 = vmatpush.msra.mxu0 0.0
  %6176 = vmatpush.msra.mxu0 0.0
  %6177 = vmatpush.msra.mxu0 0.0
  %6178 = vmatpush.msra.mxu0 0.0
  %6179 = vmatpush.msra.mxu0 0.0
  %6180 = vmatpush.msra.mxu0 0.0
  %6181 = vmatpush.msra.mxu0 0.0
  %6182 = vmatpush.msra.mxu0 0.0
  %6183 = vmatpush.msra.mxu0 0.0
  %6184 = vmatpush.msra.mxu0 0.0
  %6185 = vmatpush.msra.mxu0 %v5356
  %6186 = vmatpush.msra.mxu0 %v5355
  %6187 = vmatmul.f32.gmra.mxu0 %v6125
  %v6188 = vpop.f32.mrf.mxu0
  %v6189 = vadd.f32 0.0, %v6188
  %6190 = vdwg.mxu0
  %v6192 = vsel %vm5278, %v6189, 0
  %6194 = vmatpush.msra.mxu0 0.0
  %6195 = vmatpush.msra.mxu0 0.0
  %6196 = vmatpush.msra.mxu0 0.0
  %6197 = vmatpush.msra.mxu0 0.0
  %6198 = vmatpush.msra.mxu0 0.0
  %6199 = vmatpush.msra.mxu0 0.0
  %6200 = vmatpush.msra.mxu0 0.0
  %6201 = vmatpush.msra.mxu0 0.0
  %6202 = vmatpush.msra.mxu0 0.0
  %6203 = vmatpush.msra.mxu0 0.0
  %6204 = vmatpush.msra.mxu0 0.0
  %6205 = vmatpush.msra.mxu0 0.0
  %6206 = vmatpush.msra.mxu0 0.0
  %6207 = vmatpush.msra.mxu0 0.0
  %6208 = vmatpush.msra.mxu0 %v6123
  %6209 = vmatpush.msra.mxu0 %v6122
  %6210 = vmatmul.f32.gmra.mxu0 %v6192
  %v6211 = vpop.f32.mrf.mxu0
  %v6212 = vadd.f32 0.0, %v6211
  %6213 = vdwg.mxu0
  %v6214 = vadd.f32 %v6118, %v6212
  %v6215 = vld [vmem:[%s14] sm:$0x1]
  %v6216 = vld [vmem:[%s15] sm:$0x1]
  %vm6217 = vcmask 257024
  %v6218 = vsel %vm6217, %v6170, 0.0
  %v6219 = vrot.slane %v6218, 4
  %v6220 = vadd.f32 %v6218, %v6219
  %v6221 = vrot.slane %v6220, 2
  %v6222 = vadd.f32 %v6220, %v6221
  %v6223 = vrot.slane %v6222, 1
  %v6224 = vadd.f32 %v6222, %v6223
  %v6225 = vmul.f32 %v6170, %v6170
  %v6226 = vsel %vm6217, %v6225, 0.0
  %v6227 = vrot.slane %v6226, 4
  %v6228 = vadd.f32 %v6226, %v6227
  %v6229 = vrot.slane %v6228, 2
  %v6230 = vadd.f32 %v6228, %v6229
  %v6231 = vrot.slane %v6230, 1
  %v6232 = vadd.f32 %v6230, %v6231
  %v6233 = vsel %vm6217, %v6214, 0.0
  %v6234 = vrot.slane %v6233, 4
  %v6235 = vadd.f32 %v6233, %v6234
  %v6236 = vrot.slane %v6235, 2
  %v6237 = vadd.f32 %v6235, %v6236
  %v6238 = vrot.slane %v6237, 1
  %v6239 = vadd.f32 %v6237, %v6238
  %v6240 = vadd.f32 %v6224, %v6239
  %v6241 = vmul.f32 %v6214, %v6214
  %v6242 = vsel %vm6217, %v6241, 0.0
  %v6243 = vrot.slane %v6242, 4
  %v6244 = vadd.f32 %v6242, %v6243
  %v6245 = vrot.slane %v6244, 2
  %v6246 = vadd.f32 %v6244, %v6245
  %v6247 = vrot.slane %v6246, 1
  %v6248 = vadd.f32 %v6246, %v6247
  %v6249 = vadd.f32 %v6232, %v6248
  %v6250 = vmul.f32 %v6240, 0.125
  %v6251 = vmul.f32 %v6249, 0.125
  %v6252 = vmul.f32 %v6250, %v6250
  %v6253 = vsub.f32 %v6251, %v6252
  %v6254 = vadd.f32 %v6253, 1e-05
  %v6255 = vrsqrt.pop %v6254
  %v6256 = vmul.f32 %v6255, %v6254
  %v6257 = vmul.f32 %v6256, %v6255
  %v6258 = vmul.f32 0.5, %v6257
  %v6259 = vsub.f32 1.5, %v6258
  %v6260 = vmul.f32 %v6255, %v6259
  %vm6261 = vweird.f32 %v6254
  %vm6262 = vweird.f32 %v6255
  %vm6263 = vmor %vm6261, %vm6262
  %v6264 = vsel %vm6263, %v6255, %v6260
  %v6265 = vmul.f32 %v6215, %v6264
  %v6266 = vmul.f32 %v6250, %v6265
  %v6267 = vsub.f32 %v6216, %v6266
  %v6269 = vperm.slane %v6265, 0
  %v6271 = vmul.f32 %v6170, %v6269
  %v6273 = vperm.slane %v6267, 0
  %v6275 = vadd.f32 %v6271, %v6273
  %v6276 = vmax.f32 %v6275, 0.0
  %v6277 = vmul.f32 %v6214, %v6269
  %v6278 = vadd.f32 %v6277, %v6273
  %v6279 = vmax.f32 %v6278, 0.0
  %v6280 = vld [vmem:[%s16] sm:$0x1]
  %v6281 = vld [vmem:[%s17] sm:$0xff]
  %v6282 = vld [vmem:[%s17 + $0x8] sm:$0xff]
  %v6283 = vld [vmem:[%s17 + $0x10] sm:$0xff]
  %v6284 = vld [vmem:[%s17 + $0x18] sm:$0xff]
  %v6286 = vsel %vm535, %v6280, 0
  %v6289 = vsel %vm1388, %v6276, 0
  %6291 = vmatpush.msra.mxu0 0.0
  %6292 = vmatpush.msra.mxu0 0.0
  %6293 = vmatpush.msra.mxu0 0.0
  %6294 = vmatpush.msra.mxu0 0.0
  %6295 = vmatpush.msra.mxu0 0.0
  %6296 = vmatpush.msra.mxu0 0.0
  %6297 = vmatpush.msra.mxu0 0.0
  %6298 = vmatpush.msra.mxu0 0.0
  %6299 = vmatpush.msra.mxu0 0.0
  %6300 = vmatpush.msra.mxu0 0.0
  %6301 = vmatpush.msra.mxu0 0.0
  %6302 = vmatpush.msra.mxu0 0.0
  %6303 = vmatpush.msra.mxu0 0.0
  %6304 = vmatpush.msra.mxu0 0.0
  %6305 = vmatpush.msra.mxu0 0.0
  %6306 = vmatpush.msra.mxu0 %v6289
  %6307 = vmatmul.f32.gmra.mxu0 %v6286
  %v6308 = vpop.f32.mrf.mxu0
  %v6309 = vadd.f32 0.0, %v6308
  %6310 = vdwg.mxu0
  %v6312 = vsel %vm1388, %v6279, 0
  %6314 = vmatpush.msra.mxu0 0.0
  %6315 = vmatpush.msra.mxu0 0.0
  %6316 = vmatpush.msra.mxu0 0.0
  %6317 = vmatpush.msra.mxu0 0.0
  %6318 = vmatpush.msra.mxu0 0.0
  %6319 = vmatpush.msra.mxu0 0.0
  %6320 = vmatpush.msra.mxu0 0.0
  %6321 = vmatpush.msra.mxu0 0.0
  %6322 = vmatpush.msra.mxu0 0.0
  %6323 = vmatpush.msra.mxu0 0.0
  %6324 = vmatpush.msra.mxu0 0.0
  %6325 = vmatpush.msra.mxu0 0.0
  %6326 = vmatpush.msra.mxu0 0.0
  %6327 = vmatpush.msra.mxu0 0.0
  %6328 = vmatpush.msra.mxu0 0.0
  %6329 = vmatpush.msra.mxu0 %v6312
  %6330 = vmatmul.f32.gmra.mxu0 %v6286
  %v6331 = vpop.f32.mrf.mxu0
  %v6332 = vadd.f32 0.0, %v6331
  %6333 = vdwg.mxu0
  %s6334 = scalar_lea.vmem %s16, 1
  %v6335 = vld [vmem:[%s6334] sm:$0x1]
  %s6336 = scalar_lea.vmem %s17, 32
  %v6337 = vld [vmem:[%s6336] sm:$0xff]
  %v6338 = vld [vmem:[%s6336 + $0x8] sm:$0xff]
  %v6339 = vld [vmem:[%s6336 + $0x10] sm:$0xff]
  %v6340 = vld [vmem:[%s6336 + $0x18] sm:$0xff]
  %v6342 = vsel %vm535, %v6335, 0
  %6344 = vmatpush.msra.mxu0 0.0
  %6345 = vmatpush.msra.mxu0 0.0
  %6346 = vmatpush.msra.mxu0 0.0
  %6347 = vmatpush.msra.mxu0 0.0
  %6348 = vmatpush.msra.mxu0 0.0
  %6349 = vmatpush.msra.mxu0 0.0
  %6350 = vmatpush.msra.mxu0 0.0
  %6351 = vmatpush.msra.mxu0 0.0
  %6352 = vmatpush.msra.mxu0 0.0
  %6353 = vmatpush.msra.mxu0 0.0
  %6354 = vmatpush.msra.mxu0 0.0
  %6355 = vmatpush.msra.mxu0 0.0
  %6356 = vmatpush.msra.mxu0 0.0
  %6357 = vmatpush.msra.mxu0 0.0
  %6358 = vmatpush.msra.mxu0 0.0
  %6359 = vmatpush.msra.mxu0 %v6289
  %6360 = vmatmul.f32.gmra.mxu0 %v6342
  %v6361 = vpop.f32.mrf.mxu0
  %v6362 = vadd.f32 0.0, %v6361
  %6363 = vdwg.mxu0
  %vm6364 = vcmask 261120
  %v6366 = vsel %vm6364, %v6362, 0
  %6368 = vmatpush.msra.mxu0 0.0
  %6369 = vmatpush.msra.mxu0 0.0
  %6370 = vmatpush.msra.mxu0 0.0
  %6371 = vmatpush.msra.mxu0 0.0
  %6372 = vmatpush.msra.mxu0 0.0
  %6373 = vmatpush.msra.mxu0 0.0
  %6374 = vmatpush.msra.mxu0 0.0
  %6375 = vmatpush.msra.mxu0 0.0
  %6376 = vmatpush.msra.mxu0 0.0
  %6377 = vmatpush.msra.mxu0 0.0
  %6378 = vmatpush.msra.mxu0 0.0
  %6379 = vmatpush.msra.mxu0 0.0
  %6380 = vmatpush.msra.mxu0 %v6340
  %6381 = vmatpush.msra.mxu0 %v6339
  %6382 = vmatpush.msra.mxu0 %v6338
  %6383 = vmatpush.msra.mxu0 %v6337
  %6384 = vmatmul.f32.gmra.mxu0 %v6366
  %v6385 = vpop.f32.mrf.mxu0
  %v6386 = vadd.f32 0.0, %v6385
  %6387 = vdwg.mxu0
  %v6389 = vsel %vm6364, %v6309, 0
  %6391 = vmatpush.msra.mxu0 0.0
  %6392 = vmatpush.msra.mxu0 0.0
  %6393 = vmatpush.msra.mxu0 0.0
  %6394 = vmatpush.msra.mxu0 0.0
  %6395 = vmatpush.msra.mxu0 0.0
  %6396 = vmatpush.msra.mxu0 0.0
  %6397 = vmatpush.msra.mxu0 0.0
  %6398 = vmatpush.msra.mxu0 0.0
  %6399 = vmatpush.msra.mxu0 0.0
  %6400 = vmatpush.msra.mxu0 0.0
  %6401 = vmatpush.msra.mxu0 0.0
  %6402 = vmatpush.msra.mxu0 0.0
  %6403 = vmatpush.msra.mxu0 %v6284
  %6404 = vmatpush.msra.mxu0 %v6283
  %6405 = vmatpush.msra.mxu0 %v6282
  %6406 = vmatpush.msra.mxu0 %v6281
  %6407 = vmatmul.f32.gmra.mxu0 %v6389
  %v6408 = vpop.f32.mrf.mxu0
  %v6409 = vadd.f32 %v6386, %v6408
  %6410 = vdwg.mxu0
  %6411 = vmatpush.msra.mxu0 0.0
  %6412 = vmatpush.msra.mxu0 0.0
  %6413 = vmatpush.msra.mxu0 0.0
  %6414 = vmatpush.msra.mxu0 0.0
  %6415 = vmatpush.msra.mxu0 0.0
  %6416 = vmatpush.msra.mxu0 0.0
  %6417 = vmatpush.msra.mxu0 0.0
  %6418 = vmatpush.msra.mxu0 0.0
  %6419 = vmatpush.msra.mxu0 0.0
  %6420 = vmatpush.msra.mxu0 0.0
  %6421 = vmatpush.msra.mxu0 0.0
  %6422 = vmatpush.msra.mxu0 0.0
  %6423 = vmatpush.msra.mxu0 0.0
  %6424 = vmatpush.msra.mxu0 0.0
  %6425 = vmatpush.msra.mxu0 0.0
  %6426 = vmatpush.msra.mxu0 %v6312
  %6427 = vmatmul.f32.gmra.mxu0 %v6342
  %v6428 = vpop.f32.mrf.mxu0
  %v6429 = vadd.f32 0.0, %v6428
  %6430 = vdwg.mxu0
  %v6432 = vsel %vm6364, %v6429, 0
  %6434 = vmatpush.msra.mxu0 0.0
  %6435 = vmatpush.msra.mxu0 0.0
  %6436 = vmatpush.msra.mxu0 0.0
  %6437 = vmatpush.msra.mxu0 0.0
  %6438 = vmatpush.msra.mxu0 0.0
  %6439 = vmatpush.msra.mxu0 0.0
  %6440 = vmatpush.msra.mxu0 0.0
  %6441 = vmatpush.msra.mxu0 0.0
  %6442 = vmatpush.msra.mxu0 0.0
  %6443 = vmatpush.msra.mxu0 0.0
  %6444 = vmatpush.msra.mxu0 0.0
  %6445 = vmatpush.msra.mxu0 0.0
  %6446 = vmatpush.msra.mxu0 %v6340
  %6447 = vmatpush.msra.mxu0 %v6339
  %6448 = vmatpush.msra.mxu0 %v6338
  %6449 = vmatpush.msra.mxu0 %v6337
  %6450 = vmatmul.f32.gmra.mxu0 %v6432
  %v6451 = vpop.f32.mrf.mxu0
  %v6452 = vadd.f32 0.0, %v6451
  %6453 = vdwg.mxu0
  %v6455 = vsel %vm6364, %v6332, 0
  %6457 = vmatpush.msra.mxu0 0.0
  %6458 = vmatpush.msra.mxu0 0.0
  %6459 = vmatpush.msra.mxu0 0.0
  %6460 = vmatpush.msra.mxu0 0.0
  %6461 = vmatpush.msra.mxu0 0.0
  %6462 = vmatpush.msra.mxu0 0.0
  %6463 = vmatpush.msra.mxu0 0.0
  %6464 = vmatpush.msra.mxu0 0.0
  %6465 = vmatpush.msra.mxu0 0.0
  %6466 = vmatpush.msra.mxu0 0.0
  %6467 = vmatpush.msra.mxu0 0.0
  %6468 = vmatpush.msra.mxu0 0.0
  %6469 = vmatpush.msra.mxu0 %v6284
  %6470 = vmatpush.msra.mxu0 %v6283
  %6471 = vmatpush.msra.mxu0 %v6282
  %6472 = vmatpush.msra.mxu0 %v6281
  %6473 = vmatmul.f32.gmra.mxu0 %v6455
  %v6474 = vpop.f32.mrf.mxu0
  %v6475 = vadd.f32 %v6452, %v6474
  %6476 = vdwg.mxu0
  %s6477 = scalar_lea.vmem %s16, 2
  %v6478 = vld [vmem:[%s6477] sm:$0x1]
  %s6479 = scalar_lea.vmem %s17, 64
  %v6480 = vld [vmem:[%s6479] sm:$0xff]
  %v6481 = vld [vmem:[%s6479 + $0x8] sm:$0xff]
  %v6482 = vld [vmem:[%s6479 + $0x10] sm:$0xff]
  %v6483 = vld [vmem:[%s6479 + $0x18] sm:$0xff]
  %v6485 = vsel %vm535, %v6478, 0
  %6487 = vmatpush.msra.mxu0 0.0
  %6488 = vmatpush.msra.mxu0 0.0
  %6489 = vmatpush.msra.mxu0 0.0
  %6490 = vmatpush.msra.mxu0 0.0
  %6491 = vmatpush.msra.mxu0 0.0
  %6492 = vmatpush.msra.mxu0 0.0
  %6493 = vmatpush.msra.mxu0 0.0
  %6494 = vmatpush.msra.mxu0 0.0
  %6495 = vmatpush.msra.mxu0 0.0
  %6496 = vmatpush.msra.mxu0 0.0
  %6497 = vmatpush.msra.mxu0 0.0
  %6498 = vmatpush.msra.mxu0 0.0
  %6499 = vmatpush.msra.mxu0 0.0
  %6500 = vmatpush.msra.mxu0 0.0
  %6501 = vmatpush.msra.mxu0 0.0
  %6502 = vmatpush.msra.mxu0 %v6289
  %6503 = vmatmul.f32.gmra.mxu0 %v6485
  %v6504 = vpop.f32.mrf.mxu0
  %v6505 = vadd.f32 0.0, %v6504
  %6506 = vdwg.mxu0
  %v6508 = vsel %vm6364, %v6505, 0
  %6510 = vmatpush.msra.mxu0 0.0
  %6511 = vmatpush.msra.mxu0 0.0
  %6512 = vmatpush.msra.mxu0 0.0
  %6513 = vmatpush.msra.mxu0 0.0
  %6514 = vmatpush.msra.mxu0 0.0
  %6515 = vmatpush.msra.mxu0 0.0
  %6516 = vmatpush.msra.mxu0 0.0
  %6517 = vmatpush.msra.mxu0 0.0
  %6518 = vmatpush.msra.mxu0 0.0
  %6519 = vmatpush.msra.mxu0 0.0
  %6520 = vmatpush.msra.mxu0 0.0
  %6521 = vmatpush.msra.mxu0 0.0
  %6522 = vmatpush.msra.mxu0 %v6483
  %6523 = vmatpush.msra.mxu0 %v6482
  %6524 = vmatpush.msra.mxu0 %v6481
  %6525 = vmatpush.msra.mxu0 %v6480
  %6526 = vmatmul.f32.gmra.mxu0 %v6508
  %v6527 = vpop.f32.mrf.mxu0
  %v6528 = vadd.f32 0.0, %v6527
  %6529 = vdwg.mxu0
  %v6530 = vadd.f32 %v6409, %v6528
  %6531 = vmatpush.msra.mxu0 0.0
  %6532 = vmatpush.msra.mxu0 0.0
  %6533 = vmatpush.msra.mxu0 0.0
  %6534 = vmatpush.msra.mxu0 0.0
  %6535 = vmatpush.msra.mxu0 0.0
  %6536 = vmatpush.msra.mxu0 0.0
  %6537 = vmatpush.msra.mxu0 0.0
  %6538 = vmatpush.msra.mxu0 0.0
  %6539 = vmatpush.msra.mxu0 0.0
  %6540 = vmatpush.msra.mxu0 0.0
  %6541 = vmatpush.msra.mxu0 0.0
  %6542 = vmatpush.msra.mxu0 0.0
  %6543 = vmatpush.msra.mxu0 0.0
  %6544 = vmatpush.msra.mxu0 0.0
  %6545 = vmatpush.msra.mxu0 0.0
  %6546 = vmatpush.msra.mxu0 %v6312
  %6547 = vmatmul.f32.gmra.mxu0 %v6485
  %v6548 = vpop.f32.mrf.mxu0
  %v6549 = vadd.f32 0.0, %v6548
  %6550 = vdwg.mxu0
  %v6552 = vsel %vm6364, %v6549, 0
  %6554 = vmatpush.msra.mxu0 0.0
  %6555 = vmatpush.msra.mxu0 0.0
  %6556 = vmatpush.msra.mxu0 0.0
  %6557 = vmatpush.msra.mxu0 0.0
  %6558 = vmatpush.msra.mxu0 0.0
  %6559 = vmatpush.msra.mxu0 0.0
  %6560 = vmatpush.msra.mxu0 0.0
  %6561 = vmatpush.msra.mxu0 0.0
  %6562 = vmatpush.msra.mxu0 0.0
  %6563 = vmatpush.msra.mxu0 0.0
  %6564 = vmatpush.msra.mxu0 0.0
  %6565 = vmatpush.msra.mxu0 0.0
  %6566 = vmatpush.msra.mxu0 %v6483
  %6567 = vmatpush.msra.mxu0 %v6482
  %6568 = vmatpush.msra.mxu0 %v6481
  %6569 = vmatpush.msra.mxu0 %v6480
  %6570 = vmatmul.f32.gmra.mxu0 %v6552
  %v6571 = vpop.f32.mrf.mxu0
  %v6572 = vadd.f32 0.0, %v6571
  %6573 = vdwg.mxu0
  %v6574 = vadd.f32 %v6475, %v6572
  %s6575 = scalar_lea.vmem %s16, 3
  %v6576 = vld [vmem:[%s6575] sm:$0x1]
  %s6577 = scalar_lea.vmem %s17, 96
  %v6578 = vld [vmem:[%s6577] sm:$0xff]
  %v6579 = vld [vmem:[%s6577 + $0x8] sm:$0xff]
  %v6580 = vld [vmem:[%s6577 + $0x10] sm:$0xff]
  %v6581 = vld [vmem:[%s6577 + $0x18] sm:$0xff]
  %v6583 = vsel %vm535, %v6576, 0
  %6585 = vmatpush.msra.mxu0 0.0
  %6586 = vmatpush.msra.mxu0 0.0
  %6587 = vmatpush.msra.mxu0 0.0
  %6588 = vmatpush.msra.mxu0 0.0
  %6589 = vmatpush.msra.mxu0 0.0
  %6590 = vmatpush.msra.mxu0 0.0
  %6591 = vmatpush.msra.mxu0 0.0
  %6592 = vmatpush.msra.mxu0 0.0
  %6593 = vmatpush.msra.mxu0 0.0
  %6594 = vmatpush.msra.mxu0 0.0
  %6595 = vmatpush.msra.mxu0 0.0
  %6596 = vmatpush.msra.mxu0 0.0
  %6597 = vmatpush.msra.mxu0 0.0
  %6598 = vmatpush.msra.mxu0 0.0
  %6599 = vmatpush.msra.mxu0 0.0
  %6600 = vmatpush.msra.mxu0 %v6289
  %6601 = vmatmul.f32.gmra.mxu0 %v6583
  %v6602 = vpop.f32.mrf.mxu0
  %v6603 = vadd.f32 0.0, %v6602
  %6604 = vdwg.mxu0
  %v6606 = vsel %vm6364, %v6603, 0
  %6608 = vmatpush.msra.mxu0 0.0
  %6609 = vmatpush.msra.mxu0 0.0
  %6610 = vmatpush.msra.mxu0 0.0
  %6611 = vmatpush.msra.mxu0 0.0
  %6612 = vmatpush.msra.mxu0 0.0
  %6613 = vmatpush.msra.mxu0 0.0
  %6614 = vmatpush.msra.mxu0 0.0
  %6615 = vmatpush.msra.mxu0 0.0
  %6616 = vmatpush.msra.mxu0 0.0
  %6617 = vmatpush.msra.mxu0 0.0
  %6618 = vmatpush.msra.mxu0 0.0
  %6619 = vmatpush.msra.mxu0 0.0
  %6620 = vmatpush.msra.mxu0 %v6581
  %6621 = vmatpush.msra.mxu0 %v6580
  %6622 = vmatpush.msra.mxu0 %v6579
  %6623 = vmatpush.msra.mxu0 %v6578
  %6624 = vmatmul.f32.gmra.mxu0 %v6606
  %v6625 = vpop.f32.mrf.mxu0
  %v6626 = vadd.f32 0.0, %v6625
  %6627 = vdwg.mxu0
  %v6628 = vadd.f32 %v6530, %v6626
  %6629 = vmatpush.msra.mxu0 0.0
  %6630 = vmatpush.msra.mxu0 0.0
  %6631 = vmatpush.msra.mxu0 0.0
  %6632 = vmatpush.msra.mxu0 0.0
  %6633 = vmatpush.msra.mxu0 0.0
  %6634 = vmatpush.msra.mxu0 0.0
  %6635 = vmatpush.msra.mxu0 0.0
  %6636 = vmatpush.msra.mxu0 0.0
  %6637 = vmatpush.msra.mxu0 0.0
  %6638 = vmatpush.msra.mxu0 0.0
  %6639 = vmatpush.msra.mxu0 0.0
  %6640 = vmatpush.msra.mxu0 0.0
  %6641 = vmatpush.msra.mxu0 0.0
  %6642 = vmatpush.msra.mxu0 0.0
  %6643 = vmatpush.msra.mxu0 0.0
  %6644 = vmatpush.msra.mxu0 %v6312
  %6645 = vmatmul.f32.gmra.mxu0 %v6583
  %v6646 = vpop.f32.mrf.mxu0
  %v6647 = vadd.f32 0.0, %v6646
  %6648 = vdwg.mxu0
  %v6650 = vsel %vm6364, %v6647, 0
  %6652 = vmatpush.msra.mxu0 0.0
  %6653 = vmatpush.msra.mxu0 0.0
  %6654 = vmatpush.msra.mxu0 0.0
  %6655 = vmatpush.msra.mxu0 0.0
  %6656 = vmatpush.msra.mxu0 0.0
  %6657 = vmatpush.msra.mxu0 0.0
  %6658 = vmatpush.msra.mxu0 0.0
  %6659 = vmatpush.msra.mxu0 0.0
  %6660 = vmatpush.msra.mxu0 0.0
  %6661 = vmatpush.msra.mxu0 0.0
  %6662 = vmatpush.msra.mxu0 0.0
  %6663 = vmatpush.msra.mxu0 0.0
  %6664 = vmatpush.msra.mxu0 %v6581
  %6665 = vmatpush.msra.mxu0 %v6580
  %6666 = vmatpush.msra.mxu0 %v6579
  %6667 = vmatpush.msra.mxu0 %v6578
  %6668 = vmatmul.f32.gmra.mxu0 %v6650
  %v6669 = vpop.f32.mrf.mxu0
  %v6670 = vadd.f32 0.0, %v6669
  %6671 = vdwg.mxu0
  %v6672 = vadd.f32 %v6574, %v6670
  %v6674 = vrot.slane %v6672, 7
  %vm6676 = vcmask 1040384
  %v6677 = vsel %vm6676, %v6628, %v6674
  %v6678 = vsub.f32 0.0, %v6677
  %v6679 = vmul.f32 %v6678, 1.442695
  %v6680 = vpow.pop %v6679
  %v6681 = vadd.f32 %v6680, 1.0
  %v6682 = vrcp.pop %v6681
  %vm6683 = vcmask 1024
  %6684 = vst.msk [vmem:[%s18] sm:$0x3] %vm6683, %v6682
  // Predicated region
  $region74: #{mi_discriminator_forward.1} parent=0 // pred_check
    _
  $region75: #{mi_discriminator_forward.1} parent=0 // pred_check_branch
    %6686 = sbr.rel (0) target = $region77
  $region76: #{mi_discriminator_forward.1} parent=0 // pred_region
    _
  $region77: #{mi_discriminator_forward.1} parent=0 // pred_fallthru
    _
  // Predicated region
  $region78: #{mi_discriminator_forward.1} parent=0 // pred_check
    _
  $region79: #{mi_discriminator_forward.1} parent=0 // pred_check_branch
    %6688 = sbr.rel (0) target = $region81
  $region80: #{mi_discriminator_forward.1} parent=0 // pred_region
    _
  $region81: #{mi_discriminator_forward.1} parent=0 // pred_fallthru
    _

</llo_original>
